<compile_context>
chip_gen: v6e
topology: v6e:2x2x1
jax: 0.10.0
libtpu: 0.0.40
codegen_flags: <defaults>
</compile_context>

<pallas_src>
import numpy as np
import jax
import jax.numpy as jnp
from jax import lax
from jax.experimental import pallas as pl
from jax.experimental.pallas import tpu as pltpu


# ---------------------------------------------------------------------------
# Problem constants (Conv2DBlock on a small input)
# ---------------------------------------------------------------------------
N_BATCH = 2
H = W = 16                # spatial size
HW = H * W                # 256 flattened output positions
CIN = 3                   # module input channels
CIN_P = 8                 # input channels zero-padded to a sublane-friendly size
CMID = 16                 # hidden channels
COUT = 16                 # output channels
KSZ = 3                   # 3x3 convs, stride=1, padding=1
KK = KSZ * KSZ
PAD = 32                  # zero rows each side of the flattened activation (>= W+1)
EXT = HW + 2 * PAD        # 320 extended flat length


# ---------------------------------------------------------------------------
# Fused kernel: conv3x3+bias+ReLU  ->  conv3x3+bias+ReLU   (one batch element)
# ---------------------------------------------------------------------------
def _conv2d_block_kernel(x_ref, w1_ref, b1_ref, w2_ref, b2_ref, o_ref, hext_ref):
    # Only the horizontal wrap needs masking (vertical OOB taps land in the
    # zero-extension rows because PAD >= W+1):
    #   dx == 0 reads column w-1  -> invalid where w == 0
    #   dx == 2 reads column w+1  -> invalid where w == W-1
    ww = lax.broadcasted_iota(jnp.int32, (HW, 1), 0) % W
    col_valid = (ww >= 1, None, ww <= W - 2)          # indexed by dx

    def conv3x3_relu(load_tap, w_ref, b_ref, cout):
        # out[r] = relu(b + sum_{dy,dx} x_flat[r + (dy-1)*W + (dx-1)] @ Wt[dy,dx])
        acc = jnp.zeros((HW, cout), jnp.float32)
        for dy in range(KSZ):
            for dx in range(KSZ):
                t = dy * KSZ + dx
                shift = (dy - 1) * W + (dx - 1)
                a = load_tap(PAD + shift)              # [HW, cin] f32
                valid = col_valid[dx]
                if valid is not None:
                    a = jnp.where(valid, a, jnp.zeros_like(a))
                acc = acc + jnp.dot(a.astype(jnp.bfloat16), w_ref[t],
                                    preferred_element_type=jnp.float32)
        return jnp.maximum(acc + b_ref[...], 0.0)      # fused bias + ReLU

    # conv1: input was zero-extended & flattened by the wrapper (no im2col).
    hidden = conv3x3_relu(lambda s: x_ref[0, s:s + HW, :], w1_ref, b1_ref, CMID)

    # Stage the hidden activation in a zero-extended VMEM scratch; it never
    # goes back to HBM.  Only the two pad regions are zeroed.
    zpad = jnp.zeros((PAD, CMID), jnp.float32)
    hext_ref[0:PAD, :] = zpad
    hext_ref[PAD + HW:EXT, :] = zpad
    hext_ref[PAD:PAD + HW, :] = hidden

    # conv2 on the VMEM-resident hidden activation.
    out = conv3x3_relu(lambda s: hext_ref[s:s + HW, :], w2_ref, b2_ref, COUT)
    o_ref[0] = out.astype(o_ref.dtype)


# ---------------------------------------------------------------------------
# Wrapper
# ---------------------------------------------------------------------------
def conv2d_block_forward(params, x_nchw):
    n = x_nchw.shape[0]
    # NCHW -> NHWC -> flatten (h, w) -> zero-extend rows, zero-pad channels.
    x = jnp.transpose(x_nchw, (0, 2, 3, 1)).reshape(n, HW, CIN)
    x = jnp.pad(x, ((0, 0), (PAD, PAD), (0, CIN_P - CIN)))

    flops = 2 * n * HW * KK * (CIN * CMID + CMID * COUT)
    bytes_accessed = (x.size * 4 + params["w1"].size * 2 + params["w2"].size * 2
                      + params["b1"].size * 4 + params["b2"].size * 4
                      + n * HW * COUT * 4)

    out = pl.pallas_call(
        _conv2d_block_kernel,
        out_shape=jax.ShapeDtypeStruct((n, HW, COUT), jnp.float32),
        grid_spec=pltpu.PrefetchScalarGridSpec(
            num_scalar_prefetch=0,
            grid=(n,),
            in_specs=[
                pl.BlockSpec((1, EXT, CIN_P), lambda i: (i, 0, 0)),    # activations
                pl.BlockSpec((KK, CIN_P, CMID), lambda i: (0, 0, 0)),  # w1 (bf16)
                pl.BlockSpec((1, CMID), lambda i: (0, 0)),             # b1
                pl.BlockSpec((KK, CMID, COUT), lambda i: (0, 0, 0)),   # w2 (bf16)
                pl.BlockSpec((1, COUT), lambda i: (0, 0)),             # b2
            ],
            out_specs=pl.BlockSpec((1, HW, COUT), lambda i: (i, 0, 0)),
            scratch_shapes=[pltpu.VMEM((EXT, CMID), jnp.float32)],
        ),
        compiler_params=pltpu.CompilerParams(
            dimension_semantics=("parallel",),          # 2 blocks -> both v7x cores
            vmem_limit_bytes=32 * 1024 * 1024,
        ),
        cost_estimate=pl.CostEstimate(flops=flops, transcendentals=0,
                                      bytes_accessed=bytes_accessed),
    )(x, params["w1"], params["b1"], params["w2"], params["b2"])

    out = out.reshape(n, H, W, COUT)
    return jnp.transpose(out, (0, 3, 1, 2))             # back to NCHW (PyTorch layout)


# ---------------------------------------------------------------------------
# Deterministic parameters (random init, same structure as the nn.Module)
# ---------------------------------------------------------------------------
def init_params(key):
    k1, k2, k3, k4 = jax.random.split(key, 4)
    # Conv weights in [tap, cin, cout] layout (tap = dy*3 + dx), Kaiming-style.
    w1 = jax.random.normal(k1, (KK, CIN, CMID), jnp.float32) * np.sqrt(2.0 / (KK * CIN))
    w2 = jax.random.normal(k2, (KK, CMID, COUT), jnp.float32) * np.sqrt(2.0 / (KK * CMID))
    b1 = 0.05 * jax.random.normal(k3, (1, CMID), jnp.float32)
    b2 = 0.05 * jax.random.normal(k4, (1, COUT), jnp.float32)
    return {
        # kernel-side copies: channel-padded, bf16, laid out once at init
        "w1": jnp.pad(w1, ((0, 0), (0, CIN_P - CIN), (0, 0))).astype(jnp.bfloat16),
        "w2": w2.astype(jnp.bfloat16),
        "b1": b1,
        "b2": b2,
        # f32 originals for the pure-JAX reference
        "w1_f32": w1, "w2_f32": w2,
    }


def ref_forward(params, x_nchw):
    dn = ("NHWC", "HWIO", "NHWC")
    x = jnp.transpose(x_nchw, (0, 2, 3, 1))
    y = lax.conv_general_dilated(x, params["w1_f32"].reshape(KSZ, KSZ, CIN, CMID),
                                 (1, 1), "SAME", dimension_numbers=dn,
                                 precision=lax.Precision.HIGHEST)
    y = jnp.maximum(y + params["b1"].reshape(1, 1, 1, CMID), 0.0)
    y = lax.conv_general_dilated(y, params["w2_f32"].reshape(KSZ, KSZ, CMID, COUT),
                                 (1, 1), "SAME", dimension_numbers=dn,
                                 precision=lax.Precision.HIGHEST)
    y = jnp.maximum(y + params["b2"].reshape(1, 1, 1, COUT), 0.0)
    return jnp.transpose(y, (0, 3, 1, 2))


if __name__ == "__main__":
    key = jax.random.PRNGKey(0)
    kp, kx = jax.random.split(key)
    params = init_params(kp)

    # PyTorch-style NCHW input: batch=2, channels=3, 16x16 spatial.
    x = jax.random.normal(kx, (N_BATCH, CIN, H, W), jnp.float32)

    fwd = jax.jit(conv2d_block_forward)
    out = jax.block_until_ready(fwd(params, x))

    assert out.shape == (N_BATCH, COUT, H, W), out.shape
    assert bool(jnp.all(jnp.isfinite(out)))

    # Pure-JAX reference check (bf16 MXU operands -> loose tolerance).
    ref = jax.jit(ref_forward)(params, x)
    np.testing.assert_allclose(np.asarray(out), np.asarray(ref), rtol=0.1, atol=0.1)

    print("KERNEL_OK")
</pallas_src>

<mosaic_0001>
module attributes {stable_mosaic.version = 11 : i64} {
  func.func @_conv2d_block_kernel(%arg0: i32, %arg1: memref<1x320x8xf32, #tpu.memory_space<vmem>>, %arg2: memref<9x8x16xbf16, #tpu.memory_space<vmem>>, %arg3: memref<1x16xf32, #tpu.memory_space<vmem>>, %arg4: memref<9x16x16xbf16, #tpu.memory_space<vmem>>, %arg5: memref<1x16xf32, #tpu.memory_space<vmem>>, %arg6: memref<1x256x16xf32, #tpu.memory_space<vmem>>, %arg7: memref<320x16xf32, #tpu.memory_space<vmem>>) attributes {dimension_semantics = [#tpu.dimension_semantics<parallel>], iteration_bounds = array<i64: 2>, scalar_prefetch = 0 : i64, scratch_operands = 1 : i64, tpu.core_type = #tpu.core_type<tc>, window_params = [{transform_indices = @transform_0, window_bounds = array<i64: 1, 320, 8>}, {pipeline_mode = #tpu.pipeline_mode<synchronous>, transform_indices = @transform_1, window_bounds = array<i64: 9, 8, 16>}, {pipeline_mode = #tpu.pipeline_mode<synchronous>, transform_indices = @transform_2, window_bounds = array<i64: 1, 16>}, {pipeline_mode = #tpu.pipeline_mode<synchronous>, transform_indices = @transform_3, window_bounds = array<i64: 9, 16, 16>}, {pipeline_mode = #tpu.pipeline_mode<synchronous>, transform_indices = @transform_4, window_bounds = array<i64: 1, 16>}, {transform_indices = @transform_5, window_bounds = array<i64: 1, 256, 16>}]} {
    %0 = tpu.iota {dimensions = array<i32: 0>} : vector<256x1xi32>
    %c16_i32 = arith.constant 16 : i32
    %c0_i32 = arith.constant 0 : i32
    %1 = arith.cmpi eq, %c16_i32, %c0_i32 : i32
    %c1_i32 = arith.constant 1 : i32
    %2 = arith.select %1, %c1_i32, %c16_i32 : i32
    %3 = vector.broadcast %2 : i32 to vector<256x1xi32>
    %4 = arith.remsi %0, %3 : vector<256x1xi32>
    %c0_i32_0 = arith.constant 0 : i32
    %5 = vector.broadcast %c0_i32_0 : i32 to vector<256x1xi32>
    %6 = arith.cmpi ne, %4, %5 : vector<256x1xi32>
    %c0_i32_1 = arith.constant 0 : i32
    %7 = vector.broadcast %c0_i32_1 : i32 to vector<256x1xi32>
    %8 = arith.cmpi slt, %4, %7 : vector<256x1xi32>
    %c0_i32_2 = arith.constant 0 : i32
    %9 = arith.cmpi slt, %2, %c0_i32_2 : i32
    %10 = vector.broadcast %9 : i1 to vector<256x1xi1>
    %11 = vector.broadcast %10 : vector<256x1xi1> to vector<256x1xi1>
    %12 = arith.xori %8, %11 : vector<256x1xi1>
    %13 = arith.andi %12, %6 : vector<256x1xi1>
    %14 = vector.broadcast %2 : i32 to vector<256x1xi32>
    %15 = arith.addi %4, %14 : vector<256x1xi32>
    %16 = arith.select %13, %15, %4 : vector<256x1xi1>, vector<256x1xi32>
    %c1_i32_3 = arith.constant 1 : i32
    %17 = vector.broadcast %c1_i32_3 : i32 to vector<256x1xi32>
    %18 = arith.cmpi sge, %16, %17 : vector<256x1xi32>
    %c14_i32 = arith.constant 14 : i32
    %19 = vector.broadcast %c14_i32 : i32 to vector<256x1xi32>
    %20 = arith.cmpi sle, %16, %19 : vector<256x1xi32>
    %cst = arith.constant 0.000000e+00 : f32
    %21 = vector.broadcast %cst : f32 to vector<256x16xf32>
    %c0 = arith.constant 0 : index
    %c15 = arith.constant 15 : index
    %c0_4 = arith.constant 0 : index
    %22 = vector.load %arg1[%c0, %c15, %c0_4] : memref<1x320x8xf32, #tpu.memory_space<vmem>>, vector<1x256x8xf32>
    %23 = vector.shape_cast %22 : vector<1x256x8xf32> to vector<256x8xf32>
    %cst_5 = arith.constant 0.000000e+00 : f32
    %24 = vector.broadcast %cst_5 : f32 to vector<256x8xf32>
    %25 = vector.shape_cast %18 : vector<256x1xi1> to vector<256x1xi1>
    %26 = vector.broadcast %25 : vector<256x1xi1> to vector<256x8xi1>
    %27 = arith.select %26, %23, %24 : vector<256x8xi1>, vector<256x8xf32>
    %28 = arith.truncf %27 : vector<256x8xf32> to vector<256x8xbf16>
    %c0_6 = arith.constant 0 : index
    %c0_7 = arith.constant 0 : index
    %c0_8 = arith.constant 0 : index
    %29 = vector.load %arg2[%c0_6, %c0_7, %c0_8] : memref<9x8x16xbf16, #tpu.memory_space<vmem>>, vector<1x8x16xbf16>
    %30 = vector.shape_cast %29 : vector<1x8x16xbf16> to vector<8x16xbf16>
    %cst_9 = arith.constant dense<0.000000e+00> : vector<256x16xf32>
    %31 = tpu.matmul %28, %30, %cst_9 {dimension_numbers = #tpu.dot_dimension_numbers<[1], [0], [0], [1], [0, 0, 1, 1], [], []>} : vector<256x8xbf16>, vector<8x16xbf16>, vector<256x16xf32> -> vector<256x16xf32>
    %32 = arith.addf %21, %31 : vector<256x16xf32>
    %c0_10 = arith.constant 0 : index
    %c16 = arith.constant 16 : index
    %c0_11 = arith.constant 0 : index
    %33 = vector.load %arg1[%c0_10, %c16, %c0_11] : memref<1x320x8xf32, #tpu.memory_space<vmem>>, vector<1x256x8xf32>
    %34 = vector.shape_cast %33 : vector<1x256x8xf32> to vector<256x8xf32>
    %35 = arith.truncf %34 : vector<256x8xf32> to vector<256x8xbf16>
    %c1 = arith.constant 1 : index
    %c0_12 = arith.constant 0 : index
    %c0_13 = arith.constant 0 : index
    %36 = vector.load %arg2[%c1, %c0_12, %c0_13] : memref<9x8x16xbf16, #tpu.memory_space<vmem>>, vector<1x8x16xbf16>
    %37 = vector.shape_cast %36 : vector<1x8x16xbf16> to vector<8x16xbf16>
    %cst_14 = arith.constant dense<0.000000e+00> : vector<256x16xf32>
    %38 = tpu.matmul %35, %37, %cst_14 {dimension_numbers = #tpu.dot_dimension_numbers<[1], [0], [0], [1], [0, 0, 1, 1], [], []>} : vector<256x8xbf16>, vector<8x16xbf16>, vector<256x16xf32> -> vector<256x16xf32>
    %39 = arith.addf %32, %38 : vector<256x16xf32>
    %c0_15 = arith.constant 0 : index
    %c17 = arith.constant 17 : index
    %c0_16 = arith.constant 0 : index
    %40 = vector.load %arg1[%c0_15, %c17, %c0_16] : memref<1x320x8xf32, #tpu.memory_space<vmem>>, vector<1x256x8xf32>
    %41 = vector.shape_cast %40 : vector<1x256x8xf32> to vector<256x8xf32>
    %cst_17 = arith.constant 0.000000e+00 : f32
    %42 = vector.broadcast %cst_17 : f32 to vector<256x8xf32>
    %43 = vector.shape_cast %20 : vector<256x1xi1> to vector<256x1xi1>
    %44 = vector.broadcast %43 : vector<256x1xi1> to vector<256x8xi1>
    %45 = arith.select %44, %41, %42 : vector<256x8xi1>, vector<256x8xf32>
    %46 = arith.truncf %45 : vector<256x8xf32> to vector<256x8xbf16>
    %c2 = arith.constant 2 : index
    %c0_18 = arith.constant 0 : index
    %c0_19 = arith.constant 0 : index
    %47 = vector.load %arg2[%c2, %c0_18, %c0_19] : memref<9x8x16xbf16, #tpu.memory_space<vmem>>, vector<1x8x16xbf16>
    %48 = vector.shape_cast %47 : vector<1x8x16xbf16> to vector<8x16xbf16>
    %cst_20 = arith.constant dense<0.000000e+00> : vector<256x16xf32>
    %49 = tpu.matmul %46, %48, %cst_20 {dimension_numbers = #tpu.dot_dimension_numbers<[1], [0], [0], [1], [0, 0, 1, 1], [], []>} : vector<256x8xbf16>, vector<8x16xbf16>, vector<256x16xf32> -> vector<256x16xf32>
    %50 = arith.addf %39, %49 : vector<256x16xf32>
    %c0_21 = arith.constant 0 : index
    %c31 = arith.constant 31 : index
    %c0_22 = arith.constant 0 : index
    %51 = vector.load %arg1[%c0_21, %c31, %c0_22] : memref<1x320x8xf32, #tpu.memory_space<vmem>>, vector<1x256x8xf32>
    %52 = vector.shape_cast %51 : vector<1x256x8xf32> to vector<256x8xf32>
    %cst_23 = arith.constant 0.000000e+00 : f32
    %53 = vector.broadcast %cst_23 : f32 to vector<256x8xf32>
    %54 = vector.shape_cast %18 : vector<256x1xi1> to vector<256x1xi1>
    %55 = vector.broadcast %54 : vector<256x1xi1> to vector<256x8xi1>
    %56 = arith.select %55, %52, %53 : vector<256x8xi1>, vector<256x8xf32>
    %57 = arith.truncf %56 : vector<256x8xf32> to vector<256x8xbf16>
    %c3 = arith.constant 3 : index
    %c0_24 = arith.constant 0 : index
    %c0_25 = arith.constant 0 : index
    %58 = vector.load %arg2[%c3, %c0_24, %c0_25] : memref<9x8x16xbf16, #tpu.memory_space<vmem>>, vector<1x8x16xbf16>
    %59 = vector.shape_cast %58 : vector<1x8x16xbf16> to vector<8x16xbf16>
    %cst_26 = arith.constant dense<0.000000e+00> : vector<256x16xf32>
    %60 = tpu.matmul %57, %59, %cst_26 {dimension_numbers = #tpu.dot_dimension_numbers<[1], [0], [0], [1], [0, 0, 1, 1], [], []>} : vector<256x8xbf16>, vector<8x16xbf16>, vector<256x16xf32> -> vector<256x16xf32>
    %61 = arith.addf %50, %60 : vector<256x16xf32>
    %c0_27 = arith.constant 0 : index
    %c32 = arith.constant 32 : index
    %c0_28 = arith.constant 0 : index
    %62 = vector.load %arg1[%c0_27, %c32, %c0_28] : memref<1x320x8xf32, #tpu.memory_space<vmem>>, vector<1x256x8xf32>
    %63 = vector.shape_cast %62 : vector<1x256x8xf32> to vector<256x8xf32>
    %64 = arith.truncf %63 : vector<256x8xf32> to vector<256x8xbf16>
    %c4 = arith.constant 4 : index
    %c0_29 = arith.constant 0 : index
    %c0_30 = arith.constant 0 : index
    %65 = vector.load %arg2[%c4, %c0_29, %c0_30] : memref<9x8x16xbf16, #tpu.memory_space<vmem>>, vector<1x8x16xbf16>
    %66 = vector.shape_cast %65 : vector<1x8x16xbf16> to vector<8x16xbf16>
    %cst_31 = arith.constant dense<0.000000e+00> : vector<256x16xf32>
    %67 = tpu.matmul %64, %66, %cst_31 {dimension_numbers = #tpu.dot_dimension_numbers<[1], [0], [0], [1], [0, 0, 1, 1], [], []>} : vector<256x8xbf16>, vector<8x16xbf16>, vector<256x16xf32> -> vector<256x16xf32>
    %68 = arith.addf %61, %67 : vector<256x16xf32>
    %c0_32 = arith.constant 0 : index
    %c33 = arith.constant 33 : index
    %c0_33 = arith.constant 0 : index
    %69 = vector.load %arg1[%c0_32, %c33, %c0_33] : memref<1x320x8xf32, #tpu.memory_space<vmem>>, vector<1x256x8xf32>
    %70 = vector.shape_cast %69 : vector<1x256x8xf32> to vector<256x8xf32>
    %cst_34 = arith.constant 0.000000e+00 : f32
    %71 = vector.broadcast %cst_34 : f32 to vector<256x8xf32>
    %72 = vector.shape_cast %20 : vector<256x1xi1> to vector<256x1xi1>
    %73 = vector.broadcast %72 : vector<256x1xi1> to vector<256x8xi1>
    %74 = arith.select %73, %70, %71 : vector<256x8xi1>, vector<256x8xf32>
    %75 = arith.truncf %74 : vector<256x8xf32> to vector<256x8xbf16>
    %c5 = arith.constant 5 : index
    %c0_35 = arith.constant 0 : index
    %c0_36 = arith.constant 0 : index
    %76 = vector.load %arg2[%c5, %c0_35, %c0_36] : memref<9x8x16xbf16, #tpu.memory_space<vmem>>, vector<1x8x16xbf16>
    %77 = vector.shape_cast %76 : vector<1x8x16xbf16> to vector<8x16xbf16>
    %cst_37 = arith.constant dense<0.000000e+00> : vector<256x16xf32>
    %78 = tpu.matmul %75, %77, %cst_37 {dimension_numbers = #tpu.dot_dimension_numbers<[1], [0], [0], [1], [0, 0, 1, 1], [], []>} : vector<256x8xbf16>, vector<8x16xbf16>, vector<256x16xf32> -> vector<256x16xf32>
    %79 = arith.addf %68, %78 : vector<256x16xf32>
    %c0_38 = arith.constant 0 : index
    %c47 = arith.constant 47 : index
    %c0_39 = arith.constant 0 : index
    %80 = vector.load %arg1[%c0_38, %c47, %c0_39] : memref<1x320x8xf32, #tpu.memory_space<vmem>>, vector<1x256x8xf32>
    %81 = vector.shape_cast %80 : vector<1x256x8xf32> to vector<256x8xf32>
    %cst_40 = arith.constant 0.000000e+00 : f32
    %82 = vector.broadcast %cst_40 : f32 to vector<256x8xf32>
    %83 = vector.shape_cast %18 : vector<256x1xi1> to vector<256x1xi1>
    %84 = vector.broadcast %83 : vector<256x1xi1> to vector<256x8xi1>
    %85 = arith.select %84, %81, %82 : vector<256x8xi1>, vector<256x8xf32>
    %86 = arith.truncf %85 : vector<256x8xf32> to vector<256x8xbf16>
    %c6 = arith.constant 6 : index
    %c0_41 = arith.constant 0 : index
    %c0_42 = arith.constant 0 : index
    %87 = vector.load %arg2[%c6, %c0_41, %c0_42] : memref<9x8x16xbf16, #tpu.memory_space<vmem>>, vector<1x8x16xbf16>
    %88 = vector.shape_cast %87 : vector<1x8x16xbf16> to vector<8x16xbf16>
    %cst_43 = arith.constant dense<0.000000e+00> : vector<256x16xf32>
    %89 = tpu.matmul %86, %88, %cst_43 {dimension_numbers = #tpu.dot_dimension_numbers<[1], [0], [0], [1], [0, 0, 1, 1], [], []>} : vector<256x8xbf16>, vector<8x16xbf16>, vector<256x16xf32> -> vector<256x16xf32>
    %90 = arith.addf %79, %89 : vector<256x16xf32>
    %c0_44 = arith.constant 0 : index
    %c48 = arith.constant 48 : index
    %c0_45 = arith.constant 0 : index
    %91 = vector.load %arg1[%c0_44, %c48, %c0_45] : memref<1x320x8xf32, #tpu.memory_space<vmem>>, vector<1x256x8xf32>
    %92 = vector.shape_cast %91 : vector<1x256x8xf32> to vector<256x8xf32>
    %93 = arith.truncf %92 : vector<256x8xf32> to vector<256x8xbf16>
    %c7 = arith.constant 7 : index
    %c0_46 = arith.constant 0 : index
    %c0_47 = arith.constant 0 : index
    %94 = vector.load %arg2[%c7, %c0_46, %c0_47] : memref<9x8x16xbf16, #tpu.memory_space<vmem>>, vector<1x8x16xbf16>
    %95 = vector.shape_cast %94 : vector<1x8x16xbf16> to vector<8x16xbf16>
    %cst_48 = arith.constant dense<0.000000e+00> : vector<256x16xf32>
    %96 = tpu.matmul %93, %95, %cst_48 {dimension_numbers = #tpu.dot_dimension_numbers<[1], [0], [0], [1], [0, 0, 1, 1], [], []>} : vector<256x8xbf16>, vector<8x16xbf16>, vector<256x16xf32> -> vector<256x16xf32>
    %97 = arith.addf %90, %96 : vector<256x16xf32>
    %c0_49 = arith.constant 0 : index
    %c49 = arith.constant 49 : index
    %c0_50 = arith.constant 0 : index
    %98 = vector.load %arg1[%c0_49, %c49, %c0_50] : memref<1x320x8xf32, #tpu.memory_space<vmem>>, vector<1x256x8xf32>
    %99 = vector.shape_cast %98 : vector<1x256x8xf32> to vector<256x8xf32>
    %cst_51 = arith.constant 0.000000e+00 : f32
    %100 = vector.broadcast %cst_51 : f32 to vector<256x8xf32>
    %101 = vector.shape_cast %20 : vector<256x1xi1> to vector<256x1xi1>
    %102 = vector.broadcast %101 : vector<256x1xi1> to vector<256x8xi1>
    %103 = arith.select %102, %99, %100 : vector<256x8xi1>, vector<256x8xf32>
    %104 = arith.truncf %103 : vector<256x8xf32> to vector<256x8xbf16>
    %c8 = arith.constant 8 : index
    %c0_52 = arith.constant 0 : index
    %c0_53 = arith.constant 0 : index
    %105 = vector.load %arg2[%c8, %c0_52, %c0_53] : memref<9x8x16xbf16, #tpu.memory_space<vmem>>, vector<1x8x16xbf16>
    %106 = vector.shape_cast %105 : vector<1x8x16xbf16> to vector<8x16xbf16>
    %cst_54 = arith.constant dense<0.000000e+00> : vector<256x16xf32>
    %107 = tpu.matmul %104, %106, %cst_54 {dimension_numbers = #tpu.dot_dimension_numbers<[1], [0], [0], [1], [0, 0, 1, 1], [], []>} : vector<256x8xbf16>, vector<8x16xbf16>, vector<256x16xf32> -> vector<256x16xf32>
    %108 = arith.addf %97, %107 : vector<256x16xf32>
    %c0_55 = arith.constant 0 : index
    %c0_56 = arith.constant 0 : index
    %109 = vector.load %arg3[%c0_55, %c0_56] : memref<1x16xf32, #tpu.memory_space<vmem>>, vector<1x16xf32>
    %110 = vector.broadcast %109 : vector<1x16xf32> to vector<256x16xf32>
    %111 = arith.addf %108, %110 : vector<256x16xf32>
    %cst_57 = arith.constant 0.000000e+00 : f32
    %112 = vector.broadcast %cst_57 : f32 to vector<256x16xf32>
    %113 = arith.maximumf %111, %112 : vector<256x16xf32>
    %cst_58 = arith.constant 0.000000e+00 : f32
    %114 = vector.broadcast %cst_58 : f32 to vector<32x16xf32>
    %c0_59 = arith.constant 0 : index
    %c0_60 = arith.constant 0 : index
    %115 = vector.load %arg7[%c0_59, %c0_60] : memref<320x16xf32, #tpu.memory_space<vmem>>, vector<32x16xf32>
    tpu.vector_store %arg7[%c0_59, %c0_60], %114 {strides = array<i32>} : memref<320x16xf32, #tpu.memory_space<vmem>>, vector<32x16xf32>,
    %c288 = arith.constant 288 : index
    %c0_61 = arith.constant 0 : index
    %116 = vector.load %arg7[%c288, %c0_61] : memref<320x16xf32, #tpu.memory_space<vmem>>, vector<32x16xf32>
    tpu.vector_store %arg7[%c288, %c0_61], %114 {strides = array<i32>} : memref<320x16xf32, #tpu.memory_space<vmem>>, vector<32x16xf32>,
    %c32_62 = arith.constant 32 : index
    %c0_63 = arith.constant 0 : index
    %117 = vector.load %arg7[%c32_62, %c0_63] : memref<320x16xf32, #tpu.memory_space<vmem>>, vector<256x16xf32>
    tpu.vector_store %arg7[%c32_62, %c0_63], %113 {strides = array<i32>} : memref<320x16xf32, #tpu.memory_space<vmem>>, vector<256x16xf32>,
    %cst_64 = arith.constant 0.000000e+00 : f32
    %118 = vector.broadcast %cst_64 : f32 to vector<256x16xf32>
    %c15_65 = arith.constant 15 : index
    %c0_66 = arith.constant 0 : index
    %119 = vector.load %arg7[%c15_65, %c0_66] : memref<320x16xf32, #tpu.memory_space<vmem>>, vector<256x16xf32>
    %cst_67 = arith.constant 0.000000e+00 : f32
    %120 = vector.broadcast %cst_67 : f32 to vector<256x16xf32>
    %121 = vector.shape_cast %18 : vector<256x1xi1> to vector<256x1xi1>
    %122 = vector.broadcast %121 : vector<256x1xi1> to vector<256x16xi1>
    %123 = arith.select %122, %119, %120 : vector<256x16xi1>, vector<256x16xf32>
    %124 = arith.truncf %123 : vector<256x16xf32> to vector<256x16xbf16>
    %c0_68 = arith.constant 0 : index
    %c0_69 = arith.constant 0 : index
    %c0_70 = arith.constant 0 : index
    %125 = vector.load %arg4[%c0_68, %c0_69, %c0_70] : memref<9x16x16xbf16, #tpu.memory_space<vmem>>, vector<1x16x16xbf16>
    %126 = vector.shape_cast %125 : vector<1x16x16xbf16> to vector<16x16xbf16>
    %cst_71 = arith.constant dense<0.000000e+00> : vector<256x16xf32>
    %127 = tpu.matmul %124, %126, %cst_71 {dimension_numbers = #tpu.dot_dimension_numbers<[1], [0], [0], [1], [0, 0, 1, 1], [], []>} : vector<256x16xbf16>, vector<16x16xbf16>, vector<256x16xf32> -> vector<256x16xf32>
    %128 = arith.addf %118, %127 : vector<256x16xf32>
    %c16_72 = arith.constant 16 : index
    %c0_73 = arith.constant 0 : index
    %129 = vector.load %arg7[%c16_72, %c0_73] : memref<320x16xf32, #tpu.memory_space<vmem>>, vector<256x16xf32>
    %130 = arith.truncf %129 : vector<256x16xf32> to vector<256x16xbf16>
    %c1_74 = arith.constant 1 : index
    %c0_75 = arith.constant 0 : index
    %c0_76 = arith.constant 0 : index
    %131 = vector.load %arg4[%c1_74, %c0_75, %c0_76] : memref<9x16x16xbf16, #tpu.memory_space<vmem>>, vector<1x16x16xbf16>
    %132 = vector.shape_cast %131 : vector<1x16x16xbf16> to vector<16x16xbf16>
    %cst_77 = arith.constant dense<0.000000e+00> : vector<256x16xf32>
    %133 = tpu.matmul %130, %132, %cst_77 {dimension_numbers = #tpu.dot_dimension_numbers<[1], [0], [0], [1], [0, 0, 1, 1], [], []>} : vector<256x16xbf16>, vector<16x16xbf16>, vector<256x16xf32> -> vector<256x16xf32>
    %134 = arith.addf %128, %133 : vector<256x16xf32>
    %c17_78 = arith.constant 17 : index
    %c0_79 = arith.constant 0 : index
    %135 = vector.load %arg7[%c17_78, %c0_79] : memref<320x16xf32, #tpu.memory_space<vmem>>, vector<256x16xf32>
    %cst_80 = arith.constant 0.000000e+00 : f32
    %136 = vector.broadcast %cst_80 : f32 to vector<256x16xf32>
    %137 = vector.shape_cast %20 : vector<256x1xi1> to vector<256x1xi1>
    %138 = vector.broadcast %137 : vector<256x1xi1> to vector<256x16xi1>
    %139 = arith.select %138, %135, %136 : vector<256x16xi1>, vector<256x16xf32>
    %140 = arith.truncf %139 : vector<256x16xf32> to vector<256x16xbf16>
    %c2_81 = arith.constant 2 : index
    %c0_82 = arith.constant 0 : index
    %c0_83 = arith.constant 0 : index
    %141 = vector.load %arg4[%c2_81, %c0_82, %c0_83] : memref<9x16x16xbf16, #tpu.memory_space<vmem>>, vector<1x16x16xbf16>
    %142 = vector.shape_cast %141 : vector<1x16x16xbf16> to vector<16x16xbf16>
    %cst_84 = arith.constant dense<0.000000e+00> : vector<256x16xf32>
    %143 = tpu.matmul %140, %142, %cst_84 {dimension_numbers = #tpu.dot_dimension_numbers<[1], [0], [0], [1], [0, 0, 1, 1], [], []>} : vector<256x16xbf16>, vector<16x16xbf16>, vector<256x16xf32> -> vector<256x16xf32>
    %144 = arith.addf %134, %143 : vector<256x16xf32>
    %c31_85 = arith.constant 31 : index
    %c0_86 = arith.constant 0 : index
    %145 = vector.load %arg7[%c31_85, %c0_86] : memref<320x16xf32, #tpu.memory_space<vmem>>, vector<256x16xf32>
    %cst_87 = arith.constant 0.000000e+00 : f32
    %146 = vector.broadcast %cst_87 : f32 to vector<256x16xf32>
    %147 = vector.shape_cast %18 : vector<256x1xi1> to vector<256x1xi1>
    %148 = vector.broadcast %147 : vector<256x1xi1> to vector<256x16xi1>
    %149 = arith.select %148, %145, %146 : vector<256x16xi1>, vector<256x16xf32>
    %150 = arith.truncf %149 : vector<256x16xf32> to vector<256x16xbf16>
    %c3_88 = arith.constant 3 : index
    %c0_89 = arith.constant 0 : index
    %c0_90 = arith.constant 0 : index
    %151 = vector.load %arg4[%c3_88, %c0_89, %c0_90] : memref<9x16x16xbf16, #tpu.memory_space<vmem>>, vector<1x16x16xbf16>
    %152 = vector.shape_cast %151 : vector<1x16x16xbf16> to vector<16x16xbf16>
    %cst_91 = arith.constant dense<0.000000e+00> : vector<256x16xf32>
    %153 = tpu.matmul %150, %152, %cst_91 {dimension_numbers = #tpu.dot_dimension_numbers<[1], [0], [0], [1], [0, 0, 1, 1], [], []>} : vector<256x16xbf16>, vector<16x16xbf16>, vector<256x16xf32> -> vector<256x16xf32>
    %154 = arith.addf %144, %153 : vector<256x16xf32>
    %c32_92 = arith.constant 32 : index
    %c0_93 = arith.constant 0 : index
    %155 = vector.load %arg7[%c32_92, %c0_93] : memref<320x16xf32, #tpu.memory_space<vmem>>, vector<256x16xf32>
    %156 = arith.truncf %155 : vector<256x16xf32> to vector<256x16xbf16>
    %c4_94 = arith.constant 4 : index
    %c0_95 = arith.constant 0 : index
    %c0_96 = arith.constant 0 : index
    %157 = vector.load %arg4[%c4_94, %c0_95, %c0_96] : memref<9x16x16xbf16, #tpu.memory_space<vmem>>, vector<1x16x16xbf16>
    %158 = vector.shape_cast %157 : vector<1x16x16xbf16> to vector<16x16xbf16>
    %cst_97 = arith.constant dense<0.000000e+00> : vector<256x16xf32>
    %159 = tpu.matmul %156, %158, %cst_97 {dimension_numbers = #tpu.dot_dimension_numbers<[1], [0], [0], [1], [0, 0, 1, 1], [], []>} : vector<256x16xbf16>, vector<16x16xbf16>, vector<256x16xf32> -> vector<256x16xf32>
    %160 = arith.addf %154, %159 : vector<256x16xf32>
    %c33_98 = arith.constant 33 : index
    %c0_99 = arith.constant 0 : index
    %161 = vector.load %arg7[%c33_98, %c0_99] : memref<320x16xf32, #tpu.memory_space<vmem>>, vector<256x16xf32>
    %cst_100 = arith.constant 0.000000e+00 : f32
    %162 = vector.broadcast %cst_100 : f32 to vector<256x16xf32>
    %163 = vector.shape_cast %20 : vector<256x1xi1> to vector<256x1xi1>
    %164 = vector.broadcast %163 : vector<256x1xi1> to vector<256x16xi1>
    %165 = arith.select %164, %161, %162 : vector<256x16xi1>, vector<256x16xf32>
    %166 = arith.truncf %165 : vector<256x16xf32> to vector<256x16xbf16>
    %c5_101 = arith.constant 5 : index
    %c0_102 = arith.constant 0 : index
    %c0_103 = arith.constant 0 : index
    %167 = vector.load %arg4[%c5_101, %c0_102, %c0_103] : memref<9x16x16xbf16, #tpu.memory_space<vmem>>, vector<1x16x16xbf16>
    %168 = vector.shape_cast %167 : vector<1x16x16xbf16> to vector<16x16xbf16>
    %cst_104 = arith.constant dense<0.000000e+00> : vector<256x16xf32>
    %169 = tpu.matmul %166, %168, %cst_104 {dimension_numbers = #tpu.dot_dimension_numbers<[1], [0], [0], [1], [0, 0, 1, 1], [], []>} : vector<256x16xbf16>, vector<16x16xbf16>, vector<256x16xf32> -> vector<256x16xf32>
    %170 = arith.addf %160, %169 : vector<256x16xf32>
    %c47_105 = arith.constant 47 : index
    %c0_106 = arith.constant 0 : index
    %171 = vector.load %arg7[%c47_105, %c0_106] : memref<320x16xf32, #tpu.memory_space<vmem>>, vector<256x16xf32>
    %cst_107 = arith.constant 0.000000e+00 : f32
    %172 = vector.broadcast %cst_107 : f32 to vector<256x16xf32>
    %173 = vector.shape_cast %18 : vector<256x1xi1> to vector<256x1xi1>
    %174 = vector.broadcast %173 : vector<256x1xi1> to vector<256x16xi1>
    %175 = arith.select %174, %171, %172 : vector<256x16xi1>, vector<256x16xf32>
    %176 = arith.truncf %175 : vector<256x16xf32> to vector<256x16xbf16>
    %c6_108 = arith.constant 6 : index
    %c0_109 = arith.constant 0 : index
    %c0_110 = arith.constant 0 : index
    %177 = vector.load %arg4[%c6_108, %c0_109, %c0_110] : memref<9x16x16xbf16, #tpu.memory_space<vmem>>, vector<1x16x16xbf16>
    %178 = vector.shape_cast %177 : vector<1x16x16xbf16> to vector<16x16xbf16>
    %cst_111 = arith.constant dense<0.000000e+00> : vector<256x16xf32>
    %179 = tpu.matmul %176, %178, %cst_111 {dimension_numbers = #tpu.dot_dimension_numbers<[1], [0], [0], [1], [0, 0, 1, 1], [], []>} : vector<256x16xbf16>, vector<16x16xbf16>, vector<256x16xf32> -> vector<256x16xf32>
    %180 = arith.addf %170, %179 : vector<256x16xf32>
    %c48_112 = arith.constant 48 : index
    %c0_113 = arith.constant 0 : index
    %181 = vector.load %arg7[%c48_112, %c0_113] : memref<320x16xf32, #tpu.memory_space<vmem>>, vector<256x16xf32>
    %182 = arith.truncf %181 : vector<256x16xf32> to vector<256x16xbf16>
    %c7_114 = arith.constant 7 : index
    %c0_115 = arith.constant 0 : index
    %c0_116 = arith.constant 0 : index
    %183 = vector.load %arg4[%c7_114, %c0_115, %c0_116] : memref<9x16x16xbf16, #tpu.memory_space<vmem>>, vector<1x16x16xbf16>
    %184 = vector.shape_cast %183 : vector<1x16x16xbf16> to vector<16x16xbf16>
    %cst_117 = arith.constant dense<0.000000e+00> : vector<256x16xf32>
    %185 = tpu.matmul %182, %184, %cst_117 {dimension_numbers = #tpu.dot_dimension_numbers<[1], [0], [0], [1], [0, 0, 1, 1], [], []>} : vector<256x16xbf16>, vector<16x16xbf16>, vector<256x16xf32> -> vector<256x16xf32>
    %186 = arith.addf %180, %185 : vector<256x16xf32>
    %c49_118 = arith.constant 49 : index
    %c0_119 = arith.constant 0 : index
    %187 = vector.load %arg7[%c49_118, %c0_119] : memref<320x16xf32, #tpu.memory_space<vmem>>, vector<256x16xf32>
    %cst_120 = arith.constant 0.000000e+00 : f32
    %188 = vector.broadcast %cst_120 : f32 to vector<256x16xf32>
    %189 = vector.shape_cast %20 : vector<256x1xi1> to vector<256x1xi1>
    %190 = vector.broadcast %189 : vector<256x1xi1> to vector<256x16xi1>
    %191 = arith.select %190, %187, %188 : vector<256x16xi1>, vector<256x16xf32>
    %192 = arith.truncf %191 : vector<256x16xf32> to vector<256x16xbf16>
    %c8_121 = arith.constant 8 : index
    %c0_122 = arith.constant 0 : index
    %c0_123 = arith.constant 0 : index
    %193 = vector.load %arg4[%c8_121, %c0_122, %c0_123] : memref<9x16x16xbf16, #tpu.memory_space<vmem>>, vector<1x16x16xbf16>
    %194 = vector.shape_cast %193 : vector<1x16x16xbf16> to vector<16x16xbf16>
    %cst_124 = arith.constant dense<0.000000e+00> : vector<256x16xf32>
    %195 = tpu.matmul %192, %194, %cst_124 {dimension_numbers = #tpu.dot_dimension_numbers<[1], [0], [0], [1], [0, 0, 1, 1], [], []>} : vector<256x16xbf16>, vector<16x16xbf16>, vector<256x16xf32> -> vector<256x16xf32>
    %196 = arith.addf %186, %195 : vector<256x16xf32>
    %c0_125 = arith.constant 0 : index
    %c0_126 = arith.constant 0 : index
    %197 = vector.load %arg5[%c0_125, %c0_126] : memref<1x16xf32, #tpu.memory_space<vmem>>, vector<1x16xf32>
    %198 = vector.broadcast %197 : vector<1x16xf32> to vector<256x16xf32>
    %199 = arith.addf %196, %198 : vector<256x16xf32>
    %cst_127 = arith.constant 0.000000e+00 : f32
    %200 = vector.broadcast %cst_127 : f32 to vector<256x16xf32>
    %201 = arith.maximumf %199, %200 : vector<256x16xf32>
    %c0_128 = arith.constant 0 : index
    %c0_129 = arith.constant 0 : index
    %c0_130 = arith.constant 0 : index
    %202 = vector.load %arg6[%c0_128, %c0_129, %c0_130] : memref<1x256x16xf32, #tpu.memory_space<vmem>>, vector<1x256x16xf32>
    %203 = vector.shape_cast %202 : vector<1x256x16xf32> to vector<256x16xf32>
    %204 = vector.shape_cast %201 : vector<256x16xf32> to vector<1x256x16xf32>
    tpu.vector_store %arg6[%c0_128, %c0_129, %c0_130], %204 {strides = array<i32>} : memref<1x256x16xf32, #tpu.memory_space<vmem>>, vector<1x256x16xf32>,
    return
  }
  func.func @transform_0(%arg0: i32) -> (i32, i32, i32) {
    %c0_i32 = arith.constant 0 : i32
    %c0_i32_0 = arith.constant 0 : i32
    %c0_i32_1 = arith.constant 0 : i32
    return %arg0, %c0_i32, %c0_i32_0 : i32, i32, i32
  }
  func.func @transform_1(%arg0: i32) -> (i32, i32, i32) {
    %c0_i32 = arith.constant 0 : i32
    %c0_i32_0 = arith.constant 0 : i32
    %c0_i32_1 = arith.constant 0 : i32
    %c0_i32_2 = arith.constant 0 : i32
    return %c0_i32, %c0_i32_0, %c0_i32_1 : i32, i32, i32
  }
  func.func @transform_2(%arg0: i32) -> (i32, i32) {
    %c0_i32 = arith.constant 0 : i32
    %c0_i32_0 = arith.constant 0 : i32
    %c0_i32_1 = arith.constant 0 : i32
    return %c0_i32, %c0_i32_0 : i32, i32
  }
  func.func @transform_3(%arg0: i32) -> (i32, i32, i32) {
    %c0_i32 = arith.constant 0 : i32
    %c0_i32_0 = arith.constant 0 : i32
    %c0_i32_1 = arith.constant 0 : i32
    %c0_i32_2 = arith.constant 0 : i32
    return %c0_i32, %c0_i32_0, %c0_i32_1 : i32, i32, i32
  }
  func.func @transform_4(%arg0: i32) -> (i32, i32) {
    %c0_i32 = arith.constant 0 : i32
    %c0_i32_0 = arith.constant 0 : i32
    %c0_i32_1 = arith.constant 0 : i32
    return %c0_i32, %c0_i32_0 : i32, i32
  }
  func.func @transform_5(%arg0: i32) -> (i32, i32, i32) {
    %c0_i32 = arith.constant 0 : i32
    %c0_i32_0 = arith.constant 0 : i32
    %c0_i32_1 = arith.constant 0 : i32
    return %arg0, %c0_i32, %c0_i32_0 : i32, i32, i32
  }
}

</mosaic_0001>

<llo_original>
// kernel: conv2d_block_forward.1
$region0: #{conv2d_block_forward.1}
  #allocation0 [shape = 'u32[]', space=smem, size = 0x4, offset = 0x4, fixed_abs, tag = 'smem constant byte address 0x4 - core index']
  #allocation1 [shape = 'u32[144,128]{1,0:T(1,128)}', space=vmem, size = 0x12000, scoped, tag = 'internal scratch']
  #allocation2 [shape = 'f32[320,16]{1,0:T(8,128)}', space=vmem, size = 0x28000, scoped, tag = 'scratch operand']
  %s0 = inlined_call_operand.vmem [shape: f32[2,320,8], index: 0, kind: input, shape index: {}]
  %s1 = inlined_call_operand.vmem [shape: bf16[9,8,16], index: 1, kind: input, shape index: {}]
  %s2 = inlined_call_operand.vmem [shape: f32[1,16], index: 2, kind: input, shape index: {}]
  %s3 = inlined_call_operand.vmem [shape: bf16[9,16,16], index: 3, kind: input, shape index: {}]
  %s4 = inlined_call_operand.vmem [shape: f32[1,16], index: 4, kind: input, shape index: {}]
  %s5 = inlined_call_operand.vmem [shape: f32[2,256,16], index: 5, kind: output, shape index: {}]
  %s6 = sld [smem:[#allocation0]]
  $region53: #{conv2d_block_forward.1} parent=0
    _
  %s8 = ssub.s32 1, %s6
  %s9 = scalar_select 0, %s8, %s6
  loop: start=0, step=1, limit=4
  $region2: #{conv2d_block_forward.1} parent=0 // loop_pre_header
    _
  $region3: #{conv2d_block_forward.1} parent=0 // loop_header
    %s11 = sphi 0, %s15
    %p12 = scmp.ge.s32.totalorder %s11, 4
    %s21 = sphi 0, %s23
    %s24 = sphi 0, %s21
    %s25 = sphi 0, %s24
    %s41 = sphi 0, %s25
    %s45 = sphi 0, %s45
    %s47 = sphi 0, %s45
    %s48 = sphi 0, %s47
    %s62 = sphi 0, %s48
    %s66 = sphi 0, %s66
    %s68 = sphi 0, %s66
    %s69 = sphi 0, %s68
    %s83 = sphi 0, %s69
    %s87 = sphi 0, %s87
    %s89 = sphi 0, %s87
    %s90 = sphi 0, %s89
    %s104 = sphi 0, %s90
    %s108 = sphi 0, %s108
    %s110 = sphi 0, %s108
    %s111 = sphi 0, %s110
    %s125 = sphi 0, %s111
    %s131 = sphi 0, %s133
    %s134 = sphi 0, %s131
    %s135 = sphi 0, %s134
    %s151 = sphi 0, %s135
  $region4: #{conv2d_block_forward.1} parent=0 // loop_header_branch
    %14 = sbr.rel (%p12) target = $region8
  $region5: #{conv2d_block_forward.1} parent=0 // loop_body
    %s16 = ssub.s32 %s11, 1
    %s17 = ssub.s32 %s11, 2
    %s18 = sadd.s32 %s11, 1
    %s19 = ssub.s32 %s11, %s18
    %p20 = scmp.eq.s32.totalorder %s19, 0
    %s22 = sadd.s32 %s21, 1
    %s23 = scalar_select %p20, %s21, %s22
    %p26 = pneg %p20
    %p27 = scmp.eq.s32.totalorder %s11, 1
    %p28 = por %p26, %p27
    %p29 = scmp.ne.s32.totalorder %s21, %s24
    %p30 = scmp.eq.s32.totalorder %s11, 0
    %p31 = por %p29, %p30
    %p32 = scmp.ne.s32.totalorder %s21, %s24
    %p33 = scmp.eq.s32.totalorder %s16, 1
    %p34 = por %p32, %p33
    %p35 = scmp.ne.s32.totalorder %s24, %s25
    %p36 = scmp.eq.s32.totalorder %s16, 0
    %p37 = por %p35, %p36
    %p38 = scmp.ne.s32.totalorder %s24, %s25
    %p39 = scmp.eq.s32.totalorder %s17, 1
    %p40 = por %p38, %p39
    %p42 = scmp.ne.s32.totalorder %s25, %s41
    %p43 = scmp.eq.s32.totalorder %s17, 0
    %p44 = por %p42, %p43
    %s46 = sadd.s32 %s45, 1
    %p49 = scmp.eq.s32.totalorder %s11, 1
    %p50 = scmp.ne.s32.totalorder %s45, %s47
    %p51 = scmp.eq.s32.totalorder %s11, 0
    %p52 = por %p50, %p51
    %p53 = scmp.ne.s32.totalorder %s45, %s47
    %p54 = scmp.eq.s32.totalorder %s16, 1
    %p55 = por %p53, %p54
    %p56 = scmp.ne.s32.totalorder %s47, %s48
    %p57 = scmp.eq.s32.totalorder %s16, 0
    %p58 = por %p56, %p57
    %p59 = scmp.ne.s32.totalorder %s47, %s48
    %p60 = scmp.eq.s32.totalorder %s17, 1
    %p61 = por %p59, %p60
    %p63 = scmp.ne.s32.totalorder %s48, %s62
    %p64 = scmp.eq.s32.totalorder %s17, 0
    %p65 = por %p63, %p64
    %s67 = sadd.s32 %s66, 1
    %p70 = scmp.eq.s32.totalorder %s11, 1
    %p71 = scmp.ne.s32.totalorder %s66, %s68
    %p72 = scmp.eq.s32.totalorder %s11, 0
    %p73 = por %p71, %p72
    %p74 = scmp.ne.s32.totalorder %s66, %s68
    %p75 = scmp.eq.s32.totalorder %s16, 1
    %p76 = por %p74, %p75
    %p77 = scmp.ne.s32.totalorder %s68, %s69
    %p78 = scmp.eq.s32.totalorder %s16, 0
    %p79 = por %p77, %p78
    %p80 = scmp.ne.s32.totalorder %s68, %s69
    %p81 = scmp.eq.s32.totalorder %s17, 1
    %p82 = por %p80, %p81
    %p84 = scmp.ne.s32.totalorder %s69, %s83
    %p85 = scmp.eq.s32.totalorder %s17, 0
    %p86 = por %p84, %p85
    %s88 = sadd.s32 %s87, 1
    %p91 = scmp.eq.s32.totalorder %s11, 1
    %p92 = scmp.ne.s32.totalorder %s87, %s89
    %p93 = scmp.eq.s32.totalorder %s11, 0
    %p94 = por %p92, %p93
    %p95 = scmp.ne.s32.totalorder %s87, %s89
    %p96 = scmp.eq.s32.totalorder %s16, 1
    %p97 = por %p95, %p96
    %p98 = scmp.ne.s32.totalorder %s89, %s90
    %p99 = scmp.eq.s32.totalorder %s16, 0
    %p100 = por %p98, %p99
    %p101 = scmp.ne.s32.totalorder %s89, %s90
    %p102 = scmp.eq.s32.totalorder %s17, 1
    %p103 = por %p101, %p102
    %p105 = scmp.ne.s32.totalorder %s90, %s104
    %p106 = scmp.eq.s32.totalorder %s17, 0
    %p107 = por %p105, %p106
    %s109 = sadd.s32 %s108, 1
    %p112 = scmp.eq.s32.totalorder %s11, 1
    %p113 = scmp.ne.s32.totalorder %s108, %s110
    %p114 = scmp.eq.s32.totalorder %s11, 0
    %p115 = por %p113, %p114
    %p116 = scmp.ne.s32.totalorder %s108, %s110
    %p117 = scmp.eq.s32.totalorder %s16, 1
    %p118 = por %p116, %p117
    %p119 = scmp.ne.s32.totalorder %s110, %s111
    %p120 = scmp.eq.s32.totalorder %s16, 0
    %p121 = por %p119, %p120
    %p122 = scmp.ne.s32.totalorder %s110, %s111
    %p123 = scmp.eq.s32.totalorder %s17, 1
    %p124 = por %p122, %p123
    %p126 = scmp.ne.s32.totalorder %s111, %s125
    %p127 = scmp.eq.s32.totalorder %s17, 0
    %p128 = por %p126, %p127
    %s129 = ssub.s32 %s11, %s18
    %p130 = scmp.eq.s32.totalorder %s129, 0
    %s132 = sadd.s32 %s131, 1
    %s133 = scalar_select %p130, %s131, %s132
    %p136 = pneg %p130
    %p137 = scmp.eq.s32.totalorder %s11, 1
    %p138 = por %p136, %p137
    %p139 = scmp.ne.s32.totalorder %s131, %s134
    %p140 = scmp.eq.s32.totalorder %s11, 0
    %p141 = por %p139, %p140
    %p142 = scmp.ne.s32.totalorder %s131, %s134
    %p143 = scmp.eq.s32.totalorder %s16, 1
    %p144 = por %p142, %p143
    %p145 = scmp.ne.s32.totalorder %s134, %s135
    %p146 = scmp.eq.s32.totalorder %s16, 0
    %p147 = por %p145, %p146
    %p148 = scmp.ne.s32.totalorder %s134, %s135
    %p149 = scmp.eq.s32.totalorder %s17, 1
    %p150 = por %p148, %p149
    %p152 = scmp.ne.s32.totalorder %s135, %s151
    %p153 = scmp.eq.s32.totalorder %s17, 0
    %p154 = por %p152, %p153
    %p155 = scmp.le.s32.totalorder 1, %s11
    %p156 = scmp.lt.s32.totalorder %s11, 3
    %p157 = pnand %p155, %p156
    %p158 = pneg %p157
    // Predicated region
    $region9: #{conv2d_block_forward.1} parent=5 // pred_check
      _
    $region10: #{conv2d_block_forward.1} parent=5 // pred_check_branch
      %160 = sbr.rel (%p157) target = $region12
    $region11: #{conv2d_block_forward.1} parent=5 // pred_region
      %s161 = ssub.s32 %s11, 1
      // Predicated region
      $region13: #{conv2d_block_forward.1} parent=11 // pred_check
        %p162 = pneg %p58
      $region14: #{conv2d_block_forward.1} parent=11 // pred_check_branch
        %164 = sbr.rel (%p162) target = $region16
      $region15: #{conv2d_block_forward.1} parent=11 // pred_region
        _
      $region16: #{conv2d_block_forward.1} parent=11 // pred_fallthru
        _
      // Predicated region
      $region17: #{conv2d_block_forward.1} parent=11 // pred_check
        %p165 = pneg %p79
      $region18: #{conv2d_block_forward.1} parent=11 // pred_check_branch
        %167 = sbr.rel (%p165) target = $region20
      $region19: #{conv2d_block_forward.1} parent=11 // pred_region
        _
      $region20: #{conv2d_block_forward.1} parent=11 // pred_fallthru
        _
      // Predicated region
      $region21: #{conv2d_block_forward.1} parent=11 // pred_check
        %p168 = pneg %p100
      $region22: #{conv2d_block_forward.1} parent=11 // pred_check_branch
        %170 = sbr.rel (%p168) target = $region24
      $region23: #{conv2d_block_forward.1} parent=11 // pred_region
        _
      $region24: #{conv2d_block_forward.1} parent=11 // pred_fallthru
        _
      // Predicated region
      $region25: #{conv2d_block_forward.1} parent=11 // pred_check
        %p171 = pneg %p121
      $region26: #{conv2d_block_forward.1} parent=11 // pred_check_branch
        %173 = sbr.rel (%p171) target = $region28
      $region27: #{conv2d_block_forward.1} parent=11 // pred_region
        _
      $region28: #{conv2d_block_forward.1} parent=11 // pred_fallthru
        _
    $region12: #{conv2d_block_forward.1} parent=5 // pred_fallthru
      _
    %p174 = scmp.lt.s32.totalorder %s11, 2
    // Predicated region
    $region29: #{conv2d_block_forward.1} parent=5 // pred_check
      %p175 = pneg %p174
    $region30: #{conv2d_block_forward.1} parent=5 // pred_check_branch
      %177 = sbr.rel (%p175) target = $region32
    $region31: #{conv2d_block_forward.1} parent=5 // pred_region
      // Predicated region
      $region33: #{conv2d_block_forward.1} parent=31 // pred_check
        %p178 = pneg %p31
      $region34: #{conv2d_block_forward.1} parent=31 // pred_check_branch
        %180 = sbr.rel (%p178) target = $region36
      $region35: #{conv2d_block_forward.1} parent=31 // pred_region
        %p181 = scmp.lt.s32.totalorder %s11, 1
        %s182 = scalar_select %p181, %s11, 1
        %s183 = smul.addr %s182, 40
        %s184 = smul.addr %s183, 8
        %s185 = scalar_lea.vmem %s0, %s184
      $region36: #{conv2d_block_forward.1} parent=31 // pred_fallthru
        _
    $region32: #{conv2d_block_forward.1} parent=5 // pred_fallthru
      _
    %p186 = scmp.le.s32.totalorder 1, %s11
    %p187 = scmp.lt.s32.totalorder %s11, 3
    %p188 = pnand %p186, %p187
    %p189 = pneg %p188
    // Predicated region
    $region37: #{conv2d_block_forward.1} parent=5 // pred_check
      _
    $region38: #{conv2d_block_forward.1} parent=5 // pred_check_branch
      %191 = sbr.rel (%p188) target = $region40
    $region39: #{conv2d_block_forward.1} parent=5 // pred_region
      %s192 = ssub.s32 %s11, 1
      %p193 = scmp.lt.s32.totalorder %s16, 1
      %s194 = scalar_select %p193, %s16, 1
      %s195 = smul.addr %s194, 40
      %s196 = smul.addr %s195, 8
      %s197 = scalar_lea.vmem %s0, %s196
      %p198 = pneg %p37
      %p199 = pneg %p34
      %p200 = pneg %p58
      %p201 = pneg %p55
      %p202 = pneg %p79
      %p203 = pneg %p76
      %p204 = pneg %p100
      %p205 = pneg %p97
      %p206 = pneg %p121
      %p207 = pneg %p118
      %p208 = pneg %p147
      %p209 = pneg %p144
      %p210 = scmp.lt.s32.totalorder %s16, 1
      %s211 = scalar_select %p210, %s16, 1
      %s212 = smul.addr %s211, 32
      %s213 = smul.addr %s212, 8
      %s214 = scalar_lea.vmem %s5, %s213
      %p215 = scmp.lt.s32.totalorder %s16, 1
      %s216 = scalar_select %p215, %s16, 1
      %s217 = smul.addr %s216, 40
      %s218 = smul.addr %s217, 8
      %s219 = scalar_lea.vmem %s0, %s218
      %p220 = scmp.lt.s32.totalorder %s16, 1
      %s221 = scalar_select %p220, %s16, 1
      %s222 = smul.addr %s221, 32
      %s223 = smul.addr %s222, 8
      %s224 = scalar_lea.vmem %s5, %s223
      %v226 = vlaneseq
      %v227 = vshrl.u32 %v226, 7
      %v228 = vadd.s32 %v227, 8
      %v229 = vadd.s32 %v227, 16
      %v230 = vadd.s32 %v227, 24
      %v231 = vadd.s32 %v227, 32
      %v232 = vadd.s32 %v227, 40
      %v233 = vadd.s32 %v227, 48
      %v234 = vadd.s32 %v227, 56
      %v235 = vadd.s32 %v227, 64
      %v236 = vadd.s32 %v227, 72
      %v237 = vadd.s32 %v227, 80
      %v238 = vadd.s32 %v227, 88
      %v239 = vadd.s32 %v227, 96
      %v240 = vadd.s32 %v227, 104
      %v241 = vadd.s32 %v227, 112
      %v242 = vadd.s32 %v227, 120
      %v243 = vadd.s32 %v227, 128
      %v244 = vadd.s32 %v227, 136
      %v245 = vadd.s32 %v227, 144
      %v246 = vadd.s32 %v227, 152
      %v247 = vadd.s32 %v227, 160
      %v248 = vadd.s32 %v227, 168
      %v249 = vadd.s32 %v227, 176
      %v250 = vadd.s32 %v227, 184
      %v251 = vadd.s32 %v227, 192
      %v252 = vadd.s32 %v227, 200
      %v253 = vadd.s32 %v227, 208
      %v254 = vadd.s32 %v227, 216
      %v255 = vadd.s32 %v227, 224
      %v256 = vadd.s32 %v227, 232
      %v257 = vadd.s32 %v227, 240
      %v258 = vadd.s32 %v227, 248
      %vm259 = vcmp.lt.s32.totalorder %v227, 0
      %v260 = vsub.s32 0, %v227
      %v261 = vsel %vm259, %v260, %v227
      %v262 = vshrl.u32 %v261, 4
      %v263 = vand.u32 %v261, 15
      %v264 = vsub.s32 0, %v263
      %v265 = vsel %vm259, %v264, %v263
      %vm266 = vcmp.lt.s32.totalorder %v228, 0
      %v267 = vsub.s32 0, %v228
      %v268 = vsel %vm266, %v267, %v228
      %v269 = vshrl.u32 %v268, 4
      %v270 = vand.u32 %v268, 15
      %v271 = vsub.s32 0, %v270
      %v272 = vsel %vm266, %v271, %v270
      %vm273 = vcmp.lt.s32.totalorder %v229, 0
      %v274 = vsub.s32 0, %v229
      %v275 = vsel %vm273, %v274, %v229
      %v276 = vshrl.u32 %v275, 4
      %v277 = vand.u32 %v275, 15
      %v278 = vsub.s32 0, %v277
      %v279 = vsel %vm273, %v278, %v277
      %vm280 = vcmp.lt.s32.totalorder %v230, 0
      %v281 = vsub.s32 0, %v230
      %v282 = vsel %vm280, %v281, %v230
      %v283 = vshrl.u32 %v282, 4
      %v284 = vand.u32 %v282, 15
      %v285 = vsub.s32 0, %v284
      %v286 = vsel %vm280, %v285, %v284
      %vm287 = vcmp.lt.s32.totalorder %v231, 0
      %v288 = vsub.s32 0, %v231
      %v289 = vsel %vm287, %v288, %v231
      %v290 = vshrl.u32 %v289, 4
      %v291 = vand.u32 %v289, 15
      %v292 = vsub.s32 0, %v291
      %v293 = vsel %vm287, %v292, %v291
      %vm294 = vcmp.lt.s32.totalorder %v232, 0
      %v295 = vsub.s32 0, %v232
      %v296 = vsel %vm294, %v295, %v232
      %v297 = vshrl.u32 %v296, 4
      %v298 = vand.u32 %v296, 15
      %v299 = vsub.s32 0, %v298
      %v300 = vsel %vm294, %v299, %v298
      %vm301 = vcmp.lt.s32.totalorder %v233, 0
      %v302 = vsub.s32 0, %v233
      %v303 = vsel %vm301, %v302, %v233
      %v304 = vshrl.u32 %v303, 4
      %v305 = vand.u32 %v303, 15
      %v306 = vsub.s32 0, %v305
      %v307 = vsel %vm301, %v306, %v305
      %vm308 = vcmp.lt.s32.totalorder %v234, 0
      %v309 = vsub.s32 0, %v234
      %v310 = vsel %vm308, %v309, %v234
      %v311 = vshrl.u32 %v310, 4
      %v312 = vand.u32 %v310, 15
      %v313 = vsub.s32 0, %v312
      %v314 = vsel %vm308, %v313, %v312
      %vm315 = vcmp.lt.s32.totalorder %v235, 0
      %v316 = vsub.s32 0, %v235
      %v317 = vsel %vm315, %v316, %v235
      %v318 = vshrl.u32 %v317, 4
      %v319 = vand.u32 %v317, 15
      %v320 = vsub.s32 0, %v319
      %v321 = vsel %vm315, %v320, %v319
      %vm322 = vcmp.lt.s32.totalorder %v236, 0
      %v323 = vsub.s32 0, %v236
      %v324 = vsel %vm322, %v323, %v236
      %v325 = vshrl.u32 %v324, 4
      %v326 = vand.u32 %v324, 15
      %v327 = vsub.s32 0, %v326
      %v328 = vsel %vm322, %v327, %v326
      %vm329 = vcmp.lt.s32.totalorder %v237, 0
      %v330 = vsub.s32 0, %v237
      %v331 = vsel %vm329, %v330, %v237
      %v332 = vshrl.u32 %v331, 4
      %v333 = vand.u32 %v331, 15
      %v334 = vsub.s32 0, %v333
      %v335 = vsel %vm329, %v334, %v333
      %vm336 = vcmp.lt.s32.totalorder %v238, 0
      %v337 = vsub.s32 0, %v238
      %v338 = vsel %vm336, %v337, %v238
      %v339 = vshrl.u32 %v338, 4
      %v340 = vand.u32 %v338, 15
      %v341 = vsub.s32 0, %v340
      %v342 = vsel %vm336, %v341, %v340
      %vm343 = vcmp.lt.s32.totalorder %v239, 0
      %v344 = vsub.s32 0, %v239
      %v345 = vsel %vm343, %v344, %v239
      %v346 = vshrl.u32 %v345, 4
      %v347 = vand.u32 %v345, 15
      %v348 = vsub.s32 0, %v347
      %v349 = vsel %vm343, %v348, %v347
      %vm350 = vcmp.lt.s32.totalorder %v240, 0
      %v351 = vsub.s32 0, %v240
      %v352 = vsel %vm350, %v351, %v240
      %v353 = vshrl.u32 %v352, 4
      %v354 = vand.u32 %v352, 15
      %v355 = vsub.s32 0, %v354
      %v356 = vsel %vm350, %v355, %v354
      %vm357 = vcmp.lt.s32.totalorder %v241, 0
      %v358 = vsub.s32 0, %v241
      %v359 = vsel %vm357, %v358, %v241
      %v360 = vshrl.u32 %v359, 4
      %v361 = vand.u32 %v359, 15
      %v362 = vsub.s32 0, %v361
      %v363 = vsel %vm357, %v362, %v361
      %vm364 = vcmp.lt.s32.totalorder %v242, 0
      %v365 = vsub.s32 0, %v242
      %v366 = vsel %vm364, %v365, %v242
      %v367 = vshrl.u32 %v366, 4
      %v368 = vand.u32 %v366, 15
      %v369 = vsub.s32 0, %v368
      %v370 = vsel %vm364, %v369, %v368
      %vm371 = vcmp.lt.s32.totalorder %v243, 0
      %v372 = vsub.s32 0, %v243
      %v373 = vsel %vm371, %v372, %v243
      %v374 = vshrl.u32 %v373, 4
      %v375 = vand.u32 %v373, 15
      %v376 = vsub.s32 0, %v375
      %v377 = vsel %vm371, %v376, %v375
      %vm378 = vcmp.lt.s32.totalorder %v244, 0
      %v379 = vsub.s32 0, %v244
      %v380 = vsel %vm378, %v379, %v244
      %v381 = vshrl.u32 %v380, 4
      %v382 = vand.u32 %v380, 15
      %v383 = vsub.s32 0, %v382
      %v384 = vsel %vm378, %v383, %v382
      %vm385 = vcmp.lt.s32.totalorder %v245, 0
      %v386 = vsub.s32 0, %v245
      %v387 = vsel %vm385, %v386, %v245
      %v388 = vshrl.u32 %v387, 4
      %v389 = vand.u32 %v387, 15
      %v390 = vsub.s32 0, %v389
      %v391 = vsel %vm385, %v390, %v389
      %vm392 = vcmp.lt.s32.totalorder %v246, 0
      %v393 = vsub.s32 0, %v246
      %v394 = vsel %vm392, %v393, %v246
      %v395 = vshrl.u32 %v394, 4
      %v396 = vand.u32 %v394, 15
      %v397 = vsub.s32 0, %v396
      %v398 = vsel %vm392, %v397, %v396
      %vm399 = vcmp.lt.s32.totalorder %v247, 0
      %v400 = vsub.s32 0, %v247
      %v401 = vsel %vm399, %v400, %v247
      %v402 = vshrl.u32 %v401, 4
      %v403 = vand.u32 %v401, 15
      %v404 = vsub.s32 0, %v403
      %v405 = vsel %vm399, %v404, %v403
      %vm406 = vcmp.lt.s32.totalorder %v248, 0
      %v407 = vsub.s32 0, %v248
      %v408 = vsel %vm406, %v407, %v248
      %v409 = vshrl.u32 %v408, 4
      %v410 = vand.u32 %v408, 15
      %v411 = vsub.s32 0, %v410
      %v412 = vsel %vm406, %v411, %v410
      %vm413 = vcmp.lt.s32.totalorder %v249, 0
      %v414 = vsub.s32 0, %v249
      %v415 = vsel %vm413, %v414, %v249
      %v416 = vshrl.u32 %v415, 4
      %v417 = vand.u32 %v415, 15
      %v418 = vsub.s32 0, %v417
      %v419 = vsel %vm413, %v418, %v417
      %vm420 = vcmp.lt.s32.totalorder %v250, 0
      %v421 = vsub.s32 0, %v250
      %v422 = vsel %vm420, %v421, %v250
      %v423 = vshrl.u32 %v422, 4
      %v424 = vand.u32 %v422, 15
      %v425 = vsub.s32 0, %v424
      %v426 = vsel %vm420, %v425, %v424
      %vm427 = vcmp.lt.s32.totalorder %v251, 0
      %v428 = vsub.s32 0, %v251
      %v429 = vsel %vm427, %v428, %v251
      %v430 = vshrl.u32 %v429, 4
      %v431 = vand.u32 %v429, 15
      %v432 = vsub.s32 0, %v431
      %v433 = vsel %vm427, %v432, %v431
      %vm434 = vcmp.lt.s32.totalorder %v252, 0
      %v435 = vsub.s32 0, %v252
      %v436 = vsel %vm434, %v435, %v252
      %v437 = vshrl.u32 %v436, 4
      %v438 = vand.u32 %v436, 15
      %v439 = vsub.s32 0, %v438
      %v440 = vsel %vm434, %v439, %v438
      %vm441 = vcmp.lt.s32.totalorder %v253, 0
      %v442 = vsub.s32 0, %v253
      %v443 = vsel %vm441, %v442, %v253
      %v444 = vshrl.u32 %v443, 4
      %v445 = vand.u32 %v443, 15
      %v446 = vsub.s32 0, %v445
      %v447 = vsel %vm441, %v446, %v445
      %vm448 = vcmp.lt.s32.totalorder %v254, 0
      %v449 = vsub.s32 0, %v254
      %v450 = vsel %vm448, %v449, %v254
      %v451 = vshrl.u32 %v450, 4
      %v452 = vand.u32 %v450, 15
      %v453 = vsub.s32 0, %v452
      %v454 = vsel %vm448, %v453, %v452
      %vm455 = vcmp.lt.s32.totalorder %v255, 0
      %v456 = vsub.s32 0, %v255
      %v457 = vsel %vm455, %v456, %v255
      %v458 = vshrl.u32 %v457, 4
      %v459 = vand.u32 %v457, 15
      %v460 = vsub.s32 0, %v459
      %v461 = vsel %vm455, %v460, %v459
      %vm462 = vcmp.lt.s32.totalorder %v256, 0
      %v463 = vsub.s32 0, %v256
      %v464 = vsel %vm462, %v463, %v256
      %v465 = vshrl.u32 %v464, 4
      %v466 = vand.u32 %v464, 15
      %v467 = vsub.s32 0, %v466
      %v468 = vsel %vm462, %v467, %v466
      %vm469 = vcmp.lt.s32.totalorder %v257, 0
      %v470 = vsub.s32 0, %v257
      %v471 = vsel %vm469, %v470, %v257
      %v472 = vshrl.u32 %v471, 4
      %v473 = vand.u32 %v471, 15
      %v474 = vsub.s32 0, %v473
      %v475 = vsel %vm469, %v474, %v473
      %vm476 = vcmp.lt.s32.totalorder %v258, 0
      %v477 = vsub.s32 0, %v258
      %v478 = vsel %vm476, %v477, %v258
      %v479 = vshrl.u32 %v478, 4
      %v480 = vand.u32 %v478, 15
      %v481 = vsub.s32 0, %v480
      %v482 = vsel %vm476, %v481, %v480
      %vm483 = vcmp.ne.s32.totalorder %v265, 0
      %vm484 = vcmp.ne.s32.totalorder %v272, 0
      %vm485 = vcmp.ne.s32.totalorder %v279, 0
      %vm486 = vcmp.ne.s32.totalorder %v286, 0
      %vm487 = vcmp.ne.s32.totalorder %v293, 0
      %vm488 = vcmp.ne.s32.totalorder %v300, 0
      %vm489 = vcmp.ne.s32.totalorder %v307, 0
      %vm490 = vcmp.ne.s32.totalorder %v314, 0
      %vm491 = vcmp.ne.s32.totalorder %v321, 0
      %vm492 = vcmp.ne.s32.totalorder %v328, 0
      %vm493 = vcmp.ne.s32.totalorder %v335, 0
      %vm494 = vcmp.ne.s32.totalorder %v342, 0
      %vm495 = vcmp.ne.s32.totalorder %v349, 0
      %vm496 = vcmp.ne.s32.totalorder %v356, 0
      %vm497 = vcmp.ne.s32.totalorder %v363, 0
      %vm498 = vcmp.ne.s32.totalorder %v370, 0
      %vm499 = vcmp.ne.s32.totalorder %v377, 0
      %vm500 = vcmp.ne.s32.totalorder %v384, 0
      %vm501 = vcmp.ne.s32.totalorder %v391, 0
      %vm502 = vcmp.ne.s32.totalorder %v398, 0
      %vm503 = vcmp.ne.s32.totalorder %v405, 0
      %vm504 = vcmp.ne.s32.totalorder %v412, 0
      %vm505 = vcmp.ne.s32.totalorder %v419, 0
      %vm506 = vcmp.ne.s32.totalorder %v426, 0
      %vm507 = vcmp.ne.s32.totalorder %v433, 0
      %vm508 = vcmp.ne.s32.totalorder %v440, 0
      %vm509 = vcmp.ne.s32.totalorder %v447, 0
      %vm510 = vcmp.ne.s32.totalorder %v454, 0
      %vm511 = vcmp.ne.s32.totalorder %v461, 0
      %vm512 = vcmp.ne.s32.totalorder %v468, 0
      %vm513 = vcmp.ne.s32.totalorder %v475, 0
      %vm514 = vcmp.ne.s32.totalorder %v482, 0
      %vm515 = vcmp.lt.s32.totalorder %v265, 0
      %vm516 = vcmp.lt.s32.totalorder %v272, 0
      %vm517 = vcmp.lt.s32.totalorder %v279, 0
      %vm518 = vcmp.lt.s32.totalorder %v286, 0
      %vm519 = vcmp.lt.s32.totalorder %v293, 0
      %vm520 = vcmp.lt.s32.totalorder %v300, 0
      %vm521 = vcmp.lt.s32.totalorder %v307, 0
      %vm522 = vcmp.lt.s32.totalorder %v314, 0
      %vm523 = vcmp.lt.s32.totalorder %v321, 0
      %vm524 = vcmp.lt.s32.totalorder %v328, 0
      %vm525 = vcmp.lt.s32.totalorder %v335, 0
      %vm526 = vcmp.lt.s32.totalorder %v342, 0
      %vm527 = vcmp.lt.s32.totalorder %v349, 0
      %vm528 = vcmp.lt.s32.totalorder %v356, 0
      %vm529 = vcmp.lt.s32.totalorder %v363, 0
      %vm530 = vcmp.lt.s32.totalorder %v370, 0
      %vm531 = vcmp.lt.s32.totalorder %v377, 0
      %vm532 = vcmp.lt.s32.totalorder %v384, 0
      %vm533 = vcmp.lt.s32.totalorder %v391, 0
      %vm534 = vcmp.lt.s32.totalorder %v398, 0
      %vm535 = vcmp.lt.s32.totalorder %v405, 0
      %vm536 = vcmp.lt.s32.totalorder %v412, 0
      %vm537 = vcmp.lt.s32.totalorder %v419, 0
      %vm538 = vcmp.lt.s32.totalorder %v426, 0
      %vm539 = vcmp.lt.s32.totalorder %v433, 0
      %vm540 = vcmp.lt.s32.totalorder %v440, 0
      %vm541 = vcmp.lt.s32.totalorder %v447, 0
      %vm542 = vcmp.lt.s32.totalorder %v454, 0
      %vm543 = vcmp.lt.s32.totalorder %v461, 0
      %vm544 = vcmp.lt.s32.totalorder %v468, 0
      %vm545 = vcmp.lt.s32.totalorder %v475, 0
      %vm546 = vcmp.lt.s32.totalorder %v482, 0
      %vm547 = vmand %vm515, %vm483
      %vm548 = vmand %vm516, %vm484
      %vm549 = vmand %vm517, %vm485
      %vm550 = vmand %vm518, %vm486
      %vm551 = vmand %vm519, %vm487
      %vm552 = vmand %vm520, %vm488
      %vm553 = vmand %vm521, %vm489
      %vm554 = vmand %vm522, %vm490
      %vm555 = vmand %vm523, %vm491
      %vm556 = vmand %vm524, %vm492
      %vm557 = vmand %vm525, %vm493
      %vm558 = vmand %vm526, %vm494
      %vm559 = vmand %vm527, %vm495
      %vm560 = vmand %vm528, %vm496
      %vm561 = vmand %vm529, %vm497
      %vm562 = vmand %vm530, %vm498
      %vm563 = vmand %vm531, %vm499
      %vm564 = vmand %vm532, %vm500
      %vm565 = vmand %vm533, %vm501
      %vm566 = vmand %vm534, %vm502
      %vm567 = vmand %vm535, %vm503
      %vm568 = vmand %vm536, %vm504
      %vm569 = vmand %vm537, %vm505
      %vm570 = vmand %vm538, %vm506
      %vm571 = vmand %vm539, %vm507
      %vm572 = vmand %vm540, %vm508
      %vm573 = vmand %vm541, %vm509
      %vm574 = vmand %vm542, %vm510
      %vm575 = vmand %vm543, %vm511
      %vm576 = vmand %vm544, %vm512
      %vm577 = vmand %vm545, %vm513
      %vm578 = vmand %vm546, %vm514
      %v579 = vadd.s32 %v265, 16
      %v580 = vadd.s32 %v272, 16
      %v581 = vadd.s32 %v279, 16
      %v582 = vadd.s32 %v286, 16
      %v583 = vadd.s32 %v293, 16
      %v584 = vadd.s32 %v300, 16
      %v585 = vadd.s32 %v307, 16
      %v586 = vadd.s32 %v314, 16
      %v587 = vadd.s32 %v321, 16
      %v588 = vadd.s32 %v328, 16
      %v589 = vadd.s32 %v335, 16
      %v590 = vadd.s32 %v342, 16
      %v591 = vadd.s32 %v349, 16
      %v592 = vadd.s32 %v356, 16
      %v593 = vadd.s32 %v363, 16
      %v594 = vadd.s32 %v370, 16
      %v595 = vadd.s32 %v377, 16
      %v596 = vadd.s32 %v384, 16
      %v597 = vadd.s32 %v391, 16
      %v598 = vadd.s32 %v398, 16
      %v599 = vadd.s32 %v405, 16
      %v600 = vadd.s32 %v412, 16
      %v601 = vadd.s32 %v419, 16
      %v602 = vadd.s32 %v426, 16
      %v603 = vadd.s32 %v433, 16
      %v604 = vadd.s32 %v440, 16
      %v605 = vadd.s32 %v447, 16
      %v606 = vadd.s32 %v454, 16
      %v607 = vadd.s32 %v461, 16
      %v608 = vadd.s32 %v468, 16
      %v609 = vadd.s32 %v475, 16
      %v610 = vadd.s32 %v482, 16
      %v611 = vsel %vm547, %v579, %v265
      %v612 = vsel %vm548, %v580, %v272
      %v613 = vsel %vm549, %v581, %v279
      %v614 = vsel %vm550, %v582, %v286
      %v615 = vsel %vm551, %v583, %v293
      %v616 = vsel %vm552, %v584, %v300
      %v617 = vsel %vm553, %v585, %v307
      %v618 = vsel %vm554, %v586, %v314
      %v619 = vsel %vm555, %v587, %v321
      %v620 = vsel %vm556, %v588, %v328
      %v621 = vsel %vm557, %v589, %v335
      %v622 = vsel %vm558, %v590, %v342
      %v623 = vsel %vm559, %v591, %v349
      %v624 = vsel %vm560, %v592, %v356
      %v625 = vsel %vm561, %v593, %v363
      %v626 = vsel %vm562, %v594, %v370
      %v627 = vsel %vm563, %v595, %v377
      %v628 = vsel %vm564, %v596, %v384
      %v629 = vsel %vm565, %v597, %v391
      %v630 = vsel %vm566, %v598, %v398
      %v631 = vsel %vm567, %v599, %v405
      %v632 = vsel %vm568, %v600, %v412
      %v633 = vsel %vm569, %v601, %v419
      %v634 = vsel %vm570, %v602, %v426
      %v635 = vsel %vm571, %v603, %v433
      %v636 = vsel %vm572, %v604, %v440
      %v637 = vsel %vm573, %v605, %v447
      %v638 = vsel %vm574, %v606, %v454
      %v639 = vsel %vm575, %v607, %v461
      %v640 = vsel %vm576, %v608, %v468
      %v641 = vsel %vm577, %v609, %v475
      %v642 = vsel %vm578, %v610, %v482
      %vm643 = vcmp.ge.s32.totalorder %v611, 1
      %vm644 = vcmp.ge.s32.totalorder %v612, 1
      %vm645 = vcmp.ge.s32.totalorder %v613, 1
      %vm646 = vcmp.ge.s32.totalorder %v614, 1
      %vm647 = vcmp.ge.s32.totalorder %v615, 1
      %vm648 = vcmp.ge.s32.totalorder %v616, 1
      %vm649 = vcmp.ge.s32.totalorder %v617, 1
      %vm650 = vcmp.ge.s32.totalorder %v618, 1
      %vm651 = vcmp.ge.s32.totalorder %v619, 1
      %vm652 = vcmp.ge.s32.totalorder %v620, 1
      %vm653 = vcmp.ge.s32.totalorder %v621, 1
      %vm654 = vcmp.ge.s32.totalorder %v622, 1
      %vm655 = vcmp.ge.s32.totalorder %v623, 1
      %vm656 = vcmp.ge.s32.totalorder %v624, 1
      %vm657 = vcmp.ge.s32.totalorder %v625, 1
      %vm658 = vcmp.ge.s32.totalorder %v626, 1
      %vm659 = vcmp.ge.s32.totalorder %v627, 1
      %vm660 = vcmp.ge.s32.totalorder %v628, 1
      %vm661 = vcmp.ge.s32.totalorder %v629, 1
      %vm662 = vcmp.ge.s32.totalorder %v630, 1
      %vm663 = vcmp.ge.s32.totalorder %v631, 1
      %vm664 = vcmp.ge.s32.totalorder %v632, 1
      %vm665 = vcmp.ge.s32.totalorder %v633, 1
      %vm666 = vcmp.ge.s32.totalorder %v634, 1
      %vm667 = vcmp.ge.s32.totalorder %v635, 1
      %vm668 = vcmp.ge.s32.totalorder %v636, 1
      %vm669 = vcmp.ge.s32.totalorder %v637, 1
      %vm670 = vcmp.ge.s32.totalorder %v638, 1
      %vm671 = vcmp.ge.s32.totalorder %v639, 1
      %vm672 = vcmp.ge.s32.totalorder %v640, 1
      %vm673 = vcmp.ge.s32.totalorder %v641, 1
      %vm674 = vcmp.ge.s32.totalorder %v642, 1
      %vm675 = vcmp.le.s32.totalorder %v611, 14
      %vm676 = vcmp.le.s32.totalorder %v612, 14
      %vm677 = vcmp.le.s32.totalorder %v613, 14
      %vm678 = vcmp.le.s32.totalorder %v614, 14
      %vm679 = vcmp.le.s32.totalorder %v615, 14
      %vm680 = vcmp.le.s32.totalorder %v616, 14
      %vm681 = vcmp.le.s32.totalorder %v617, 14
      %vm682 = vcmp.le.s32.totalorder %v618, 14
      %vm683 = vcmp.le.s32.totalorder %v619, 14
      %vm684 = vcmp.le.s32.totalorder %v620, 14
      %vm685 = vcmp.le.s32.totalorder %v621, 14
      %vm686 = vcmp.le.s32.totalorder %v622, 14
      %vm687 = vcmp.le.s32.totalorder %v623, 14
      %vm688 = vcmp.le.s32.totalorder %v624, 14
      %vm689 = vcmp.le.s32.totalorder %v625, 14
      %vm690 = vcmp.le.s32.totalorder %v626, 14
      %vm691 = vcmp.le.s32.totalorder %v627, 14
      %vm692 = vcmp.le.s32.totalorder %v628, 14
      %vm693 = vcmp.le.s32.totalorder %v629, 14
      %vm694 = vcmp.le.s32.totalorder %v630, 14
      %vm695 = vcmp.le.s32.totalorder %v631, 14
      %vm696 = vcmp.le.s32.totalorder %v632, 14
      %vm697 = vcmp.le.s32.totalorder %v633, 14
      %vm698 = vcmp.le.s32.totalorder %v634, 14
      %vm699 = vcmp.le.s32.totalorder %v635, 14
      %vm700 = vcmp.le.s32.totalorder %v636, 14
      %vm701 = vcmp.le.s32.totalorder %v637, 14
      %vm702 = vcmp.le.s32.totalorder %v638, 14
      %vm703 = vcmp.le.s32.totalorder %v639, 14
      %vm704 = vcmp.le.s32.totalorder %v640, 14
      %vm705 = vcmp.le.s32.totalorder %v641, 14
      %vm706 = vcmp.le.s32.totalorder %v642, 14
      %v707 = vld [vmem:[%s219 + $0xf] sm:$0xff]
      %v708 = vld [vmem:[%s219 + $0x17] sm:$0xff]
      %v709 = vld [vmem:[%s219 + $0x1f] sm:$0xff]
      %v710 = vld [vmem:[%s219 + $0x27] sm:$0xff]
      %v711 = vld [vmem:[%s219 + $0x2f] sm:$0xff]
      %v712 = vld [vmem:[%s219 + $0x37] sm:$0xff]
      %v713 = vld [vmem:[%s219 + $0x3f] sm:$0xff]
      %v714 = vld [vmem:[%s219 + $0x47] sm:$0xff]
      %v715 = vld [vmem:[%s219 + $0x4f] sm:$0xff]
      %v716 = vld [vmem:[%s219 + $0x57] sm:$0xff]
      %v717 = vld [vmem:[%s219 + $0x5f] sm:$0xff]
      %v718 = vld [vmem:[%s219 + $0x67] sm:$0xff]
      %v719 = vld [vmem:[%s219 + $0x6f] sm:$0xff]
      %v720 = vld [vmem:[%s219 + $0x77] sm:$0xff]
      %v721 = vld [vmem:[%s219 + $0x7f] sm:$0xff]
      %v722 = vld [vmem:[%s219 + $0x87] sm:$0xff]
      %v723 = vld [vmem:[%s219 + $0x8f] sm:$0xff]
      %v724 = vld [vmem:[%s219 + $0x97] sm:$0xff]
      %v725 = vld [vmem:[%s219 + $0x9f] sm:$0xff]
      %v726 = vld [vmem:[%s219 + $0xa7] sm:$0xff]
      %v727 = vld [vmem:[%s219 + $0xaf] sm:$0xff]
      %v728 = vld [vmem:[%s219 + $0xb7] sm:$0xff]
      %v729 = vld [vmem:[%s219 + $0xbf] sm:$0xff]
      %v730 = vld [vmem:[%s219 + $0xc7] sm:$0xff]
      %v731 = vld [vmem:[%s219 + $0xcf] sm:$0xff]
      %v732 = vld [vmem:[%s219 + $0xd7] sm:$0xff]
      %v733 = vld [vmem:[%s219 + $0xdf] sm:$0xff]
      %v734 = vld [vmem:[%s219 + $0xe7] sm:$0xff]
      %v735 = vld [vmem:[%s219 + $0xef] sm:$0xff]
      %v736 = vld [vmem:[%s219 + $0xf7] sm:$0xff]
      %v737 = vld [vmem:[%s219 + $0xff] sm:$0xff]
      %v738 = vld [vmem:[%s219 + $0x107] sm:$0xff]
      %v739 = vsel %vm643, 1, 0
      %v740 = vsel %vm644, 1, 0
      %v741 = vsel %vm645, 1, 0
      %v742 = vsel %vm646, 1, 0
      %v743 = vsel %vm647, 1, 0
      %v744 = vsel %vm648, 1, 0
      %v745 = vsel %vm649, 1, 0
      %v746 = vsel %vm650, 1, 0
      %v747 = vsel %vm651, 1, 0
      %v748 = vsel %vm652, 1, 0
      %v749 = vsel %vm653, 1, 0
      %v750 = vsel %vm654, 1, 0
      %v751 = vsel %vm655, 1, 0
      %v752 = vsel %vm656, 1, 0
      %v753 = vsel %vm657, 1, 0
      %v754 = vsel %vm658, 1, 0
      %v755 = vsel %vm659, 1, 0
      %v756 = vsel %vm660, 1, 0
      %v757 = vsel %vm661, 1, 0
      %v758 = vsel %vm662, 1, 0
      %v759 = vsel %vm663, 1, 0
      %v760 = vsel %vm664, 1, 0
      %v761 = vsel %vm665, 1, 0
      %v762 = vsel %vm666, 1, 0
      %v763 = vsel %vm667, 1, 0
      %v764 = vsel %vm668, 1, 0
      %v765 = vsel %vm669, 1, 0
      %v766 = vsel %vm670, 1, 0
      %v767 = vsel %vm671, 1, 0
      %v768 = vsel %vm672, 1, 0
      %v769 = vsel %vm673, 1, 0
      %v770 = vsel %vm674, 1, 0
      %vm771 = vcmp.eq.s32.totalorder %v739, 1
      %vm772 = vcmp.eq.s32.totalorder %v740, 1
      %vm773 = vcmp.eq.s32.totalorder %v741, 1
      %vm774 = vcmp.eq.s32.totalorder %v742, 1
      %vm775 = vcmp.eq.s32.totalorder %v743, 1
      %vm776 = vcmp.eq.s32.totalorder %v744, 1
      %vm777 = vcmp.eq.s32.totalorder %v745, 1
      %vm778 = vcmp.eq.s32.totalorder %v746, 1
      %vm779 = vcmp.eq.s32.totalorder %v747, 1
      %vm780 = vcmp.eq.s32.totalorder %v748, 1
      %vm781 = vcmp.eq.s32.totalorder %v749, 1
      %vm782 = vcmp.eq.s32.totalorder %v750, 1
      %vm783 = vcmp.eq.s32.totalorder %v751, 1
      %vm784 = vcmp.eq.s32.totalorder %v752, 1
      %vm785 = vcmp.eq.s32.totalorder %v753, 1
      %vm786 = vcmp.eq.s32.totalorder %v754, 1
      %vm787 = vcmp.eq.s32.totalorder %v755, 1
      %vm788 = vcmp.eq.s32.totalorder %v756, 1
      %vm789 = vcmp.eq.s32.totalorder %v757, 1
      %vm790 = vcmp.eq.s32.totalorder %v758, 1
      %vm791 = vcmp.eq.s32.totalorder %v759, 1
      %vm792 = vcmp.eq.s32.totalorder %v760, 1
      %vm793 = vcmp.eq.s32.totalorder %v761, 1
      %vm794 = vcmp.eq.s32.totalorder %v762, 1
      %vm795 = vcmp.eq.s32.totalorder %v763, 1
      %vm796 = vcmp.eq.s32.totalorder %v764, 1
      %vm797 = vcmp.eq.s32.totalorder %v765, 1
      %vm798 = vcmp.eq.s32.totalorder %v766, 1
      %vm799 = vcmp.eq.s32.totalorder %v767, 1
      %vm800 = vcmp.eq.s32.totalorder %v768, 1
      %vm801 = vcmp.eq.s32.totalorder %v769, 1
      %vm802 = vcmp.eq.s32.totalorder %v770, 1
      %v803 = vsel %vm771, %v707, 0.0
      %v804 = vsel %vm772, %v708, 0.0
      %v805 = vsel %vm773, %v709, 0.0
      %v806 = vsel %vm774, %v710, 0.0
      %v807 = vsel %vm775, %v711, 0.0
      %v808 = vsel %vm776, %v712, 0.0
      %v809 = vsel %vm777, %v713, 0.0
      %v810 = vsel %vm778, %v714, 0.0
      %v811 = vsel %vm779, %v715, 0.0
      %v812 = vsel %vm780, %v716, 0.0
      %v813 = vsel %vm781, %v717, 0.0
      %v814 = vsel %vm782, %v718, 0.0
      %v815 = vsel %vm783, %v719, 0.0
      %v816 = vsel %vm784, %v720, 0.0
      %v817 = vsel %vm785, %v721, 0.0
      %v818 = vsel %vm786, %v722, 0.0
      %v819 = vsel %vm787, %v723, 0.0
      %v820 = vsel %vm788, %v724, 0.0
      %v821 = vsel %vm789, %v725, 0.0
      %v822 = vsel %vm790, %v726, 0.0
      %v823 = vsel %vm791, %v727, 0.0
      %v824 = vsel %vm792, %v728, 0.0
      %v825 = vsel %vm793, %v729, 0.0
      %v826 = vsel %vm794, %v730, 0.0
      %v827 = vsel %vm795, %v731, 0.0
      %v828 = vsel %vm796, %v732, 0.0
      %v829 = vsel %vm797, %v733, 0.0
      %v830 = vsel %vm798, %v734, 0.0
      %v831 = vsel %vm799, %v735, 0.0
      %v832 = vsel %vm800, %v736, 0.0
      %v833 = vsel %vm801, %v737, 0.0
      %v834 = vsel %vm802, %v738, 0.0
      %v835 = vpack.c.bf16 %v804, %v803
      %v836 = vpack.c.bf16 %v806, %v805
      %v837 = vpack.c.bf16 %v808, %v807
      %v838 = vpack.c.bf16 %v810, %v809
      %v839 = vpack.c.bf16 %v812, %v811
      %v840 = vpack.c.bf16 %v814, %v813
      %v841 = vpack.c.bf16 %v816, %v815
      %v842 = vpack.c.bf16 %v818, %v817
      %v843 = vpack.c.bf16 %v820, %v819
      %v844 = vpack.c.bf16 %v822, %v821
      %v845 = vpack.c.bf16 %v824, %v823
      %v846 = vpack.c.bf16 %v826, %v825
      %v847 = vpack.c.bf16 %v828, %v827
      %v848 = vpack.c.bf16 %v830, %v829
      %v849 = vpack.c.bf16 %v832, %v831
      %v850 = vpack.c.bf16 %v834, %v833
      %v851 = vld [vmem:[%s1] sm:$0xf]
      %v852 = vld [vmem:[%s219 + $0x10] sm:$0xff]
      %v853 = vld [vmem:[%s219 + $0x18] sm:$0xff]
      %v854 = vld [vmem:[%s219 + $0x20] sm:$0xff]
      %v855 = vld [vmem:[%s219 + $0x28] sm:$0xff]
      %v856 = vld [vmem:[%s219 + $0x30] sm:$0xff]
      %v857 = vld [vmem:[%s219 + $0x38] sm:$0xff]
      %v858 = vld [vmem:[%s219 + $0x40] sm:$0xff]
      %v859 = vld [vmem:[%s219 + $0x48] sm:$0xff]
      %v860 = vld [vmem:[%s219 + $0x50] sm:$0xff]
      %v861 = vld [vmem:[%s219 + $0x58] sm:$0xff]
      %v862 = vld [vmem:[%s219 + $0x60] sm:$0xff]
      %v863 = vld [vmem:[%s219 + $0x68] sm:$0xff]
      %v864 = vld [vmem:[%s219 + $0x70] sm:$0xff]
      %v865 = vld [vmem:[%s219 + $0x78] sm:$0xff]
      %v866 = vld [vmem:[%s219 + $0x80] sm:$0xff]
      %v867 = vld [vmem:[%s219 + $0x88] sm:$0xff]
      %v868 = vld [vmem:[%s219 + $0x90] sm:$0xff]
      %v869 = vld [vmem:[%s219 + $0x98] sm:$0xff]
      %v870 = vld [vmem:[%s219 + $0xa0] sm:$0xff]
      %v871 = vld [vmem:[%s219 + $0xa8] sm:$0xff]
      %v872 = vld [vmem:[%s219 + $0xb0] sm:$0xff]
      %v873 = vld [vmem:[%s219 + $0xb8] sm:$0xff]
      %v874 = vld [vmem:[%s219 + $0xc0] sm:$0xff]
      %v875 = vld [vmem:[%s219 + $0xc8] sm:$0xff]
      %v876 = vld [vmem:[%s219 + $0xd0] sm:$0xff]
      %v877 = vld [vmem:[%s219 + $0xd8] sm:$0xff]
      %v878 = vld [vmem:[%s219 + $0xe0] sm:$0xff]
      %v879 = vld [vmem:[%s219 + $0xe8] sm:$0xff]
      %v880 = vld [vmem:[%s219 + $0xf0] sm:$0xff]
      %v881 = vld [vmem:[%s219 + $0xf8] sm:$0xff]
      %v882 = vld [vmem:[%s219 + $0x100] sm:$0xff]
      %v883 = vld [vmem:[%s219 + $0x108] sm:$0xff]
      %v884 = vpack.c.bf16 %v853, %v852
      %v885 = vpack.c.bf16 %v855, %v854
      %v886 = vpack.c.bf16 %v857, %v856
      %v887 = vpack.c.bf16 %v859, %v858
      %v888 = vpack.c.bf16 %v861, %v860
      %v889 = vpack.c.bf16 %v863, %v862
      %v890 = vpack.c.bf16 %v865, %v864
      %v891 = vpack.c.bf16 %v867, %v866
      %v892 = vpack.c.bf16 %v869, %v868
      %v893 = vpack.c.bf16 %v871, %v870
      %v894 = vpack.c.bf16 %v873, %v872
      %v895 = vpack.c.bf16 %v875, %v874
      %v896 = vpack.c.bf16 %v877, %v876
      %v897 = vpack.c.bf16 %v879, %v878
      %v898 = vpack.c.bf16 %v881, %v880
      %v899 = vpack.c.bf16 %v883, %v882
      %s900 = scalar_lea.vmem %s1, 4
      %v901 = vld [vmem:[%s900] sm:$0xf]
      %vm902 = vcmask 64512
      %v904 = vsel %vm902, %v884, 0
      %v907 = vsel %vm902, %v885, 0
      %v910 = vsel %vm902, %v886, 0
      %v913 = vsel %vm902, %v887, 0
      %v916 = vsel %vm902, %v888, 0
      %v919 = vsel %vm902, %v889, 0
      %v922 = vsel %vm902, %v890, 0
      %v925 = vsel %vm902, %v891, 0
      %v928 = vsel %vm902, %v892, 0
      %v931 = vsel %vm902, %v893, 0
      %v934 = vsel %vm902, %v894, 0
      %v937 = vsel %vm902, %v895, 0
      %v940 = vsel %vm902, %v896, 0
      %v943 = vsel %vm902, %v897, 0
      %v946 = vsel %vm902, %v898, 0
      %v949 = vsel %vm902, %v899, 0
      %vm951 = vcmask 1043456
      %v953 = vsel %vm951, %v901, 0
      %955 = vmatprep.subr.bf16.mxu0 0
      %956 = vmatpush1.bf16.msra.mxu0 0
      %957 = vmatprep.subr.bf16.mxu0 0
      %958 = vmatpush1.bf16.msra.mxu0 0
      %959 = vmatprep.subr.bf16.mxu0 0
      %960 = vmatpush1.bf16.msra.mxu0 0
      %961 = vmatprep.subr.bf16.mxu0 0
      %962 = vmatpush1.bf16.msra.mxu0 0
      %963 = vmatprep.subr.bf16.mxu0 0
      %964 = vmatpush1.bf16.msra.mxu0 0
      %965 = vmatprep.subr.bf16.mxu0 0
      %966 = vmatpush1.bf16.msra.mxu0 0
      %967 = vmatprep.subr.bf16.mxu0 0
      %968 = vmatpush1.bf16.msra.mxu0 0
      %969 = vmatprep.subr.bf16.mxu0 0
      %970 = vmatpush1.bf16.msra.mxu0 %v953
      %971 = vmatprep.subr.bf16.mxu0 0
      %972 = vmatpush2.bf16.msra.mxu0 0
      %973 = vmatprep.subr.bf16.mxu0 0
      %974 = vmatpush2.bf16.msra.mxu0 0
      %975 = vmatprep.subr.bf16.mxu0 0
      %976 = vmatpush2.bf16.msra.mxu0 0
      %977 = vmatprep.subr.bf16.mxu0 0
      %978 = vmatpush2.bf16.msra.mxu0 0
      %979 = vmatprep.subr.bf16.mxu0 0
      %980 = vmatpush2.bf16.msra.mxu0 0
      %981 = vmatprep.subr.bf16.mxu0 0
      %982 = vmatpush2.bf16.msra.mxu0 0
      %983 = vmatprep.subr.bf16.mxu0 0
      %984 = vmatpush2.bf16.msra.mxu0 0
      %985 = vmatprep.subr.bf16.mxu0 0
      %986 = vmatpush2.bf16.msra.mxu0 0
      %987 = vmatprep.mubr.bf16.mxu0 0
      %988 = vmatmul.mubr.bf16.gmra.mxu0 %v904
      %v989 = vpop.f32.mrf.mxu0
      %v990 = vadd.f32 0.0, %v989
      %v991 = vpop.f32.mrf.mxu0
      %v992 = vpop.f32.mrf.mxu0
      %v993 = vadd.f32 0.0, %v992
      %v994 = vpop.f32.mrf.mxu0
      %995 = vmatprep.mubr.bf16.mxu0 0
      %996 = vmatmul.mubr.bf16.gmra.mxu0 %v907
      %v997 = vpop.f32.mrf.mxu0
      %v998 = vadd.f32 0.0, %v997
      %v999 = vpop.f32.mrf.mxu0
      %v1000 = vpop.f32.mrf.mxu0
      %v1001 = vadd.f32 0.0, %v1000
      %v1002 = vpop.f32.mrf.mxu0
      %1003 = vmatprep.mubr.bf16.mxu0 0
      %1004 = vmatmul.mubr.bf16.gmra.mxu0 %v910
      %v1005 = vpop.f32.mrf.mxu0
      %v1006 = vadd.f32 0.0, %v1005
      %v1007 = vpop.f32.mrf.mxu0
      %v1008 = vpop.f32.mrf.mxu0
      %v1009 = vadd.f32 0.0, %v1008
      %v1010 = vpop.f32.mrf.mxu0
      %1011 = vmatprep.mubr.bf16.mxu0 0
      %1012 = vmatmul.mubr.bf16.gmra.mxu0 %v913
      %v1013 = vpop.f32.mrf.mxu0
      %v1014 = vadd.f32 0.0, %v1013
      %v1015 = vpop.f32.mrf.mxu0
      %v1016 = vpop.f32.mrf.mxu0
      %v1017 = vadd.f32 0.0, %v1016
      %v1018 = vpop.f32.mrf.mxu0
      %1019 = vmatprep.mubr.bf16.mxu0 0
      %1020 = vmatmul.mubr.bf16.gmra.mxu0 %v916
      %v1021 = vpop.f32.mrf.mxu0
      %v1022 = vadd.f32 0.0, %v1021
      %v1023 = vpop.f32.mrf.mxu0
      %v1024 = vpop.f32.mrf.mxu0
      %v1025 = vadd.f32 0.0, %v1024
      %v1026 = vpop.f32.mrf.mxu0
      %1027 = vmatprep.mubr.bf16.mxu0 0
      %1028 = vmatmul.mubr.bf16.gmra.mxu0 %v919
      %v1029 = vpop.f32.mrf.mxu0
      %v1030 = vadd.f32 0.0, %v1029
      %v1031 = vpop.f32.mrf.mxu0
      %v1032 = vpop.f32.mrf.mxu0
      %v1033 = vadd.f32 0.0, %v1032
      %v1034 = vpop.f32.mrf.mxu0
      %1035 = vmatprep.mubr.bf16.mxu0 0
      %1036 = vmatmul.mubr.bf16.gmra.mxu0 %v922
      %v1037 = vpop.f32.mrf.mxu0
      %v1038 = vadd.f32 0.0, %v1037
      %v1039 = vpop.f32.mrf.mxu0
      %v1040 = vpop.f32.mrf.mxu0
      %v1041 = vadd.f32 0.0, %v1040
      %v1042 = vpop.f32.mrf.mxu0
      %1043 = vmatprep.mubr.bf16.mxu0 0
      %1044 = vmatmul.mubr.bf16.gmra.mxu0 %v925
      %v1045 = vpop.f32.mrf.mxu0
      %v1046 = vadd.f32 0.0, %v1045
      %v1047 = vpop.f32.mrf.mxu0
      %v1048 = vpop.f32.mrf.mxu0
      %v1049 = vadd.f32 0.0, %v1048
      %v1050 = vpop.f32.mrf.mxu0
      %1051 = vmatprep.mubr.bf16.mxu0 0
      %1052 = vmatmul.mubr.bf16.gmra.mxu0 %v928
      %v1053 = vpop.f32.mrf.mxu0
      %v1054 = vadd.f32 0.0, %v1053
      %v1055 = vpop.f32.mrf.mxu0
      %v1056 = vpop.f32.mrf.mxu0
      %v1057 = vadd.f32 0.0, %v1056
      %v1058 = vpop.f32.mrf.mxu0
      %1059 = vmatprep.mubr.bf16.mxu0 0
      %1060 = vmatmul.mubr.bf16.gmra.mxu0 %v931
      %v1061 = vpop.f32.mrf.mxu0
      %v1062 = vadd.f32 0.0, %v1061
      %v1063 = vpop.f32.mrf.mxu0
      %v1064 = vpop.f32.mrf.mxu0
      %v1065 = vadd.f32 0.0, %v1064
      %v1066 = vpop.f32.mrf.mxu0
      %1067 = vmatprep.mubr.bf16.mxu0 0
      %1068 = vmatmul.mubr.bf16.gmra.mxu0 %v934
      %v1069 = vpop.f32.mrf.mxu0
      %v1070 = vadd.f32 0.0, %v1069
      %v1071 = vpop.f32.mrf.mxu0
      %v1072 = vpop.f32.mrf.mxu0
      %v1073 = vadd.f32 0.0, %v1072
      %v1074 = vpop.f32.mrf.mxu0
      %1075 = vmatprep.mubr.bf16.mxu0 0
      %1076 = vmatmul.mubr.bf16.gmra.mxu0 %v937
      %v1077 = vpop.f32.mrf.mxu0
      %v1078 = vadd.f32 0.0, %v1077
      %v1079 = vpop.f32.mrf.mxu0
      %v1080 = vpop.f32.mrf.mxu0
      %v1081 = vadd.f32 0.0, %v1080
      %v1082 = vpop.f32.mrf.mxu0
      %1083 = vmatprep.mubr.bf16.mxu0 0
      %1084 = vmatmul.mubr.bf16.gmra.mxu0 %v940
      %v1085 = vpop.f32.mrf.mxu0
      %v1086 = vadd.f32 0.0, %v1085
      %v1087 = vpop.f32.mrf.mxu0
      %v1088 = vpop.f32.mrf.mxu0
      %v1089 = vadd.f32 0.0, %v1088
      %v1090 = vpop.f32.mrf.mxu0
      %1091 = vmatprep.mubr.bf16.mxu0 0
      %1092 = vmatmul.mubr.bf16.gmra.mxu0 %v943
      %v1093 = vpop.f32.mrf.mxu0
      %v1094 = vadd.f32 0.0, %v1093
      %v1095 = vpop.f32.mrf.mxu0
      %v1096 = vpop.f32.mrf.mxu0
      %v1097 = vadd.f32 0.0, %v1096
      %v1098 = vpop.f32.mrf.mxu0
      %1099 = vmatprep.mubr.bf16.mxu0 0
      %1100 = vmatmul.mubr.bf16.gmra.mxu0 %v946
      %v1101 = vpop.f32.mrf.mxu0
      %v1102 = vadd.f32 0.0, %v1101
      %v1103 = vpop.f32.mrf.mxu0
      %v1104 = vpop.f32.mrf.mxu0
      %v1105 = vadd.f32 0.0, %v1104
      %v1106 = vpop.f32.mrf.mxu0
      %1107 = vmatprep.mubr.bf16.mxu0 0
      %1108 = vmatmul.mubr.bf16.gmra.mxu0 %v949
      %v1109 = vpop.f32.mrf.mxu0
      %v1110 = vadd.f32 0.0, %v1109
      %v1111 = vpop.f32.mrf.mxu0
      %v1112 = vpop.f32.mrf.mxu0
      %v1113 = vadd.f32 0.0, %v1112
      %v1114 = vpop.f32.mrf.mxu0
      %1115 = vdwg.mxu0
      %v1117 = vsel %vm902, %v835, 0
      %v1120 = vsel %vm902, %v836, 0
      %v1123 = vsel %vm902, %v837, 0
      %v1126 = vsel %vm902, %v838, 0
      %v1129 = vsel %vm902, %v839, 0
      %v1132 = vsel %vm902, %v840, 0
      %v1135 = vsel %vm902, %v841, 0
      %v1138 = vsel %vm902, %v842, 0
      %v1141 = vsel %vm902, %v843, 0
      %v1144 = vsel %vm902, %v844, 0
      %v1147 = vsel %vm902, %v845, 0
      %v1150 = vsel %vm902, %v846, 0
      %v1153 = vsel %vm902, %v847, 0
      %v1156 = vsel %vm902, %v848, 0
      %v1159 = vsel %vm902, %v849, 0
      %v1162 = vsel %vm902, %v850, 0
      %v1165 = vsel %vm951, %v851, 0
      %1167 = vmatprep.subr.bf16.mxu0 0
      %1168 = vmatpush1.bf16.msra.mxu0 0
      %1169 = vmatprep.subr.bf16.mxu0 0
      %1170 = vmatpush1.bf16.msra.mxu0 0
      %1171 = vmatprep.subr.bf16.mxu0 0
      %1172 = vmatpush1.bf16.msra.mxu0 0
      %1173 = vmatprep.subr.bf16.mxu0 0
      %1174 = vmatpush1.bf16.msra.mxu0 0
      %1175 = vmatprep.subr.bf16.mxu0 0
      %1176 = vmatpush1.bf16.msra.mxu0 0
      %1177 = vmatprep.subr.bf16.mxu0 0
      %1178 = vmatpush1.bf16.msra.mxu0 0
      %1179 = vmatprep.subr.bf16.mxu0 0
      %1180 = vmatpush1.bf16.msra.mxu0 0
      %1181 = vmatprep.subr.bf16.mxu0 0
      %1182 = vmatpush1.bf16.msra.mxu0 %v1165
      %1183 = vmatprep.subr.bf16.mxu0 0
      %1184 = vmatpush2.bf16.msra.mxu0 0
      %1185 = vmatprep.subr.bf16.mxu0 0
      %1186 = vmatpush2.bf16.msra.mxu0 0
      %1187 = vmatprep.subr.bf16.mxu0 0
      %1188 = vmatpush2.bf16.msra.mxu0 0
      %1189 = vmatprep.subr.bf16.mxu0 0
      %1190 = vmatpush2.bf16.msra.mxu0 0
      %1191 = vmatprep.subr.bf16.mxu0 0
      %1192 = vmatpush2.bf16.msra.mxu0 0
      %1193 = vmatprep.subr.bf16.mxu0 0
      %1194 = vmatpush2.bf16.msra.mxu0 0
      %1195 = vmatprep.subr.bf16.mxu0 0
      %1196 = vmatpush2.bf16.msra.mxu0 0
      %1197 = vmatprep.subr.bf16.mxu0 0
      %1198 = vmatpush2.bf16.msra.mxu0 0
      %1199 = vmatprep.mubr.bf16.mxu0 0
      %1200 = vmatmul.mubr.bf16.gmra.mxu0 %v1117
      %v1201 = vpop.f32.mrf.mxu0
      %v1202 = vadd.f32 %v990, %v1201
      %v1203 = vpop.f32.mrf.mxu0
      %v1204 = vpop.f32.mrf.mxu0
      %v1205 = vadd.f32 %v993, %v1204
      %v1206 = vpop.f32.mrf.mxu0
      %1207 = vmatprep.mubr.bf16.mxu0 0
      %1208 = vmatmul.mubr.bf16.gmra.mxu0 %v1120
      %v1209 = vpop.f32.mrf.mxu0
      %v1210 = vadd.f32 %v998, %v1209
      %v1211 = vpop.f32.mrf.mxu0
      %v1212 = vpop.f32.mrf.mxu0
      %v1213 = vadd.f32 %v1001, %v1212
      %v1214 = vpop.f32.mrf.mxu0
      %1215 = vmatprep.mubr.bf16.mxu0 0
      %1216 = vmatmul.mubr.bf16.gmra.mxu0 %v1123
      %v1217 = vpop.f32.mrf.mxu0
      %v1218 = vadd.f32 %v1006, %v1217
      %v1219 = vpop.f32.mrf.mxu0
      %v1220 = vpop.f32.mrf.mxu0
      %v1221 = vadd.f32 %v1009, %v1220
      %v1222 = vpop.f32.mrf.mxu0
      %1223 = vmatprep.mubr.bf16.mxu0 0
      %1224 = vmatmul.mubr.bf16.gmra.mxu0 %v1126
      %v1225 = vpop.f32.mrf.mxu0
      %v1226 = vadd.f32 %v1014, %v1225
      %v1227 = vpop.f32.mrf.mxu0
      %v1228 = vpop.f32.mrf.mxu0
      %v1229 = vadd.f32 %v1017, %v1228
      %v1230 = vpop.f32.mrf.mxu0
      %1231 = vmatprep.mubr.bf16.mxu0 0
      %1232 = vmatmul.mubr.bf16.gmra.mxu0 %v1129
      %v1233 = vpop.f32.mrf.mxu0
      %v1234 = vadd.f32 %v1022, %v1233
      %v1235 = vpop.f32.mrf.mxu0
      %v1236 = vpop.f32.mrf.mxu0
      %v1237 = vadd.f32 %v1025, %v1236
      %v1238 = vpop.f32.mrf.mxu0
      %1239 = vmatprep.mubr.bf16.mxu0 0
      %1240 = vmatmul.mubr.bf16.gmra.mxu0 %v1132
      %v1241 = vpop.f32.mrf.mxu0
      %v1242 = vadd.f32 %v1030, %v1241
      %v1243 = vpop.f32.mrf.mxu0
      %v1244 = vpop.f32.mrf.mxu0
      %v1245 = vadd.f32 %v1033, %v1244
      %v1246 = vpop.f32.mrf.mxu0
      %1247 = vmatprep.mubr.bf16.mxu0 0
      %1248 = vmatmul.mubr.bf16.gmra.mxu0 %v1135
      %v1249 = vpop.f32.mrf.mxu0
      %v1250 = vadd.f32 %v1038, %v1249
      %v1251 = vpop.f32.mrf.mxu0
      %v1252 = vpop.f32.mrf.mxu0
      %v1253 = vadd.f32 %v1041, %v1252
      %v1254 = vpop.f32.mrf.mxu0
      %1255 = vmatprep.mubr.bf16.mxu0 0
      %1256 = vmatmul.mubr.bf16.gmra.mxu0 %v1138
      %v1257 = vpop.f32.mrf.mxu0
      %v1258 = vadd.f32 %v1046, %v1257
      %v1259 = vpop.f32.mrf.mxu0
      %v1260 = vpop.f32.mrf.mxu0
      %v1261 = vadd.f32 %v1049, %v1260
      %v1262 = vpop.f32.mrf.mxu0
      %1263 = vmatprep.mubr.bf16.mxu0 0
      %1264 = vmatmul.mubr.bf16.gmra.mxu0 %v1141
      %v1265 = vpop.f32.mrf.mxu0
      %v1266 = vadd.f32 %v1054, %v1265
      %v1267 = vpop.f32.mrf.mxu0
      %v1268 = vpop.f32.mrf.mxu0
      %v1269 = vadd.f32 %v1057, %v1268
      %v1270 = vpop.f32.mrf.mxu0
      %1271 = vmatprep.mubr.bf16.mxu0 0
      %1272 = vmatmul.mubr.bf16.gmra.mxu0 %v1144
      %v1273 = vpop.f32.mrf.mxu0
      %v1274 = vadd.f32 %v1062, %v1273
      %v1275 = vpop.f32.mrf.mxu0
      %v1276 = vpop.f32.mrf.mxu0
      %v1277 = vadd.f32 %v1065, %v1276
      %v1278 = vpop.f32.mrf.mxu0
      %1279 = vmatprep.mubr.bf16.mxu0 0
      %1280 = vmatmul.mubr.bf16.gmra.mxu0 %v1147
      %v1281 = vpop.f32.mrf.mxu0
      %v1282 = vadd.f32 %v1070, %v1281
      %v1283 = vpop.f32.mrf.mxu0
      %v1284 = vpop.f32.mrf.mxu0
      %v1285 = vadd.f32 %v1073, %v1284
      %v1286 = vpop.f32.mrf.mxu0
      %1287 = vmatprep.mubr.bf16.mxu0 0
      %1288 = vmatmul.mubr.bf16.gmra.mxu0 %v1150
      %v1289 = vpop.f32.mrf.mxu0
      %v1290 = vadd.f32 %v1078, %v1289
      %v1291 = vpop.f32.mrf.mxu0
      %v1292 = vpop.f32.mrf.mxu0
      %v1293 = vadd.f32 %v1081, %v1292
      %v1294 = vpop.f32.mrf.mxu0
      %1295 = vmatprep.mubr.bf16.mxu0 0
      %1296 = vmatmul.mubr.bf16.gmra.mxu0 %v1153
      %v1297 = vpop.f32.mrf.mxu0
      %v1298 = vadd.f32 %v1086, %v1297
      %v1299 = vpop.f32.mrf.mxu0
      %v1300 = vpop.f32.mrf.mxu0
      %v1301 = vadd.f32 %v1089, %v1300
      %v1302 = vpop.f32.mrf.mxu0
      %1303 = vmatprep.mubr.bf16.mxu0 0
      %1304 = vmatmul.mubr.bf16.gmra.mxu0 %v1156
      %v1305 = vpop.f32.mrf.mxu0
      %v1306 = vadd.f32 %v1094, %v1305
      %v1307 = vpop.f32.mrf.mxu0
      %v1308 = vpop.f32.mrf.mxu0
      %v1309 = vadd.f32 %v1097, %v1308
      %v1310 = vpop.f32.mrf.mxu0
      %1311 = vmatprep.mubr.bf16.mxu0 0
      %1312 = vmatmul.mubr.bf16.gmra.mxu0 %v1159
      %v1313 = vpop.f32.mrf.mxu0
      %v1314 = vadd.f32 %v1102, %v1313
      %v1315 = vpop.f32.mrf.mxu0
      %v1316 = vpop.f32.mrf.mxu0
      %v1317 = vadd.f32 %v1105, %v1316
      %v1318 = vpop.f32.mrf.mxu0
      %1319 = vmatprep.mubr.bf16.mxu0 0
      %1320 = vmatmul.mubr.bf16.gmra.mxu0 %v1162
      %v1321 = vpop.f32.mrf.mxu0
      %v1322 = vadd.f32 %v1110, %v1321
      %v1323 = vpop.f32.mrf.mxu0
      %v1324 = vpop.f32.mrf.mxu0
      %v1325 = vadd.f32 %v1113, %v1324
      %v1326 = vpop.f32.mrf.mxu0
      %1327 = vdwg.mxu0
      %v1328 = vld [vmem:[%s219 + $0x11] sm:$0xff]
      %v1329 = vld [vmem:[%s219 + $0x19] sm:$0xff]
      %v1330 = vld [vmem:[%s219 + $0x21] sm:$0xff]
      %v1331 = vld [vmem:[%s219 + $0x29] sm:$0xff]
      %v1332 = vld [vmem:[%s219 + $0x31] sm:$0xff]
      %v1333 = vld [vmem:[%s219 + $0x39] sm:$0xff]
      %v1334 = vld [vmem:[%s219 + $0x41] sm:$0xff]
      %v1335 = vld [vmem:[%s219 + $0x49] sm:$0xff]
      %v1336 = vld [vmem:[%s219 + $0x51] sm:$0xff]
      %v1337 = vld [vmem:[%s219 + $0x59] sm:$0xff]
      %v1338 = vld [vmem:[%s219 + $0x61] sm:$0xff]
      %v1339 = vld [vmem:[%s219 + $0x69] sm:$0xff]
      %v1340 = vld [vmem:[%s219 + $0x71] sm:$0xff]
      %v1341 = vld [vmem:[%s219 + $0x79] sm:$0xff]
      %v1342 = vld [vmem:[%s219 + $0x81] sm:$0xff]
      %v1343 = vld [vmem:[%s219 + $0x89] sm:$0xff]
      %v1344 = vld [vmem:[%s219 + $0x91] sm:$0xff]
      %v1345 = vld [vmem:[%s219 + $0x99] sm:$0xff]
      %v1346 = vld [vmem:[%s219 + $0xa1] sm:$0xff]
      %v1347 = vld [vmem:[%s219 + $0xa9] sm:$0xff]
      %v1348 = vld [vmem:[%s219 + $0xb1] sm:$0xff]
      %v1349 = vld [vmem:[%s219 + $0xb9] sm:$0xff]
      %v1350 = vld [vmem:[%s219 + $0xc1] sm:$0xff]
      %v1351 = vld [vmem:[%s219 + $0xc9] sm:$0xff]
      %v1352 = vld [vmem:[%s219 + $0xd1] sm:$0xff]
      %v1353 = vld [vmem:[%s219 + $0xd9] sm:$0xff]
      %v1354 = vld [vmem:[%s219 + $0xe1] sm:$0xff]
      %v1355 = vld [vmem:[%s219 + $0xe9] sm:$0xff]
      %v1356 = vld [vmem:[%s219 + $0xf1] sm:$0xff]
      %v1357 = vld [vmem:[%s219 + $0xf9] sm:$0xff]
      %v1358 = vld [vmem:[%s219 + $0x101] sm:$0xff]
      %v1359 = vld [vmem:[%s219 + $0x109] sm:$0xff]
      %v1360 = vsel %vm675, 1, 0
      %v1361 = vsel %vm676, 1, 0
      %v1362 = vsel %vm677, 1, 0
      %v1363 = vsel %vm678, 1, 0
      %v1364 = vsel %vm679, 1, 0
      %v1365 = vsel %vm680, 1, 0
      %v1366 = vsel %vm681, 1, 0
      %v1367 = vsel %vm682, 1, 0
      %v1368 = vsel %vm683, 1, 0
      %v1369 = vsel %vm684, 1, 0
      %v1370 = vsel %vm685, 1, 0
      %v1371 = vsel %vm686, 1, 0
      %v1372 = vsel %vm687, 1, 0
      %v1373 = vsel %vm688, 1, 0
      %v1374 = vsel %vm689, 1, 0
      %v1375 = vsel %vm690, 1, 0
      %v1376 = vsel %vm691, 1, 0
      %v1377 = vsel %vm692, 1, 0
      %v1378 = vsel %vm693, 1, 0
      %v1379 = vsel %vm694, 1, 0
      %v1380 = vsel %vm695, 1, 0
      %v1381 = vsel %vm696, 1, 0
      %v1382 = vsel %vm697, 1, 0
      %v1383 = vsel %vm698, 1, 0
      %v1384 = vsel %vm699, 1, 0
      %v1385 = vsel %vm700, 1, 0
      %v1386 = vsel %vm701, 1, 0
      %v1387 = vsel %vm702, 1, 0
      %v1388 = vsel %vm703, 1, 0
      %v1389 = vsel %vm704, 1, 0
      %v1390 = vsel %vm705, 1, 0
      %v1391 = vsel %vm706, 1, 0
      %vm1392 = vcmp.eq.s32.totalorder %v1360, 1
      %vm1393 = vcmp.eq.s32.totalorder %v1361, 1
      %vm1394 = vcmp.eq.s32.totalorder %v1362, 1
      %vm1395 = vcmp.eq.s32.totalorder %v1363, 1
      %vm1396 = vcmp.eq.s32.totalorder %v1364, 1
      %vm1397 = vcmp.eq.s32.totalorder %v1365, 1
      %vm1398 = vcmp.eq.s32.totalorder %v1366, 1
      %vm1399 = vcmp.eq.s32.totalorder %v1367, 1
      %vm1400 = vcmp.eq.s32.totalorder %v1368, 1
      %vm1401 = vcmp.eq.s32.totalorder %v1369, 1
      %vm1402 = vcmp.eq.s32.totalorder %v1370, 1
      %vm1403 = vcmp.eq.s32.totalorder %v1371, 1
      %vm1404 = vcmp.eq.s32.totalorder %v1372, 1
      %vm1405 = vcmp.eq.s32.totalorder %v1373, 1
      %vm1406 = vcmp.eq.s32.totalorder %v1374, 1
      %vm1407 = vcmp.eq.s32.totalorder %v1375, 1
      %vm1408 = vcmp.eq.s32.totalorder %v1376, 1
      %vm1409 = vcmp.eq.s32.totalorder %v1377, 1
      %vm1410 = vcmp.eq.s32.totalorder %v1378, 1
      %vm1411 = vcmp.eq.s32.totalorder %v1379, 1
      %vm1412 = vcmp.eq.s32.totalorder %v1380, 1
      %vm1413 = vcmp.eq.s32.totalorder %v1381, 1
      %vm1414 = vcmp.eq.s32.totalorder %v1382, 1
      %vm1415 = vcmp.eq.s32.totalorder %v1383, 1
      %vm1416 = vcmp.eq.s32.totalorder %v1384, 1
      %vm1417 = vcmp.eq.s32.totalorder %v1385, 1
      %vm1418 = vcmp.eq.s32.totalorder %v1386, 1
      %vm1419 = vcmp.eq.s32.totalorder %v1387, 1
      %vm1420 = vcmp.eq.s32.totalorder %v1388, 1
      %vm1421 = vcmp.eq.s32.totalorder %v1389, 1
      %vm1422 = vcmp.eq.s32.totalorder %v1390, 1
      %vm1423 = vcmp.eq.s32.totalorder %v1391, 1
      %v1424 = vsel %vm1392, %v1328, 0.0
      %v1425 = vsel %vm1393, %v1329, 0.0
      %v1426 = vsel %vm1394, %v1330, 0.0
      %v1427 = vsel %vm1395, %v1331, 0.0
      %v1428 = vsel %vm1396, %v1332, 0.0
      %v1429 = vsel %vm1397, %v1333, 0.0
      %v1430 = vsel %vm1398, %v1334, 0.0
      %v1431 = vsel %vm1399, %v1335, 0.0
      %v1432 = vsel %vm1400, %v1336, 0.0
      %v1433 = vsel %vm1401, %v1337, 0.0
      %v1434 = vsel %vm1402, %v1338, 0.0
      %v1435 = vsel %vm1403, %v1339, 0.0
      %v1436 = vsel %vm1404, %v1340, 0.0
      %v1437 = vsel %vm1405, %v1341, 0.0
      %v1438 = vsel %vm1406, %v1342, 0.0
      %v1439 = vsel %vm1407, %v1343, 0.0
      %v1440 = vsel %vm1408, %v1344, 0.0
      %v1441 = vsel %vm1409, %v1345, 0.0
      %v1442 = vsel %vm1410, %v1346, 0.0
      %v1443 = vsel %vm1411, %v1347, 0.0
      %v1444 = vsel %vm1412, %v1348, 0.0
      %v1445 = vsel %vm1413, %v1349, 0.0
      %v1446 = vsel %vm1414, %v1350, 0.0
      %v1447 = vsel %vm1415, %v1351, 0.0
      %v1448 = vsel %vm1416, %v1352, 0.0
      %v1449 = vsel %vm1417, %v1353, 0.0
      %v1450 = vsel %vm1418, %v1354, 0.0
      %v1451 = vsel %vm1419, %v1355, 0.0
      %v1452 = vsel %vm1420, %v1356, 0.0
      %v1453 = vsel %vm1421, %v1357, 0.0
      %v1454 = vsel %vm1422, %v1358, 0.0
      %v1455 = vsel %vm1423, %v1359, 0.0
      %v1456 = vpack.c.bf16 %v1425, %v1424
      %v1457 = vpack.c.bf16 %v1427, %v1426
      %v1458 = vpack.c.bf16 %v1429, %v1428
      %v1459 = vpack.c.bf16 %v1431, %v1430
      %v1460 = vpack.c.bf16 %v1433, %v1432
      %v1461 = vpack.c.bf16 %v1435, %v1434
      %v1462 = vpack.c.bf16 %v1437, %v1436
      %v1463 = vpack.c.bf16 %v1439, %v1438
      %v1464 = vpack.c.bf16 %v1441, %v1440
      %v1465 = vpack.c.bf16 %v1443, %v1442
      %v1466 = vpack.c.bf16 %v1445, %v1444
      %v1467 = vpack.c.bf16 %v1447, %v1446
      %v1468 = vpack.c.bf16 %v1449, %v1448
      %v1469 = vpack.c.bf16 %v1451, %v1450
      %v1470 = vpack.c.bf16 %v1453, %v1452
      %v1471 = vpack.c.bf16 %v1455, %v1454
      %s1472 = scalar_lea.vmem %s1, 8
      %v1473 = vld [vmem:[%s1472] sm:$0xf]
      %v1475 = vsel %vm902, %v1456, 0
      %v1478 = vsel %vm902, %v1457, 0
      %v1481 = vsel %vm902, %v1458, 0
      %v1484 = vsel %vm902, %v1459, 0
      %v1487 = vsel %vm902, %v1460, 0
      %v1490 = vsel %vm902, %v1461, 0
      %v1493 = vsel %vm902, %v1462, 0
      %v1496 = vsel %vm902, %v1463, 0
      %v1499 = vsel %vm902, %v1464, 0
      %v1502 = vsel %vm902, %v1465, 0
      %v1505 = vsel %vm902, %v1466, 0
      %v1508 = vsel %vm902, %v1467, 0
      %v1511 = vsel %vm902, %v1468, 0
      %v1514 = vsel %vm902, %v1469, 0
      %v1517 = vsel %vm902, %v1470, 0
      %v1520 = vsel %vm902, %v1471, 0
      %v1523 = vsel %vm951, %v1473, 0
      %1525 = vmatprep.subr.bf16.mxu0 0
      %1526 = vmatpush1.bf16.msra.mxu0 0
      %1527 = vmatprep.subr.bf16.mxu0 0
      %1528 = vmatpush1.bf16.msra.mxu0 0
      %1529 = vmatprep.subr.bf16.mxu0 0
      %1530 = vmatpush1.bf16.msra.mxu0 0
      %1531 = vmatprep.subr.bf16.mxu0 0
      %1532 = vmatpush1.bf16.msra.mxu0 0
      %1533 = vmatprep.subr.bf16.mxu0 0
      %1534 = vmatpush1.bf16.msra.mxu0 0
      %1535 = vmatprep.subr.bf16.mxu0 0
      %1536 = vmatpush1.bf16.msra.mxu0 0
      %1537 = vmatprep.subr.bf16.mxu0 0
      %1538 = vmatpush1.bf16.msra.mxu0 0
      %1539 = vmatprep.subr.bf16.mxu0 0
      %1540 = vmatpush1.bf16.msra.mxu0 %v1523
      %1541 = vmatprep.subr.bf16.mxu0 0
      %1542 = vmatpush2.bf16.msra.mxu0 0
      %1543 = vmatprep.subr.bf16.mxu0 0
      %1544 = vmatpush2.bf16.msra.mxu0 0
      %1545 = vmatprep.subr.bf16.mxu0 0
      %1546 = vmatpush2.bf16.msra.mxu0 0
      %1547 = vmatprep.subr.bf16.mxu0 0
      %1548 = vmatpush2.bf16.msra.mxu0 0
      %1549 = vmatprep.subr.bf16.mxu0 0
      %1550 = vmatpush2.bf16.msra.mxu0 0
      %1551 = vmatprep.subr.bf16.mxu0 0
      %1552 = vmatpush2.bf16.msra.mxu0 0
      %1553 = vmatprep.subr.bf16.mxu0 0
      %1554 = vmatpush2.bf16.msra.mxu0 0
      %1555 = vmatprep.subr.bf16.mxu0 0
      %1556 = vmatpush2.bf16.msra.mxu0 0
      %1557 = vmatprep.mubr.bf16.mxu0 0
      %1558 = vmatmul.mubr.bf16.gmra.mxu0 %v1475
      %v1559 = vpop.f32.mrf.mxu0
      %v1560 = vadd.f32 0.0, %v1559
      %v1561 = vpop.f32.mrf.mxu0
      %v1562 = vpop.f32.mrf.mxu0
      %v1563 = vadd.f32 0.0, %v1562
      %v1564 = vpop.f32.mrf.mxu0
      %1565 = vmatprep.mubr.bf16.mxu0 0
      %1566 = vmatmul.mubr.bf16.gmra.mxu0 %v1478
      %v1567 = vpop.f32.mrf.mxu0
      %v1568 = vadd.f32 0.0, %v1567
      %v1569 = vpop.f32.mrf.mxu0
      %v1570 = vpop.f32.mrf.mxu0
      %v1571 = vadd.f32 0.0, %v1570
      %v1572 = vpop.f32.mrf.mxu0
      %1573 = vmatprep.mubr.bf16.mxu0 0
      %1574 = vmatmul.mubr.bf16.gmra.mxu0 %v1481
      %v1575 = vpop.f32.mrf.mxu0
      %v1576 = vadd.f32 0.0, %v1575
      %v1577 = vpop.f32.mrf.mxu0
      %v1578 = vpop.f32.mrf.mxu0
      %v1579 = vadd.f32 0.0, %v1578
      %v1580 = vpop.f32.mrf.mxu0
      %1581 = vmatprep.mubr.bf16.mxu0 0
      %1582 = vmatmul.mubr.bf16.gmra.mxu0 %v1484
      %v1583 = vpop.f32.mrf.mxu0
      %v1584 = vadd.f32 0.0, %v1583
      %v1585 = vpop.f32.mrf.mxu0
      %v1586 = vpop.f32.mrf.mxu0
      %v1587 = vadd.f32 0.0, %v1586
      %v1588 = vpop.f32.mrf.mxu0
      %1589 = vmatprep.mubr.bf16.mxu0 0
      %1590 = vmatmul.mubr.bf16.gmra.mxu0 %v1487
      %v1591 = vpop.f32.mrf.mxu0
      %v1592 = vadd.f32 0.0, %v1591
      %v1593 = vpop.f32.mrf.mxu0
      %v1594 = vpop.f32.mrf.mxu0
      %v1595 = vadd.f32 0.0, %v1594
      %v1596 = vpop.f32.mrf.mxu0
      %1597 = vmatprep.mubr.bf16.mxu0 0
      %1598 = vmatmul.mubr.bf16.gmra.mxu0 %v1490
      %v1599 = vpop.f32.mrf.mxu0
      %v1600 = vadd.f32 0.0, %v1599
      %v1601 = vpop.f32.mrf.mxu0
      %v1602 = vpop.f32.mrf.mxu0
      %v1603 = vadd.f32 0.0, %v1602
      %v1604 = vpop.f32.mrf.mxu0
      %1605 = vmatprep.mubr.bf16.mxu0 0
      %1606 = vmatmul.mubr.bf16.gmra.mxu0 %v1493
      %v1607 = vpop.f32.mrf.mxu0
      %v1608 = vadd.f32 0.0, %v1607
      %v1609 = vpop.f32.mrf.mxu0
      %v1610 = vpop.f32.mrf.mxu0
      %v1611 = vadd.f32 0.0, %v1610
      %v1612 = vpop.f32.mrf.mxu0
      %1613 = vmatprep.mubr.bf16.mxu0 0
      %1614 = vmatmul.mubr.bf16.gmra.mxu0 %v1496
      %v1615 = vpop.f32.mrf.mxu0
      %v1616 = vadd.f32 0.0, %v1615
      %v1617 = vpop.f32.mrf.mxu0
      %v1618 = vpop.f32.mrf.mxu0
      %v1619 = vadd.f32 0.0, %v1618
      %v1620 = vpop.f32.mrf.mxu0
      %1621 = vmatprep.mubr.bf16.mxu0 0
      %1622 = vmatmul.mubr.bf16.gmra.mxu0 %v1499
      %v1623 = vpop.f32.mrf.mxu0
      %v1624 = vadd.f32 0.0, %v1623
      %v1625 = vpop.f32.mrf.mxu0
      %v1626 = vpop.f32.mrf.mxu0
      %v1627 = vadd.f32 0.0, %v1626
      %v1628 = vpop.f32.mrf.mxu0
      %1629 = vmatprep.mubr.bf16.mxu0 0
      %1630 = vmatmul.mubr.bf16.gmra.mxu0 %v1502
      %v1631 = vpop.f32.mrf.mxu0
      %v1632 = vadd.f32 0.0, %v1631
      %v1633 = vpop.f32.mrf.mxu0
      %v1634 = vpop.f32.mrf.mxu0
      %v1635 = vadd.f32 0.0, %v1634
      %v1636 = vpop.f32.mrf.mxu0
      %1637 = vmatprep.mubr.bf16.mxu0 0
      %1638 = vmatmul.mubr.bf16.gmra.mxu0 %v1505
      %v1639 = vpop.f32.mrf.mxu0
      %v1640 = vadd.f32 0.0, %v1639
      %v1641 = vpop.f32.mrf.mxu0
      %v1642 = vpop.f32.mrf.mxu0
      %v1643 = vadd.f32 0.0, %v1642
      %v1644 = vpop.f32.mrf.mxu0
      %1645 = vmatprep.mubr.bf16.mxu0 0
      %1646 = vmatmul.mubr.bf16.gmra.mxu0 %v1508
      %v1647 = vpop.f32.mrf.mxu0
      %v1648 = vadd.f32 0.0, %v1647
      %v1649 = vpop.f32.mrf.mxu0
      %v1650 = vpop.f32.mrf.mxu0
      %v1651 = vadd.f32 0.0, %v1650
      %v1652 = vpop.f32.mrf.mxu0
      %1653 = vmatprep.mubr.bf16.mxu0 0
      %1654 = vmatmul.mubr.bf16.gmra.mxu0 %v1511
      %v1655 = vpop.f32.mrf.mxu0
      %v1656 = vadd.f32 0.0, %v1655
      %v1657 = vpop.f32.mrf.mxu0
      %v1658 = vpop.f32.mrf.mxu0
      %v1659 = vadd.f32 0.0, %v1658
      %v1660 = vpop.f32.mrf.mxu0
      %1661 = vmatprep.mubr.bf16.mxu0 0
      %1662 = vmatmul.mubr.bf16.gmra.mxu0 %v1514
      %v1663 = vpop.f32.mrf.mxu0
      %v1664 = vadd.f32 0.0, %v1663
      %v1665 = vpop.f32.mrf.mxu0
      %v1666 = vpop.f32.mrf.mxu0
      %v1667 = vadd.f32 0.0, %v1666
      %v1668 = vpop.f32.mrf.mxu0
      %1669 = vmatprep.mubr.bf16.mxu0 0
      %1670 = vmatmul.mubr.bf16.gmra.mxu0 %v1517
      %v1671 = vpop.f32.mrf.mxu0
      %v1672 = vadd.f32 0.0, %v1671
      %v1673 = vpop.f32.mrf.mxu0
      %v1674 = vpop.f32.mrf.mxu0
      %v1675 = vadd.f32 0.0, %v1674
      %v1676 = vpop.f32.mrf.mxu0
      %1677 = vmatprep.mubr.bf16.mxu0 0
      %1678 = vmatmul.mubr.bf16.gmra.mxu0 %v1520
      %v1679 = vpop.f32.mrf.mxu0
      %v1680 = vadd.f32 0.0, %v1679
      %v1681 = vpop.f32.mrf.mxu0
      %v1682 = vpop.f32.mrf.mxu0
      %v1683 = vadd.f32 0.0, %v1682
      %v1684 = vpop.f32.mrf.mxu0
      %1685 = vdwg.mxu0
      %v1686 = vadd.f32 %v1202, %v1560
      %v1687 = vadd.f32 %v1205, %v1563
      %v1688 = vadd.f32 %v1210, %v1568
      %v1689 = vadd.f32 %v1213, %v1571
      %v1690 = vadd.f32 %v1218, %v1576
      %v1691 = vadd.f32 %v1221, %v1579
      %v1692 = vadd.f32 %v1226, %v1584
      %v1693 = vadd.f32 %v1229, %v1587
      %v1694 = vadd.f32 %v1234, %v1592
      %v1695 = vadd.f32 %v1237, %v1595
      %v1696 = vadd.f32 %v1242, %v1600
      %v1697 = vadd.f32 %v1245, %v1603
      %v1698 = vadd.f32 %v1250, %v1608
      %v1699 = vadd.f32 %v1253, %v1611
      %v1700 = vadd.f32 %v1258, %v1616
      %v1701 = vadd.f32 %v1261, %v1619
      %v1702 = vadd.f32 %v1266, %v1624
      %v1703 = vadd.f32 %v1269, %v1627
      %v1704 = vadd.f32 %v1274, %v1632
      %v1705 = vadd.f32 %v1277, %v1635
      %v1706 = vadd.f32 %v1282, %v1640
      %v1707 = vadd.f32 %v1285, %v1643
      %v1708 = vadd.f32 %v1290, %v1648
      %v1709 = vadd.f32 %v1293, %v1651
      %v1710 = vadd.f32 %v1298, %v1656
      %v1711 = vadd.f32 %v1301, %v1659
      %v1712 = vadd.f32 %v1306, %v1664
      %v1713 = vadd.f32 %v1309, %v1667
      %v1714 = vadd.f32 %v1314, %v1672
      %v1715 = vadd.f32 %v1317, %v1675
      %v1716 = vadd.f32 %v1322, %v1680
      %v1717 = vadd.f32 %v1325, %v1683
      %v1718 = vld [vmem:[%s219 + $0x1f] sm:$0xff]
      %v1719 = vld [vmem:[%s219 + $0x27] sm:$0xff]
      %v1720 = vld [vmem:[%s219 + $0x2f] sm:$0xff]
      %v1721 = vld [vmem:[%s219 + $0x37] sm:$0xff]
      %v1722 = vld [vmem:[%s219 + $0x3f] sm:$0xff]
      %v1723 = vld [vmem:[%s219 + $0x47] sm:$0xff]
      %v1724 = vld [vmem:[%s219 + $0x4f] sm:$0xff]
      %v1725 = vld [vmem:[%s219 + $0x57] sm:$0xff]
      %v1726 = vld [vmem:[%s219 + $0x5f] sm:$0xff]
      %v1727 = vld [vmem:[%s219 + $0x67] sm:$0xff]
      %v1728 = vld [vmem:[%s219 + $0x6f] sm:$0xff]
      %v1729 = vld [vmem:[%s219 + $0x77] sm:$0xff]
      %v1730 = vld [vmem:[%s219 + $0x7f] sm:$0xff]
      %v1731 = vld [vmem:[%s219 + $0x87] sm:$0xff]
      %v1732 = vld [vmem:[%s219 + $0x8f] sm:$0xff]
      %v1733 = vld [vmem:[%s219 + $0x97] sm:$0xff]
      %v1734 = vld [vmem:[%s219 + $0x9f] sm:$0xff]
      %v1735 = vld [vmem:[%s219 + $0xa7] sm:$0xff]
      %v1736 = vld [vmem:[%s219 + $0xaf] sm:$0xff]
      %v1737 = vld [vmem:[%s219 + $0xb7] sm:$0xff]
      %v1738 = vld [vmem:[%s219 + $0xbf] sm:$0xff]
      %v1739 = vld [vmem:[%s219 + $0xc7] sm:$0xff]
      %v1740 = vld [vmem:[%s219 + $0xcf] sm:$0xff]
      %v1741 = vld [vmem:[%s219 + $0xd7] sm:$0xff]
      %v1742 = vld [vmem:[%s219 + $0xdf] sm:$0xff]
      %v1743 = vld [vmem:[%s219 + $0xe7] sm:$0xff]
      %v1744 = vld [vmem:[%s219 + $0xef] sm:$0xff]
      %v1745 = vld [vmem:[%s219 + $0xf7] sm:$0xff]
      %v1746 = vld [vmem:[%s219 + $0xff] sm:$0xff]
      %v1747 = vld [vmem:[%s219 + $0x107] sm:$0xff]
      %v1748 = vld [vmem:[%s219 + $0x10f] sm:$0xff]
      %v1749 = vld [vmem:[%s219 + $0x117] sm:$0xff]
      %v1750 = vsel %vm771, %v1718, 0.0
      %v1751 = vsel %vm772, %v1719, 0.0
      %v1752 = vsel %vm773, %v1720, 0.0
      %v1753 = vsel %vm774, %v1721, 0.0
      %v1754 = vsel %vm775, %v1722, 0.0
      %v1755 = vsel %vm776, %v1723, 0.0
      %v1756 = vsel %vm777, %v1724, 0.0
      %v1757 = vsel %vm778, %v1725, 0.0
      %v1758 = vsel %vm779, %v1726, 0.0
      %v1759 = vsel %vm780, %v1727, 0.0
      %v1760 = vsel %vm781, %v1728, 0.0
      %v1761 = vsel %vm782, %v1729, 0.0
      %v1762 = vsel %vm783, %v1730, 0.0
      %v1763 = vsel %vm784, %v1731, 0.0
      %v1764 = vsel %vm785, %v1732, 0.0
      %v1765 = vsel %vm786, %v1733, 0.0
      %v1766 = vsel %vm787, %v1734, 0.0
      %v1767 = vsel %vm788, %v1735, 0.0
      %v1768 = vsel %vm789, %v1736, 0.0
      %v1769 = vsel %vm790, %v1737, 0.0
      %v1770 = vsel %vm791, %v1738, 0.0
      %v1771 = vsel %vm792, %v1739, 0.0
      %v1772 = vsel %vm793, %v1740, 0.0
      %v1773 = vsel %vm794, %v1741, 0.0
      %v1774 = vsel %vm795, %v1742, 0.0
      %v1775 = vsel %vm796, %v1743, 0.0
      %v1776 = vsel %vm797, %v1744, 0.0
      %v1777 = vsel %vm798, %v1745, 0.0
      %v1778 = vsel %vm799, %v1746, 0.0
      %v1779 = vsel %vm800, %v1747, 0.0
      %v1780 = vsel %vm801, %v1748, 0.0
      %v1781 = vsel %vm802, %v1749, 0.0
      %v1782 = vpack.c.bf16 %v1751, %v1750
      %v1783 = vpack.c.bf16 %v1753, %v1752
      %v1784 = vpack.c.bf16 %v1755, %v1754
      %v1785 = vpack.c.bf16 %v1757, %v1756
      %v1786 = vpack.c.bf16 %v1759, %v1758
      %v1787 = vpack.c.bf16 %v1761, %v1760
      %v1788 = vpack.c.bf16 %v1763, %v1762
      %v1789 = vpack.c.bf16 %v1765, %v1764
      %v1790 = vpack.c.bf16 %v1767, %v1766
      %v1791 = vpack.c.bf16 %v1769, %v1768
      %v1792 = vpack.c.bf16 %v1771, %v1770
      %v1793 = vpack.c.bf16 %v1773, %v1772
      %v1794 = vpack.c.bf16 %v1775, %v1774
      %v1795 = vpack.c.bf16 %v1777, %v1776
      %v1796 = vpack.c.bf16 %v1779, %v1778
      %v1797 = vpack.c.bf16 %v1781, %v1780
      %s1798 = scalar_lea.vmem %s1, 12
      %v1799 = vld [vmem:[%s1798] sm:$0xf]
      %v1801 = vsel %vm902, %v1782, 0
      %v1804 = vsel %vm902, %v1783, 0
      %v1807 = vsel %vm902, %v1784, 0
      %v1810 = vsel %vm902, %v1785, 0
      %v1813 = vsel %vm902, %v1786, 0
      %v1816 = vsel %vm902, %v1787, 0
      %v1819 = vsel %vm902, %v1788, 0
      %v1822 = vsel %vm902, %v1789, 0
      %v1825 = vsel %vm902, %v1790, 0
      %v1828 = vsel %vm902, %v1791, 0
      %v1831 = vsel %vm902, %v1792, 0
      %v1834 = vsel %vm902, %v1793, 0
      %v1837 = vsel %vm902, %v1794, 0
      %v1840 = vsel %vm902, %v1795, 0
      %v1843 = vsel %vm902, %v1796, 0
      %v1846 = vsel %vm902, %v1797, 0
      %v1849 = vsel %vm951, %v1799, 0
      %1851 = vmatprep.subr.bf16.mxu0 0
      %1852 = vmatpush1.bf16.msra.mxu0 0
      %1853 = vmatprep.subr.bf16.mxu0 0
      %1854 = vmatpush1.bf16.msra.mxu0 0
      %1855 = vmatprep.subr.bf16.mxu0 0
      %1856 = vmatpush1.bf16.msra.mxu0 0
      %1857 = vmatprep.subr.bf16.mxu0 0
      %1858 = vmatpush1.bf16.msra.mxu0 0
      %1859 = vmatprep.subr.bf16.mxu0 0
      %1860 = vmatpush1.bf16.msra.mxu0 0
      %1861 = vmatprep.subr.bf16.mxu0 0
      %1862 = vmatpush1.bf16.msra.mxu0 0
      %1863 = vmatprep.subr.bf16.mxu0 0
      %1864 = vmatpush1.bf16.msra.mxu0 0
      %1865 = vmatprep.subr.bf16.mxu0 0
      %1866 = vmatpush1.bf16.msra.mxu0 %v1849
      %1867 = vmatprep.subr.bf16.mxu0 0
      %1868 = vmatpush2.bf16.msra.mxu0 0
      %1869 = vmatprep.subr.bf16.mxu0 0
      %1870 = vmatpush2.bf16.msra.mxu0 0
      %1871 = vmatprep.subr.bf16.mxu0 0
      %1872 = vmatpush2.bf16.msra.mxu0 0
      %1873 = vmatprep.subr.bf16.mxu0 0
      %1874 = vmatpush2.bf16.msra.mxu0 0
      %1875 = vmatprep.subr.bf16.mxu0 0
      %1876 = vmatpush2.bf16.msra.mxu0 0
      %1877 = vmatprep.subr.bf16.mxu0 0
      %1878 = vmatpush2.bf16.msra.mxu0 0
      %1879 = vmatprep.subr.bf16.mxu0 0
      %1880 = vmatpush2.bf16.msra.mxu0 0
      %1881 = vmatprep.subr.bf16.mxu0 0
      %1882 = vmatpush2.bf16.msra.mxu0 0
      %1883 = vmatprep.mubr.bf16.mxu0 0
      %1884 = vmatmul.mubr.bf16.gmra.mxu0 %v1801
      %v1885 = vpop.f32.mrf.mxu0
      %v1886 = vadd.f32 0.0, %v1885
      %v1887 = vpop.f32.mrf.mxu0
      %v1888 = vpop.f32.mrf.mxu0
      %v1889 = vadd.f32 0.0, %v1888
      %v1890 = vpop.f32.mrf.mxu0
      %1891 = vmatprep.mubr.bf16.mxu0 0
      %1892 = vmatmul.mubr.bf16.gmra.mxu0 %v1804
      %v1893 = vpop.f32.mrf.mxu0
      %v1894 = vadd.f32 0.0, %v1893
      %v1895 = vpop.f32.mrf.mxu0
      %v1896 = vpop.f32.mrf.mxu0
      %v1897 = vadd.f32 0.0, %v1896
      %v1898 = vpop.f32.mrf.mxu0
      %1899 = vmatprep.mubr.bf16.mxu0 0
      %1900 = vmatmul.mubr.bf16.gmra.mxu0 %v1807
      %v1901 = vpop.f32.mrf.mxu0
      %v1902 = vadd.f32 0.0, %v1901
      %v1903 = vpop.f32.mrf.mxu0
      %v1904 = vpop.f32.mrf.mxu0
      %v1905 = vadd.f32 0.0, %v1904
      %v1906 = vpop.f32.mrf.mxu0
      %1907 = vmatprep.mubr.bf16.mxu0 0
      %1908 = vmatmul.mubr.bf16.gmra.mxu0 %v1810
      %v1909 = vpop.f32.mrf.mxu0
      %v1910 = vadd.f32 0.0, %v1909
      %v1911 = vpop.f32.mrf.mxu0
      %v1912 = vpop.f32.mrf.mxu0
      %v1913 = vadd.f32 0.0, %v1912
      %v1914 = vpop.f32.mrf.mxu0
      %1915 = vmatprep.mubr.bf16.mxu0 0
      %1916 = vmatmul.mubr.bf16.gmra.mxu0 %v1813
      %v1917 = vpop.f32.mrf.mxu0
      %v1918 = vadd.f32 0.0, %v1917
      %v1919 = vpop.f32.mrf.mxu0
      %v1920 = vpop.f32.mrf.mxu0
      %v1921 = vadd.f32 0.0, %v1920
      %v1922 = vpop.f32.mrf.mxu0
      %1923 = vmatprep.mubr.bf16.mxu0 0
      %1924 = vmatmul.mubr.bf16.gmra.mxu0 %v1816
      %v1925 = vpop.f32.mrf.mxu0
      %v1926 = vadd.f32 0.0, %v1925
      %v1927 = vpop.f32.mrf.mxu0
      %v1928 = vpop.f32.mrf.mxu0
      %v1929 = vadd.f32 0.0, %v1928
      %v1930 = vpop.f32.mrf.mxu0
      %1931 = vmatprep.mubr.bf16.mxu0 0
      %1932 = vmatmul.mubr.bf16.gmra.mxu0 %v1819
      %v1933 = vpop.f32.mrf.mxu0
      %v1934 = vadd.f32 0.0, %v1933
      %v1935 = vpop.f32.mrf.mxu0
      %v1936 = vpop.f32.mrf.mxu0
      %v1937 = vadd.f32 0.0, %v1936
      %v1938 = vpop.f32.mrf.mxu0
      %1939 = vmatprep.mubr.bf16.mxu0 0
      %1940 = vmatmul.mubr.bf16.gmra.mxu0 %v1822
      %v1941 = vpop.f32.mrf.mxu0
      %v1942 = vadd.f32 0.0, %v1941
      %v1943 = vpop.f32.mrf.mxu0
      %v1944 = vpop.f32.mrf.mxu0
      %v1945 = vadd.f32 0.0, %v1944
      %v1946 = vpop.f32.mrf.mxu0
      %1947 = vmatprep.mubr.bf16.mxu0 0
      %1948 = vmatmul.mubr.bf16.gmra.mxu0 %v1825
      %v1949 = vpop.f32.mrf.mxu0
      %v1950 = vadd.f32 0.0, %v1949
      %v1951 = vpop.f32.mrf.mxu0
      %v1952 = vpop.f32.mrf.mxu0
      %v1953 = vadd.f32 0.0, %v1952
      %v1954 = vpop.f32.mrf.mxu0
      %1955 = vmatprep.mubr.bf16.mxu0 0
      %1956 = vmatmul.mubr.bf16.gmra.mxu0 %v1828
      %v1957 = vpop.f32.mrf.mxu0
      %v1958 = vadd.f32 0.0, %v1957
      %v1959 = vpop.f32.mrf.mxu0
      %v1960 = vpop.f32.mrf.mxu0
      %v1961 = vadd.f32 0.0, %v1960
      %v1962 = vpop.f32.mrf.mxu0
      %1963 = vmatprep.mubr.bf16.mxu0 0
      %1964 = vmatmul.mubr.bf16.gmra.mxu0 %v1831
      %v1965 = vpop.f32.mrf.mxu0
      %v1966 = vadd.f32 0.0, %v1965
      %v1967 = vpop.f32.mrf.mxu0
      %v1968 = vpop.f32.mrf.mxu0
      %v1969 = vadd.f32 0.0, %v1968
      %v1970 = vpop.f32.mrf.mxu0
      %1971 = vmatprep.mubr.bf16.mxu0 0
      %1972 = vmatmul.mubr.bf16.gmra.mxu0 %v1834
      %v1973 = vpop.f32.mrf.mxu0
      %v1974 = vadd.f32 0.0, %v1973
      %v1975 = vpop.f32.mrf.mxu0
      %v1976 = vpop.f32.mrf.mxu0
      %v1977 = vadd.f32 0.0, %v1976
      %v1978 = vpop.f32.mrf.mxu0
      %1979 = vmatprep.mubr.bf16.mxu0 0
      %1980 = vmatmul.mubr.bf16.gmra.mxu0 %v1837
      %v1981 = vpop.f32.mrf.mxu0
      %v1982 = vadd.f32 0.0, %v1981
      %v1983 = vpop.f32.mrf.mxu0
      %v1984 = vpop.f32.mrf.mxu0
      %v1985 = vadd.f32 0.0, %v1984
      %v1986 = vpop.f32.mrf.mxu0
      %1987 = vmatprep.mubr.bf16.mxu0 0
      %1988 = vmatmul.mubr.bf16.gmra.mxu0 %v1840
      %v1989 = vpop.f32.mrf.mxu0
      %v1990 = vadd.f32 0.0, %v1989
      %v1991 = vpop.f32.mrf.mxu0
      %v1992 = vpop.f32.mrf.mxu0
      %v1993 = vadd.f32 0.0, %v1992
      %v1994 = vpop.f32.mrf.mxu0
      %1995 = vmatprep.mubr.bf16.mxu0 0
      %1996 = vmatmul.mubr.bf16.gmra.mxu0 %v1843
      %v1997 = vpop.f32.mrf.mxu0
      %v1998 = vadd.f32 0.0, %v1997
      %v1999 = vpop.f32.mrf.mxu0
      %v2000 = vpop.f32.mrf.mxu0
      %v2001 = vadd.f32 0.0, %v2000
      %v2002 = vpop.f32.mrf.mxu0
      %2003 = vmatprep.mubr.bf16.mxu0 0
      %2004 = vmatmul.mubr.bf16.gmra.mxu0 %v1846
      %v2005 = vpop.f32.mrf.mxu0
      %v2006 = vadd.f32 0.0, %v2005
      %v2007 = vpop.f32.mrf.mxu0
      %v2008 = vpop.f32.mrf.mxu0
      %v2009 = vadd.f32 0.0, %v2008
      %v2010 = vpop.f32.mrf.mxu0
      %2011 = vdwg.mxu0
      %v2012 = vadd.f32 %v1686, %v1886
      %v2013 = vadd.f32 %v1687, %v1889
      %v2014 = vadd.f32 %v1688, %v1894
      %v2015 = vadd.f32 %v1689, %v1897
      %v2016 = vadd.f32 %v1690, %v1902
      %v2017 = vadd.f32 %v1691, %v1905
      %v2018 = vadd.f32 %v1692, %v1910
      %v2019 = vadd.f32 %v1693, %v1913
      %v2020 = vadd.f32 %v1694, %v1918
      %v2021 = vadd.f32 %v1695, %v1921
      %v2022 = vadd.f32 %v1696, %v1926
      %v2023 = vadd.f32 %v1697, %v1929
      %v2024 = vadd.f32 %v1698, %v1934
      %v2025 = vadd.f32 %v1699, %v1937
      %v2026 = vadd.f32 %v1700, %v1942
      %v2027 = vadd.f32 %v1701, %v1945
      %v2028 = vadd.f32 %v1702, %v1950
      %v2029 = vadd.f32 %v1703, %v1953
      %v2030 = vadd.f32 %v1704, %v1958
      %v2031 = vadd.f32 %v1705, %v1961
      %v2032 = vadd.f32 %v1706, %v1966
      %v2033 = vadd.f32 %v1707, %v1969
      %v2034 = vadd.f32 %v1708, %v1974
      %v2035 = vadd.f32 %v1709, %v1977
      %v2036 = vadd.f32 %v1710, %v1982
      %v2037 = vadd.f32 %v1711, %v1985
      %v2038 = vadd.f32 %v1712, %v1990
      %v2039 = vadd.f32 %v1713, %v1993
      %v2040 = vadd.f32 %v1714, %v1998
      %v2041 = vadd.f32 %v1715, %v2001
      %v2042 = vadd.f32 %v1716, %v2006
      %v2043 = vadd.f32 %v1717, %v2009
      %v2044 = vld [vmem:[%s219 + $0x20] sm:$0xff]
      %v2045 = vld [vmem:[%s219 + $0x28] sm:$0xff]
      %v2046 = vld [vmem:[%s219 + $0x30] sm:$0xff]
      %v2047 = vld [vmem:[%s219 + $0x38] sm:$0xff]
      %v2048 = vld [vmem:[%s219 + $0x40] sm:$0xff]
      %v2049 = vld [vmem:[%s219 + $0x48] sm:$0xff]
      %v2050 = vld [vmem:[%s219 + $0x50] sm:$0xff]
      %v2051 = vld [vmem:[%s219 + $0x58] sm:$0xff]
      %v2052 = vld [vmem:[%s219 + $0x60] sm:$0xff]
      %v2053 = vld [vmem:[%s219 + $0x68] sm:$0xff]
      %v2054 = vld [vmem:[%s219 + $0x70] sm:$0xff]
      %v2055 = vld [vmem:[%s219 + $0x78] sm:$0xff]
      %v2056 = vld [vmem:[%s219 + $0x80] sm:$0xff]
      %v2057 = vld [vmem:[%s219 + $0x88] sm:$0xff]
      %v2058 = vld [vmem:[%s219 + $0x90] sm:$0xff]
      %v2059 = vld [vmem:[%s219 + $0x98] sm:$0xff]
      %v2060 = vld [vmem:[%s219 + $0xa0] sm:$0xff]
      %v2061 = vld [vmem:[%s219 + $0xa8] sm:$0xff]
      %v2062 = vld [vmem:[%s219 + $0xb0] sm:$0xff]
      %v2063 = vld [vmem:[%s219 + $0xb8] sm:$0xff]
      %v2064 = vld [vmem:[%s219 + $0xc0] sm:$0xff]
      %v2065 = vld [vmem:[%s219 + $0xc8] sm:$0xff]
      %v2066 = vld [vmem:[%s219 + $0xd0] sm:$0xff]
      %v2067 = vld [vmem:[%s219 + $0xd8] sm:$0xff]
      %v2068 = vld [vmem:[%s219 + $0xe0] sm:$0xff]
      %v2069 = vld [vmem:[%s219 + $0xe8] sm:$0xff]
      %v2070 = vld [vmem:[%s219 + $0xf0] sm:$0xff]
      %v2071 = vld [vmem:[%s219 + $0xf8] sm:$0xff]
      %v2072 = vld [vmem:[%s219 + $0x100] sm:$0xff]
      %v2073 = vld [vmem:[%s219 + $0x108] sm:$0xff]
      %v2074 = vld [vmem:[%s219 + $0x110] sm:$0xff]
      %v2075 = vld [vmem:[%s219 + $0x118] sm:$0xff]
      %v2076 = vpack.c.bf16 %v2045, %v2044
      %v2077 = vpack.c.bf16 %v2047, %v2046
      %v2078 = vpack.c.bf16 %v2049, %v2048
      %v2079 = vpack.c.bf16 %v2051, %v2050
      %v2080 = vpack.c.bf16 %v2053, %v2052
      %v2081 = vpack.c.bf16 %v2055, %v2054
      %v2082 = vpack.c.bf16 %v2057, %v2056
      %v2083 = vpack.c.bf16 %v2059, %v2058
      %v2084 = vpack.c.bf16 %v2061, %v2060
      %v2085 = vpack.c.bf16 %v2063, %v2062
      %v2086 = vpack.c.bf16 %v2065, %v2064
      %v2087 = vpack.c.bf16 %v2067, %v2066
      %v2088 = vpack.c.bf16 %v2069, %v2068
      %v2089 = vpack.c.bf16 %v2071, %v2070
      %v2090 = vpack.c.bf16 %v2073, %v2072
      %v2091 = vpack.c.bf16 %v2075, %v2074
      %s2092 = scalar_lea.vmem %s1, 16
      %v2093 = vld [vmem:[%s2092] sm:$0xf]
      %v2095 = vsel %vm902, %v2076, 0
      %v2098 = vsel %vm902, %v2077, 0
      %v2101 = vsel %vm902, %v2078, 0
      %v2104 = vsel %vm902, %v2079, 0
      %v2107 = vsel %vm902, %v2080, 0
      %v2110 = vsel %vm902, %v2081, 0
      %v2113 = vsel %vm902, %v2082, 0
      %v2116 = vsel %vm902, %v2083, 0
      %v2119 = vsel %vm902, %v2084, 0
      %v2122 = vsel %vm902, %v2085, 0
      %v2125 = vsel %vm902, %v2086, 0
      %v2128 = vsel %vm902, %v2087, 0
      %v2131 = vsel %vm902, %v2088, 0
      %v2134 = vsel %vm902, %v2089, 0
      %v2137 = vsel %vm902, %v2090, 0
      %v2140 = vsel %vm902, %v2091, 0
      %v2143 = vsel %vm951, %v2093, 0
      %2145 = vmatprep.subr.bf16.mxu0 0
      %2146 = vmatpush1.bf16.msra.mxu0 0
      %2147 = vmatprep.subr.bf16.mxu0 0
      %2148 = vmatpush1.bf16.msra.mxu0 0
      %2149 = vmatprep.subr.bf16.mxu0 0
      %2150 = vmatpush1.bf16.msra.mxu0 0
      %2151 = vmatprep.subr.bf16.mxu0 0
      %2152 = vmatpush1.bf16.msra.mxu0 0
      %2153 = vmatprep.subr.bf16.mxu0 0
      %2154 = vmatpush1.bf16.msra.mxu0 0
      %2155 = vmatprep.subr.bf16.mxu0 0
      %2156 = vmatpush1.bf16.msra.mxu0 0
      %2157 = vmatprep.subr.bf16.mxu0 0
      %2158 = vmatpush1.bf16.msra.mxu0 0
      %2159 = vmatprep.subr.bf16.mxu0 0
      %2160 = vmatpush1.bf16.msra.mxu0 %v2143
      %2161 = vmatprep.subr.bf16.mxu0 0
      %2162 = vmatpush2.bf16.msra.mxu0 0
      %2163 = vmatprep.subr.bf16.mxu0 0
      %2164 = vmatpush2.bf16.msra.mxu0 0
      %2165 = vmatprep.subr.bf16.mxu0 0
      %2166 = vmatpush2.bf16.msra.mxu0 0
      %2167 = vmatprep.subr.bf16.mxu0 0
      %2168 = vmatpush2.bf16.msra.mxu0 0
      %2169 = vmatprep.subr.bf16.mxu0 0
      %2170 = vmatpush2.bf16.msra.mxu0 0
      %2171 = vmatprep.subr.bf16.mxu0 0
      %2172 = vmatpush2.bf16.msra.mxu0 0
      %2173 = vmatprep.subr.bf16.mxu0 0
      %2174 = vmatpush2.bf16.msra.mxu0 0
      %2175 = vmatprep.subr.bf16.mxu0 0
      %2176 = vmatpush2.bf16.msra.mxu0 0
      %2177 = vmatprep.mubr.bf16.mxu0 0
      %2178 = vmatmul.mubr.bf16.gmra.mxu0 %v2095
      %v2179 = vpop.f32.mrf.mxu0
      %v2180 = vadd.f32 0.0, %v2179
      %v2181 = vpop.f32.mrf.mxu0
      %v2182 = vpop.f32.mrf.mxu0
      %v2183 = vadd.f32 0.0, %v2182
      %v2184 = vpop.f32.mrf.mxu0
      %2185 = vmatprep.mubr.bf16.mxu0 0
      %2186 = vmatmul.mubr.bf16.gmra.mxu0 %v2098
      %v2187 = vpop.f32.mrf.mxu0
      %v2188 = vadd.f32 0.0, %v2187
      %v2189 = vpop.f32.mrf.mxu0
      %v2190 = vpop.f32.mrf.mxu0
      %v2191 = vadd.f32 0.0, %v2190
      %v2192 = vpop.f32.mrf.mxu0
      %2193 = vmatprep.mubr.bf16.mxu0 0
      %2194 = vmatmul.mubr.bf16.gmra.mxu0 %v2101
      %v2195 = vpop.f32.mrf.mxu0
      %v2196 = vadd.f32 0.0, %v2195
      %v2197 = vpop.f32.mrf.mxu0
      %v2198 = vpop.f32.mrf.mxu0
      %v2199 = vadd.f32 0.0, %v2198
      %v2200 = vpop.f32.mrf.mxu0
      %2201 = vmatprep.mubr.bf16.mxu0 0
      %2202 = vmatmul.mubr.bf16.gmra.mxu0 %v2104
      %v2203 = vpop.f32.mrf.mxu0
      %v2204 = vadd.f32 0.0, %v2203
      %v2205 = vpop.f32.mrf.mxu0
      %v2206 = vpop.f32.mrf.mxu0
      %v2207 = vadd.f32 0.0, %v2206
      %v2208 = vpop.f32.mrf.mxu0
      %2209 = vmatprep.mubr.bf16.mxu0 0
      %2210 = vmatmul.mubr.bf16.gmra.mxu0 %v2107
      %v2211 = vpop.f32.mrf.mxu0
      %v2212 = vadd.f32 0.0, %v2211
      %v2213 = vpop.f32.mrf.mxu0
      %v2214 = vpop.f32.mrf.mxu0
      %v2215 = vadd.f32 0.0, %v2214
      %v2216 = vpop.f32.mrf.mxu0
      %2217 = vmatprep.mubr.bf16.mxu0 0
      %2218 = vmatmul.mubr.bf16.gmra.mxu0 %v2110
      %v2219 = vpop.f32.mrf.mxu0
      %v2220 = vadd.f32 0.0, %v2219
      %v2221 = vpop.f32.mrf.mxu0
      %v2222 = vpop.f32.mrf.mxu0
      %v2223 = vadd.f32 0.0, %v2222
      %v2224 = vpop.f32.mrf.mxu0
      %2225 = vmatprep.mubr.bf16.mxu0 0
      %2226 = vmatmul.mubr.bf16.gmra.mxu0 %v2113
      %v2227 = vpop.f32.mrf.mxu0
      %v2228 = vadd.f32 0.0, %v2227
      %v2229 = vpop.f32.mrf.mxu0
      %v2230 = vpop.f32.mrf.mxu0
      %v2231 = vadd.f32 0.0, %v2230
      %v2232 = vpop.f32.mrf.mxu0
      %2233 = vmatprep.mubr.bf16.mxu0 0
      %2234 = vmatmul.mubr.bf16.gmra.mxu0 %v2116
      %v2235 = vpop.f32.mrf.mxu0
      %v2236 = vadd.f32 0.0, %v2235
      %v2237 = vpop.f32.mrf.mxu0
      %v2238 = vpop.f32.mrf.mxu0
      %v2239 = vadd.f32 0.0, %v2238
      %v2240 = vpop.f32.mrf.mxu0
      %2241 = vmatprep.mubr.bf16.mxu0 0
      %2242 = vmatmul.mubr.bf16.gmra.mxu0 %v2119
      %v2243 = vpop.f32.mrf.mxu0
      %v2244 = vadd.f32 0.0, %v2243
      %v2245 = vpop.f32.mrf.mxu0
      %v2246 = vpop.f32.mrf.mxu0
      %v2247 = vadd.f32 0.0, %v2246
      %v2248 = vpop.f32.mrf.mxu0
      %2249 = vmatprep.mubr.bf16.mxu0 0
      %2250 = vmatmul.mubr.bf16.gmra.mxu0 %v2122
      %v2251 = vpop.f32.mrf.mxu0
      %v2252 = vadd.f32 0.0, %v2251
      %v2253 = vpop.f32.mrf.mxu0
      %v2254 = vpop.f32.mrf.mxu0
      %v2255 = vadd.f32 0.0, %v2254
      %v2256 = vpop.f32.mrf.mxu0
      %2257 = vmatprep.mubr.bf16.mxu0 0
      %2258 = vmatmul.mubr.bf16.gmra.mxu0 %v2125
      %v2259 = vpop.f32.mrf.mxu0
      %v2260 = vadd.f32 0.0, %v2259
      %v2261 = vpop.f32.mrf.mxu0
      %v2262 = vpop.f32.mrf.mxu0
      %v2263 = vadd.f32 0.0, %v2262
      %v2264 = vpop.f32.mrf.mxu0
      %2265 = vmatprep.mubr.bf16.mxu0 0
      %2266 = vmatmul.mubr.bf16.gmra.mxu0 %v2128
      %v2267 = vpop.f32.mrf.mxu0
      %v2268 = vadd.f32 0.0, %v2267
      %v2269 = vpop.f32.mrf.mxu0
      %v2270 = vpop.f32.mrf.mxu0
      %v2271 = vadd.f32 0.0, %v2270
      %v2272 = vpop.f32.mrf.mxu0
      %2273 = vmatprep.mubr.bf16.mxu0 0
      %2274 = vmatmul.mubr.bf16.gmra.mxu0 %v2131
      %v2275 = vpop.f32.mrf.mxu0
      %v2276 = vadd.f32 0.0, %v2275
      %v2277 = vpop.f32.mrf.mxu0
      %v2278 = vpop.f32.mrf.mxu0
      %v2279 = vadd.f32 0.0, %v2278
      %v2280 = vpop.f32.mrf.mxu0
      %2281 = vmatprep.mubr.bf16.mxu0 0
      %2282 = vmatmul.mubr.bf16.gmra.mxu0 %v2134
      %v2283 = vpop.f32.mrf.mxu0
      %v2284 = vadd.f32 0.0, %v2283
      %v2285 = vpop.f32.mrf.mxu0
      %v2286 = vpop.f32.mrf.mxu0
      %v2287 = vadd.f32 0.0, %v2286
      %v2288 = vpop.f32.mrf.mxu0
      %2289 = vmatprep.mubr.bf16.mxu0 0
      %2290 = vmatmul.mubr.bf16.gmra.mxu0 %v2137
      %v2291 = vpop.f32.mrf.mxu0
      %v2292 = vadd.f32 0.0, %v2291
      %v2293 = vpop.f32.mrf.mxu0
      %v2294 = vpop.f32.mrf.mxu0
      %v2295 = vadd.f32 0.0, %v2294
      %v2296 = vpop.f32.mrf.mxu0
      %2297 = vmatprep.mubr.bf16.mxu0 0
      %2298 = vmatmul.mubr.bf16.gmra.mxu0 %v2140
      %v2299 = vpop.f32.mrf.mxu0
      %v2300 = vadd.f32 0.0, %v2299
      %v2301 = vpop.f32.mrf.mxu0
      %v2302 = vpop.f32.mrf.mxu0
      %v2303 = vadd.f32 0.0, %v2302
      %v2304 = vpop.f32.mrf.mxu0
      %2305 = vdwg.mxu0
      %v2306 = vadd.f32 %v2012, %v2180
      %v2307 = vadd.f32 %v2013, %v2183
      %v2308 = vadd.f32 %v2014, %v2188
      %v2309 = vadd.f32 %v2015, %v2191
      %v2310 = vadd.f32 %v2016, %v2196
      %v2311 = vadd.f32 %v2017, %v2199
      %v2312 = vadd.f32 %v2018, %v2204
      %v2313 = vadd.f32 %v2019, %v2207
      %v2314 = vadd.f32 %v2020, %v2212
      %v2315 = vadd.f32 %v2021, %v2215
      %v2316 = vadd.f32 %v2022, %v2220
      %v2317 = vadd.f32 %v2023, %v2223
      %v2318 = vadd.f32 %v2024, %v2228
      %v2319 = vadd.f32 %v2025, %v2231
      %v2320 = vadd.f32 %v2026, %v2236
      %v2321 = vadd.f32 %v2027, %v2239
      %v2322 = vadd.f32 %v2028, %v2244
      %v2323 = vadd.f32 %v2029, %v2247
      %v2324 = vadd.f32 %v2030, %v2252
      %v2325 = vadd.f32 %v2031, %v2255
      %v2326 = vadd.f32 %v2032, %v2260
      %v2327 = vadd.f32 %v2033, %v2263
      %v2328 = vadd.f32 %v2034, %v2268
      %v2329 = vadd.f32 %v2035, %v2271
      %v2330 = vadd.f32 %v2036, %v2276
      %v2331 = vadd.f32 %v2037, %v2279
      %v2332 = vadd.f32 %v2038, %v2284
      %v2333 = vadd.f32 %v2039, %v2287
      %v2334 = vadd.f32 %v2040, %v2292
      %v2335 = vadd.f32 %v2041, %v2295
      %v2336 = vadd.f32 %v2042, %v2300
      %v2337 = vadd.f32 %v2043, %v2303
      %v2338 = vld [vmem:[%s219 + $0x21] sm:$0xff]
      %v2339 = vld [vmem:[%s219 + $0x29] sm:$0xff]
      %v2340 = vld [vmem:[%s219 + $0x31] sm:$0xff]
      %v2341 = vld [vmem:[%s219 + $0x39] sm:$0xff]
      %v2342 = vld [vmem:[%s219 + $0x41] sm:$0xff]
      %v2343 = vld [vmem:[%s219 + $0x49] sm:$0xff]
      %v2344 = vld [vmem:[%s219 + $0x51] sm:$0xff]
      %v2345 = vld [vmem:[%s219 + $0x59] sm:$0xff]
      %v2346 = vld [vmem:[%s219 + $0x61] sm:$0xff]
      %v2347 = vld [vmem:[%s219 + $0x69] sm:$0xff]
      %v2348 = vld [vmem:[%s219 + $0x71] sm:$0xff]
      %v2349 = vld [vmem:[%s219 + $0x79] sm:$0xff]
      %v2350 = vld [vmem:[%s219 + $0x81] sm:$0xff]
      %v2351 = vld [vmem:[%s219 + $0x89] sm:$0xff]
      %v2352 = vld [vmem:[%s219 + $0x91] sm:$0xff]
      %v2353 = vld [vmem:[%s219 + $0x99] sm:$0xff]
      %v2354 = vld [vmem:[%s219 + $0xa1] sm:$0xff]
      %v2355 = vld [vmem:[%s219 + $0xa9] sm:$0xff]
      %v2356 = vld [vmem:[%s219 + $0xb1] sm:$0xff]
      %v2357 = vld [vmem:[%s219 + $0xb9] sm:$0xff]
      %v2358 = vld [vmem:[%s219 + $0xc1] sm:$0xff]
      %v2359 = vld [vmem:[%s219 + $0xc9] sm:$0xff]
      %v2360 = vld [vmem:[%s219 + $0xd1] sm:$0xff]
      %v2361 = vld [vmem:[%s219 + $0xd9] sm:$0xff]
      %v2362 = vld [vmem:[%s219 + $0xe1] sm:$0xff]
      %v2363 = vld [vmem:[%s219 + $0xe9] sm:$0xff]
      %v2364 = vld [vmem:[%s219 + $0xf1] sm:$0xff]
      %v2365 = vld [vmem:[%s219 + $0xf9] sm:$0xff]
      %v2366 = vld [vmem:[%s219 + $0x101] sm:$0xff]
      %v2367 = vld [vmem:[%s219 + $0x109] sm:$0xff]
      %v2368 = vld [vmem:[%s219 + $0x111] sm:$0xff]
      %v2369 = vld [vmem:[%s219 + $0x119] sm:$0xff]
      %v2370 = vsel %vm1392, %v2338, 0.0
      %v2371 = vsel %vm1393, %v2339, 0.0
      %v2372 = vsel %vm1394, %v2340, 0.0
      %v2373 = vsel %vm1395, %v2341, 0.0
      %v2374 = vsel %vm1396, %v2342, 0.0
      %v2375 = vsel %vm1397, %v2343, 0.0
      %v2376 = vsel %vm1398, %v2344, 0.0
      %v2377 = vsel %vm1399, %v2345, 0.0
      %v2378 = vsel %vm1400, %v2346, 0.0
      %v2379 = vsel %vm1401, %v2347, 0.0
      %v2380 = vsel %vm1402, %v2348, 0.0
      %v2381 = vsel %vm1403, %v2349, 0.0
      %v2382 = vsel %vm1404, %v2350, 0.0
      %v2383 = vsel %vm1405, %v2351, 0.0
      %v2384 = vsel %vm1406, %v2352, 0.0
      %v2385 = vsel %vm1407, %v2353, 0.0
      %v2386 = vsel %vm1408, %v2354, 0.0
      %v2387 = vsel %vm1409, %v2355, 0.0
      %v2388 = vsel %vm1410, %v2356, 0.0
      %v2389 = vsel %vm1411, %v2357, 0.0
      %v2390 = vsel %vm1412, %v2358, 0.0
      %v2391 = vsel %vm1413, %v2359, 0.0
      %v2392 = vsel %vm1414, %v2360, 0.0
      %v2393 = vsel %vm1415, %v2361, 0.0
      %v2394 = vsel %vm1416, %v2362, 0.0
      %v2395 = vsel %vm1417, %v2363, 0.0
      %v2396 = vsel %vm1418, %v2364, 0.0
      %v2397 = vsel %vm1419, %v2365, 0.0
      %v2398 = vsel %vm1420, %v2366, 0.0
      %v2399 = vsel %vm1421, %v2367, 0.0
      %v2400 = vsel %vm1422, %v2368, 0.0
      %v2401 = vsel %vm1423, %v2369, 0.0
      %v2402 = vpack.c.bf16 %v2371, %v2370
      %v2403 = vpack.c.bf16 %v2373, %v2372
      %v2404 = vpack.c.bf16 %v2375, %v2374
      %v2405 = vpack.c.bf16 %v2377, %v2376
      %v2406 = vpack.c.bf16 %v2379, %v2378
      %v2407 = vpack.c.bf16 %v2381, %v2380
      %v2408 = vpack.c.bf16 %v2383, %v2382
      %v2409 = vpack.c.bf16 %v2385, %v2384
      %v2410 = vpack.c.bf16 %v2387, %v2386
      %v2411 = vpack.c.bf16 %v2389, %v2388
      %v2412 = vpack.c.bf16 %v2391, %v2390
      %v2413 = vpack.c.bf16 %v2393, %v2392
      %v2414 = vpack.c.bf16 %v2395, %v2394
      %v2415 = vpack.c.bf16 %v2397, %v2396
      %v2416 = vpack.c.bf16 %v2399, %v2398
      %v2417 = vpack.c.bf16 %v2401, %v2400
      %s2418 = scalar_lea.vmem %s1, 20
      %v2419 = vld [vmem:[%s2418] sm:$0xf]
      %v2421 = vsel %vm902, %v2402, 0
      %v2424 = vsel %vm902, %v2403, 0
      %v2427 = vsel %vm902, %v2404, 0
      %v2430 = vsel %vm902, %v2405, 0
      %v2433 = vsel %vm902, %v2406, 0
      %v2436 = vsel %vm902, %v2407, 0
      %v2439 = vsel %vm902, %v2408, 0
      %v2442 = vsel %vm902, %v2409, 0
      %v2445 = vsel %vm902, %v2410, 0
      %v2448 = vsel %vm902, %v2411, 0
      %v2451 = vsel %vm902, %v2412, 0
      %v2454 = vsel %vm902, %v2413, 0
      %v2457 = vsel %vm902, %v2414, 0
      %v2460 = vsel %vm902, %v2415, 0
      %v2463 = vsel %vm902, %v2416, 0
      %v2466 = vsel %vm902, %v2417, 0
      %v2469 = vsel %vm951, %v2419, 0
      %2471 = vmatprep.subr.bf16.mxu0 0
      %2472 = vmatpush1.bf16.msra.mxu0 0
      %2473 = vmatprep.subr.bf16.mxu0 0
      %2474 = vmatpush1.bf16.msra.mxu0 0
      %2475 = vmatprep.subr.bf16.mxu0 0
      %2476 = vmatpush1.bf16.msra.mxu0 0
      %2477 = vmatprep.subr.bf16.mxu0 0
      %2478 = vmatpush1.bf16.msra.mxu0 0
      %2479 = vmatprep.subr.bf16.mxu0 0
      %2480 = vmatpush1.bf16.msra.mxu0 0
      %2481 = vmatprep.subr.bf16.mxu0 0
      %2482 = vmatpush1.bf16.msra.mxu0 0
      %2483 = vmatprep.subr.bf16.mxu0 0
      %2484 = vmatpush1.bf16.msra.mxu0 0
      %2485 = vmatprep.subr.bf16.mxu0 0
      %2486 = vmatpush1.bf16.msra.mxu0 %v2469
      %2487 = vmatprep.subr.bf16.mxu0 0
      %2488 = vmatpush2.bf16.msra.mxu0 0
      %2489 = vmatprep.subr.bf16.mxu0 0
      %2490 = vmatpush2.bf16.msra.mxu0 0
      %2491 = vmatprep.subr.bf16.mxu0 0
      %2492 = vmatpush2.bf16.msra.mxu0 0
      %2493 = vmatprep.subr.bf16.mxu0 0
      %2494 = vmatpush2.bf16.msra.mxu0 0
      %2495 = vmatprep.subr.bf16.mxu0 0
      %2496 = vmatpush2.bf16.msra.mxu0 0
      %2497 = vmatprep.subr.bf16.mxu0 0
      %2498 = vmatpush2.bf16.msra.mxu0 0
      %2499 = vmatprep.subr.bf16.mxu0 0
      %2500 = vmatpush2.bf16.msra.mxu0 0
      %2501 = vmatprep.subr.bf16.mxu0 0
      %2502 = vmatpush2.bf16.msra.mxu0 0
      %2503 = vmatprep.mubr.bf16.mxu0 0
      %2504 = vmatmul.mubr.bf16.gmra.mxu0 %v2421
      %v2505 = vpop.f32.mrf.mxu0
      %v2506 = vadd.f32 0.0, %v2505
      %v2507 = vpop.f32.mrf.mxu0
      %v2508 = vpop.f32.mrf.mxu0
      %v2509 = vadd.f32 0.0, %v2508
      %v2510 = vpop.f32.mrf.mxu0
      %2511 = vmatprep.mubr.bf16.mxu0 0
      %2512 = vmatmul.mubr.bf16.gmra.mxu0 %v2424
      %v2513 = vpop.f32.mrf.mxu0
      %v2514 = vadd.f32 0.0, %v2513
      %v2515 = vpop.f32.mrf.mxu0
      %v2516 = vpop.f32.mrf.mxu0
      %v2517 = vadd.f32 0.0, %v2516
      %v2518 = vpop.f32.mrf.mxu0
      %2519 = vmatprep.mubr.bf16.mxu0 0
      %2520 = vmatmul.mubr.bf16.gmra.mxu0 %v2427
      %v2521 = vpop.f32.mrf.mxu0
      %v2522 = vadd.f32 0.0, %v2521
      %v2523 = vpop.f32.mrf.mxu0
      %v2524 = vpop.f32.mrf.mxu0
      %v2525 = vadd.f32 0.0, %v2524
      %v2526 = vpop.f32.mrf.mxu0
      %2527 = vmatprep.mubr.bf16.mxu0 0
      %2528 = vmatmul.mubr.bf16.gmra.mxu0 %v2430
      %v2529 = vpop.f32.mrf.mxu0
      %v2530 = vadd.f32 0.0, %v2529
      %v2531 = vpop.f32.mrf.mxu0
      %v2532 = vpop.f32.mrf.mxu0
      %v2533 = vadd.f32 0.0, %v2532
      %v2534 = vpop.f32.mrf.mxu0
      %2535 = vmatprep.mubr.bf16.mxu0 0
      %2536 = vmatmul.mubr.bf16.gmra.mxu0 %v2433
      %v2537 = vpop.f32.mrf.mxu0
      %v2538 = vadd.f32 0.0, %v2537
      %v2539 = vpop.f32.mrf.mxu0
      %v2540 = vpop.f32.mrf.mxu0
      %v2541 = vadd.f32 0.0, %v2540
      %v2542 = vpop.f32.mrf.mxu0
      %2543 = vmatprep.mubr.bf16.mxu0 0
      %2544 = vmatmul.mubr.bf16.gmra.mxu0 %v2436
      %v2545 = vpop.f32.mrf.mxu0
      %v2546 = vadd.f32 0.0, %v2545
      %v2547 = vpop.f32.mrf.mxu0
      %v2548 = vpop.f32.mrf.mxu0
      %v2549 = vadd.f32 0.0, %v2548
      %v2550 = vpop.f32.mrf.mxu0
      %2551 = vmatprep.mubr.bf16.mxu0 0
      %2552 = vmatmul.mubr.bf16.gmra.mxu0 %v2439
      %v2553 = vpop.f32.mrf.mxu0
      %v2554 = vadd.f32 0.0, %v2553
      %v2555 = vpop.f32.mrf.mxu0
      %v2556 = vpop.f32.mrf.mxu0
      %v2557 = vadd.f32 0.0, %v2556
      %v2558 = vpop.f32.mrf.mxu0
      %2559 = vmatprep.mubr.bf16.mxu0 0
      %2560 = vmatmul.mubr.bf16.gmra.mxu0 %v2442
      %v2561 = vpop.f32.mrf.mxu0
      %v2562 = vadd.f32 0.0, %v2561
      %v2563 = vpop.f32.mrf.mxu0
      %v2564 = vpop.f32.mrf.mxu0
      %v2565 = vadd.f32 0.0, %v2564
      %v2566 = vpop.f32.mrf.mxu0
      %2567 = vmatprep.mubr.bf16.mxu0 0
      %2568 = vmatmul.mubr.bf16.gmra.mxu0 %v2445
      %v2569 = vpop.f32.mrf.mxu0
      %v2570 = vadd.f32 0.0, %v2569
      %v2571 = vpop.f32.mrf.mxu0
      %v2572 = vpop.f32.mrf.mxu0
      %v2573 = vadd.f32 0.0, %v2572
      %v2574 = vpop.f32.mrf.mxu0
      %2575 = vmatprep.mubr.bf16.mxu0 0
      %2576 = vmatmul.mubr.bf16.gmra.mxu0 %v2448
      %v2577 = vpop.f32.mrf.mxu0
      %v2578 = vadd.f32 0.0, %v2577
      %v2579 = vpop.f32.mrf.mxu0
      %v2580 = vpop.f32.mrf.mxu0
      %v2581 = vadd.f32 0.0, %v2580
      %v2582 = vpop.f32.mrf.mxu0
      %2583 = vmatprep.mubr.bf16.mxu0 0
      %2584 = vmatmul.mubr.bf16.gmra.mxu0 %v2451
      %v2585 = vpop.f32.mrf.mxu0
      %v2586 = vadd.f32 0.0, %v2585
      %v2587 = vpop.f32.mrf.mxu0
      %v2588 = vpop.f32.mrf.mxu0
      %v2589 = vadd.f32 0.0, %v2588
      %v2590 = vpop.f32.mrf.mxu0
      %2591 = vmatprep.mubr.bf16.mxu0 0
      %2592 = vmatmul.mubr.bf16.gmra.mxu0 %v2454
      %v2593 = vpop.f32.mrf.mxu0
      %v2594 = vadd.f32 0.0, %v2593
      %v2595 = vpop.f32.mrf.mxu0
      %v2596 = vpop.f32.mrf.mxu0
      %v2597 = vadd.f32 0.0, %v2596
      %v2598 = vpop.f32.mrf.mxu0
      %2599 = vmatprep.mubr.bf16.mxu0 0
      %2600 = vmatmul.mubr.bf16.gmra.mxu0 %v2457
      %v2601 = vpop.f32.mrf.mxu0
      %v2602 = vadd.f32 0.0, %v2601
      %v2603 = vpop.f32.mrf.mxu0
      %v2604 = vpop.f32.mrf.mxu0
      %v2605 = vadd.f32 0.0, %v2604
      %v2606 = vpop.f32.mrf.mxu0
      %2607 = vmatprep.mubr.bf16.mxu0 0
      %2608 = vmatmul.mubr.bf16.gmra.mxu0 %v2460
      %v2609 = vpop.f32.mrf.mxu0
      %v2610 = vadd.f32 0.0, %v2609
      %v2611 = vpop.f32.mrf.mxu0
      %v2612 = vpop.f32.mrf.mxu0
      %v2613 = vadd.f32 0.0, %v2612
      %v2614 = vpop.f32.mrf.mxu0
      %2615 = vmatprep.mubr.bf16.mxu0 0
      %2616 = vmatmul.mubr.bf16.gmra.mxu0 %v2463
      %v2617 = vpop.f32.mrf.mxu0
      %v2618 = vadd.f32 0.0, %v2617
      %v2619 = vpop.f32.mrf.mxu0
      %v2620 = vpop.f32.mrf.mxu0
      %v2621 = vadd.f32 0.0, %v2620
      %v2622 = vpop.f32.mrf.mxu0
      %2623 = vmatprep.mubr.bf16.mxu0 0
      %2624 = vmatmul.mubr.bf16.gmra.mxu0 %v2466
      %v2625 = vpop.f32.mrf.mxu0
      %v2626 = vadd.f32 0.0, %v2625
      %v2627 = vpop.f32.mrf.mxu0
      %v2628 = vpop.f32.mrf.mxu0
      %v2629 = vadd.f32 0.0, %v2628
      %v2630 = vpop.f32.mrf.mxu0
      %2631 = vdwg.mxu0
      %v2632 = vadd.f32 %v2306, %v2506
      %v2633 = vadd.f32 %v2307, %v2509
      %v2634 = vadd.f32 %v2308, %v2514
      %v2635 = vadd.f32 %v2309, %v2517
      %v2636 = vadd.f32 %v2310, %v2522
      %v2637 = vadd.f32 %v2311, %v2525
      %v2638 = vadd.f32 %v2312, %v2530
      %v2639 = vadd.f32 %v2313, %v2533
      %v2640 = vadd.f32 %v2314, %v2538
      %v2641 = vadd.f32 %v2315, %v2541
      %v2642 = vadd.f32 %v2316, %v2546
      %v2643 = vadd.f32 %v2317, %v2549
      %v2644 = vadd.f32 %v2318, %v2554
      %v2645 = vadd.f32 %v2319, %v2557
      %v2646 = vadd.f32 %v2320, %v2562
      %v2647 = vadd.f32 %v2321, %v2565
      %v2648 = vadd.f32 %v2322, %v2570
      %v2649 = vadd.f32 %v2323, %v2573
      %v2650 = vadd.f32 %v2324, %v2578
      %v2651 = vadd.f32 %v2325, %v2581
      %v2652 = vadd.f32 %v2326, %v2586
      %v2653 = vadd.f32 %v2327, %v2589
      %v2654 = vadd.f32 %v2328, %v2594
      %v2655 = vadd.f32 %v2329, %v2597
      %v2656 = vadd.f32 %v2330, %v2602
      %v2657 = vadd.f32 %v2331, %v2605
      %v2658 = vadd.f32 %v2332, %v2610
      %v2659 = vadd.f32 %v2333, %v2613
      %v2660 = vadd.f32 %v2334, %v2618
      %v2661 = vadd.f32 %v2335, %v2621
      %v2662 = vadd.f32 %v2336, %v2626
      %v2663 = vadd.f32 %v2337, %v2629
      %v2664 = vld [vmem:[%s219 + $0x2f] sm:$0xff]
      %v2665 = vld [vmem:[%s219 + $0x37] sm:$0xff]
      %v2666 = vld [vmem:[%s219 + $0x3f] sm:$0xff]
      %v2667 = vld [vmem:[%s219 + $0x47] sm:$0xff]
      %v2668 = vld [vmem:[%s219 + $0x4f] sm:$0xff]
      %v2669 = vld [vmem:[%s219 + $0x57] sm:$0xff]
      %v2670 = vld [vmem:[%s219 + $0x5f] sm:$0xff]
      %v2671 = vld [vmem:[%s219 + $0x67] sm:$0xff]
      %v2672 = vld [vmem:[%s219 + $0x6f] sm:$0xff]
      %v2673 = vld [vmem:[%s219 + $0x77] sm:$0xff]
      %v2674 = vld [vmem:[%s219 + $0x7f] sm:$0xff]
      %v2675 = vld [vmem:[%s219 + $0x87] sm:$0xff]
      %v2676 = vld [vmem:[%s219 + $0x8f] sm:$0xff]
      %v2677 = vld [vmem:[%s219 + $0x97] sm:$0xff]
      %v2678 = vld [vmem:[%s219 + $0x9f] sm:$0xff]
      %v2679 = vld [vmem:[%s219 + $0xa7] sm:$0xff]
      %v2680 = vld [vmem:[%s219 + $0xaf] sm:$0xff]
      %v2681 = vld [vmem:[%s219 + $0xb7] sm:$0xff]
      %v2682 = vld [vmem:[%s219 + $0xbf] sm:$0xff]
      %v2683 = vld [vmem:[%s219 + $0xc7] sm:$0xff]
      %v2684 = vld [vmem:[%s219 + $0xcf] sm:$0xff]
      %v2685 = vld [vmem:[%s219 + $0xd7] sm:$0xff]
      %v2686 = vld [vmem:[%s219 + $0xdf] sm:$0xff]
      %v2687 = vld [vmem:[%s219 + $0xe7] sm:$0xff]
      %v2688 = vld [vmem:[%s219 + $0xef] sm:$0xff]
      %v2689 = vld [vmem:[%s219 + $0xf7] sm:$0xff]
      %v2690 = vld [vmem:[%s219 + $0xff] sm:$0xff]
      %v2691 = vld [vmem:[%s219 + $0x107] sm:$0xff]
      %v2692 = vld [vmem:[%s219 + $0x10f] sm:$0xff]
      %v2693 = vld [vmem:[%s219 + $0x117] sm:$0xff]
      %v2694 = vld [vmem:[%s219 + $0x11f] sm:$0xff]
      %v2695 = vld [vmem:[%s219 + $0x127] sm:$0xff]
      %v2696 = vsel %vm771, %v2664, 0.0
      %v2697 = vsel %vm772, %v2665, 0.0
      %v2698 = vsel %vm773, %v2666, 0.0
      %v2699 = vsel %vm774, %v2667, 0.0
      %v2700 = vsel %vm775, %v2668, 0.0
      %v2701 = vsel %vm776, %v2669, 0.0
      %v2702 = vsel %vm777, %v2670, 0.0
      %v2703 = vsel %vm778, %v2671, 0.0
      %v2704 = vsel %vm779, %v2672, 0.0
      %v2705 = vsel %vm780, %v2673, 0.0
      %v2706 = vsel %vm781, %v2674, 0.0
      %v2707 = vsel %vm782, %v2675, 0.0
      %v2708 = vsel %vm783, %v2676, 0.0
      %v2709 = vsel %vm784, %v2677, 0.0
      %v2710 = vsel %vm785, %v2678, 0.0
      %v2711 = vsel %vm786, %v2679, 0.0
      %v2712 = vsel %vm787, %v2680, 0.0
      %v2713 = vsel %vm788, %v2681, 0.0
      %v2714 = vsel %vm789, %v2682, 0.0
      %v2715 = vsel %vm790, %v2683, 0.0
      %v2716 = vsel %vm791, %v2684, 0.0
      %v2717 = vsel %vm792, %v2685, 0.0
      %v2718 = vsel %vm793, %v2686, 0.0
      %v2719 = vsel %vm794, %v2687, 0.0
      %v2720 = vsel %vm795, %v2688, 0.0
      %v2721 = vsel %vm796, %v2689, 0.0
      %v2722 = vsel %vm797, %v2690, 0.0
      %v2723 = vsel %vm798, %v2691, 0.0
      %v2724 = vsel %vm799, %v2692, 0.0
      %v2725 = vsel %vm800, %v2693, 0.0
      %v2726 = vsel %vm801, %v2694, 0.0
      %v2727 = vsel %vm802, %v2695, 0.0
      %v2728 = vpack.c.bf16 %v2697, %v2696
      %v2729 = vpack.c.bf16 %v2699, %v2698
      %v2730 = vpack.c.bf16 %v2701, %v2700
      %v2731 = vpack.c.bf16 %v2703, %v2702
      %v2732 = vpack.c.bf16 %v2705, %v2704
      %v2733 = vpack.c.bf16 %v2707, %v2706
      %v2734 = vpack.c.bf16 %v2709, %v2708
      %v2735 = vpack.c.bf16 %v2711, %v2710
      %v2736 = vpack.c.bf16 %v2713, %v2712
      %v2737 = vpack.c.bf16 %v2715, %v2714
      %v2738 = vpack.c.bf16 %v2717, %v2716
      %v2739 = vpack.c.bf16 %v2719, %v2718
      %v2740 = vpack.c.bf16 %v2721, %v2720
      %v2741 = vpack.c.bf16 %v2723, %v2722
      %v2742 = vpack.c.bf16 %v2725, %v2724
      %v2743 = vpack.c.bf16 %v2727, %v2726
      %s2744 = scalar_lea.vmem %s1, 24
      %v2745 = vld [vmem:[%s2744] sm:$0xf]
      %v2747 = vsel %vm902, %v2728, 0
      %v2750 = vsel %vm902, %v2729, 0
      %v2753 = vsel %vm902, %v2730, 0
      %v2756 = vsel %vm902, %v2731, 0
      %v2759 = vsel %vm902, %v2732, 0
      %v2762 = vsel %vm902, %v2733, 0
      %v2765 = vsel %vm902, %v2734, 0
      %v2768 = vsel %vm902, %v2735, 0
      %v2771 = vsel %vm902, %v2736, 0
      %v2774 = vsel %vm902, %v2737, 0
      %v2777 = vsel %vm902, %v2738, 0
      %v2780 = vsel %vm902, %v2739, 0
      %v2783 = vsel %vm902, %v2740, 0
      %v2786 = vsel %vm902, %v2741, 0
      %v2789 = vsel %vm902, %v2742, 0
      %v2792 = vsel %vm902, %v2743, 0
      %v2795 = vsel %vm951, %v2745, 0
      %2797 = vmatprep.subr.bf16.mxu0 0
      %2798 = vmatpush1.bf16.msra.mxu0 0
      %2799 = vmatprep.subr.bf16.mxu0 0
      %2800 = vmatpush1.bf16.msra.mxu0 0
      %2801 = vmatprep.subr.bf16.mxu0 0
      %2802 = vmatpush1.bf16.msra.mxu0 0
      %2803 = vmatprep.subr.bf16.mxu0 0
      %2804 = vmatpush1.bf16.msra.mxu0 0
      %2805 = vmatprep.subr.bf16.mxu0 0
      %2806 = vmatpush1.bf16.msra.mxu0 0
      %2807 = vmatprep.subr.bf16.mxu0 0
      %2808 = vmatpush1.bf16.msra.mxu0 0
      %2809 = vmatprep.subr.bf16.mxu0 0
      %2810 = vmatpush1.bf16.msra.mxu0 0
      %2811 = vmatprep.subr.bf16.mxu0 0
      %2812 = vmatpush1.bf16.msra.mxu0 %v2795
      %2813 = vmatprep.subr.bf16.mxu0 0
      %2814 = vmatpush2.bf16.msra.mxu0 0
      %2815 = vmatprep.subr.bf16.mxu0 0
      %2816 = vmatpush2.bf16.msra.mxu0 0
      %2817 = vmatprep.subr.bf16.mxu0 0
      %2818 = vmatpush2.bf16.msra.mxu0 0
      %2819 = vmatprep.subr.bf16.mxu0 0
      %2820 = vmatpush2.bf16.msra.mxu0 0
      %2821 = vmatprep.subr.bf16.mxu0 0
      %2822 = vmatpush2.bf16.msra.mxu0 0
      %2823 = vmatprep.subr.bf16.mxu0 0
      %2824 = vmatpush2.bf16.msra.mxu0 0
      %2825 = vmatprep.subr.bf16.mxu0 0
      %2826 = vmatpush2.bf16.msra.mxu0 0
      %2827 = vmatprep.subr.bf16.mxu0 0
      %2828 = vmatpush2.bf16.msra.mxu0 0
      %2829 = vmatprep.mubr.bf16.mxu0 0
      %2830 = vmatmul.mubr.bf16.gmra.mxu0 %v2747
      %v2831 = vpop.f32.mrf.mxu0
      %v2832 = vadd.f32 0.0, %v2831
      %v2833 = vpop.f32.mrf.mxu0
      %v2834 = vpop.f32.mrf.mxu0
      %v2835 = vadd.f32 0.0, %v2834
      %v2836 = vpop.f32.mrf.mxu0
      %2837 = vmatprep.mubr.bf16.mxu0 0
      %2838 = vmatmul.mubr.bf16.gmra.mxu0 %v2750
      %v2839 = vpop.f32.mrf.mxu0
      %v2840 = vadd.f32 0.0, %v2839
      %v2841 = vpop.f32.mrf.mxu0
      %v2842 = vpop.f32.mrf.mxu0
      %v2843 = vadd.f32 0.0, %v2842
      %v2844 = vpop.f32.mrf.mxu0
      %2845 = vmatprep.mubr.bf16.mxu0 0
      %2846 = vmatmul.mubr.bf16.gmra.mxu0 %v2753
      %v2847 = vpop.f32.mrf.mxu0
      %v2848 = vadd.f32 0.0, %v2847
      %v2849 = vpop.f32.mrf.mxu0
      %v2850 = vpop.f32.mrf.mxu0
      %v2851 = vadd.f32 0.0, %v2850
      %v2852 = vpop.f32.mrf.mxu0
      %2853 = vmatprep.mubr.bf16.mxu0 0
      %2854 = vmatmul.mubr.bf16.gmra.mxu0 %v2756
      %v2855 = vpop.f32.mrf.mxu0
      %v2856 = vadd.f32 0.0, %v2855
      %v2857 = vpop.f32.mrf.mxu0
      %v2858 = vpop.f32.mrf.mxu0
      %v2859 = vadd.f32 0.0, %v2858
      %v2860 = vpop.f32.mrf.mxu0
      %2861 = vmatprep.mubr.bf16.mxu0 0
      %2862 = vmatmul.mubr.bf16.gmra.mxu0 %v2759
      %v2863 = vpop.f32.mrf.mxu0
      %v2864 = vadd.f32 0.0, %v2863
      %v2865 = vpop.f32.mrf.mxu0
      %v2866 = vpop.f32.mrf.mxu0
      %v2867 = vadd.f32 0.0, %v2866
      %v2868 = vpop.f32.mrf.mxu0
      %2869 = vmatprep.mubr.bf16.mxu0 0
      %2870 = vmatmul.mubr.bf16.gmra.mxu0 %v2762
      %v2871 = vpop.f32.mrf.mxu0
      %v2872 = vadd.f32 0.0, %v2871
      %v2873 = vpop.f32.mrf.mxu0
      %v2874 = vpop.f32.mrf.mxu0
      %v2875 = vadd.f32 0.0, %v2874
      %v2876 = vpop.f32.mrf.mxu0
      %2877 = vmatprep.mubr.bf16.mxu0 0
      %2878 = vmatmul.mubr.bf16.gmra.mxu0 %v2765
      %v2879 = vpop.f32.mrf.mxu0
      %v2880 = vadd.f32 0.0, %v2879
      %v2881 = vpop.f32.mrf.mxu0
      %v2882 = vpop.f32.mrf.mxu0
      %v2883 = vadd.f32 0.0, %v2882
      %v2884 = vpop.f32.mrf.mxu0
      %2885 = vmatprep.mubr.bf16.mxu0 0
      %2886 = vmatmul.mubr.bf16.gmra.mxu0 %v2768
      %v2887 = vpop.f32.mrf.mxu0
      %v2888 = vadd.f32 0.0, %v2887
      %v2889 = vpop.f32.mrf.mxu0
      %v2890 = vpop.f32.mrf.mxu0
      %v2891 = vadd.f32 0.0, %v2890
      %v2892 = vpop.f32.mrf.mxu0
      %2893 = vmatprep.mubr.bf16.mxu0 0
      %2894 = vmatmul.mubr.bf16.gmra.mxu0 %v2771
      %v2895 = vpop.f32.mrf.mxu0
      %v2896 = vadd.f32 0.0, %v2895
      %v2897 = vpop.f32.mrf.mxu0
      %v2898 = vpop.f32.mrf.mxu0
      %v2899 = vadd.f32 0.0, %v2898
      %v2900 = vpop.f32.mrf.mxu0
      %2901 = vmatprep.mubr.bf16.mxu0 0
      %2902 = vmatmul.mubr.bf16.gmra.mxu0 %v2774
      %v2903 = vpop.f32.mrf.mxu0
      %v2904 = vadd.f32 0.0, %v2903
      %v2905 = vpop.f32.mrf.mxu0
      %v2906 = vpop.f32.mrf.mxu0
      %v2907 = vadd.f32 0.0, %v2906
      %v2908 = vpop.f32.mrf.mxu0
      %2909 = vmatprep.mubr.bf16.mxu0 0
      %2910 = vmatmul.mubr.bf16.gmra.mxu0 %v2777
      %v2911 = vpop.f32.mrf.mxu0
      %v2912 = vadd.f32 0.0, %v2911
      %v2913 = vpop.f32.mrf.mxu0
      %v2914 = vpop.f32.mrf.mxu0
      %v2915 = vadd.f32 0.0, %v2914
      %v2916 = vpop.f32.mrf.mxu0
      %2917 = vmatprep.mubr.bf16.mxu0 0
      %2918 = vmatmul.mubr.bf16.gmra.mxu0 %v2780
      %v2919 = vpop.f32.mrf.mxu0
      %v2920 = vadd.f32 0.0, %v2919
      %v2921 = vpop.f32.mrf.mxu0
      %v2922 = vpop.f32.mrf.mxu0
      %v2923 = vadd.f32 0.0, %v2922
      %v2924 = vpop.f32.mrf.mxu0
      %2925 = vmatprep.mubr.bf16.mxu0 0
      %2926 = vmatmul.mubr.bf16.gmra.mxu0 %v2783
      %v2927 = vpop.f32.mrf.mxu0
      %v2928 = vadd.f32 0.0, %v2927
      %v2929 = vpop.f32.mrf.mxu0
      %v2930 = vpop.f32.mrf.mxu0
      %v2931 = vadd.f32 0.0, %v2930
      %v2932 = vpop.f32.mrf.mxu0
      %2933 = vmatprep.mubr.bf16.mxu0 0
      %2934 = vmatmul.mubr.bf16.gmra.mxu0 %v2786
      %v2935 = vpop.f32.mrf.mxu0
      %v2936 = vadd.f32 0.0, %v2935
      %v2937 = vpop.f32.mrf.mxu0
      %v2938 = vpop.f32.mrf.mxu0
      %v2939 = vadd.f32 0.0, %v2938
      %v2940 = vpop.f32.mrf.mxu0
      %2941 = vmatprep.mubr.bf16.mxu0 0
      %2942 = vmatmul.mubr.bf16.gmra.mxu0 %v2789
      %v2943 = vpop.f32.mrf.mxu0
      %v2944 = vadd.f32 0.0, %v2943
      %v2945 = vpop.f32.mrf.mxu0
      %v2946 = vpop.f32.mrf.mxu0
      %v2947 = vadd.f32 0.0, %v2946
      %v2948 = vpop.f32.mrf.mxu0
      %2949 = vmatprep.mubr.bf16.mxu0 0
      %2950 = vmatmul.mubr.bf16.gmra.mxu0 %v2792
      %v2951 = vpop.f32.mrf.mxu0
      %v2952 = vadd.f32 0.0, %v2951
      %v2953 = vpop.f32.mrf.mxu0
      %v2954 = vpop.f32.mrf.mxu0
      %v2955 = vadd.f32 0.0, %v2954
      %v2956 = vpop.f32.mrf.mxu0
      %2957 = vdwg.mxu0
      %v2958 = vadd.f32 %v2632, %v2832
      %v2959 = vadd.f32 %v2633, %v2835
      %v2960 = vadd.f32 %v2634, %v2840
      %v2961 = vadd.f32 %v2635, %v2843
      %v2962 = vadd.f32 %v2636, %v2848
      %v2963 = vadd.f32 %v2637, %v2851
      %v2964 = vadd.f32 %v2638, %v2856
      %v2965 = vadd.f32 %v2639, %v2859
      %v2966 = vadd.f32 %v2640, %v2864
      %v2967 = vadd.f32 %v2641, %v2867
      %v2968 = vadd.f32 %v2642, %v2872
      %v2969 = vadd.f32 %v2643, %v2875
      %v2970 = vadd.f32 %v2644, %v2880
      %v2971 = vadd.f32 %v2645, %v2883
      %v2972 = vadd.f32 %v2646, %v2888
      %v2973 = vadd.f32 %v2647, %v2891
      %v2974 = vadd.f32 %v2648, %v2896
      %v2975 = vadd.f32 %v2649, %v2899
      %v2976 = vadd.f32 %v2650, %v2904
      %v2977 = vadd.f32 %v2651, %v2907
      %v2978 = vadd.f32 %v2652, %v2912
      %v2979 = vadd.f32 %v2653, %v2915
      %v2980 = vadd.f32 %v2654, %v2920
      %v2981 = vadd.f32 %v2655, %v2923
      %v2982 = vadd.f32 %v2656, %v2928
      %v2983 = vadd.f32 %v2657, %v2931
      %v2984 = vadd.f32 %v2658, %v2936
      %v2985 = vadd.f32 %v2659, %v2939
      %v2986 = vadd.f32 %v2660, %v2944
      %v2987 = vadd.f32 %v2661, %v2947
      %v2988 = vadd.f32 %v2662, %v2952
      %v2989 = vadd.f32 %v2663, %v2955
      %v2990 = vld [vmem:[%s219 + $0x30] sm:$0xff]
      %v2991 = vld [vmem:[%s219 + $0x38] sm:$0xff]
      %v2992 = vld [vmem:[%s219 + $0x40] sm:$0xff]
      %v2993 = vld [vmem:[%s219 + $0x48] sm:$0xff]
      %v2994 = vld [vmem:[%s219 + $0x50] sm:$0xff]
      %v2995 = vld [vmem:[%s219 + $0x58] sm:$0xff]
      %v2996 = vld [vmem:[%s219 + $0x60] sm:$0xff]
      %v2997 = vld [vmem:[%s219 + $0x68] sm:$0xff]
      %v2998 = vld [vmem:[%s219 + $0x70] sm:$0xff]
      %v2999 = vld [vmem:[%s219 + $0x78] sm:$0xff]
      %v3000 = vld [vmem:[%s219 + $0x80] sm:$0xff]
      %v3001 = vld [vmem:[%s219 + $0x88] sm:$0xff]
      %v3002 = vld [vmem:[%s219 + $0x90] sm:$0xff]
      %v3003 = vld [vmem:[%s219 + $0x98] sm:$0xff]
      %v3004 = vld [vmem:[%s219 + $0xa0] sm:$0xff]
      %v3005 = vld [vmem:[%s219 + $0xa8] sm:$0xff]
      %v3006 = vld [vmem:[%s219 + $0xb0] sm:$0xff]
      %v3007 = vld [vmem:[%s219 + $0xb8] sm:$0xff]
      %v3008 = vld [vmem:[%s219 + $0xc0] sm:$0xff]
      %v3009 = vld [vmem:[%s219 + $0xc8] sm:$0xff]
      %v3010 = vld [vmem:[%s219 + $0xd0] sm:$0xff]
      %v3011 = vld [vmem:[%s219 + $0xd8] sm:$0xff]
      %v3012 = vld [vmem:[%s219 + $0xe0] sm:$0xff]
      %v3013 = vld [vmem:[%s219 + $0xe8] sm:$0xff]
      %v3014 = vld [vmem:[%s219 + $0xf0] sm:$0xff]
      %v3015 = vld [vmem:[%s219 + $0xf8] sm:$0xff]
      %v3016 = vld [vmem:[%s219 + $0x100] sm:$0xff]
      %v3017 = vld [vmem:[%s219 + $0x108] sm:$0xff]
      %v3018 = vld [vmem:[%s219 + $0x110] sm:$0xff]
      %v3019 = vld [vmem:[%s219 + $0x118] sm:$0xff]
      %v3020 = vld [vmem:[%s219 + $0x120] sm:$0xff]
      %v3021 = vld [vmem:[%s219 + $0x128] sm:$0xff]
      %v3022 = vpack.c.bf16 %v2991, %v2990
      %v3023 = vpack.c.bf16 %v2993, %v2992
      %v3024 = vpack.c.bf16 %v2995, %v2994
      %v3025 = vpack.c.bf16 %v2997, %v2996
      %v3026 = vpack.c.bf16 %v2999, %v2998
      %v3027 = vpack.c.bf16 %v3001, %v3000
      %v3028 = vpack.c.bf16 %v3003, %v3002
      %v3029 = vpack.c.bf16 %v3005, %v3004
      %v3030 = vpack.c.bf16 %v3007, %v3006
      %v3031 = vpack.c.bf16 %v3009, %v3008
      %v3032 = vpack.c.bf16 %v3011, %v3010
      %v3033 = vpack.c.bf16 %v3013, %v3012
      %v3034 = vpack.c.bf16 %v3015, %v3014
      %v3035 = vpack.c.bf16 %v3017, %v3016
      %v3036 = vpack.c.bf16 %v3019, %v3018
      %v3037 = vpack.c.bf16 %v3021, %v3020
      %s3038 = scalar_lea.vmem %s1, 28
      %v3039 = vld [vmem:[%s3038] sm:$0xf]
      %v3041 = vsel %vm902, %v3022, 0
      %v3044 = vsel %vm902, %v3023, 0
      %v3047 = vsel %vm902, %v3024, 0
      %v3050 = vsel %vm902, %v3025, 0
      %v3053 = vsel %vm902, %v3026, 0
      %v3056 = vsel %vm902, %v3027, 0
      %v3059 = vsel %vm902, %v3028, 0
      %v3062 = vsel %vm902, %v3029, 0
      %v3065 = vsel %vm902, %v3030, 0
      %v3068 = vsel %vm902, %v3031, 0
      %v3071 = vsel %vm902, %v3032, 0
      %v3074 = vsel %vm902, %v3033, 0
      %v3077 = vsel %vm902, %v3034, 0
      %v3080 = vsel %vm902, %v3035, 0
      %v3083 = vsel %vm902, %v3036, 0
      %v3086 = vsel %vm902, %v3037, 0
      %v3089 = vsel %vm951, %v3039, 0
      %3091 = vmatprep.subr.bf16.mxu0 0
      %3092 = vmatpush1.bf16.msra.mxu0 0
      %3093 = vmatprep.subr.bf16.mxu0 0
      %3094 = vmatpush1.bf16.msra.mxu0 0
      %3095 = vmatprep.subr.bf16.mxu0 0
      %3096 = vmatpush1.bf16.msra.mxu0 0
      %3097 = vmatprep.subr.bf16.mxu0 0
      %3098 = vmatpush1.bf16.msra.mxu0 0
      %3099 = vmatprep.subr.bf16.mxu0 0
      %3100 = vmatpush1.bf16.msra.mxu0 0
      %3101 = vmatprep.subr.bf16.mxu0 0
      %3102 = vmatpush1.bf16.msra.mxu0 0
      %3103 = vmatprep.subr.bf16.mxu0 0
      %3104 = vmatpush1.bf16.msra.mxu0 0
      %3105 = vmatprep.subr.bf16.mxu0 0
      %3106 = vmatpush1.bf16.msra.mxu0 %v3089
      %3107 = vmatprep.subr.bf16.mxu0 0
      %3108 = vmatpush2.bf16.msra.mxu0 0
      %3109 = vmatprep.subr.bf16.mxu0 0
      %3110 = vmatpush2.bf16.msra.mxu0 0
      %3111 = vmatprep.subr.bf16.mxu0 0
      %3112 = vmatpush2.bf16.msra.mxu0 0
      %3113 = vmatprep.subr.bf16.mxu0 0
      %3114 = vmatpush2.bf16.msra.mxu0 0
      %3115 = vmatprep.subr.bf16.mxu0 0
      %3116 = vmatpush2.bf16.msra.mxu0 0
      %3117 = vmatprep.subr.bf16.mxu0 0
      %3118 = vmatpush2.bf16.msra.mxu0 0
      %3119 = vmatprep.subr.bf16.mxu0 0
      %3120 = vmatpush2.bf16.msra.mxu0 0
      %3121 = vmatprep.subr.bf16.mxu0 0
      %3122 = vmatpush2.bf16.msra.mxu0 0
      %3123 = vmatprep.mubr.bf16.mxu0 0
      %3124 = vmatmul.mubr.bf16.gmra.mxu0 %v3041
      %v3125 = vpop.f32.mrf.mxu0
      %v3126 = vadd.f32 0.0, %v3125
      %v3127 = vpop.f32.mrf.mxu0
      %v3128 = vpop.f32.mrf.mxu0
      %v3129 = vadd.f32 0.0, %v3128
      %v3130 = vpop.f32.mrf.mxu0
      %3131 = vmatprep.mubr.bf16.mxu0 0
      %3132 = vmatmul.mubr.bf16.gmra.mxu0 %v3044
      %v3133 = vpop.f32.mrf.mxu0
      %v3134 = vadd.f32 0.0, %v3133
      %v3135 = vpop.f32.mrf.mxu0
      %v3136 = vpop.f32.mrf.mxu0
      %v3137 = vadd.f32 0.0, %v3136
      %v3138 = vpop.f32.mrf.mxu0
      %3139 = vmatprep.mubr.bf16.mxu0 0
      %3140 = vmatmul.mubr.bf16.gmra.mxu0 %v3047
      %v3141 = vpop.f32.mrf.mxu0
      %v3142 = vadd.f32 0.0, %v3141
      %v3143 = vpop.f32.mrf.mxu0
      %v3144 = vpop.f32.mrf.mxu0
      %v3145 = vadd.f32 0.0, %v3144
      %v3146 = vpop.f32.mrf.mxu0
      %3147 = vmatprep.mubr.bf16.mxu0 0
      %3148 = vmatmul.mubr.bf16.gmra.mxu0 %v3050
      %v3149 = vpop.f32.mrf.mxu0
      %v3150 = vadd.f32 0.0, %v3149
      %v3151 = vpop.f32.mrf.mxu0
      %v3152 = vpop.f32.mrf.mxu0
      %v3153 = vadd.f32 0.0, %v3152
      %v3154 = vpop.f32.mrf.mxu0
      %3155 = vmatprep.mubr.bf16.mxu0 0
      %3156 = vmatmul.mubr.bf16.gmra.mxu0 %v3053
      %v3157 = vpop.f32.mrf.mxu0
      %v3158 = vadd.f32 0.0, %v3157
      %v3159 = vpop.f32.mrf.mxu0
      %v3160 = vpop.f32.mrf.mxu0
      %v3161 = vadd.f32 0.0, %v3160
      %v3162 = vpop.f32.mrf.mxu0
      %3163 = vmatprep.mubr.bf16.mxu0 0
      %3164 = vmatmul.mubr.bf16.gmra.mxu0 %v3056
      %v3165 = vpop.f32.mrf.mxu0
      %v3166 = vadd.f32 0.0, %v3165
      %v3167 = vpop.f32.mrf.mxu0
      %v3168 = vpop.f32.mrf.mxu0
      %v3169 = vadd.f32 0.0, %v3168
      %v3170 = vpop.f32.mrf.mxu0
      %3171 = vmatprep.mubr.bf16.mxu0 0
      %3172 = vmatmul.mubr.bf16.gmra.mxu0 %v3059
      %v3173 = vpop.f32.mrf.mxu0
      %v3174 = vadd.f32 0.0, %v3173
      %v3175 = vpop.f32.mrf.mxu0
      %v3176 = vpop.f32.mrf.mxu0
      %v3177 = vadd.f32 0.0, %v3176
      %v3178 = vpop.f32.mrf.mxu0
      %3179 = vmatprep.mubr.bf16.mxu0 0
      %3180 = vmatmul.mubr.bf16.gmra.mxu0 %v3062
      %v3181 = vpop.f32.mrf.mxu0
      %v3182 = vadd.f32 0.0, %v3181
      %v3183 = vpop.f32.mrf.mxu0
      %v3184 = vpop.f32.mrf.mxu0
      %v3185 = vadd.f32 0.0, %v3184
      %v3186 = vpop.f32.mrf.mxu0
      %3187 = vmatprep.mubr.bf16.mxu0 0
      %3188 = vmatmul.mubr.bf16.gmra.mxu0 %v3065
      %v3189 = vpop.f32.mrf.mxu0
      %v3190 = vadd.f32 0.0, %v3189
      %v3191 = vpop.f32.mrf.mxu0
      %v3192 = vpop.f32.mrf.mxu0
      %v3193 = vadd.f32 0.0, %v3192
      %v3194 = vpop.f32.mrf.mxu0
      %3195 = vmatprep.mubr.bf16.mxu0 0
      %3196 = vmatmul.mubr.bf16.gmra.mxu0 %v3068
      %v3197 = vpop.f32.mrf.mxu0
      %v3198 = vadd.f32 0.0, %v3197
      %v3199 = vpop.f32.mrf.mxu0
      %v3200 = vpop.f32.mrf.mxu0
      %v3201 = vadd.f32 0.0, %v3200
      %v3202 = vpop.f32.mrf.mxu0
      %3203 = vmatprep.mubr.bf16.mxu0 0
      %3204 = vmatmul.mubr.bf16.gmra.mxu0 %v3071
      %v3205 = vpop.f32.mrf.mxu0
      %v3206 = vadd.f32 0.0, %v3205
      %v3207 = vpop.f32.mrf.mxu0
      %v3208 = vpop.f32.mrf.mxu0
      %v3209 = vadd.f32 0.0, %v3208
      %v3210 = vpop.f32.mrf.mxu0
      %3211 = vmatprep.mubr.bf16.mxu0 0
      %3212 = vmatmul.mubr.bf16.gmra.mxu0 %v3074
      %v3213 = vpop.f32.mrf.mxu0
      %v3214 = vadd.f32 0.0, %v3213
      %v3215 = vpop.f32.mrf.mxu0
      %v3216 = vpop.f32.mrf.mxu0
      %v3217 = vadd.f32 0.0, %v3216
      %v3218 = vpop.f32.mrf.mxu0
      %3219 = vmatprep.mubr.bf16.mxu0 0
      %3220 = vmatmul.mubr.bf16.gmra.mxu0 %v3077
      %v3221 = vpop.f32.mrf.mxu0
      %v3222 = vadd.f32 0.0, %v3221
      %v3223 = vpop.f32.mrf.mxu0
      %v3224 = vpop.f32.mrf.mxu0
      %v3225 = vadd.f32 0.0, %v3224
      %v3226 = vpop.f32.mrf.mxu0
      %3227 = vmatprep.mubr.bf16.mxu0 0
      %3228 = vmatmul.mubr.bf16.gmra.mxu0 %v3080
      %v3229 = vpop.f32.mrf.mxu0
      %v3230 = vadd.f32 0.0, %v3229
      %v3231 = vpop.f32.mrf.mxu0
      %v3232 = vpop.f32.mrf.mxu0
      %v3233 = vadd.f32 0.0, %v3232
      %v3234 = vpop.f32.mrf.mxu0
      %3235 = vmatprep.mubr.bf16.mxu0 0
      %3236 = vmatmul.mubr.bf16.gmra.mxu0 %v3083
      %v3237 = vpop.f32.mrf.mxu0
      %v3238 = vadd.f32 0.0, %v3237
      %v3239 = vpop.f32.mrf.mxu0
      %v3240 = vpop.f32.mrf.mxu0
      %v3241 = vadd.f32 0.0, %v3240
      %v3242 = vpop.f32.mrf.mxu0
      %3243 = vmatprep.mubr.bf16.mxu0 0
      %3244 = vmatmul.mubr.bf16.gmra.mxu0 %v3086
      %v3245 = vpop.f32.mrf.mxu0
      %v3246 = vadd.f32 0.0, %v3245
      %v3247 = vpop.f32.mrf.mxu0
      %v3248 = vpop.f32.mrf.mxu0
      %v3249 = vadd.f32 0.0, %v3248
      %v3250 = vpop.f32.mrf.mxu0
      %3251 = vdwg.mxu0
      %v3252 = vadd.f32 %v2958, %v3126
      %v3253 = vadd.f32 %v2959, %v3129
      %v3254 = vadd.f32 %v2960, %v3134
      %v3255 = vadd.f32 %v2961, %v3137
      %v3256 = vadd.f32 %v2962, %v3142
      %v3257 = vadd.f32 %v2963, %v3145
      %v3258 = vadd.f32 %v2964, %v3150
      %v3259 = vadd.f32 %v2965, %v3153
      %v3260 = vadd.f32 %v2966, %v3158
      %v3261 = vadd.f32 %v2967, %v3161
      %v3262 = vadd.f32 %v2968, %v3166
      %v3263 = vadd.f32 %v2969, %v3169
      %v3264 = vadd.f32 %v2970, %v3174
      %v3265 = vadd.f32 %v2971, %v3177
      %v3266 = vadd.f32 %v2972, %v3182
      %v3267 = vadd.f32 %v2973, %v3185
      %v3268 = vadd.f32 %v2974, %v3190
      %v3269 = vadd.f32 %v2975, %v3193
      %v3270 = vadd.f32 %v2976, %v3198
      %v3271 = vadd.f32 %v2977, %v3201
      %v3272 = vadd.f32 %v2978, %v3206
      %v3273 = vadd.f32 %v2979, %v3209
      %v3274 = vadd.f32 %v2980, %v3214
      %v3275 = vadd.f32 %v2981, %v3217
      %v3276 = vadd.f32 %v2982, %v3222
      %v3277 = vadd.f32 %v2983, %v3225
      %v3278 = vadd.f32 %v2984, %v3230
      %v3279 = vadd.f32 %v2985, %v3233
      %v3280 = vadd.f32 %v2986, %v3238
      %v3281 = vadd.f32 %v2987, %v3241
      %v3282 = vadd.f32 %v2988, %v3246
      %v3283 = vadd.f32 %v2989, %v3249
      %v3284 = vld [vmem:[%s219 + $0x31] sm:$0xff]
      %v3285 = vld [vmem:[%s219 + $0x39] sm:$0xff]
      %v3286 = vld [vmem:[%s219 + $0x41] sm:$0xff]
      %v3287 = vld [vmem:[%s219 + $0x49] sm:$0xff]
      %v3288 = vld [vmem:[%s219 + $0x51] sm:$0xff]
      %v3289 = vld [vmem:[%s219 + $0x59] sm:$0xff]
      %v3290 = vld [vmem:[%s219 + $0x61] sm:$0xff]
      %v3291 = vld [vmem:[%s219 + $0x69] sm:$0xff]
      %v3292 = vld [vmem:[%s219 + $0x71] sm:$0xff]
      %v3293 = vld [vmem:[%s219 + $0x79] sm:$0xff]
      %v3294 = vld [vmem:[%s219 + $0x81] sm:$0xff]
      %v3295 = vld [vmem:[%s219 + $0x89] sm:$0xff]
      %v3296 = vld [vmem:[%s219 + $0x91] sm:$0xff]
      %v3297 = vld [vmem:[%s219 + $0x99] sm:$0xff]
      %v3298 = vld [vmem:[%s219 + $0xa1] sm:$0xff]
      %v3299 = vld [vmem:[%s219 + $0xa9] sm:$0xff]
      %v3300 = vld [vmem:[%s219 + $0xb1] sm:$0xff]
      %v3301 = vld [vmem:[%s219 + $0xb9] sm:$0xff]
      %v3302 = vld [vmem:[%s219 + $0xc1] sm:$0xff]
      %v3303 = vld [vmem:[%s219 + $0xc9] sm:$0xff]
      %v3304 = vld [vmem:[%s219 + $0xd1] sm:$0xff]
      %v3305 = vld [vmem:[%s219 + $0xd9] sm:$0xff]
      %v3306 = vld [vmem:[%s219 + $0xe1] sm:$0xff]
      %v3307 = vld [vmem:[%s219 + $0xe9] sm:$0xff]
      %v3308 = vld [vmem:[%s219 + $0xf1] sm:$0xff]
      %v3309 = vld [vmem:[%s219 + $0xf9] sm:$0xff]
      %v3310 = vld [vmem:[%s219 + $0x101] sm:$0xff]
      %v3311 = vld [vmem:[%s219 + $0x109] sm:$0xff]
      %v3312 = vld [vmem:[%s219 + $0x111] sm:$0xff]
      %v3313 = vld [vmem:[%s219 + $0x119] sm:$0xff]
      %v3314 = vld [vmem:[%s219 + $0x121] sm:$0xff]
      %v3315 = vld [vmem:[%s219 + $0x129] sm:$0xff]
      %v3316 = vsel %vm1392, %v3284, 0.0
      %v3317 = vsel %vm1393, %v3285, 0.0
      %v3318 = vsel %vm1394, %v3286, 0.0
      %v3319 = vsel %vm1395, %v3287, 0.0
      %v3320 = vsel %vm1396, %v3288, 0.0
      %v3321 = vsel %vm1397, %v3289, 0.0
      %v3322 = vsel %vm1398, %v3290, 0.0
      %v3323 = vsel %vm1399, %v3291, 0.0
      %v3324 = vsel %vm1400, %v3292, 0.0
      %v3325 = vsel %vm1401, %v3293, 0.0
      %v3326 = vsel %vm1402, %v3294, 0.0
      %v3327 = vsel %vm1403, %v3295, 0.0
      %v3328 = vsel %vm1404, %v3296, 0.0
      %v3329 = vsel %vm1405, %v3297, 0.0
      %v3330 = vsel %vm1406, %v3298, 0.0
      %v3331 = vsel %vm1407, %v3299, 0.0
      %v3332 = vsel %vm1408, %v3300, 0.0
      %v3333 = vsel %vm1409, %v3301, 0.0
      %v3334 = vsel %vm1410, %v3302, 0.0
      %v3335 = vsel %vm1411, %v3303, 0.0
      %v3336 = vsel %vm1412, %v3304, 0.0
      %v3337 = vsel %vm1413, %v3305, 0.0
      %v3338 = vsel %vm1414, %v3306, 0.0
      %v3339 = vsel %vm1415, %v3307, 0.0
      %v3340 = vsel %vm1416, %v3308, 0.0
      %v3341 = vsel %vm1417, %v3309, 0.0
      %v3342 = vsel %vm1418, %v3310, 0.0
      %v3343 = vsel %vm1419, %v3311, 0.0
      %v3344 = vsel %vm1420, %v3312, 0.0
      %v3345 = vsel %vm1421, %v3313, 0.0
      %v3346 = vsel %vm1422, %v3314, 0.0
      %v3347 = vsel %vm1423, %v3315, 0.0
      %v3348 = vpack.c.bf16 %v3317, %v3316
      %v3349 = vpack.c.bf16 %v3319, %v3318
      %v3350 = vpack.c.bf16 %v3321, %v3320
      %v3351 = vpack.c.bf16 %v3323, %v3322
      %v3352 = vpack.c.bf16 %v3325, %v3324
      %v3353 = vpack.c.bf16 %v3327, %v3326
      %v3354 = vpack.c.bf16 %v3329, %v3328
      %v3355 = vpack.c.bf16 %v3331, %v3330
      %v3356 = vpack.c.bf16 %v3333, %v3332
      %v3357 = vpack.c.bf16 %v3335, %v3334
      %v3358 = vpack.c.bf16 %v3337, %v3336
      %v3359 = vpack.c.bf16 %v3339, %v3338
      %v3360 = vpack.c.bf16 %v3341, %v3340
      %v3361 = vpack.c.bf16 %v3343, %v3342
      %v3362 = vpack.c.bf16 %v3345, %v3344
      %v3363 = vpack.c.bf16 %v3347, %v3346
      %s3364 = scalar_lea.vmem %s1, 32
      %v3365 = vld [vmem:[%s3364] sm:$0xf]
      %v3367 = vsel %vm902, %v3348, 0
      %v3370 = vsel %vm902, %v3349, 0
      %v3373 = vsel %vm902, %v3350, 0
      %v3376 = vsel %vm902, %v3351, 0
      %v3379 = vsel %vm902, %v3352, 0
      %v3382 = vsel %vm902, %v3353, 0
      %v3385 = vsel %vm902, %v3354, 0
      %v3388 = vsel %vm902, %v3355, 0
      %v3391 = vsel %vm902, %v3356, 0
      %v3394 = vsel %vm902, %v3357, 0
      %v3397 = vsel %vm902, %v3358, 0
      %v3400 = vsel %vm902, %v3359, 0
      %v3403 = vsel %vm902, %v3360, 0
      %v3406 = vsel %vm902, %v3361, 0
      %v3409 = vsel %vm902, %v3362, 0
      %v3412 = vsel %vm902, %v3363, 0
      %v3415 = vsel %vm951, %v3365, 0
      %3417 = vmatprep.subr.bf16.mxu0 0
      %3418 = vmatpush1.bf16.msra.mxu0 0
      %3419 = vmatprep.subr.bf16.mxu0 0
      %3420 = vmatpush1.bf16.msra.mxu0 0
      %3421 = vmatprep.subr.bf16.mxu0 0
      %3422 = vmatpush1.bf16.msra.mxu0 0
      %3423 = vmatprep.subr.bf16.mxu0 0
      %3424 = vmatpush1.bf16.msra.mxu0 0
      %3425 = vmatprep.subr.bf16.mxu0 0
      %3426 = vmatpush1.bf16.msra.mxu0 0
      %3427 = vmatprep.subr.bf16.mxu0 0
      %3428 = vmatpush1.bf16.msra.mxu0 0
      %3429 = vmatprep.subr.bf16.mxu0 0
      %3430 = vmatpush1.bf16.msra.mxu0 0
      %3431 = vmatprep.subr.bf16.mxu0 0
      %3432 = vmatpush1.bf16.msra.mxu0 %v3415
      %3433 = vmatprep.subr.bf16.mxu0 0
      %3434 = vmatpush2.bf16.msra.mxu0 0
      %3435 = vmatprep.subr.bf16.mxu0 0
      %3436 = vmatpush2.bf16.msra.mxu0 0
      %3437 = vmatprep.subr.bf16.mxu0 0
      %3438 = vmatpush2.bf16.msra.mxu0 0
      %3439 = vmatprep.subr.bf16.mxu0 0
      %3440 = vmatpush2.bf16.msra.mxu0 0
      %3441 = vmatprep.subr.bf16.mxu0 0
      %3442 = vmatpush2.bf16.msra.mxu0 0
      %3443 = vmatprep.subr.bf16.mxu0 0
      %3444 = vmatpush2.bf16.msra.mxu0 0
      %3445 = vmatprep.subr.bf16.mxu0 0
      %3446 = vmatpush2.bf16.msra.mxu0 0
      %3447 = vmatprep.subr.bf16.mxu0 0
      %3448 = vmatpush2.bf16.msra.mxu0 0
      %3449 = vmatprep.mubr.bf16.mxu0 0
      %3450 = vmatmul.mubr.bf16.gmra.mxu0 %v3367
      %v3451 = vpop.f32.mrf.mxu0
      %v3452 = vadd.f32 0.0, %v3451
      %v3453 = vpop.f32.mrf.mxu0
      %v3454 = vpop.f32.mrf.mxu0
      %v3455 = vadd.f32 0.0, %v3454
      %v3456 = vpop.f32.mrf.mxu0
      %3457 = vmatprep.mubr.bf16.mxu0 0
      %3458 = vmatmul.mubr.bf16.gmra.mxu0 %v3370
      %v3459 = vpop.f32.mrf.mxu0
      %v3460 = vadd.f32 0.0, %v3459
      %v3461 = vpop.f32.mrf.mxu0
      %v3462 = vpop.f32.mrf.mxu0
      %v3463 = vadd.f32 0.0, %v3462
      %v3464 = vpop.f32.mrf.mxu0
      %3465 = vmatprep.mubr.bf16.mxu0 0
      %3466 = vmatmul.mubr.bf16.gmra.mxu0 %v3373
      %v3467 = vpop.f32.mrf.mxu0
      %v3468 = vadd.f32 0.0, %v3467
      %v3469 = vpop.f32.mrf.mxu0
      %v3470 = vpop.f32.mrf.mxu0
      %v3471 = vadd.f32 0.0, %v3470
      %v3472 = vpop.f32.mrf.mxu0
      %3473 = vmatprep.mubr.bf16.mxu0 0
      %3474 = vmatmul.mubr.bf16.gmra.mxu0 %v3376
      %v3475 = vpop.f32.mrf.mxu0
      %v3476 = vadd.f32 0.0, %v3475
      %v3477 = vpop.f32.mrf.mxu0
      %v3478 = vpop.f32.mrf.mxu0
      %v3479 = vadd.f32 0.0, %v3478
      %v3480 = vpop.f32.mrf.mxu0
      %3481 = vmatprep.mubr.bf16.mxu0 0
      %3482 = vmatmul.mubr.bf16.gmra.mxu0 %v3379
      %v3483 = vpop.f32.mrf.mxu0
      %v3484 = vadd.f32 0.0, %v3483
      %v3485 = vpop.f32.mrf.mxu0
      %v3486 = vpop.f32.mrf.mxu0
      %v3487 = vadd.f32 0.0, %v3486
      %v3488 = vpop.f32.mrf.mxu0
      %3489 = vmatprep.mubr.bf16.mxu0 0
      %3490 = vmatmul.mubr.bf16.gmra.mxu0 %v3382
      %v3491 = vpop.f32.mrf.mxu0
      %v3492 = vadd.f32 0.0, %v3491
      %v3493 = vpop.f32.mrf.mxu0
      %v3494 = vpop.f32.mrf.mxu0
      %v3495 = vadd.f32 0.0, %v3494
      %v3496 = vpop.f32.mrf.mxu0
      %3497 = vmatprep.mubr.bf16.mxu0 0
      %3498 = vmatmul.mubr.bf16.gmra.mxu0 %v3385
      %v3499 = vpop.f32.mrf.mxu0
      %v3500 = vadd.f32 0.0, %v3499
      %v3501 = vpop.f32.mrf.mxu0
      %v3502 = vpop.f32.mrf.mxu0
      %v3503 = vadd.f32 0.0, %v3502
      %v3504 = vpop.f32.mrf.mxu0
      %3505 = vmatprep.mubr.bf16.mxu0 0
      %3506 = vmatmul.mubr.bf16.gmra.mxu0 %v3388
      %v3507 = vpop.f32.mrf.mxu0
      %v3508 = vadd.f32 0.0, %v3507
      %v3509 = vpop.f32.mrf.mxu0
      %v3510 = vpop.f32.mrf.mxu0
      %v3511 = vadd.f32 0.0, %v3510
      %v3512 = vpop.f32.mrf.mxu0
      %3513 = vmatprep.mubr.bf16.mxu0 0
      %3514 = vmatmul.mubr.bf16.gmra.mxu0 %v3391
      %v3515 = vpop.f32.mrf.mxu0
      %v3516 = vadd.f32 0.0, %v3515
      %v3517 = vpop.f32.mrf.mxu0
      %v3518 = vpop.f32.mrf.mxu0
      %v3519 = vadd.f32 0.0, %v3518
      %v3520 = vpop.f32.mrf.mxu0
      %3521 = vmatprep.mubr.bf16.mxu0 0
      %3522 = vmatmul.mubr.bf16.gmra.mxu0 %v3394
      %v3523 = vpop.f32.mrf.mxu0
      %v3524 = vadd.f32 0.0, %v3523
      %v3525 = vpop.f32.mrf.mxu0
      %v3526 = vpop.f32.mrf.mxu0
      %v3527 = vadd.f32 0.0, %v3526
      %v3528 = vpop.f32.mrf.mxu0
      %3529 = vmatprep.mubr.bf16.mxu0 0
      %3530 = vmatmul.mubr.bf16.gmra.mxu0 %v3397
      %v3531 = vpop.f32.mrf.mxu0
      %v3532 = vadd.f32 0.0, %v3531
      %v3533 = vpop.f32.mrf.mxu0
      %v3534 = vpop.f32.mrf.mxu0
      %v3535 = vadd.f32 0.0, %v3534
      %v3536 = vpop.f32.mrf.mxu0
      %3537 = vmatprep.mubr.bf16.mxu0 0
      %3538 = vmatmul.mubr.bf16.gmra.mxu0 %v3400
      %v3539 = vpop.f32.mrf.mxu0
      %v3540 = vadd.f32 0.0, %v3539
      %v3541 = vpop.f32.mrf.mxu0
      %v3542 = vpop.f32.mrf.mxu0
      %v3543 = vadd.f32 0.0, %v3542
      %v3544 = vpop.f32.mrf.mxu0
      %3545 = vmatprep.mubr.bf16.mxu0 0
      %3546 = vmatmul.mubr.bf16.gmra.mxu0 %v3403
      %v3547 = vpop.f32.mrf.mxu0
      %v3548 = vadd.f32 0.0, %v3547
      %v3549 = vpop.f32.mrf.mxu0
      %v3550 = vpop.f32.mrf.mxu0
      %v3551 = vadd.f32 0.0, %v3550
      %v3552 = vpop.f32.mrf.mxu0
      %3553 = vmatprep.mubr.bf16.mxu0 0
      %3554 = vmatmul.mubr.bf16.gmra.mxu0 %v3406
      %v3555 = vpop.f32.mrf.mxu0
      %v3556 = vadd.f32 0.0, %v3555
      %v3557 = vpop.f32.mrf.mxu0
      %v3558 = vpop.f32.mrf.mxu0
      %v3559 = vadd.f32 0.0, %v3558
      %v3560 = vpop.f32.mrf.mxu0
      %3561 = vmatprep.mubr.bf16.mxu0 0
      %3562 = vmatmul.mubr.bf16.gmra.mxu0 %v3409
      %v3563 = vpop.f32.mrf.mxu0
      %v3564 = vadd.f32 0.0, %v3563
      %v3565 = vpop.f32.mrf.mxu0
      %v3566 = vpop.f32.mrf.mxu0
      %v3567 = vadd.f32 0.0, %v3566
      %v3568 = vpop.f32.mrf.mxu0
      %3569 = vmatprep.mubr.bf16.mxu0 0
      %3570 = vmatmul.mubr.bf16.gmra.mxu0 %v3412
      %v3571 = vpop.f32.mrf.mxu0
      %v3572 = vadd.f32 0.0, %v3571
      %v3573 = vpop.f32.mrf.mxu0
      %v3574 = vpop.f32.mrf.mxu0
      %v3575 = vadd.f32 0.0, %v3574
      %v3576 = vpop.f32.mrf.mxu0
      %3577 = vdwg.mxu0
      %v3578 = vadd.f32 %v3252, %v3452
      %v3579 = vadd.f32 %v3253, %v3455
      %v3580 = vadd.f32 %v3254, %v3460
      %v3581 = vadd.f32 %v3255, %v3463
      %v3582 = vadd.f32 %v3256, %v3468
      %v3583 = vadd.f32 %v3257, %v3471
      %v3584 = vadd.f32 %v3258, %v3476
      %v3585 = vadd.f32 %v3259, %v3479
      %v3586 = vadd.f32 %v3260, %v3484
      %v3587 = vadd.f32 %v3261, %v3487
      %v3588 = vadd.f32 %v3262, %v3492
      %v3589 = vadd.f32 %v3263, %v3495
      %v3590 = vadd.f32 %v3264, %v3500
      %v3591 = vadd.f32 %v3265, %v3503
      %v3592 = vadd.f32 %v3266, %v3508
      %v3593 = vadd.f32 %v3267, %v3511
      %v3594 = vadd.f32 %v3268, %v3516
      %v3595 = vadd.f32 %v3269, %v3519
      %v3596 = vadd.f32 %v3270, %v3524
      %v3597 = vadd.f32 %v3271, %v3527
      %v3598 = vadd.f32 %v3272, %v3532
      %v3599 = vadd.f32 %v3273, %v3535
      %v3600 = vadd.f32 %v3274, %v3540
      %v3601 = vadd.f32 %v3275, %v3543
      %v3602 = vadd.f32 %v3276, %v3548
      %v3603 = vadd.f32 %v3277, %v3551
      %v3604 = vadd.f32 %v3278, %v3556
      %v3605 = vadd.f32 %v3279, %v3559
      %v3606 = vadd.f32 %v3280, %v3564
      %v3607 = vadd.f32 %v3281, %v3567
      %v3608 = vadd.f32 %v3282, %v3572
      %v3609 = vadd.f32 %v3283, %v3575
      %v3610 = vld [vmem:[%s2] sm:$0x1]
      %v3612 = vlaneseq
      %v3613 = vshrl.u32 %v3612, 7
      %v3614 = vsub.s32 0, %v3613
      %v3615 = vrot.slane %v3610, %v3614
      %v3617 = vadd.f32 %v3578, %v3615
      %v3618 = vadd.f32 %v3579, %v3615
      %v3619 = vadd.f32 %v3580, %v3615
      %v3620 = vadd.f32 %v3581, %v3615
      %v3621 = vadd.f32 %v3582, %v3615
      %v3622 = vadd.f32 %v3583, %v3615
      %v3623 = vadd.f32 %v3584, %v3615
      %v3624 = vadd.f32 %v3585, %v3615
      %v3625 = vadd.f32 %v3586, %v3615
      %v3626 = vadd.f32 %v3587, %v3615
      %v3627 = vadd.f32 %v3588, %v3615
      %v3628 = vadd.f32 %v3589, %v3615
      %v3629 = vadd.f32 %v3590, %v3615
      %v3630 = vadd.f32 %v3591, %v3615
      %v3631 = vadd.f32 %v3592, %v3615
      %v3632 = vadd.f32 %v3593, %v3615
      %v3633 = vadd.f32 %v3594, %v3615
      %v3634 = vadd.f32 %v3595, %v3615
      %v3635 = vadd.f32 %v3596, %v3615
      %v3636 = vadd.f32 %v3597, %v3615
      %v3637 = vadd.f32 %v3598, %v3615
      %v3638 = vadd.f32 %v3599, %v3615
      %v3639 = vadd.f32 %v3600, %v3615
      %v3640 = vadd.f32 %v3601, %v3615
      %v3641 = vadd.f32 %v3602, %v3615
      %v3642 = vadd.f32 %v3603, %v3615
      %v3643 = vadd.f32 %v3604, %v3615
      %v3644 = vadd.f32 %v3605, %v3615
      %v3645 = vadd.f32 %v3606, %v3615
      %v3646 = vadd.f32 %v3607, %v3615
      %v3647 = vadd.f32 %v3608, %v3615
      %v3648 = vadd.f32 %v3609, %v3615
      %v3649 = vmax.f32 %v3617, 0.0
      %v3650 = vmax.f32 %v3618, 0.0
      %v3651 = vmax.f32 %v3619, 0.0
      %v3652 = vmax.f32 %v3620, 0.0
      %v3653 = vmax.f32 %v3621, 0.0
      %v3654 = vmax.f32 %v3622, 0.0
      %v3655 = vmax.f32 %v3623, 0.0
      %v3656 = vmax.f32 %v3624, 0.0
      %v3657 = vmax.f32 %v3625, 0.0
      %v3658 = vmax.f32 %v3626, 0.0
      %v3659 = vmax.f32 %v3627, 0.0
      %v3660 = vmax.f32 %v3628, 0.0
      %v3661 = vmax.f32 %v3629, 0.0
      %v3662 = vmax.f32 %v3630, 0.0
      %v3663 = vmax.f32 %v3631, 0.0
      %v3664 = vmax.f32 %v3632, 0.0
      %v3665 = vmax.f32 %v3633, 0.0
      %v3666 = vmax.f32 %v3634, 0.0
      %v3667 = vmax.f32 %v3635, 0.0
      %v3668 = vmax.f32 %v3636, 0.0
      %v3669 = vmax.f32 %v3637, 0.0
      %v3670 = vmax.f32 %v3638, 0.0
      %v3671 = vmax.f32 %v3639, 0.0
      %v3672 = vmax.f32 %v3640, 0.0
      %v3673 = vmax.f32 %v3641, 0.0
      %v3674 = vmax.f32 %v3642, 0.0
      %v3675 = vmax.f32 %v3643, 0.0
      %v3676 = vmax.f32 %v3644, 0.0
      %v3677 = vmax.f32 %v3645, 0.0
      %v3678 = vmax.f32 %v3646, 0.0
      %v3679 = vmax.f32 %v3647, 0.0
      %v3680 = vmax.f32 %v3648, 0.0
      %vm3681 = vcmask 130048
      %3682 = vst.msk [vmem:[#allocation2] sm:$0xff] %vm3681, 0.0
      %3683 = vst.msk [vmem:[#allocation2 + $0x8] sm:$0xff] %vm3681, 0.0
      %3684 = vst.msk [vmem:[#allocation2 + $0x10] sm:$0xff] %vm3681, 0.0
      %3685 = vst.msk [vmem:[#allocation2 + $0x18] sm:$0xff] %vm3681, 0.0
      %3686 = vst.msk [vmem:[#allocation2 + $0x120] sm:$0xff] %vm3681, 0.0
      %3687 = vst.msk [vmem:[#allocation2 + $0x128] sm:$0xff] %vm3681, 0.0
      %3688 = vst.msk [vmem:[#allocation2 + $0x130] sm:$0xff] %vm3681, 0.0
      %3689 = vst.msk [vmem:[#allocation2 + $0x138] sm:$0xff] %vm3681, 0.0
      %3690 = vst.msk [vmem:[#allocation2 + $0x20] sm:$0xff] %vm3681, %v3649
      %3691 = vst.msk [vmem:[#allocation2 + $0x28] sm:$0xff] %vm3681, %v3650
      %3692 = vst.msk [vmem:[#allocation2 + $0x30] sm:$0xff] %vm3681, %v3651
      %3693 = vst.msk [vmem:[#allocation2 + $0x38] sm:$0xff] %vm3681, %v3652
      %3694 = vst.msk [vmem:[#allocation2 + $0x40] sm:$0xff] %vm3681, %v3653
      %3695 = vst.msk [vmem:[#allocation2 + $0x48] sm:$0xff] %vm3681, %v3654
      %3696 = vst.msk [vmem:[#allocation2 + $0x50] sm:$0xff] %vm3681, %v3655
      %3697 = vst.msk [vmem:[#allocation2 + $0x58] sm:$0xff] %vm3681, %v3656
      %3698 = vst.msk [vmem:[#allocation2 + $0x60] sm:$0xff] %vm3681, %v3657
      %3699 = vst.msk [vmem:[#allocation2 + $0x68] sm:$0xff] %vm3681, %v3658
      %3700 = vst.msk [vmem:[#allocation2 + $0x70] sm:$0xff] %vm3681, %v3659
      %3701 = vst.msk [vmem:[#allocation2 + $0x78] sm:$0xff] %vm3681, %v3660
      %3702 = vst.msk [vmem:[#allocation2 + $0x80] sm:$0xff] %vm3681, %v3661
      %3703 = vst.msk [vmem:[#allocation2 + $0x88] sm:$0xff] %vm3681, %v3662
      %3704 = vst.msk [vmem:[#allocation2 + $0x90] sm:$0xff] %vm3681, %v3663
      %3705 = vst.msk [vmem:[#allocation2 + $0x98] sm:$0xff] %vm3681, %v3664
      %3706 = vst.msk [vmem:[#allocation2 + $0xa0] sm:$0xff] %vm3681, %v3665
      %3707 = vst.msk [vmem:[#allocation2 + $0xa8] sm:$0xff] %vm3681, %v3666
      %3708 = vst.msk [vmem:[#allocation2 + $0xb0] sm:$0xff] %vm3681, %v3667
      %3709 = vst.msk [vmem:[#allocation2 + $0xb8] sm:$0xff] %vm3681, %v3668
      %3710 = vst.msk [vmem:[#allocation2 + $0xc0] sm:$0xff] %vm3681, %v3669
      %3711 = vst.msk [vmem:[#allocation2 + $0xc8] sm:$0xff] %vm3681, %v3670
      %3712 = vst.msk [vmem:[#allocation2 + $0xd0] sm:$0xff] %vm3681, %v3671
      %3713 = vst.msk [vmem:[#allocation2 + $0xd8] sm:$0xff] %vm3681, %v3672
      %3714 = vst.msk [vmem:[#allocation2 + $0xe0] sm:$0xff] %vm3681, %v3673
      %3715 = vst.msk [vmem:[#allocation2 + $0xe8] sm:$0xff] %vm3681, %v3674
      %3716 = vst.msk [vmem:[#allocation2 + $0xf0] sm:$0xff] %vm3681, %v3675
      %3717 = vst.msk [vmem:[#allocation2 + $0xf8] sm:$0xff] %vm3681, %v3676
      %3718 = vst.msk [vmem:[#allocation2 + $0x100] sm:$0xff] %vm3681, %v3677
      %3719 = vst.msk [vmem:[#allocation2 + $0x108] sm:$0xff] %vm3681, %v3678
      %3720 = vst.msk [vmem:[#allocation2 + $0x110] sm:$0xff] %vm3681, %v3679
      %3721 = vst.msk [vmem:[#allocation2 + $0x118] sm:$0xff] %vm3681, %v3680
      %v3722 = vld [vmem:[#allocation2 + $0xf] sm:$0xff]
      %v3723 = vld [vmem:[#allocation2 + $0x17] sm:$0xff]
      %v3724 = vld [vmem:[#allocation2 + $0x1f] sm:$0xff]
      %v3725 = vld [vmem:[#allocation2 + $0x27] sm:$0xff]
      %v3726 = vld [vmem:[#allocation2 + $0x2f] sm:$0xff]
      %v3727 = vld [vmem:[#allocation2 + $0x37] sm:$0xff]
      %v3728 = vld [vmem:[#allocation2 + $0x3f] sm:$0xff]
      %v3729 = vld [vmem:[#allocation2 + $0x47] sm:$0xff]
      %v3730 = vld [vmem:[#allocation2 + $0x4f] sm:$0xff]
      %v3731 = vld [vmem:[#allocation2 + $0x57] sm:$0xff]
      %v3732 = vld [vmem:[#allocation2 + $0x5f] sm:$0xff]
      %v3733 = vld [vmem:[#allocation2 + $0x67] sm:$0xff]
      %v3734 = vld [vmem:[#allocation2 + $0x6f] sm:$0xff]
      %v3735 = vld [vmem:[#allocation2 + $0x77] sm:$0xff]
      %v3736 = vld [vmem:[#allocation2 + $0x7f] sm:$0xff]
      %v3737 = vld [vmem:[#allocation2 + $0x87] sm:$0xff]
      %v3738 = vld [vmem:[#allocation2 + $0x8f] sm:$0xff]
      %v3739 = vld [vmem:[#allocation2 + $0x97] sm:$0xff]
      %v3740 = vld [vmem:[#allocation2 + $0x9f] sm:$0xff]
      %v3741 = vld [vmem:[#allocation2 + $0xa7] sm:$0xff]
      %v3742 = vld [vmem:[#allocation2 + $0xaf] sm:$0xff]
      %v3743 = vld [vmem:[#allocation2 + $0xb7] sm:$0xff]
      %v3744 = vld [vmem:[#allocation2 + $0xbf] sm:$0xff]
      %v3745 = vld [vmem:[#allocation2 + $0xc7] sm:$0xff]
      %v3746 = vld [vmem:[#allocation2 + $0xcf] sm:$0xff]
      %v3747 = vld [vmem:[#allocation2 + $0xd7] sm:$0xff]
      %v3748 = vld [vmem:[#allocation2 + $0xdf] sm:$0xff]
      %v3749 = vld [vmem:[#allocation2 + $0xe7] sm:$0xff]
      %v3750 = vld [vmem:[#allocation2 + $0xef] sm:$0xff]
      %v3751 = vld [vmem:[#allocation2 + $0xf7] sm:$0xff]
      %v3752 = vld [vmem:[#allocation2 + $0xff] sm:$0xff]
      %v3753 = vld [vmem:[#allocation2 + $0x107] sm:$0xff]
      %v3754 = vsel %vm771, %v3722, 0.0
      %v3755 = vsel %vm772, %v3723, 0.0
      %v3756 = vsel %vm773, %v3724, 0.0
      %v3757 = vsel %vm774, %v3725, 0.0
      %v3758 = vsel %vm775, %v3726, 0.0
      %v3759 = vsel %vm776, %v3727, 0.0
      %v3760 = vsel %vm777, %v3728, 0.0
      %v3761 = vsel %vm778, %v3729, 0.0
      %v3762 = vsel %vm779, %v3730, 0.0
      %v3763 = vsel %vm780, %v3731, 0.0
      %v3764 = vsel %vm781, %v3732, 0.0
      %v3765 = vsel %vm782, %v3733, 0.0
      %v3766 = vsel %vm783, %v3734, 0.0
      %v3767 = vsel %vm784, %v3735, 0.0
      %v3768 = vsel %vm785, %v3736, 0.0
      %v3769 = vsel %vm786, %v3737, 0.0
      %v3770 = vsel %vm787, %v3738, 0.0
      %v3771 = vsel %vm788, %v3739, 0.0
      %v3772 = vsel %vm789, %v3740, 0.0
      %v3773 = vsel %vm790, %v3741, 0.0
      %v3774 = vsel %vm791, %v3742, 0.0
      %v3775 = vsel %vm792, %v3743, 0.0
      %v3776 = vsel %vm793, %v3744, 0.0
      %v3777 = vsel %vm794, %v3745, 0.0
      %v3778 = vsel %vm795, %v3746, 0.0
      %v3779 = vsel %vm796, %v3747, 0.0
      %v3780 = vsel %vm797, %v3748, 0.0
      %v3781 = vsel %vm798, %v3749, 0.0
      %v3782 = vsel %vm799, %v3750, 0.0
      %v3783 = vsel %vm800, %v3751, 0.0
      %v3784 = vsel %vm801, %v3752, 0.0
      %v3785 = vsel %vm802, %v3753, 0.0
      %v3786 = vpack.c.bf16 %v3755, %v3754
      %v3787 = vpack.c.bf16 %v3757, %v3756
      %v3788 = vpack.c.bf16 %v3759, %v3758
      %v3789 = vpack.c.bf16 %v3761, %v3760
      %v3790 = vpack.c.bf16 %v3763, %v3762
      %v3791 = vpack.c.bf16 %v3765, %v3764
      %v3792 = vpack.c.bf16 %v3767, %v3766
      %v3793 = vpack.c.bf16 %v3769, %v3768
      %v3794 = vpack.c.bf16 %v3771, %v3770
      %v3795 = vpack.c.bf16 %v3773, %v3772
      %v3796 = vpack.c.bf16 %v3775, %v3774
      %v3797 = vpack.c.bf16 %v3777, %v3776
      %v3798 = vpack.c.bf16 %v3779, %v3778
      %v3799 = vpack.c.bf16 %v3781, %v3780
      %v3800 = vpack.c.bf16 %v3783, %v3782
      %v3801 = vpack.c.bf16 %v3785, %v3784
      %v3802 = vld [vmem:[%s3] sm:$0xf]
      %v3803 = vld [vmem:[%s3 + $0x4] sm:$0xf]
      %v3804 = vld [vmem:[#allocation2 + $0x10] sm:$0xff]
      %v3805 = vld [vmem:[#allocation2 + $0x18] sm:$0xff]
      %v3806 = vld [vmem:[#allocation2 + $0x20] sm:$0xff]
      %v3807 = vld [vmem:[#allocation2 + $0x28] sm:$0xff]
      %v3808 = vld [vmem:[#allocation2 + $0x30] sm:$0xff]
      %v3809 = vld [vmem:[#allocation2 + $0x38] sm:$0xff]
      %v3810 = vld [vmem:[#allocation2 + $0x40] sm:$0xff]
      %v3811 = vld [vmem:[#allocation2 + $0x48] sm:$0xff]
      %v3812 = vld [vmem:[#allocation2 + $0x50] sm:$0xff]
      %v3813 = vld [vmem:[#allocation2 + $0x58] sm:$0xff]
      %v3814 = vld [vmem:[#allocation2 + $0x60] sm:$0xff]
      %v3815 = vld [vmem:[#allocation2 + $0x68] sm:$0xff]
      %v3816 = vld [vmem:[#allocation2 + $0x70] sm:$0xff]
      %v3817 = vld [vmem:[#allocation2 + $0x78] sm:$0xff]
      %v3818 = vld [vmem:[#allocation2 + $0x80] sm:$0xff]
      %v3819 = vld [vmem:[#allocation2 + $0x88] sm:$0xff]
      %v3820 = vld [vmem:[#allocation2 + $0x90] sm:$0xff]
      %v3821 = vld [vmem:[#allocation2 + $0x98] sm:$0xff]
      %v3822 = vld [vmem:[#allocation2 + $0xa0] sm:$0xff]
      %v3823 = vld [vmem:[#allocation2 + $0xa8] sm:$0xff]
      %v3824 = vld [vmem:[#allocation2 + $0xb0] sm:$0xff]
      %v3825 = vld [vmem:[#allocation2 + $0xb8] sm:$0xff]
      %v3826 = vld [vmem:[#allocation2 + $0xc0] sm:$0xff]
      %v3827 = vld [vmem:[#allocation2 + $0xc8] sm:$0xff]
      %v3828 = vld [vmem:[#allocation2 + $0xd0] sm:$0xff]
      %v3829 = vld [vmem:[#allocation2 + $0xd8] sm:$0xff]
      %v3830 = vld [vmem:[#allocation2 + $0xe0] sm:$0xff]
      %v3831 = vld [vmem:[#allocation2 + $0xe8] sm:$0xff]
      %v3832 = vld [vmem:[#allocation2 + $0xf0] sm:$0xff]
      %v3833 = vld [vmem:[#allocation2 + $0xf8] sm:$0xff]
      %v3834 = vld [vmem:[#allocation2 + $0x100] sm:$0xff]
      %v3835 = vld [vmem:[#allocation2 + $0x108] sm:$0xff]
      %v3836 = vpack.c.bf16 %v3805, %v3804
      %v3837 = vpack.c.bf16 %v3807, %v3806
      %v3838 = vpack.c.bf16 %v3809, %v3808
      %v3839 = vpack.c.bf16 %v3811, %v3810
      %v3840 = vpack.c.bf16 %v3813, %v3812
      %v3841 = vpack.c.bf16 %v3815, %v3814
      %v3842 = vpack.c.bf16 %v3817, %v3816
      %v3843 = vpack.c.bf16 %v3819, %v3818
      %v3844 = vpack.c.bf16 %v3821, %v3820
      %v3845 = vpack.c.bf16 %v3823, %v3822
      %v3846 = vpack.c.bf16 %v3825, %v3824
      %v3847 = vpack.c.bf16 %v3827, %v3826
      %v3848 = vpack.c.bf16 %v3829, %v3828
      %v3849 = vpack.c.bf16 %v3831, %v3830
      %v3850 = vpack.c.bf16 %v3833, %v3832
      %v3851 = vpack.c.bf16 %v3835, %v3834
      %s3852 = scalar_lea.vmem %s3, 8
      %v3853 = vld [vmem:[%s3852] sm:$0xf]
      %v3854 = vld [vmem:[%s3852 + $0x4] sm:$0xf]
      %v3857 = vunpack.c.l.b16 %v3853
      %v3858 = vunpack.c.l.b16 %v3854
      %v3859 = vpack.c.b16 %v3858, %v3857
      %v3862 = vsel %vm3681, %v3836, 0
      %v3865 = vsel %vm3681, %v3837, 0
      %v3868 = vsel %vm3681, %v3838, 0
      %v3871 = vsel %vm3681, %v3839, 0
      %v3874 = vsel %vm3681, %v3840, 0
      %v3877 = vsel %vm3681, %v3841, 0
      %v3880 = vsel %vm3681, %v3842, 0
      %v3883 = vsel %vm3681, %v3843, 0
      %v3886 = vsel %vm3681, %v3844, 0
      %v3889 = vsel %vm3681, %v3845, 0
      %v3892 = vsel %vm3681, %v3846, 0
      %v3895 = vsel %vm3681, %v3847, 0
      %v3898 = vsel %vm3681, %v3848, 0
      %v3901 = vsel %vm3681, %v3849, 0
      %v3904 = vsel %vm3681, %v3850, 0
      %v3907 = vsel %vm3681, %v3851, 0
      %3909 = vmatprep.subr.bf16.mxu0 0
      %3910 = vmatpush1.bf16.msra.mxu0 0
      %3911 = vmatprep.subr.bf16.mxu0 0
      %3912 = vmatpush1.bf16.msra.mxu0 0
      %3913 = vmatprep.subr.bf16.mxu0 0
      %3914 = vmatpush1.bf16.msra.mxu0 0
      %3915 = vmatprep.subr.bf16.mxu0 0
      %3916 = vmatpush1.bf16.msra.mxu0 0
      %3917 = vmatprep.subr.bf16.mxu0 0
      %3918 = vmatpush1.bf16.msra.mxu0 0
      %3919 = vmatprep.subr.bf16.mxu0 0
      %3920 = vmatpush1.bf16.msra.mxu0 0
      %3921 = vmatprep.subr.bf16.mxu0 0
      %3922 = vmatpush1.bf16.msra.mxu0 0
      %3923 = vmatprep.subr.bf16.mxu0 0
      %3924 = vmatpush1.bf16.msra.mxu0 %v3859
      %3925 = vmatprep.subr.bf16.mxu0 0
      %3926 = vmatpush2.bf16.msra.mxu0 0
      %3927 = vmatprep.subr.bf16.mxu0 0
      %3928 = vmatpush2.bf16.msra.mxu0 0
      %3929 = vmatprep.subr.bf16.mxu0 0
      %3930 = vmatpush2.bf16.msra.mxu0 0
      %3931 = vmatprep.subr.bf16.mxu0 0
      %3932 = vmatpush2.bf16.msra.mxu0 0
      %3933 = vmatprep.subr.bf16.mxu0 0
      %3934 = vmatpush2.bf16.msra.mxu0 0
      %3935 = vmatprep.subr.bf16.mxu0 0
      %3936 = vmatpush2.bf16.msra.mxu0 0
      %3937 = vmatprep.subr.bf16.mxu0 0
      %3938 = vmatpush2.bf16.msra.mxu0 0
      %3939 = vmatprep.subr.bf16.mxu0 0
      %3940 = vmatpush2.bf16.msra.mxu0 0
      %3941 = vmatprep.mubr.bf16.mxu0 0
      %3942 = vmatmul.mubr.bf16.gmra.mxu0 %v3862
      %v3943 = vpop.f32.mrf.mxu0
      %v3944 = vadd.f32 0.0, %v3943
      %v3945 = vpop.f32.mrf.mxu0
      %v3946 = vpop.f32.mrf.mxu0
      %v3947 = vadd.f32 0.0, %v3946
      %v3948 = vpop.f32.mrf.mxu0
      %3949 = vmatprep.mubr.bf16.mxu0 0
      %3950 = vmatmul.mubr.bf16.gmra.mxu0 %v3865
      %v3951 = vpop.f32.mrf.mxu0
      %v3952 = vadd.f32 0.0, %v3951
      %v3953 = vpop.f32.mrf.mxu0
      %v3954 = vpop.f32.mrf.mxu0
      %v3955 = vadd.f32 0.0, %v3954
      %v3956 = vpop.f32.mrf.mxu0
      %3957 = vmatprep.mubr.bf16.mxu0 0
      %3958 = vmatmul.mubr.bf16.gmra.mxu0 %v3868
      %v3959 = vpop.f32.mrf.mxu0
      %v3960 = vadd.f32 0.0, %v3959
      %v3961 = vpop.f32.mrf.mxu0
      %v3962 = vpop.f32.mrf.mxu0
      %v3963 = vadd.f32 0.0, %v3962
      %v3964 = vpop.f32.mrf.mxu0
      %3965 = vmatprep.mubr.bf16.mxu0 0
      %3966 = vmatmul.mubr.bf16.gmra.mxu0 %v3871
      %v3967 = vpop.f32.mrf.mxu0
      %v3968 = vadd.f32 0.0, %v3967
      %v3969 = vpop.f32.mrf.mxu0
      %v3970 = vpop.f32.mrf.mxu0
      %v3971 = vadd.f32 0.0, %v3970
      %v3972 = vpop.f32.mrf.mxu0
      %3973 = vmatprep.mubr.bf16.mxu0 0
      %3974 = vmatmul.mubr.bf16.gmra.mxu0 %v3874
      %v3975 = vpop.f32.mrf.mxu0
      %v3976 = vadd.f32 0.0, %v3975
      %v3977 = vpop.f32.mrf.mxu0
      %v3978 = vpop.f32.mrf.mxu0
      %v3979 = vadd.f32 0.0, %v3978
      %v3980 = vpop.f32.mrf.mxu0
      %3981 = vmatprep.mubr.bf16.mxu0 0
      %3982 = vmatmul.mubr.bf16.gmra.mxu0 %v3877
      %v3983 = vpop.f32.mrf.mxu0
      %v3984 = vadd.f32 0.0, %v3983
      %v3985 = vpop.f32.mrf.mxu0
      %v3986 = vpop.f32.mrf.mxu0
      %v3987 = vadd.f32 0.0, %v3986
      %v3988 = vpop.f32.mrf.mxu0
      %3989 = vmatprep.mubr.bf16.mxu0 0
      %3990 = vmatmul.mubr.bf16.gmra.mxu0 %v3880
      %v3991 = vpop.f32.mrf.mxu0
      %v3992 = vadd.f32 0.0, %v3991
      %v3993 = vpop.f32.mrf.mxu0
      %v3994 = vpop.f32.mrf.mxu0
      %v3995 = vadd.f32 0.0, %v3994
      %v3996 = vpop.f32.mrf.mxu0
      %3997 = vmatprep.mubr.bf16.mxu0 0
      %3998 = vmatmul.mubr.bf16.gmra.mxu0 %v3883
      %v3999 = vpop.f32.mrf.mxu0
      %v4000 = vadd.f32 0.0, %v3999
      %v4001 = vpop.f32.mrf.mxu0
      %v4002 = vpop.f32.mrf.mxu0
      %v4003 = vadd.f32 0.0, %v4002
      %v4004 = vpop.f32.mrf.mxu0
      %4005 = vmatprep.mubr.bf16.mxu0 0
      %4006 = vmatmul.mubr.bf16.gmra.mxu0 %v3886
      %v4007 = vpop.f32.mrf.mxu0
      %v4008 = vadd.f32 0.0, %v4007
      %v4009 = vpop.f32.mrf.mxu0
      %v4010 = vpop.f32.mrf.mxu0
      %v4011 = vadd.f32 0.0, %v4010
      %v4012 = vpop.f32.mrf.mxu0
      %4013 = vmatprep.mubr.bf16.mxu0 0
      %4014 = vmatmul.mubr.bf16.gmra.mxu0 %v3889
      %v4015 = vpop.f32.mrf.mxu0
      %v4016 = vadd.f32 0.0, %v4015
      %v4017 = vpop.f32.mrf.mxu0
      %v4018 = vpop.f32.mrf.mxu0
      %v4019 = vadd.f32 0.0, %v4018
      %v4020 = vpop.f32.mrf.mxu0
      %4021 = vmatprep.mubr.bf16.mxu0 0
      %4022 = vmatmul.mubr.bf16.gmra.mxu0 %v3892
      %v4023 = vpop.f32.mrf.mxu0
      %v4024 = vadd.f32 0.0, %v4023
      %v4025 = vpop.f32.mrf.mxu0
      %v4026 = vpop.f32.mrf.mxu0
      %v4027 = vadd.f32 0.0, %v4026
      %v4028 = vpop.f32.mrf.mxu0
      %4029 = vmatprep.mubr.bf16.mxu0 0
      %4030 = vmatmul.mubr.bf16.gmra.mxu0 %v3895
      %v4031 = vpop.f32.mrf.mxu0
      %v4032 = vadd.f32 0.0, %v4031
      %v4033 = vpop.f32.mrf.mxu0
      %v4034 = vpop.f32.mrf.mxu0
      %v4035 = vadd.f32 0.0, %v4034
      %v4036 = vpop.f32.mrf.mxu0
      %4037 = vmatprep.mubr.bf16.mxu0 0
      %4038 = vmatmul.mubr.bf16.gmra.mxu0 %v3898
      %v4039 = vpop.f32.mrf.mxu0
      %v4040 = vadd.f32 0.0, %v4039
      %v4041 = vpop.f32.mrf.mxu0
      %v4042 = vpop.f32.mrf.mxu0
      %v4043 = vadd.f32 0.0, %v4042
      %v4044 = vpop.f32.mrf.mxu0
      %4045 = vmatprep.mubr.bf16.mxu0 0
      %4046 = vmatmul.mubr.bf16.gmra.mxu0 %v3901
      %v4047 = vpop.f32.mrf.mxu0
      %v4048 = vadd.f32 0.0, %v4047
      %v4049 = vpop.f32.mrf.mxu0
      %v4050 = vpop.f32.mrf.mxu0
      %v4051 = vadd.f32 0.0, %v4050
      %v4052 = vpop.f32.mrf.mxu0
      %4053 = vmatprep.mubr.bf16.mxu0 0
      %4054 = vmatmul.mubr.bf16.gmra.mxu0 %v3904
      %v4055 = vpop.f32.mrf.mxu0
      %v4056 = vadd.f32 0.0, %v4055
      %v4057 = vpop.f32.mrf.mxu0
      %v4058 = vpop.f32.mrf.mxu0
      %v4059 = vadd.f32 0.0, %v4058
      %v4060 = vpop.f32.mrf.mxu0
      %4061 = vmatprep.mubr.bf16.mxu0 0
      %4062 = vmatmul.mubr.bf16.gmra.mxu0 %v3907
      %v4063 = vpop.f32.mrf.mxu0
      %v4064 = vadd.f32 0.0, %v4063
      %v4065 = vpop.f32.mrf.mxu0
      %v4066 = vpop.f32.mrf.mxu0
      %v4067 = vadd.f32 0.0, %v4066
      %v4068 = vpop.f32.mrf.mxu0
      %4069 = vdwg.mxu0
      %v4072 = vunpack.c.l.b16 %v3802
      %v4073 = vunpack.c.l.b16 %v3803
      %v4074 = vpack.c.b16 %v4073, %v4072
      %v4077 = vsel %vm3681, %v3786, 0
      %v4080 = vsel %vm3681, %v3787, 0
      %v4083 = vsel %vm3681, %v3788, 0
      %v4086 = vsel %vm3681, %v3789, 0
      %v4089 = vsel %vm3681, %v3790, 0
      %v4092 = vsel %vm3681, %v3791, 0
      %v4095 = vsel %vm3681, %v3792, 0
      %v4098 = vsel %vm3681, %v3793, 0
      %v4101 = vsel %vm3681, %v3794, 0
      %v4104 = vsel %vm3681, %v3795, 0
      %v4107 = vsel %vm3681, %v3796, 0
      %v4110 = vsel %vm3681, %v3797, 0
      %v4113 = vsel %vm3681, %v3798, 0
      %v4116 = vsel %vm3681, %v3799, 0
      %v4119 = vsel %vm3681, %v3800, 0
      %v4122 = vsel %vm3681, %v3801, 0
      %4124 = vmatprep.subr.bf16.mxu0 0
      %4125 = vmatpush1.bf16.msra.mxu0 0
      %4126 = vmatprep.subr.bf16.mxu0 0
      %4127 = vmatpush1.bf16.msra.mxu0 0
      %4128 = vmatprep.subr.bf16.mxu0 0
      %4129 = vmatpush1.bf16.msra.mxu0 0
      %4130 = vmatprep.subr.bf16.mxu0 0
      %4131 = vmatpush1.bf16.msra.mxu0 0
      %4132 = vmatprep.subr.bf16.mxu0 0
      %4133 = vmatpush1.bf16.msra.mxu0 0
      %4134 = vmatprep.subr.bf16.mxu0 0
      %4135 = vmatpush1.bf16.msra.mxu0 0
      %4136 = vmatprep.subr.bf16.mxu0 0
      %4137 = vmatpush1.bf16.msra.mxu0 0
      %4138 = vmatprep.subr.bf16.mxu0 0
      %4139 = vmatpush1.bf16.msra.mxu0 %v4074
      %4140 = vmatprep.subr.bf16.mxu0 0
      %4141 = vmatpush2.bf16.msra.mxu0 0
      %4142 = vmatprep.subr.bf16.mxu0 0
      %4143 = vmatpush2.bf16.msra.mxu0 0
      %4144 = vmatprep.subr.bf16.mxu0 0
      %4145 = vmatpush2.bf16.msra.mxu0 0
      %4146 = vmatprep.subr.bf16.mxu0 0
      %4147 = vmatpush2.bf16.msra.mxu0 0
      %4148 = vmatprep.subr.bf16.mxu0 0
      %4149 = vmatpush2.bf16.msra.mxu0 0
      %4150 = vmatprep.subr.bf16.mxu0 0
      %4151 = vmatpush2.bf16.msra.mxu0 0
      %4152 = vmatprep.subr.bf16.mxu0 0
      %4153 = vmatpush2.bf16.msra.mxu0 0
      %4154 = vmatprep.subr.bf16.mxu0 0
      %4155 = vmatpush2.bf16.msra.mxu0 0
      %4156 = vmatprep.mubr.bf16.mxu0 0
      %4157 = vmatmul.mubr.bf16.gmra.mxu0 %v4077
      %v4158 = vpop.f32.mrf.mxu0
      %v4159 = vadd.f32 %v3944, %v4158
      %v4160 = vpop.f32.mrf.mxu0
      %v4161 = vpop.f32.mrf.mxu0
      %v4162 = vadd.f32 %v3947, %v4161
      %v4163 = vpop.f32.mrf.mxu0
      %4164 = vmatprep.mubr.bf16.mxu0 0
      %4165 = vmatmul.mubr.bf16.gmra.mxu0 %v4080
      %v4166 = vpop.f32.mrf.mxu0
      %v4167 = vadd.f32 %v3952, %v4166
      %v4168 = vpop.f32.mrf.mxu0
      %v4169 = vpop.f32.mrf.mxu0
      %v4170 = vadd.f32 %v3955, %v4169
      %v4171 = vpop.f32.mrf.mxu0
      %4172 = vmatprep.mubr.bf16.mxu0 0
      %4173 = vmatmul.mubr.bf16.gmra.mxu0 %v4083
      %v4174 = vpop.f32.mrf.mxu0
      %v4175 = vadd.f32 %v3960, %v4174
      %v4176 = vpop.f32.mrf.mxu0
      %v4177 = vpop.f32.mrf.mxu0
      %v4178 = vadd.f32 %v3963, %v4177
      %v4179 = vpop.f32.mrf.mxu0
      %4180 = vmatprep.mubr.bf16.mxu0 0
      %4181 = vmatmul.mubr.bf16.gmra.mxu0 %v4086
      %v4182 = vpop.f32.mrf.mxu0
      %v4183 = vadd.f32 %v3968, %v4182
      %v4184 = vpop.f32.mrf.mxu0
      %v4185 = vpop.f32.mrf.mxu0
      %v4186 = vadd.f32 %v3971, %v4185
      %v4187 = vpop.f32.mrf.mxu0
      %4188 = vmatprep.mubr.bf16.mxu0 0
      %4189 = vmatmul.mubr.bf16.gmra.mxu0 %v4089
      %v4190 = vpop.f32.mrf.mxu0
      %v4191 = vadd.f32 %v3976, %v4190
      %v4192 = vpop.f32.mrf.mxu0
      %v4193 = vpop.f32.mrf.mxu0
      %v4194 = vadd.f32 %v3979, %v4193
      %v4195 = vpop.f32.mrf.mxu0
      %4196 = vmatprep.mubr.bf16.mxu0 0
      %4197 = vmatmul.mubr.bf16.gmra.mxu0 %v4092
      %v4198 = vpop.f32.mrf.mxu0
      %v4199 = vadd.f32 %v3984, %v4198
      %v4200 = vpop.f32.mrf.mxu0
      %v4201 = vpop.f32.mrf.mxu0
      %v4202 = vadd.f32 %v3987, %v4201
      %v4203 = vpop.f32.mrf.mxu0
      %4204 = vmatprep.mubr.bf16.mxu0 0
      %4205 = vmatmul.mubr.bf16.gmra.mxu0 %v4095
      %v4206 = vpop.f32.mrf.mxu0
      %v4207 = vadd.f32 %v3992, %v4206
      %v4208 = vpop.f32.mrf.mxu0
      %v4209 = vpop.f32.mrf.mxu0
      %v4210 = vadd.f32 %v3995, %v4209
      %v4211 = vpop.f32.mrf.mxu0
      %4212 = vmatprep.mubr.bf16.mxu0 0
      %4213 = vmatmul.mubr.bf16.gmra.mxu0 %v4098
      %v4214 = vpop.f32.mrf.mxu0
      %v4215 = vadd.f32 %v4000, %v4214
      %v4216 = vpop.f32.mrf.mxu0
      %v4217 = vpop.f32.mrf.mxu0
      %v4218 = vadd.f32 %v4003, %v4217
      %v4219 = vpop.f32.mrf.mxu0
      %4220 = vmatprep.mubr.bf16.mxu0 0
      %4221 = vmatmul.mubr.bf16.gmra.mxu0 %v4101
      %v4222 = vpop.f32.mrf.mxu0
      %v4223 = vadd.f32 %v4008, %v4222
      %v4224 = vpop.f32.mrf.mxu0
      %v4225 = vpop.f32.mrf.mxu0
      %v4226 = vadd.f32 %v4011, %v4225
      %v4227 = vpop.f32.mrf.mxu0
      %4228 = vmatprep.mubr.bf16.mxu0 0
      %4229 = vmatmul.mubr.bf16.gmra.mxu0 %v4104
      %v4230 = vpop.f32.mrf.mxu0
      %v4231 = vadd.f32 %v4016, %v4230
      %v4232 = vpop.f32.mrf.mxu0
      %v4233 = vpop.f32.mrf.mxu0
      %v4234 = vadd.f32 %v4019, %v4233
      %v4235 = vpop.f32.mrf.mxu0
      %4236 = vmatprep.mubr.bf16.mxu0 0
      %4237 = vmatmul.mubr.bf16.gmra.mxu0 %v4107
      %v4238 = vpop.f32.mrf.mxu0
      %v4239 = vadd.f32 %v4024, %v4238
      %v4240 = vpop.f32.mrf.mxu0
      %v4241 = vpop.f32.mrf.mxu0
      %v4242 = vadd.f32 %v4027, %v4241
      %v4243 = vpop.f32.mrf.mxu0
      %4244 = vmatprep.mubr.bf16.mxu0 0
      %4245 = vmatmul.mubr.bf16.gmra.mxu0 %v4110
      %v4246 = vpop.f32.mrf.mxu0
      %v4247 = vadd.f32 %v4032, %v4246
      %v4248 = vpop.f32.mrf.mxu0
      %v4249 = vpop.f32.mrf.mxu0
      %v4250 = vadd.f32 %v4035, %v4249
      %v4251 = vpop.f32.mrf.mxu0
      %4252 = vmatprep.mubr.bf16.mxu0 0
      %4253 = vmatmul.mubr.bf16.gmra.mxu0 %v4113
      %v4254 = vpop.f32.mrf.mxu0
      %v4255 = vadd.f32 %v4040, %v4254
      %v4256 = vpop.f32.mrf.mxu0
      %v4257 = vpop.f32.mrf.mxu0
      %v4258 = vadd.f32 %v4043, %v4257
      %v4259 = vpop.f32.mrf.mxu0
      %4260 = vmatprep.mubr.bf16.mxu0 0
      %4261 = vmatmul.mubr.bf16.gmra.mxu0 %v4116
      %v4262 = vpop.f32.mrf.mxu0
      %v4263 = vadd.f32 %v4048, %v4262
      %v4264 = vpop.f32.mrf.mxu0
      %v4265 = vpop.f32.mrf.mxu0
      %v4266 = vadd.f32 %v4051, %v4265
      %v4267 = vpop.f32.mrf.mxu0
      %4268 = vmatprep.mubr.bf16.mxu0 0
      %4269 = vmatmul.mubr.bf16.gmra.mxu0 %v4119
      %v4270 = vpop.f32.mrf.mxu0
      %v4271 = vadd.f32 %v4056, %v4270
      %v4272 = vpop.f32.mrf.mxu0
      %v4273 = vpop.f32.mrf.mxu0
      %v4274 = vadd.f32 %v4059, %v4273
      %v4275 = vpop.f32.mrf.mxu0
      %4276 = vmatprep.mubr.bf16.mxu0 0
      %4277 = vmatmul.mubr.bf16.gmra.mxu0 %v4122
      %v4278 = vpop.f32.mrf.mxu0
      %v4279 = vadd.f32 %v4064, %v4278
      %v4280 = vpop.f32.mrf.mxu0
      %v4281 = vpop.f32.mrf.mxu0
      %v4282 = vadd.f32 %v4067, %v4281
      %v4283 = vpop.f32.mrf.mxu0
      %4284 = vdwg.mxu0
      %v4285 = vld [vmem:[#allocation2 + $0x11] sm:$0xff]
      %v4286 = vld [vmem:[#allocation2 + $0x19] sm:$0xff]
      %v4287 = vld [vmem:[#allocation2 + $0x21] sm:$0xff]
      %v4288 = vld [vmem:[#allocation2 + $0x29] sm:$0xff]
      %v4289 = vld [vmem:[#allocation2 + $0x31] sm:$0xff]
      %v4290 = vld [vmem:[#allocation2 + $0x39] sm:$0xff]
      %v4291 = vld [vmem:[#allocation2 + $0x41] sm:$0xff]
      %v4292 = vld [vmem:[#allocation2 + $0x49] sm:$0xff]
      %v4293 = vld [vmem:[#allocation2 + $0x51] sm:$0xff]
      %v4294 = vld [vmem:[#allocation2 + $0x59] sm:$0xff]
      %v4295 = vld [vmem:[#allocation2 + $0x61] sm:$0xff]
      %v4296 = vld [vmem:[#allocation2 + $0x69] sm:$0xff]
      %v4297 = vld [vmem:[#allocation2 + $0x71] sm:$0xff]
      %v4298 = vld [vmem:[#allocation2 + $0x79] sm:$0xff]
      %v4299 = vld [vmem:[#allocation2 + $0x81] sm:$0xff]
      %v4300 = vld [vmem:[#allocation2 + $0x89] sm:$0xff]
      %v4301 = vld [vmem:[#allocation2 + $0x91] sm:$0xff]
      %v4302 = vld [vmem:[#allocation2 + $0x99] sm:$0xff]
      %v4303 = vld [vmem:[#allocation2 + $0xa1] sm:$0xff]
      %v4304 = vld [vmem:[#allocation2 + $0xa9] sm:$0xff]
      %v4305 = vld [vmem:[#allocation2 + $0xb1] sm:$0xff]
      %v4306 = vld [vmem:[#allocation2 + $0xb9] sm:$0xff]
      %v4307 = vld [vmem:[#allocation2 + $0xc1] sm:$0xff]
      %v4308 = vld [vmem:[#allocation2 + $0xc9] sm:$0xff]
      %v4309 = vld [vmem:[#allocation2 + $0xd1] sm:$0xff]
      %v4310 = vld [vmem:[#allocation2 + $0xd9] sm:$0xff]
      %v4311 = vld [vmem:[#allocation2 + $0xe1] sm:$0xff]
      %v4312 = vld [vmem:[#allocation2 + $0xe9] sm:$0xff]
      %v4313 = vld [vmem:[#allocation2 + $0xf1] sm:$0xff]
      %v4314 = vld [vmem:[#allocation2 + $0xf9] sm:$0xff]
      %v4315 = vld [vmem:[#allocation2 + $0x101] sm:$0xff]
      %v4316 = vld [vmem:[#allocation2 + $0x109] sm:$0xff]
      %v4317 = vsel %vm1392, %v4285, 0.0
      %v4318 = vsel %vm1393, %v4286, 0.0
      %v4319 = vsel %vm1394, %v4287, 0.0
      %v4320 = vsel %vm1395, %v4288, 0.0
      %v4321 = vsel %vm1396, %v4289, 0.0
      %v4322 = vsel %vm1397, %v4290, 0.0
      %v4323 = vsel %vm1398, %v4291, 0.0
      %v4324 = vsel %vm1399, %v4292, 0.0
      %v4325 = vsel %vm1400, %v4293, 0.0
      %v4326 = vsel %vm1401, %v4294, 0.0
      %v4327 = vsel %vm1402, %v4295, 0.0
      %v4328 = vsel %vm1403, %v4296, 0.0
      %v4329 = vsel %vm1404, %v4297, 0.0
      %v4330 = vsel %vm1405, %v4298, 0.0
      %v4331 = vsel %vm1406, %v4299, 0.0
      %v4332 = vsel %vm1407, %v4300, 0.0
      %v4333 = vsel %vm1408, %v4301, 0.0
      %v4334 = vsel %vm1409, %v4302, 0.0
      %v4335 = vsel %vm1410, %v4303, 0.0
      %v4336 = vsel %vm1411, %v4304, 0.0
      %v4337 = vsel %vm1412, %v4305, 0.0
      %v4338 = vsel %vm1413, %v4306, 0.0
      %v4339 = vsel %vm1414, %v4307, 0.0
      %v4340 = vsel %vm1415, %v4308, 0.0
      %v4341 = vsel %vm1416, %v4309, 0.0
      %v4342 = vsel %vm1417, %v4310, 0.0
      %v4343 = vsel %vm1418, %v4311, 0.0
      %v4344 = vsel %vm1419, %v4312, 0.0
      %v4345 = vsel %vm1420, %v4313, 0.0
      %v4346 = vsel %vm1421, %v4314, 0.0
      %v4347 = vsel %vm1422, %v4315, 0.0
      %v4348 = vsel %vm1423, %v4316, 0.0
      %v4349 = vpack.c.bf16 %v4318, %v4317
      %v4350 = vpack.c.bf16 %v4320, %v4319
      %v4351 = vpack.c.bf16 %v4322, %v4321
      %v4352 = vpack.c.bf16 %v4324, %v4323
      %v4353 = vpack.c.bf16 %v4326, %v4325
      %v4354 = vpack.c.bf16 %v4328, %v4327
      %v4355 = vpack.c.bf16 %v4330, %v4329
      %v4356 = vpack.c.bf16 %v4332, %v4331
      %v4357 = vpack.c.bf16 %v4334, %v4333
      %v4358 = vpack.c.bf16 %v4336, %v4335
      %v4359 = vpack.c.bf16 %v4338, %v4337
      %v4360 = vpack.c.bf16 %v4340, %v4339
      %v4361 = vpack.c.bf16 %v4342, %v4341
      %v4362 = vpack.c.bf16 %v4344, %v4343
      %v4363 = vpack.c.bf16 %v4346, %v4345
      %v4364 = vpack.c.bf16 %v4348, %v4347
      %s4365 = scalar_lea.vmem %s3, 16
      %v4366 = vld [vmem:[%s4365] sm:$0xf]
      %v4367 = vld [vmem:[%s4365 + $0x4] sm:$0xf]
      %v4370 = vunpack.c.l.b16 %v4366
      %v4371 = vunpack.c.l.b16 %v4367
      %v4372 = vpack.c.b16 %v4371, %v4370
      %v4375 = vsel %vm3681, %v4349, 0
      %v4378 = vsel %vm3681, %v4350, 0
      %v4381 = vsel %vm3681, %v4351, 0
      %v4384 = vsel %vm3681, %v4352, 0
      %v4387 = vsel %vm3681, %v4353, 0
      %v4390 = vsel %vm3681, %v4354, 0
      %v4393 = vsel %vm3681, %v4355, 0
      %v4396 = vsel %vm3681, %v4356, 0
      %v4399 = vsel %vm3681, %v4357, 0
      %v4402 = vsel %vm3681, %v4358, 0
      %v4405 = vsel %vm3681, %v4359, 0
      %v4408 = vsel %vm3681, %v4360, 0
      %v4411 = vsel %vm3681, %v4361, 0
      %v4414 = vsel %vm3681, %v4362, 0
      %v4417 = vsel %vm3681, %v4363, 0
      %v4420 = vsel %vm3681, %v4364, 0
      %4422 = vmatprep.subr.bf16.mxu0 0
      %4423 = vmatpush1.bf16.msra.mxu0 0
      %4424 = vmatprep.subr.bf16.mxu0 0
      %4425 = vmatpush1.bf16.msra.mxu0 0
      %4426 = vmatprep.subr.bf16.mxu0 0
      %4427 = vmatpush1.bf16.msra.mxu0 0
      %4428 = vmatprep.subr.bf16.mxu0 0
      %4429 = vmatpush1.bf16.msra.mxu0 0
      %4430 = vmatprep.subr.bf16.mxu0 0
      %4431 = vmatpush1.bf16.msra.mxu0 0
      %4432 = vmatprep.subr.bf16.mxu0 0
      %4433 = vmatpush1.bf16.msra.mxu0 0
      %4434 = vmatprep.subr.bf16.mxu0 0
      %4435 = vmatpush1.bf16.msra.mxu0 0
      %4436 = vmatprep.subr.bf16.mxu0 0
      %4437 = vmatpush1.bf16.msra.mxu0 %v4372
      %4438 = vmatprep.subr.bf16.mxu0 0
      %4439 = vmatpush2.bf16.msra.mxu0 0
      %4440 = vmatprep.subr.bf16.mxu0 0
      %4441 = vmatpush2.bf16.msra.mxu0 0
      %4442 = vmatprep.subr.bf16.mxu0 0
      %4443 = vmatpush2.bf16.msra.mxu0 0
      %4444 = vmatprep.subr.bf16.mxu0 0
      %4445 = vmatpush2.bf16.msra.mxu0 0
      %4446 = vmatprep.subr.bf16.mxu0 0
      %4447 = vmatpush2.bf16.msra.mxu0 0
      %4448 = vmatprep.subr.bf16.mxu0 0
      %4449 = vmatpush2.bf16.msra.mxu0 0
      %4450 = vmatprep.subr.bf16.mxu0 0
      %4451 = vmatpush2.bf16.msra.mxu0 0
      %4452 = vmatprep.subr.bf16.mxu0 0
      %4453 = vmatpush2.bf16.msra.mxu0 0
      %4454 = vmatprep.mubr.bf16.mxu0 0
      %4455 = vmatmul.mubr.bf16.gmra.mxu0 %v4375
      %v4456 = vpop.f32.mrf.mxu0
      %v4457 = vadd.f32 0.0, %v4456
      %v4458 = vpop.f32.mrf.mxu0
      %v4459 = vpop.f32.mrf.mxu0
      %v4460 = vadd.f32 0.0, %v4459
      %v4461 = vpop.f32.mrf.mxu0
      %4462 = vmatprep.mubr.bf16.mxu0 0
      %4463 = vmatmul.mubr.bf16.gmra.mxu0 %v4378
      %v4464 = vpop.f32.mrf.mxu0
      %v4465 = vadd.f32 0.0, %v4464
      %v4466 = vpop.f32.mrf.mxu0
      %v4467 = vpop.f32.mrf.mxu0
      %v4468 = vadd.f32 0.0, %v4467
      %v4469 = vpop.f32.mrf.mxu0
      %4470 = vmatprep.mubr.bf16.mxu0 0
      %4471 = vmatmul.mubr.bf16.gmra.mxu0 %v4381
      %v4472 = vpop.f32.mrf.mxu0
      %v4473 = vadd.f32 0.0, %v4472
      %v4474 = vpop.f32.mrf.mxu0
      %v4475 = vpop.f32.mrf.mxu0
      %v4476 = vadd.f32 0.0, %v4475
      %v4477 = vpop.f32.mrf.mxu0
      %4478 = vmatprep.mubr.bf16.mxu0 0
      %4479 = vmatmul.mubr.bf16.gmra.mxu0 %v4384
      %v4480 = vpop.f32.mrf.mxu0
      %v4481 = vadd.f32 0.0, %v4480
      %v4482 = vpop.f32.mrf.mxu0
      %v4483 = vpop.f32.mrf.mxu0
      %v4484 = vadd.f32 0.0, %v4483
      %v4485 = vpop.f32.mrf.mxu0
      %4486 = vmatprep.mubr.bf16.mxu0 0
      %4487 = vmatmul.mubr.bf16.gmra.mxu0 %v4387
      %v4488 = vpop.f32.mrf.mxu0
      %v4489 = vadd.f32 0.0, %v4488
      %v4490 = vpop.f32.mrf.mxu0
      %v4491 = vpop.f32.mrf.mxu0
      %v4492 = vadd.f32 0.0, %v4491
      %v4493 = vpop.f32.mrf.mxu0
      %4494 = vmatprep.mubr.bf16.mxu0 0
      %4495 = vmatmul.mubr.bf16.gmra.mxu0 %v4390
      %v4496 = vpop.f32.mrf.mxu0
      %v4497 = vadd.f32 0.0, %v4496
      %v4498 = vpop.f32.mrf.mxu0
      %v4499 = vpop.f32.mrf.mxu0
      %v4500 = vadd.f32 0.0, %v4499
      %v4501 = vpop.f32.mrf.mxu0
      %4502 = vmatprep.mubr.bf16.mxu0 0
      %4503 = vmatmul.mubr.bf16.gmra.mxu0 %v4393
      %v4504 = vpop.f32.mrf.mxu0
      %v4505 = vadd.f32 0.0, %v4504
      %v4506 = vpop.f32.mrf.mxu0
      %v4507 = vpop.f32.mrf.mxu0
      %v4508 = vadd.f32 0.0, %v4507
      %v4509 = vpop.f32.mrf.mxu0
      %4510 = vmatprep.mubr.bf16.mxu0 0
      %4511 = vmatmul.mubr.bf16.gmra.mxu0 %v4396
      %v4512 = vpop.f32.mrf.mxu0
      %v4513 = vadd.f32 0.0, %v4512
      %v4514 = vpop.f32.mrf.mxu0
      %v4515 = vpop.f32.mrf.mxu0
      %v4516 = vadd.f32 0.0, %v4515
      %v4517 = vpop.f32.mrf.mxu0
      %4518 = vmatprep.mubr.bf16.mxu0 0
      %4519 = vmatmul.mubr.bf16.gmra.mxu0 %v4399
      %v4520 = vpop.f32.mrf.mxu0
      %v4521 = vadd.f32 0.0, %v4520
      %v4522 = vpop.f32.mrf.mxu0
      %v4523 = vpop.f32.mrf.mxu0
      %v4524 = vadd.f32 0.0, %v4523
      %v4525 = vpop.f32.mrf.mxu0
      %4526 = vmatprep.mubr.bf16.mxu0 0
      %4527 = vmatmul.mubr.bf16.gmra.mxu0 %v4402
      %v4528 = vpop.f32.mrf.mxu0
      %v4529 = vadd.f32 0.0, %v4528
      %v4530 = vpop.f32.mrf.mxu0
      %v4531 = vpop.f32.mrf.mxu0
      %v4532 = vadd.f32 0.0, %v4531
      %v4533 = vpop.f32.mrf.mxu0
      %4534 = vmatprep.mubr.bf16.mxu0 0
      %4535 = vmatmul.mubr.bf16.gmra.mxu0 %v4405
      %v4536 = vpop.f32.mrf.mxu0
      %v4537 = vadd.f32 0.0, %v4536
      %v4538 = vpop.f32.mrf.mxu0
      %v4539 = vpop.f32.mrf.mxu0
      %v4540 = vadd.f32 0.0, %v4539
      %v4541 = vpop.f32.mrf.mxu0
      %4542 = vmatprep.mubr.bf16.mxu0 0
      %4543 = vmatmul.mubr.bf16.gmra.mxu0 %v4408
      %v4544 = vpop.f32.mrf.mxu0
      %v4545 = vadd.f32 0.0, %v4544
      %v4546 = vpop.f32.mrf.mxu0
      %v4547 = vpop.f32.mrf.mxu0
      %v4548 = vadd.f32 0.0, %v4547
      %v4549 = vpop.f32.mrf.mxu0
      %4550 = vmatprep.mubr.bf16.mxu0 0
      %4551 = vmatmul.mubr.bf16.gmra.mxu0 %v4411
      %v4552 = vpop.f32.mrf.mxu0
      %v4553 = vadd.f32 0.0, %v4552
      %v4554 = vpop.f32.mrf.mxu0
      %v4555 = vpop.f32.mrf.mxu0
      %v4556 = vadd.f32 0.0, %v4555
      %v4557 = vpop.f32.mrf.mxu0
      %4558 = vmatprep.mubr.bf16.mxu0 0
      %4559 = vmatmul.mubr.bf16.gmra.mxu0 %v4414
      %v4560 = vpop.f32.mrf.mxu0
      %v4561 = vadd.f32 0.0, %v4560
      %v4562 = vpop.f32.mrf.mxu0
      %v4563 = vpop.f32.mrf.mxu0
      %v4564 = vadd.f32 0.0, %v4563
      %v4565 = vpop.f32.mrf.mxu0
      %4566 = vmatprep.mubr.bf16.mxu0 0
      %4567 = vmatmul.mubr.bf16.gmra.mxu0 %v4417
      %v4568 = vpop.f32.mrf.mxu0
      %v4569 = vadd.f32 0.0, %v4568
      %v4570 = vpop.f32.mrf.mxu0
      %v4571 = vpop.f32.mrf.mxu0
      %v4572 = vadd.f32 0.0, %v4571
      %v4573 = vpop.f32.mrf.mxu0
      %4574 = vmatprep.mubr.bf16.mxu0 0
      %4575 = vmatmul.mubr.bf16.gmra.mxu0 %v4420
      %v4576 = vpop.f32.mrf.mxu0
      %v4577 = vadd.f32 0.0, %v4576
      %v4578 = vpop.f32.mrf.mxu0
      %v4579 = vpop.f32.mrf.mxu0
      %v4580 = vadd.f32 0.0, %v4579
      %v4581 = vpop.f32.mrf.mxu0
      %4582 = vdwg.mxu0
      %v4583 = vadd.f32 %v4159, %v4457
      %v4584 = vadd.f32 %v4162, %v4460
      %v4585 = vadd.f32 %v4167, %v4465
      %v4586 = vadd.f32 %v4170, %v4468
      %v4587 = vadd.f32 %v4175, %v4473
      %v4588 = vadd.f32 %v4178, %v4476
      %v4589 = vadd.f32 %v4183, %v4481
      %v4590 = vadd.f32 %v4186, %v4484
      %v4591 = vadd.f32 %v4191, %v4489
      %v4592 = vadd.f32 %v4194, %v4492
      %v4593 = vadd.f32 %v4199, %v4497
      %v4594 = vadd.f32 %v4202, %v4500
      %v4595 = vadd.f32 %v4207, %v4505
      %v4596 = vadd.f32 %v4210, %v4508
      %v4597 = vadd.f32 %v4215, %v4513
      %v4598 = vadd.f32 %v4218, %v4516
      %v4599 = vadd.f32 %v4223, %v4521
      %v4600 = vadd.f32 %v4226, %v4524
      %v4601 = vadd.f32 %v4231, %v4529
      %v4602 = vadd.f32 %v4234, %v4532
      %v4603 = vadd.f32 %v4239, %v4537
      %v4604 = vadd.f32 %v4242, %v4540
      %v4605 = vadd.f32 %v4247, %v4545
      %v4606 = vadd.f32 %v4250, %v4548
      %v4607 = vadd.f32 %v4255, %v4553
      %v4608 = vadd.f32 %v4258, %v4556
      %v4609 = vadd.f32 %v4263, %v4561
      %v4610 = vadd.f32 %v4266, %v4564
      %v4611 = vadd.f32 %v4271, %v4569
      %v4612 = vadd.f32 %v4274, %v4572
      %v4613 = vadd.f32 %v4279, %v4577
      %v4614 = vadd.f32 %v4282, %v4580
      %v4615 = vld [vmem:[#allocation2 + $0x1f] sm:$0xff]
      %v4616 = vld [vmem:[#allocation2 + $0x27] sm:$0xff]
      %v4617 = vld [vmem:[#allocation2 + $0x2f] sm:$0xff]
      %v4618 = vld [vmem:[#allocation2 + $0x37] sm:$0xff]
      %v4619 = vld [vmem:[#allocation2 + $0x3f] sm:$0xff]
      %v4620 = vld [vmem:[#allocation2 + $0x47] sm:$0xff]
      %v4621 = vld [vmem:[#allocation2 + $0x4f] sm:$0xff]
      %v4622 = vld [vmem:[#allocation2 + $0x57] sm:$0xff]
      %v4623 = vld [vmem:[#allocation2 + $0x5f] sm:$0xff]
      %v4624 = vld [vmem:[#allocation2 + $0x67] sm:$0xff]
      %v4625 = vld [vmem:[#allocation2 + $0x6f] sm:$0xff]
      %v4626 = vld [vmem:[#allocation2 + $0x77] sm:$0xff]
      %v4627 = vld [vmem:[#allocation2 + $0x7f] sm:$0xff]
      %v4628 = vld [vmem:[#allocation2 + $0x87] sm:$0xff]
      %v4629 = vld [vmem:[#allocation2 + $0x8f] sm:$0xff]
      %v4630 = vld [vmem:[#allocation2 + $0x97] sm:$0xff]
      %v4631 = vld [vmem:[#allocation2 + $0x9f] sm:$0xff]
      %v4632 = vld [vmem:[#allocation2 + $0xa7] sm:$0xff]
      %v4633 = vld [vmem:[#allocation2 + $0xaf] sm:$0xff]
      %v4634 = vld [vmem:[#allocation2 + $0xb7] sm:$0xff]
      %v4635 = vld [vmem:[#allocation2 + $0xbf] sm:$0xff]
      %v4636 = vld [vmem:[#allocation2 + $0xc7] sm:$0xff]
      %v4637 = vld [vmem:[#allocation2 + $0xcf] sm:$0xff]
      %v4638 = vld [vmem:[#allocation2 + $0xd7] sm:$0xff]
      %v4639 = vld [vmem:[#allocation2 + $0xdf] sm:$0xff]
      %v4640 = vld [vmem:[#allocation2 + $0xe7] sm:$0xff]
      %v4641 = vld [vmem:[#allocation2 + $0xef] sm:$0xff]
      %v4642 = vld [vmem:[#allocation2 + $0xf7] sm:$0xff]
      %v4643 = vld [vmem:[#allocation2 + $0xff] sm:$0xff]
      %v4644 = vld [vmem:[#allocation2 + $0x107] sm:$0xff]
      %v4645 = vld [vmem:[#allocation2 + $0x10f] sm:$0xff]
      %v4646 = vld [vmem:[#allocation2 + $0x117] sm:$0xff]
      %v4647 = vsel %vm771, %v4615, 0.0
      %v4648 = vsel %vm772, %v4616, 0.0
      %v4649 = vsel %vm773, %v4617, 0.0
      %v4650 = vsel %vm774, %v4618, 0.0
      %v4651 = vsel %vm775, %v4619, 0.0
      %v4652 = vsel %vm776, %v4620, 0.0
      %v4653 = vsel %vm777, %v4621, 0.0
      %v4654 = vsel %vm778, %v4622, 0.0
      %v4655 = vsel %vm779, %v4623, 0.0
      %v4656 = vsel %vm780, %v4624, 0.0
      %v4657 = vsel %vm781, %v4625, 0.0
      %v4658 = vsel %vm782, %v4626, 0.0
      %v4659 = vsel %vm783, %v4627, 0.0
      %v4660 = vsel %vm784, %v4628, 0.0
      %v4661 = vsel %vm785, %v4629, 0.0
      %v4662 = vsel %vm786, %v4630, 0.0
      %v4663 = vsel %vm787, %v4631, 0.0
      %v4664 = vsel %vm788, %v4632, 0.0
      %v4665 = vsel %vm789, %v4633, 0.0
      %v4666 = vsel %vm790, %v4634, 0.0
      %v4667 = vsel %vm791, %v4635, 0.0
      %v4668 = vsel %vm792, %v4636, 0.0
      %v4669 = vsel %vm793, %v4637, 0.0
      %v4670 = vsel %vm794, %v4638, 0.0
      %v4671 = vsel %vm795, %v4639, 0.0
      %v4672 = vsel %vm796, %v4640, 0.0
      %v4673 = vsel %vm797, %v4641, 0.0
      %v4674 = vsel %vm798, %v4642, 0.0
      %v4675 = vsel %vm799, %v4643, 0.0
      %v4676 = vsel %vm800, %v4644, 0.0
      %v4677 = vsel %vm801, %v4645, 0.0
      %v4678 = vsel %vm802, %v4646, 0.0
      %v4679 = vpack.c.bf16 %v4648, %v4647
      %v4680 = vpack.c.bf16 %v4650, %v4649
      %v4681 = vpack.c.bf16 %v4652, %v4651
      %v4682 = vpack.c.bf16 %v4654, %v4653
      %v4683 = vpack.c.bf16 %v4656, %v4655
      %v4684 = vpack.c.bf16 %v4658, %v4657
      %v4685 = vpack.c.bf16 %v4660, %v4659
      %v4686 = vpack.c.bf16 %v4662, %v4661
      %v4687 = vpack.c.bf16 %v4664, %v4663
      %v4688 = vpack.c.bf16 %v4666, %v4665
      %v4689 = vpack.c.bf16 %v4668, %v4667
      %v4690 = vpack.c.bf16 %v4670, %v4669
      %v4691 = vpack.c.bf16 %v4672, %v4671
      %v4692 = vpack.c.bf16 %v4674, %v4673
      %v4693 = vpack.c.bf16 %v4676, %v4675
      %v4694 = vpack.c.bf16 %v4678, %v4677
      %s4695 = scalar_lea.vmem %s3, 24
      %v4696 = vld [vmem:[%s4695] sm:$0xf]
      %v4697 = vld [vmem:[%s4695 + $0x4] sm:$0xf]
      %v4700 = vunpack.c.l.b16 %v4696
      %v4701 = vunpack.c.l.b16 %v4697
      %v4702 = vpack.c.b16 %v4701, %v4700
      %v4705 = vsel %vm3681, %v4679, 0
      %v4708 = vsel %vm3681, %v4680, 0
      %v4711 = vsel %vm3681, %v4681, 0
      %v4714 = vsel %vm3681, %v4682, 0
      %v4717 = vsel %vm3681, %v4683, 0
      %v4720 = vsel %vm3681, %v4684, 0
      %v4723 = vsel %vm3681, %v4685, 0
      %v4726 = vsel %vm3681, %v4686, 0
      %v4729 = vsel %vm3681, %v4687, 0
      %v4732 = vsel %vm3681, %v4688, 0
      %v4735 = vsel %vm3681, %v4689, 0
      %v4738 = vsel %vm3681, %v4690, 0
      %v4741 = vsel %vm3681, %v4691, 0
      %v4744 = vsel %vm3681, %v4692, 0
      %v4747 = vsel %vm3681, %v4693, 0
      %v4750 = vsel %vm3681, %v4694, 0
      %4752 = vmatprep.subr.bf16.mxu0 0
      %4753 = vmatpush1.bf16.msra.mxu0 0
      %4754 = vmatprep.subr.bf16.mxu0 0
      %4755 = vmatpush1.bf16.msra.mxu0 0
      %4756 = vmatprep.subr.bf16.mxu0 0
      %4757 = vmatpush1.bf16.msra.mxu0 0
      %4758 = vmatprep.subr.bf16.mxu0 0
      %4759 = vmatpush1.bf16.msra.mxu0 0
      %4760 = vmatprep.subr.bf16.mxu0 0
      %4761 = vmatpush1.bf16.msra.mxu0 0
      %4762 = vmatprep.subr.bf16.mxu0 0
      %4763 = vmatpush1.bf16.msra.mxu0 0
      %4764 = vmatprep.subr.bf16.mxu0 0
      %4765 = vmatpush1.bf16.msra.mxu0 0
      %4766 = vmatprep.subr.bf16.mxu0 0
      %4767 = vmatpush1.bf16.msra.mxu0 %v4702
      %4768 = vmatprep.subr.bf16.mxu0 0
      %4769 = vmatpush2.bf16.msra.mxu0 0
      %4770 = vmatprep.subr.bf16.mxu0 0
      %4771 = vmatpush2.bf16.msra.mxu0 0
      %4772 = vmatprep.subr.bf16.mxu0 0
      %4773 = vmatpush2.bf16.msra.mxu0 0
      %4774 = vmatprep.subr.bf16.mxu0 0
      %4775 = vmatpush2.bf16.msra.mxu0 0
      %4776 = vmatprep.subr.bf16.mxu0 0
      %4777 = vmatpush2.bf16.msra.mxu0 0
      %4778 = vmatprep.subr.bf16.mxu0 0
      %4779 = vmatpush2.bf16.msra.mxu0 0
      %4780 = vmatprep.subr.bf16.mxu0 0
      %4781 = vmatpush2.bf16.msra.mxu0 0
      %4782 = vmatprep.subr.bf16.mxu0 0
      %4783 = vmatpush2.bf16.msra.mxu0 0
      %4784 = vmatprep.mubr.bf16.mxu0 0
      %4785 = vmatmul.mubr.bf16.gmra.mxu0 %v4705
      %v4786 = vpop.f32.mrf.mxu0
      %v4787 = vadd.f32 0.0, %v4786
      %v4788 = vpop.f32.mrf.mxu0
      %v4789 = vpop.f32.mrf.mxu0
      %v4790 = vadd.f32 0.0, %v4789
      %v4791 = vpop.f32.mrf.mxu0
      %4792 = vmatprep.mubr.bf16.mxu0 0
      %4793 = vmatmul.mubr.bf16.gmra.mxu0 %v4708
      %v4794 = vpop.f32.mrf.mxu0
      %v4795 = vadd.f32 0.0, %v4794
      %v4796 = vpop.f32.mrf.mxu0
      %v4797 = vpop.f32.mrf.mxu0
      %v4798 = vadd.f32 0.0, %v4797
      %v4799 = vpop.f32.mrf.mxu0
      %4800 = vmatprep.mubr.bf16.mxu0 0
      %4801 = vmatmul.mubr.bf16.gmra.mxu0 %v4711
      %v4802 = vpop.f32.mrf.mxu0
      %v4803 = vadd.f32 0.0, %v4802
      %v4804 = vpop.f32.mrf.mxu0
      %v4805 = vpop.f32.mrf.mxu0
      %v4806 = vadd.f32 0.0, %v4805
      %v4807 = vpop.f32.mrf.mxu0
      %4808 = vmatprep.mubr.bf16.mxu0 0
      %4809 = vmatmul.mubr.bf16.gmra.mxu0 %v4714
      %v4810 = vpop.f32.mrf.mxu0
      %v4811 = vadd.f32 0.0, %v4810
      %v4812 = vpop.f32.mrf.mxu0
      %v4813 = vpop.f32.mrf.mxu0
      %v4814 = vadd.f32 0.0, %v4813
      %v4815 = vpop.f32.mrf.mxu0
      %4816 = vmatprep.mubr.bf16.mxu0 0
      %4817 = vmatmul.mubr.bf16.gmra.mxu0 %v4717
      %v4818 = vpop.f32.mrf.mxu0
      %v4819 = vadd.f32 0.0, %v4818
      %v4820 = vpop.f32.mrf.mxu0
      %v4821 = vpop.f32.mrf.mxu0
      %v4822 = vadd.f32 0.0, %v4821
      %v4823 = vpop.f32.mrf.mxu0
      %4824 = vmatprep.mubr.bf16.mxu0 0
      %4825 = vmatmul.mubr.bf16.gmra.mxu0 %v4720
      %v4826 = vpop.f32.mrf.mxu0
      %v4827 = vadd.f32 0.0, %v4826
      %v4828 = vpop.f32.mrf.mxu0
      %v4829 = vpop.f32.mrf.mxu0
      %v4830 = vadd.f32 0.0, %v4829
      %v4831 = vpop.f32.mrf.mxu0
      %4832 = vmatprep.mubr.bf16.mxu0 0
      %4833 = vmatmul.mubr.bf16.gmra.mxu0 %v4723
      %v4834 = vpop.f32.mrf.mxu0
      %v4835 = vadd.f32 0.0, %v4834
      %v4836 = vpop.f32.mrf.mxu0
      %v4837 = vpop.f32.mrf.mxu0
      %v4838 = vadd.f32 0.0, %v4837
      %v4839 = vpop.f32.mrf.mxu0
      %4840 = vmatprep.mubr.bf16.mxu0 0
      %4841 = vmatmul.mubr.bf16.gmra.mxu0 %v4726
      %v4842 = vpop.f32.mrf.mxu0
      %v4843 = vadd.f32 0.0, %v4842
      %v4844 = vpop.f32.mrf.mxu0
      %v4845 = vpop.f32.mrf.mxu0
      %v4846 = vadd.f32 0.0, %v4845
      %v4847 = vpop.f32.mrf.mxu0
      %4848 = vmatprep.mubr.bf16.mxu0 0
      %4849 = vmatmul.mubr.bf16.gmra.mxu0 %v4729
      %v4850 = vpop.f32.mrf.mxu0
      %v4851 = vadd.f32 0.0, %v4850
      %v4852 = vpop.f32.mrf.mxu0
      %v4853 = vpop.f32.mrf.mxu0
      %v4854 = vadd.f32 0.0, %v4853
      %v4855 = vpop.f32.mrf.mxu0
      %4856 = vmatprep.mubr.bf16.mxu0 0
      %4857 = vmatmul.mubr.bf16.gmra.mxu0 %v4732
      %v4858 = vpop.f32.mrf.mxu0
      %v4859 = vadd.f32 0.0, %v4858
      %v4860 = vpop.f32.mrf.mxu0
      %v4861 = vpop.f32.mrf.mxu0
      %v4862 = vadd.f32 0.0, %v4861
      %v4863 = vpop.f32.mrf.mxu0
      %4864 = vmatprep.mubr.bf16.mxu0 0
      %4865 = vmatmul.mubr.bf16.gmra.mxu0 %v4735
      %v4866 = vpop.f32.mrf.mxu0
      %v4867 = vadd.f32 0.0, %v4866
      %v4868 = vpop.f32.mrf.mxu0
      %v4869 = vpop.f32.mrf.mxu0
      %v4870 = vadd.f32 0.0, %v4869
      %v4871 = vpop.f32.mrf.mxu0
      %4872 = vmatprep.mubr.bf16.mxu0 0
      %4873 = vmatmul.mubr.bf16.gmra.mxu0 %v4738
      %v4874 = vpop.f32.mrf.mxu0
      %v4875 = vadd.f32 0.0, %v4874
      %v4876 = vpop.f32.mrf.mxu0
      %v4877 = vpop.f32.mrf.mxu0
      %v4878 = vadd.f32 0.0, %v4877
      %v4879 = vpop.f32.mrf.mxu0
      %4880 = vmatprep.mubr.bf16.mxu0 0
      %4881 = vmatmul.mubr.bf16.gmra.mxu0 %v4741
      %v4882 = vpop.f32.mrf.mxu0
      %v4883 = vadd.f32 0.0, %v4882
      %v4884 = vpop.f32.mrf.mxu0
      %v4885 = vpop.f32.mrf.mxu0
      %v4886 = vadd.f32 0.0, %v4885
      %v4887 = vpop.f32.mrf.mxu0
      %4888 = vmatprep.mubr.bf16.mxu0 0
      %4889 = vmatmul.mubr.bf16.gmra.mxu0 %v4744
      %v4890 = vpop.f32.mrf.mxu0
      %v4891 = vadd.f32 0.0, %v4890
      %v4892 = vpop.f32.mrf.mxu0
      %v4893 = vpop.f32.mrf.mxu0
      %v4894 = vadd.f32 0.0, %v4893
      %v4895 = vpop.f32.mrf.mxu0
      %4896 = vmatprep.mubr.bf16.mxu0 0
      %4897 = vmatmul.mubr.bf16.gmra.mxu0 %v4747
      %v4898 = vpop.f32.mrf.mxu0
      %v4899 = vadd.f32 0.0, %v4898
      %v4900 = vpop.f32.mrf.mxu0
      %v4901 = vpop.f32.mrf.mxu0
      %v4902 = vadd.f32 0.0, %v4901
      %v4903 = vpop.f32.mrf.mxu0
      %4904 = vmatprep.mubr.bf16.mxu0 0
      %4905 = vmatmul.mubr.bf16.gmra.mxu0 %v4750
      %v4906 = vpop.f32.mrf.mxu0
      %v4907 = vadd.f32 0.0, %v4906
      %v4908 = vpop.f32.mrf.mxu0
      %v4909 = vpop.f32.mrf.mxu0
      %v4910 = vadd.f32 0.0, %v4909
      %v4911 = vpop.f32.mrf.mxu0
      %4912 = vdwg.mxu0
      %v4913 = vadd.f32 %v4583, %v4787
      %v4914 = vadd.f32 %v4584, %v4790
      %v4915 = vadd.f32 %v4585, %v4795
      %v4916 = vadd.f32 %v4586, %v4798
      %v4917 = vadd.f32 %v4587, %v4803
      %v4918 = vadd.f32 %v4588, %v4806
      %v4919 = vadd.f32 %v4589, %v4811
      %v4920 = vadd.f32 %v4590, %v4814
      %v4921 = vadd.f32 %v4591, %v4819
      %v4922 = vadd.f32 %v4592, %v4822
      %v4923 = vadd.f32 %v4593, %v4827
      %v4924 = vadd.f32 %v4594, %v4830
      %v4925 = vadd.f32 %v4595, %v4835
      %v4926 = vadd.f32 %v4596, %v4838
      %v4927 = vadd.f32 %v4597, %v4843
      %v4928 = vadd.f32 %v4598, %v4846
      %v4929 = vadd.f32 %v4599, %v4851
      %v4930 = vadd.f32 %v4600, %v4854
      %v4931 = vadd.f32 %v4601, %v4859
      %v4932 = vadd.f32 %v4602, %v4862
      %v4933 = vadd.f32 %v4603, %v4867
      %v4934 = vadd.f32 %v4604, %v4870
      %v4935 = vadd.f32 %v4605, %v4875
      %v4936 = vadd.f32 %v4606, %v4878
      %v4937 = vadd.f32 %v4607, %v4883
      %v4938 = vadd.f32 %v4608, %v4886
      %v4939 = vadd.f32 %v4609, %v4891
      %v4940 = vadd.f32 %v4610, %v4894
      %v4941 = vadd.f32 %v4611, %v4899
      %v4942 = vadd.f32 %v4612, %v4902
      %v4943 = vadd.f32 %v4613, %v4907
      %v4944 = vadd.f32 %v4614, %v4910
      %v4945 = vld [vmem:[#allocation2 + $0x20] sm:$0xff]
      %v4946 = vld [vmem:[#allocation2 + $0x28] sm:$0xff]
      %v4947 = vld [vmem:[#allocation2 + $0x30] sm:$0xff]
      %v4948 = vld [vmem:[#allocation2 + $0x38] sm:$0xff]
      %v4949 = vld [vmem:[#allocation2 + $0x40] sm:$0xff]
      %v4950 = vld [vmem:[#allocation2 + $0x48] sm:$0xff]
      %v4951 = vld [vmem:[#allocation2 + $0x50] sm:$0xff]
      %v4952 = vld [vmem:[#allocation2 + $0x58] sm:$0xff]
      %v4953 = vld [vmem:[#allocation2 + $0x60] sm:$0xff]
      %v4954 = vld [vmem:[#allocation2 + $0x68] sm:$0xff]
      %v4955 = vld [vmem:[#allocation2 + $0x70] sm:$0xff]
      %v4956 = vld [vmem:[#allocation2 + $0x78] sm:$0xff]
      %v4957 = vld [vmem:[#allocation2 + $0x80] sm:$0xff]
      %v4958 = vld [vmem:[#allocation2 + $0x88] sm:$0xff]
      %v4959 = vld [vmem:[#allocation2 + $0x90] sm:$0xff]
      %v4960 = vld [vmem:[#allocation2 + $0x98] sm:$0xff]
      %v4961 = vld [vmem:[#allocation2 + $0xa0] sm:$0xff]
      %v4962 = vld [vmem:[#allocation2 + $0xa8] sm:$0xff]
      %v4963 = vld [vmem:[#allocation2 + $0xb0] sm:$0xff]
      %v4964 = vld [vmem:[#allocation2 + $0xb8] sm:$0xff]
      %v4965 = vld [vmem:[#allocation2 + $0xc0] sm:$0xff]
      %v4966 = vld [vmem:[#allocation2 + $0xc8] sm:$0xff]
      %v4967 = vld [vmem:[#allocation2 + $0xd0] sm:$0xff]
      %v4968 = vld [vmem:[#allocation2 + $0xd8] sm:$0xff]
      %v4969 = vld [vmem:[#allocation2 + $0xe0] sm:$0xff]
      %v4970 = vld [vmem:[#allocation2 + $0xe8] sm:$0xff]
      %v4971 = vld [vmem:[#allocation2 + $0xf0] sm:$0xff]
      %v4972 = vld [vmem:[#allocation2 + $0xf8] sm:$0xff]
      %v4973 = vld [vmem:[#allocation2 + $0x100] sm:$0xff]
      %v4974 = vld [vmem:[#allocation2 + $0x108] sm:$0xff]
      %v4975 = vld [vmem:[#allocation2 + $0x110] sm:$0xff]
      %v4976 = vld [vmem:[#allocation2 + $0x118] sm:$0xff]
      %v4977 = vpack.c.bf16 %v4946, %v4945
      %v4978 = vpack.c.bf16 %v4948, %v4947
      %v4979 = vpack.c.bf16 %v4950, %v4949
      %v4980 = vpack.c.bf16 %v4952, %v4951
      %v4981 = vpack.c.bf16 %v4954, %v4953
      %v4982 = vpack.c.bf16 %v4956, %v4955
      %v4983 = vpack.c.bf16 %v4958, %v4957
      %v4984 = vpack.c.bf16 %v4960, %v4959
      %v4985 = vpack.c.bf16 %v4962, %v4961
      %v4986 = vpack.c.bf16 %v4964, %v4963
      %v4987 = vpack.c.bf16 %v4966, %v4965
      %v4988 = vpack.c.bf16 %v4968, %v4967
      %v4989 = vpack.c.bf16 %v4970, %v4969
      %v4990 = vpack.c.bf16 %v4972, %v4971
      %v4991 = vpack.c.bf16 %v4974, %v4973
      %v4992 = vpack.c.bf16 %v4976, %v4975
      %s4993 = scalar_lea.vmem %s3, 32
      %v4994 = vld [vmem:[%s4993] sm:$0xf]
      %v4995 = vld [vmem:[%s4993 + $0x4] sm:$0xf]
      %v4998 = vunpack.c.l.b16 %v4994
      %v4999 = vunpack.c.l.b16 %v4995
      %v5000 = vpack.c.b16 %v4999, %v4998
      %v5003 = vsel %vm3681, %v4977, 0
      %v5006 = vsel %vm3681, %v4978, 0
      %v5009 = vsel %vm3681, %v4979, 0
      %v5012 = vsel %vm3681, %v4980, 0
      %v5015 = vsel %vm3681, %v4981, 0
      %v5018 = vsel %vm3681, %v4982, 0
      %v5021 = vsel %vm3681, %v4983, 0
      %v5024 = vsel %vm3681, %v4984, 0
      %v5027 = vsel %vm3681, %v4985, 0
      %v5030 = vsel %vm3681, %v4986, 0
      %v5033 = vsel %vm3681, %v4987, 0
      %v5036 = vsel %vm3681, %v4988, 0
      %v5039 = vsel %vm3681, %v4989, 0
      %v5042 = vsel %vm3681, %v4990, 0
      %v5045 = vsel %vm3681, %v4991, 0
      %v5048 = vsel %vm3681, %v4992, 0
      %5050 = vmatprep.subr.bf16.mxu0 0
      %5051 = vmatpush1.bf16.msra.mxu0 0
      %5052 = vmatprep.subr.bf16.mxu0 0
      %5053 = vmatpush1.bf16.msra.mxu0 0
      %5054 = vmatprep.subr.bf16.mxu0 0
      %5055 = vmatpush1.bf16.msra.mxu0 0
      %5056 = vmatprep.subr.bf16.mxu0 0
      %5057 = vmatpush1.bf16.msra.mxu0 0
      %5058 = vmatprep.subr.bf16.mxu0 0
      %5059 = vmatpush1.bf16.msra.mxu0 0
      %5060 = vmatprep.subr.bf16.mxu0 0
      %5061 = vmatpush1.bf16.msra.mxu0 0
      %5062 = vmatprep.subr.bf16.mxu0 0
      %5063 = vmatpush1.bf16.msra.mxu0 0
      %5064 = vmatprep.subr.bf16.mxu0 0
      %5065 = vmatpush1.bf16.msra.mxu0 %v5000
      %5066 = vmatprep.subr.bf16.mxu0 0
      %5067 = vmatpush2.bf16.msra.mxu0 0
      %5068 = vmatprep.subr.bf16.mxu0 0
      %5069 = vmatpush2.bf16.msra.mxu0 0
      %5070 = vmatprep.subr.bf16.mxu0 0
      %5071 = vmatpush2.bf16.msra.mxu0 0
      %5072 = vmatprep.subr.bf16.mxu0 0
      %5073 = vmatpush2.bf16.msra.mxu0 0
      %5074 = vmatprep.subr.bf16.mxu0 0
      %5075 = vmatpush2.bf16.msra.mxu0 0
      %5076 = vmatprep.subr.bf16.mxu0 0
      %5077 = vmatpush2.bf16.msra.mxu0 0
      %5078 = vmatprep.subr.bf16.mxu0 0
      %5079 = vmatpush2.bf16.msra.mxu0 0
      %5080 = vmatprep.subr.bf16.mxu0 0
      %5081 = vmatpush2.bf16.msra.mxu0 0
      %5082 = vmatprep.mubr.bf16.mxu0 0
      %5083 = vmatmul.mubr.bf16.gmra.mxu0 %v5003
      %v5084 = vpop.f32.mrf.mxu0
      %v5085 = vadd.f32 0.0, %v5084
      %v5086 = vpop.f32.mrf.mxu0
      %v5087 = vpop.f32.mrf.mxu0
      %v5088 = vadd.f32 0.0, %v5087
      %v5089 = vpop.f32.mrf.mxu0
      %5090 = vmatprep.mubr.bf16.mxu0 0
      %5091 = vmatmul.mubr.bf16.gmra.mxu0 %v5006
      %v5092 = vpop.f32.mrf.mxu0
      %v5093 = vadd.f32 0.0, %v5092
      %v5094 = vpop.f32.mrf.mxu0
      %v5095 = vpop.f32.mrf.mxu0
      %v5096 = vadd.f32 0.0, %v5095
      %v5097 = vpop.f32.mrf.mxu0
      %5098 = vmatprep.mubr.bf16.mxu0 0
      %5099 = vmatmul.mubr.bf16.gmra.mxu0 %v5009
      %v5100 = vpop.f32.mrf.mxu0
      %v5101 = vadd.f32 0.0, %v5100
      %v5102 = vpop.f32.mrf.mxu0
      %v5103 = vpop.f32.mrf.mxu0
      %v5104 = vadd.f32 0.0, %v5103
      %v5105 = vpop.f32.mrf.mxu0
      %5106 = vmatprep.mubr.bf16.mxu0 0
      %5107 = vmatmul.mubr.bf16.gmra.mxu0 %v5012
      %v5108 = vpop.f32.mrf.mxu0
      %v5109 = vadd.f32 0.0, %v5108
      %v5110 = vpop.f32.mrf.mxu0
      %v5111 = vpop.f32.mrf.mxu0
      %v5112 = vadd.f32 0.0, %v5111
      %v5113 = vpop.f32.mrf.mxu0
      %5114 = vmatprep.mubr.bf16.mxu0 0
      %5115 = vmatmul.mubr.bf16.gmra.mxu0 %v5015
      %v5116 = vpop.f32.mrf.mxu0
      %v5117 = vadd.f32 0.0, %v5116
      %v5118 = vpop.f32.mrf.mxu0
      %v5119 = vpop.f32.mrf.mxu0
      %v5120 = vadd.f32 0.0, %v5119
      %v5121 = vpop.f32.mrf.mxu0
      %5122 = vmatprep.mubr.bf16.mxu0 0
      %5123 = vmatmul.mubr.bf16.gmra.mxu0 %v5018
      %v5124 = vpop.f32.mrf.mxu0
      %v5125 = vadd.f32 0.0, %v5124
      %v5126 = vpop.f32.mrf.mxu0
      %v5127 = vpop.f32.mrf.mxu0
      %v5128 = vadd.f32 0.0, %v5127
      %v5129 = vpop.f32.mrf.mxu0
      %5130 = vmatprep.mubr.bf16.mxu0 0
      %5131 = vmatmul.mubr.bf16.gmra.mxu0 %v5021
      %v5132 = vpop.f32.mrf.mxu0
      %v5133 = vadd.f32 0.0, %v5132
      %v5134 = vpop.f32.mrf.mxu0
      %v5135 = vpop.f32.mrf.mxu0
      %v5136 = vadd.f32 0.0, %v5135
      %v5137 = vpop.f32.mrf.mxu0
      %5138 = vmatprep.mubr.bf16.mxu0 0
      %5139 = vmatmul.mubr.bf16.gmra.mxu0 %v5024
      %v5140 = vpop.f32.mrf.mxu0
      %v5141 = vadd.f32 0.0, %v5140
      %v5142 = vpop.f32.mrf.mxu0
      %v5143 = vpop.f32.mrf.mxu0
      %v5144 = vadd.f32 0.0, %v5143
      %v5145 = vpop.f32.mrf.mxu0
      %5146 = vmatprep.mubr.bf16.mxu0 0
      %5147 = vmatmul.mubr.bf16.gmra.mxu0 %v5027
      %v5148 = vpop.f32.mrf.mxu0
      %v5149 = vadd.f32 0.0, %v5148
      %v5150 = vpop.f32.mrf.mxu0
      %v5151 = vpop.f32.mrf.mxu0
      %v5152 = vadd.f32 0.0, %v5151
      %v5153 = vpop.f32.mrf.mxu0
      %5154 = vmatprep.mubr.bf16.mxu0 0
      %5155 = vmatmul.mubr.bf16.gmra.mxu0 %v5030
      %v5156 = vpop.f32.mrf.mxu0
      %v5157 = vadd.f32 0.0, %v5156
      %v5158 = vpop.f32.mrf.mxu0
      %v5159 = vpop.f32.mrf.mxu0
      %v5160 = vadd.f32 0.0, %v5159
      %v5161 = vpop.f32.mrf.mxu0
      %5162 = vmatprep.mubr.bf16.mxu0 0
      %5163 = vmatmul.mubr.bf16.gmra.mxu0 %v5033
      %v5164 = vpop.f32.mrf.mxu0
      %v5165 = vadd.f32 0.0, %v5164
      %v5166 = vpop.f32.mrf.mxu0
      %v5167 = vpop.f32.mrf.mxu0
      %v5168 = vadd.f32 0.0, %v5167
      %v5169 = vpop.f32.mrf.mxu0
      %5170 = vmatprep.mubr.bf16.mxu0 0
      %5171 = vmatmul.mubr.bf16.gmra.mxu0 %v5036
      %v5172 = vpop.f32.mrf.mxu0
      %v5173 = vadd.f32 0.0, %v5172
      %v5174 = vpop.f32.mrf.mxu0
      %v5175 = vpop.f32.mrf.mxu0
      %v5176 = vadd.f32 0.0, %v5175
      %v5177 = vpop.f32.mrf.mxu0
      %5178 = vmatprep.mubr.bf16.mxu0 0
      %5179 = vmatmul.mubr.bf16.gmra.mxu0 %v5039
      %v5180 = vpop.f32.mrf.mxu0
      %v5181 = vadd.f32 0.0, %v5180
      %v5182 = vpop.f32.mrf.mxu0
      %v5183 = vpop.f32.mrf.mxu0
      %v5184 = vadd.f32 0.0, %v5183
      %v5185 = vpop.f32.mrf.mxu0
      %5186 = vmatprep.mubr.bf16.mxu0 0
      %5187 = vmatmul.mubr.bf16.gmra.mxu0 %v5042
      %v5188 = vpop.f32.mrf.mxu0
      %v5189 = vadd.f32 0.0, %v5188
      %v5190 = vpop.f32.mrf.mxu0
      %v5191 = vpop.f32.mrf.mxu0
      %v5192 = vadd.f32 0.0, %v5191
      %v5193 = vpop.f32.mrf.mxu0
      %5194 = vmatprep.mubr.bf16.mxu0 0
      %5195 = vmatmul.mubr.bf16.gmra.mxu0 %v5045
      %v5196 = vpop.f32.mrf.mxu0
      %v5197 = vadd.f32 0.0, %v5196
      %v5198 = vpop.f32.mrf.mxu0
      %v5199 = vpop.f32.mrf.mxu0
      %v5200 = vadd.f32 0.0, %v5199
      %v5201 = vpop.f32.mrf.mxu0
      %5202 = vmatprep.mubr.bf16.mxu0 0
      %5203 = vmatmul.mubr.bf16.gmra.mxu0 %v5048
      %v5204 = vpop.f32.mrf.mxu0
      %v5205 = vadd.f32 0.0, %v5204
      %v5206 = vpop.f32.mrf.mxu0
      %v5207 = vpop.f32.mrf.mxu0
      %v5208 = vadd.f32 0.0, %v5207
      %v5209 = vpop.f32.mrf.mxu0
      %5210 = vdwg.mxu0
      %v5211 = vadd.f32 %v4913, %v5085
      %v5212 = vadd.f32 %v4914, %v5088
      %v5213 = vadd.f32 %v4915, %v5093
      %v5214 = vadd.f32 %v4916, %v5096
      %v5215 = vadd.f32 %v4917, %v5101
      %v5216 = vadd.f32 %v4918, %v5104
      %v5217 = vadd.f32 %v4919, %v5109
      %v5218 = vadd.f32 %v4920, %v5112
      %v5219 = vadd.f32 %v4921, %v5117
      %v5220 = vadd.f32 %v4922, %v5120
      %v5221 = vadd.f32 %v4923, %v5125
      %v5222 = vadd.f32 %v4924, %v5128
      %v5223 = vadd.f32 %v4925, %v5133
      %v5224 = vadd.f32 %v4926, %v5136
      %v5225 = vadd.f32 %v4927, %v5141
      %v5226 = vadd.f32 %v4928, %v5144
      %v5227 = vadd.f32 %v4929, %v5149
      %v5228 = vadd.f32 %v4930, %v5152
      %v5229 = vadd.f32 %v4931, %v5157
      %v5230 = vadd.f32 %v4932, %v5160
      %v5231 = vadd.f32 %v4933, %v5165
      %v5232 = vadd.f32 %v4934, %v5168
      %v5233 = vadd.f32 %v4935, %v5173
      %v5234 = vadd.f32 %v4936, %v5176
      %v5235 = vadd.f32 %v4937, %v5181
      %v5236 = vadd.f32 %v4938, %v5184
      %v5237 = vadd.f32 %v4939, %v5189
      %v5238 = vadd.f32 %v4940, %v5192
      %v5239 = vadd.f32 %v4941, %v5197
      %v5240 = vadd.f32 %v4942, %v5200
      %v5241 = vadd.f32 %v4943, %v5205
      %v5242 = vadd.f32 %v4944, %v5208
      %v5243 = vld [vmem:[#allocation2 + $0x21] sm:$0xff]
      %v5244 = vld [vmem:[#allocation2 + $0x29] sm:$0xff]
      %v5245 = vld [vmem:[#allocation2 + $0x31] sm:$0xff]
      %v5246 = vld [vmem:[#allocation2 + $0x39] sm:$0xff]
      %v5247 = vld [vmem:[#allocation2 + $0x41] sm:$0xff]
      %v5248 = vld [vmem:[#allocation2 + $0x49] sm:$0xff]
      %v5249 = vld [vmem:[#allocation2 + $0x51] sm:$0xff]
      %v5250 = vld [vmem:[#allocation2 + $0x59] sm:$0xff]
      %v5251 = vld [vmem:[#allocation2 + $0x61] sm:$0xff]
      %v5252 = vld [vmem:[#allocation2 + $0x69] sm:$0xff]
      %v5253 = vld [vmem:[#allocation2 + $0x71] sm:$0xff]
      %v5254 = vld [vmem:[#allocation2 + $0x79] sm:$0xff]
      %v5255 = vld [vmem:[#allocation2 + $0x81] sm:$0xff]
      %v5256 = vld [vmem:[#allocation2 + $0x89] sm:$0xff]
      %v5257 = vld [vmem:[#allocation2 + $0x91] sm:$0xff]
      %v5258 = vld [vmem:[#allocation2 + $0x99] sm:$0xff]
      %v5259 = vld [vmem:[#allocation2 + $0xa1] sm:$0xff]
      %v5260 = vld [vmem:[#allocation2 + $0xa9] sm:$0xff]
      %v5261 = vld [vmem:[#allocation2 + $0xb1] sm:$0xff]
      %v5262 = vld [vmem:[#allocation2 + $0xb9] sm:$0xff]
      %v5263 = vld [vmem:[#allocation2 + $0xc1] sm:$0xff]
      %v5264 = vld [vmem:[#allocation2 + $0xc9] sm:$0xff]
      %v5265 = vld [vmem:[#allocation2 + $0xd1] sm:$0xff]
      %v5266 = vld [vmem:[#allocation2 + $0xd9] sm:$0xff]
      %v5267 = vld [vmem:[#allocation2 + $0xe1] sm:$0xff]
      %v5268 = vld [vmem:[#allocation2 + $0xe9] sm:$0xff]
      %v5269 = vld [vmem:[#allocation2 + $0xf1] sm:$0xff]
      %v5270 = vld [vmem:[#allocation2 + $0xf9] sm:$0xff]
      %v5271 = vld [vmem:[#allocation2 + $0x101] sm:$0xff]
      %v5272 = vld [vmem:[#allocation2 + $0x109] sm:$0xff]
      %v5273 = vld [vmem:[#allocation2 + $0x111] sm:$0xff]
      %v5274 = vld [vmem:[#allocation2 + $0x119] sm:$0xff]
      %v5275 = vsel %vm1392, %v5243, 0.0
      %v5276 = vsel %vm1393, %v5244, 0.0
      %v5277 = vsel %vm1394, %v5245, 0.0
      %v5278 = vsel %vm1395, %v5246, 0.0
      %v5279 = vsel %vm1396, %v5247, 0.0
      %v5280 = vsel %vm1397, %v5248, 0.0
      %v5281 = vsel %vm1398, %v5249, 0.0
      %v5282 = vsel %vm1399, %v5250, 0.0
      %v5283 = vsel %vm1400, %v5251, 0.0
      %v5284 = vsel %vm1401, %v5252, 0.0
      %v5285 = vsel %vm1402, %v5253, 0.0
      %v5286 = vsel %vm1403, %v5254, 0.0
      %v5287 = vsel %vm1404, %v5255, 0.0
      %v5288 = vsel %vm1405, %v5256, 0.0
      %v5289 = vsel %vm1406, %v5257, 0.0
      %v5290 = vsel %vm1407, %v5258, 0.0
      %v5291 = vsel %vm1408, %v5259, 0.0
      %v5292 = vsel %vm1409, %v5260, 0.0
      %v5293 = vsel %vm1410, %v5261, 0.0
      %v5294 = vsel %vm1411, %v5262, 0.0
      %v5295 = vsel %vm1412, %v5263, 0.0
      %v5296 = vsel %vm1413, %v5264, 0.0
      %v5297 = vsel %vm1414, %v5265, 0.0
      %v5298 = vsel %vm1415, %v5266, 0.0
      %v5299 = vsel %vm1416, %v5267, 0.0
      %v5300 = vsel %vm1417, %v5268, 0.0
      %v5301 = vsel %vm1418, %v5269, 0.0
      %v5302 = vsel %vm1419, %v5270, 0.0
      %v5303 = vsel %vm1420, %v5271, 0.0
      %v5304 = vsel %vm1421, %v5272, 0.0
      %v5305 = vsel %vm1422, %v5273, 0.0
      %v5306 = vsel %vm1423, %v5274, 0.0
      %v5307 = vpack.c.bf16 %v5276, %v5275
      %v5308 = vpack.c.bf16 %v5278, %v5277
      %v5309 = vpack.c.bf16 %v5280, %v5279
      %v5310 = vpack.c.bf16 %v5282, %v5281
      %v5311 = vpack.c.bf16 %v5284, %v5283
      %v5312 = vpack.c.bf16 %v5286, %v5285
      %v5313 = vpack.c.bf16 %v5288, %v5287
      %v5314 = vpack.c.bf16 %v5290, %v5289
      %v5315 = vpack.c.bf16 %v5292, %v5291
      %v5316 = vpack.c.bf16 %v5294, %v5293
      %v5317 = vpack.c.bf16 %v5296, %v5295
      %v5318 = vpack.c.bf16 %v5298, %v5297
      %v5319 = vpack.c.bf16 %v5300, %v5299
      %v5320 = vpack.c.bf16 %v5302, %v5301
      %v5321 = vpack.c.bf16 %v5304, %v5303
      %v5322 = vpack.c.bf16 %v5306, %v5305
      %s5323 = scalar_lea.vmem %s3, 40
      %v5324 = vld [vmem:[%s5323] sm:$0xf]
      %v5325 = vld [vmem:[%s5323 + $0x4] sm:$0xf]
      %v5328 = vunpack.c.l.b16 %v5324
      %v5329 = vunpack.c.l.b16 %v5325
      %v5330 = vpack.c.b16 %v5329, %v5328
      %v5333 = vsel %vm3681, %v5307, 0
      %v5336 = vsel %vm3681, %v5308, 0
      %v5339 = vsel %vm3681, %v5309, 0
      %v5342 = vsel %vm3681, %v5310, 0
      %v5345 = vsel %vm3681, %v5311, 0
      %v5348 = vsel %vm3681, %v5312, 0
      %v5351 = vsel %vm3681, %v5313, 0
      %v5354 = vsel %vm3681, %v5314, 0
      %v5357 = vsel %vm3681, %v5315, 0
      %v5360 = vsel %vm3681, %v5316, 0
      %v5363 = vsel %vm3681, %v5317, 0
      %v5366 = vsel %vm3681, %v5318, 0
      %v5369 = vsel %vm3681, %v5319, 0
      %v5372 = vsel %vm3681, %v5320, 0
      %v5375 = vsel %vm3681, %v5321, 0
      %v5378 = vsel %vm3681, %v5322, 0
      %5380 = vmatprep.subr.bf16.mxu0 0
      %5381 = vmatpush1.bf16.msra.mxu0 0
      %5382 = vmatprep.subr.bf16.mxu0 0
      %5383 = vmatpush1.bf16.msra.mxu0 0
      %5384 = vmatprep.subr.bf16.mxu0 0
      %5385 = vmatpush1.bf16.msra.mxu0 0
      %5386 = vmatprep.subr.bf16.mxu0 0
      %5387 = vmatpush1.bf16.msra.mxu0 0
      %5388 = vmatprep.subr.bf16.mxu0 0
      %5389 = vmatpush1.bf16.msra.mxu0 0
      %5390 = vmatprep.subr.bf16.mxu0 0
      %5391 = vmatpush1.bf16.msra.mxu0 0
      %5392 = vmatprep.subr.bf16.mxu0 0
      %5393 = vmatpush1.bf16.msra.mxu0 0
      %5394 = vmatprep.subr.bf16.mxu0 0
      %5395 = vmatpush1.bf16.msra.mxu0 %v5330
      %5396 = vmatprep.subr.bf16.mxu0 0
      %5397 = vmatpush2.bf16.msra.mxu0 0
      %5398 = vmatprep.subr.bf16.mxu0 0
      %5399 = vmatpush2.bf16.msra.mxu0 0
      %5400 = vmatprep.subr.bf16.mxu0 0
      %5401 = vmatpush2.bf16.msra.mxu0 0
      %5402 = vmatprep.subr.bf16.mxu0 0
      %5403 = vmatpush2.bf16.msra.mxu0 0
      %5404 = vmatprep.subr.bf16.mxu0 0
      %5405 = vmatpush2.bf16.msra.mxu0 0
      %5406 = vmatprep.subr.bf16.mxu0 0
      %5407 = vmatpush2.bf16.msra.mxu0 0
      %5408 = vmatprep.subr.bf16.mxu0 0
      %5409 = vmatpush2.bf16.msra.mxu0 0
      %5410 = vmatprep.subr.bf16.mxu0 0
      %5411 = vmatpush2.bf16.msra.mxu0 0
      %5412 = vmatprep.mubr.bf16.mxu0 0
      %5413 = vmatmul.mubr.bf16.gmra.mxu0 %v5333
      %v5414 = vpop.f32.mrf.mxu0
      %v5415 = vadd.f32 0.0, %v5414
      %v5416 = vpop.f32.mrf.mxu0
      %v5417 = vpop.f32.mrf.mxu0
      %v5418 = vadd.f32 0.0, %v5417
      %v5419 = vpop.f32.mrf.mxu0
      %5420 = vmatprep.mubr.bf16.mxu0 0
      %5421 = vmatmul.mubr.bf16.gmra.mxu0 %v5336
      %v5422 = vpop.f32.mrf.mxu0
      %v5423 = vadd.f32 0.0, %v5422
      %v5424 = vpop.f32.mrf.mxu0
      %v5425 = vpop.f32.mrf.mxu0
      %v5426 = vadd.f32 0.0, %v5425
      %v5427 = vpop.f32.mrf.mxu0
      %5428 = vmatprep.mubr.bf16.mxu0 0
      %5429 = vmatmul.mubr.bf16.gmra.mxu0 %v5339
      %v5430 = vpop.f32.mrf.mxu0
      %v5431 = vadd.f32 0.0, %v5430
      %v5432 = vpop.f32.mrf.mxu0
      %v5433 = vpop.f32.mrf.mxu0
      %v5434 = vadd.f32 0.0, %v5433
      %v5435 = vpop.f32.mrf.mxu0
      %5436 = vmatprep.mubr.bf16.mxu0 0
      %5437 = vmatmul.mubr.bf16.gmra.mxu0 %v5342
      %v5438 = vpop.f32.mrf.mxu0
      %v5439 = vadd.f32 0.0, %v5438
      %v5440 = vpop.f32.mrf.mxu0
      %v5441 = vpop.f32.mrf.mxu0
      %v5442 = vadd.f32 0.0, %v5441
      %v5443 = vpop.f32.mrf.mxu0
      %5444 = vmatprep.mubr.bf16.mxu0 0
      %5445 = vmatmul.mubr.bf16.gmra.mxu0 %v5345
      %v5446 = vpop.f32.mrf.mxu0
      %v5447 = vadd.f32 0.0, %v5446
      %v5448 = vpop.f32.mrf.mxu0
      %v5449 = vpop.f32.mrf.mxu0
      %v5450 = vadd.f32 0.0, %v5449
      %v5451 = vpop.f32.mrf.mxu0
      %5452 = vmatprep.mubr.bf16.mxu0 0
      %5453 = vmatmul.mubr.bf16.gmra.mxu0 %v5348
      %v5454 = vpop.f32.mrf.mxu0
      %v5455 = vadd.f32 0.0, %v5454
      %v5456 = vpop.f32.mrf.mxu0
      %v5457 = vpop.f32.mrf.mxu0
      %v5458 = vadd.f32 0.0, %v5457
      %v5459 = vpop.f32.mrf.mxu0
      %5460 = vmatprep.mubr.bf16.mxu0 0
      %5461 = vmatmul.mubr.bf16.gmra.mxu0 %v5351
      %v5462 = vpop.f32.mrf.mxu0
      %v5463 = vadd.f32 0.0, %v5462
      %v5464 = vpop.f32.mrf.mxu0
      %v5465 = vpop.f32.mrf.mxu0
      %v5466 = vadd.f32 0.0, %v5465
      %v5467 = vpop.f32.mrf.mxu0
      %5468 = vmatprep.mubr.bf16.mxu0 0
      %5469 = vmatmul.mubr.bf16.gmra.mxu0 %v5354
      %v5470 = vpop.f32.mrf.mxu0
      %v5471 = vadd.f32 0.0, %v5470
      %v5472 = vpop.f32.mrf.mxu0
      %v5473 = vpop.f32.mrf.mxu0
      %v5474 = vadd.f32 0.0, %v5473
      %v5475 = vpop.f32.mrf.mxu0
      %5476 = vmatprep.mubr.bf16.mxu0 0
      %5477 = vmatmul.mubr.bf16.gmra.mxu0 %v5357
      %v5478 = vpop.f32.mrf.mxu0
      %v5479 = vadd.f32 0.0, %v5478
      %v5480 = vpop.f32.mrf.mxu0
      %v5481 = vpop.f32.mrf.mxu0
      %v5482 = vadd.f32 0.0, %v5481
      %v5483 = vpop.f32.mrf.mxu0
      %5484 = vmatprep.mubr.bf16.mxu0 0
      %5485 = vmatmul.mubr.bf16.gmra.mxu0 %v5360
      %v5486 = vpop.f32.mrf.mxu0
      %v5487 = vadd.f32 0.0, %v5486
      %v5488 = vpop.f32.mrf.mxu0
      %v5489 = vpop.f32.mrf.mxu0
      %v5490 = vadd.f32 0.0, %v5489
      %v5491 = vpop.f32.mrf.mxu0
      %5492 = vmatprep.mubr.bf16.mxu0 0
      %5493 = vmatmul.mubr.bf16.gmra.mxu0 %v5363
      %v5494 = vpop.f32.mrf.mxu0
      %v5495 = vadd.f32 0.0, %v5494
      %v5496 = vpop.f32.mrf.mxu0
      %v5497 = vpop.f32.mrf.mxu0
      %v5498 = vadd.f32 0.0, %v5497
      %v5499 = vpop.f32.mrf.mxu0
      %5500 = vmatprep.mubr.bf16.mxu0 0
      %5501 = vmatmul.mubr.bf16.gmra.mxu0 %v5366
      %v5502 = vpop.f32.mrf.mxu0
      %v5503 = vadd.f32 0.0, %v5502
      %v5504 = vpop.f32.mrf.mxu0
      %v5505 = vpop.f32.mrf.mxu0
      %v5506 = vadd.f32 0.0, %v5505
      %v5507 = vpop.f32.mrf.mxu0
      %5508 = vmatprep.mubr.bf16.mxu0 0
      %5509 = vmatmul.mubr.bf16.gmra.mxu0 %v5369
      %v5510 = vpop.f32.mrf.mxu0
      %v5511 = vadd.f32 0.0, %v5510
      %v5512 = vpop.f32.mrf.mxu0
      %v5513 = vpop.f32.mrf.mxu0
      %v5514 = vadd.f32 0.0, %v5513
      %v5515 = vpop.f32.mrf.mxu0
      %5516 = vmatprep.mubr.bf16.mxu0 0
      %5517 = vmatmul.mubr.bf16.gmra.mxu0 %v5372
      %v5518 = vpop.f32.mrf.mxu0
      %v5519 = vadd.f32 0.0, %v5518
      %v5520 = vpop.f32.mrf.mxu0
      %v5521 = vpop.f32.mrf.mxu0
      %v5522 = vadd.f32 0.0, %v5521
      %v5523 = vpop.f32.mrf.mxu0
      %5524 = vmatprep.mubr.bf16.mxu0 0
      %5525 = vmatmul.mubr.bf16.gmra.mxu0 %v5375
      %v5526 = vpop.f32.mrf.mxu0
      %v5527 = vadd.f32 0.0, %v5526
      %v5528 = vpop.f32.mrf.mxu0
      %v5529 = vpop.f32.mrf.mxu0
      %v5530 = vadd.f32 0.0, %v5529
      %v5531 = vpop.f32.mrf.mxu0
      %5532 = vmatprep.mubr.bf16.mxu0 0
      %5533 = vmatmul.mubr.bf16.gmra.mxu0 %v5378
      %v5534 = vpop.f32.mrf.mxu0
      %v5535 = vadd.f32 0.0, %v5534
      %v5536 = vpop.f32.mrf.mxu0
      %v5537 = vpop.f32.mrf.mxu0
      %v5538 = vadd.f32 0.0, %v5537
      %v5539 = vpop.f32.mrf.mxu0
      %5540 = vdwg.mxu0
      %v5541 = vadd.f32 %v5211, %v5415
      %v5542 = vadd.f32 %v5212, %v5418
      %v5543 = vadd.f32 %v5213, %v5423
      %v5544 = vadd.f32 %v5214, %v5426
      %v5545 = vadd.f32 %v5215, %v5431
      %v5546 = vadd.f32 %v5216, %v5434
      %v5547 = vadd.f32 %v5217, %v5439
      %v5548 = vadd.f32 %v5218, %v5442
      %v5549 = vadd.f32 %v5219, %v5447
      %v5550 = vadd.f32 %v5220, %v5450
      %v5551 = vadd.f32 %v5221, %v5455
      %v5552 = vadd.f32 %v5222, %v5458
      %v5553 = vadd.f32 %v5223, %v5463
      %v5554 = vadd.f32 %v5224, %v5466
      %v5555 = vadd.f32 %v5225, %v5471
      %v5556 = vadd.f32 %v5226, %v5474
      %v5557 = vadd.f32 %v5227, %v5479
      %v5558 = vadd.f32 %v5228, %v5482
      %v5559 = vadd.f32 %v5229, %v5487
      %v5560 = vadd.f32 %v5230, %v5490
      %v5561 = vadd.f32 %v5231, %v5495
      %v5562 = vadd.f32 %v5232, %v5498
      %v5563 = vadd.f32 %v5233, %v5503
      %v5564 = vadd.f32 %v5234, %v5506
      %v5565 = vadd.f32 %v5235, %v5511
      %v5566 = vadd.f32 %v5236, %v5514
      %v5567 = vadd.f32 %v5237, %v5519
      %v5568 = vadd.f32 %v5238, %v5522
      %v5569 = vadd.f32 %v5239, %v5527
      %v5570 = vadd.f32 %v5240, %v5530
      %v5571 = vadd.f32 %v5241, %v5535
      %v5572 = vadd.f32 %v5242, %v5538
      %v5573 = vld [vmem:[#allocation2 + $0x2f] sm:$0xff]
      %v5574 = vld [vmem:[#allocation2 + $0x37] sm:$0xff]
      %v5575 = vld [vmem:[#allocation2 + $0x3f] sm:$0xff]
      %v5576 = vld [vmem:[#allocation2 + $0x47] sm:$0xff]
      %v5577 = vld [vmem:[#allocation2 + $0x4f] sm:$0xff]
      %v5578 = vld [vmem:[#allocation2 + $0x57] sm:$0xff]
      %v5579 = vld [vmem:[#allocation2 + $0x5f] sm:$0xff]
      %v5580 = vld [vmem:[#allocation2 + $0x67] sm:$0xff]
      %v5581 = vld [vmem:[#allocation2 + $0x6f] sm:$0xff]
      %v5582 = vld [vmem:[#allocation2 + $0x77] sm:$0xff]
      %v5583 = vld [vmem:[#allocation2 + $0x7f] sm:$0xff]
      %v5584 = vld [vmem:[#allocation2 + $0x87] sm:$0xff]
      %v5585 = vld [vmem:[#allocation2 + $0x8f] sm:$0xff]
      %v5586 = vld [vmem:[#allocation2 + $0x97] sm:$0xff]
      %v5587 = vld [vmem:[#allocation2 + $0x9f] sm:$0xff]
      %v5588 = vld [vmem:[#allocation2 + $0xa7] sm:$0xff]
      %v5589 = vld [vmem:[#allocation2 + $0xaf] sm:$0xff]
      %v5590 = vld [vmem:[#allocation2 + $0xb7] sm:$0xff]
      %v5591 = vld [vmem:[#allocation2 + $0xbf] sm:$0xff]
      %v5592 = vld [vmem:[#allocation2 + $0xc7] sm:$0xff]
      %v5593 = vld [vmem:[#allocation2 + $0xcf] sm:$0xff]
      %v5594 = vld [vmem:[#allocation2 + $0xd7] sm:$0xff]
      %v5595 = vld [vmem:[#allocation2 + $0xdf] sm:$0xff]
      %v5596 = vld [vmem:[#allocation2 + $0xe7] sm:$0xff]
      %v5597 = vld [vmem:[#allocation2 + $0xef] sm:$0xff]
      %v5598 = vld [vmem:[#allocation2 + $0xf7] sm:$0xff]
      %v5599 = vld [vmem:[#allocation2 + $0xff] sm:$0xff]
      %v5600 = vld [vmem:[#allocation2 + $0x107] sm:$0xff]
      %v5601 = vld [vmem:[#allocation2 + $0x10f] sm:$0xff]
      %v5602 = vld [vmem:[#allocation2 + $0x117] sm:$0xff]
      %v5603 = vld [vmem:[#allocation2 + $0x11f] sm:$0xff]
      %v5604 = vld [vmem:[#allocation2 + $0x127] sm:$0xff]
      %v5605 = vsel %vm771, %v5573, 0.0
      %v5606 = vsel %vm772, %v5574, 0.0
      %v5607 = vsel %vm773, %v5575, 0.0
      %v5608 = vsel %vm774, %v5576, 0.0
      %v5609 = vsel %vm775, %v5577, 0.0
      %v5610 = vsel %vm776, %v5578, 0.0
      %v5611 = vsel %vm777, %v5579, 0.0
      %v5612 = vsel %vm778, %v5580, 0.0
      %v5613 = vsel %vm779, %v5581, 0.0
      %v5614 = vsel %vm780, %v5582, 0.0
      %v5615 = vsel %vm781, %v5583, 0.0
      %v5616 = vsel %vm782, %v5584, 0.0
      %v5617 = vsel %vm783, %v5585, 0.0
      %v5618 = vsel %vm784, %v5586, 0.0
      %v5619 = vsel %vm785, %v5587, 0.0
      %v5620 = vsel %vm786, %v5588, 0.0
      %v5621 = vsel %vm787, %v5589, 0.0
      %v5622 = vsel %vm788, %v5590, 0.0
      %v5623 = vsel %vm789, %v5591, 0.0
      %v5624 = vsel %vm790, %v5592, 0.0
      %v5625 = vsel %vm791, %v5593, 0.0
      %v5626 = vsel %vm792, %v5594, 0.0
      %v5627 = vsel %vm793, %v5595, 0.0
      %v5628 = vsel %vm794, %v5596, 0.0
      %v5629 = vsel %vm795, %v5597, 0.0
      %v5630 = vsel %vm796, %v5598, 0.0
      %v5631 = vsel %vm797, %v5599, 0.0
      %v5632 = vsel %vm798, %v5600, 0.0
      %v5633 = vsel %vm799, %v5601, 0.0
      %v5634 = vsel %vm800, %v5602, 0.0
      %v5635 = vsel %vm801, %v5603, 0.0
      %v5636 = vsel %vm802, %v5604, 0.0
      %v5637 = vpack.c.bf16 %v5606, %v5605
      %v5638 = vpack.c.bf16 %v5608, %v5607
      %v5639 = vpack.c.bf16 %v5610, %v5609
      %v5640 = vpack.c.bf16 %v5612, %v5611
      %v5641 = vpack.c.bf16 %v5614, %v5613
      %v5642 = vpack.c.bf16 %v5616, %v5615
      %v5643 = vpack.c.bf16 %v5618, %v5617
      %v5644 = vpack.c.bf16 %v5620, %v5619
      %v5645 = vpack.c.bf16 %v5622, %v5621
      %v5646 = vpack.c.bf16 %v5624, %v5623
      %v5647 = vpack.c.bf16 %v5626, %v5625
      %v5648 = vpack.c.bf16 %v5628, %v5627
      %v5649 = vpack.c.bf16 %v5630, %v5629
      %v5650 = vpack.c.bf16 %v5632, %v5631
      %v5651 = vpack.c.bf16 %v5634, %v5633
      %v5652 = vpack.c.bf16 %v5636, %v5635
      %s5653 = scalar_lea.vmem %s3, 48
      %v5654 = vld [vmem:[%s5653] sm:$0xf]
      %v5655 = vld [vmem:[%s5653 + $0x4] sm:$0xf]
      %v5658 = vunpack.c.l.b16 %v5654
      %v5659 = vunpack.c.l.b16 %v5655
      %v5660 = vpack.c.b16 %v5659, %v5658
      %v5663 = vsel %vm3681, %v5637, 0
      %v5666 = vsel %vm3681, %v5638, 0
      %v5669 = vsel %vm3681, %v5639, 0
      %v5672 = vsel %vm3681, %v5640, 0
      %v5675 = vsel %vm3681, %v5641, 0
      %v5678 = vsel %vm3681, %v5642, 0
      %v5681 = vsel %vm3681, %v5643, 0
      %v5684 = vsel %vm3681, %v5644, 0
      %v5687 = vsel %vm3681, %v5645, 0
      %v5690 = vsel %vm3681, %v5646, 0
      %v5693 = vsel %vm3681, %v5647, 0
      %v5696 = vsel %vm3681, %v5648, 0
      %v5699 = vsel %vm3681, %v5649, 0
      %v5702 = vsel %vm3681, %v5650, 0
      %v5705 = vsel %vm3681, %v5651, 0
      %v5708 = vsel %vm3681, %v5652, 0
      %5710 = vmatprep.subr.bf16.mxu0 0
      %5711 = vmatpush1.bf16.msra.mxu0 0
      %5712 = vmatprep.subr.bf16.mxu0 0
      %5713 = vmatpush1.bf16.msra.mxu0 0
      %5714 = vmatprep.subr.bf16.mxu0 0
      %5715 = vmatpush1.bf16.msra.mxu0 0
      %5716 = vmatprep.subr.bf16.mxu0 0
      %5717 = vmatpush1.bf16.msra.mxu0 0
      %5718 = vmatprep.subr.bf16.mxu0 0
      %5719 = vmatpush1.bf16.msra.mxu0 0
      %5720 = vmatprep.subr.bf16.mxu0 0
      %5721 = vmatpush1.bf16.msra.mxu0 0
      %5722 = vmatprep.subr.bf16.mxu0 0
      %5723 = vmatpush1.bf16.msra.mxu0 0
      %5724 = vmatprep.subr.bf16.mxu0 0
      %5725 = vmatpush1.bf16.msra.mxu0 %v5660
      %5726 = vmatprep.subr.bf16.mxu0 0
      %5727 = vmatpush2.bf16.msra.mxu0 0
      %5728 = vmatprep.subr.bf16.mxu0 0
      %5729 = vmatpush2.bf16.msra.mxu0 0
      %5730 = vmatprep.subr.bf16.mxu0 0
      %5731 = vmatpush2.bf16.msra.mxu0 0
      %5732 = vmatprep.subr.bf16.mxu0 0
      %5733 = vmatpush2.bf16.msra.mxu0 0
      %5734 = vmatprep.subr.bf16.mxu0 0
      %5735 = vmatpush2.bf16.msra.mxu0 0
      %5736 = vmatprep.subr.bf16.mxu0 0
      %5737 = vmatpush2.bf16.msra.mxu0 0
      %5738 = vmatprep.subr.bf16.mxu0 0
      %5739 = vmatpush2.bf16.msra.mxu0 0
      %5740 = vmatprep.subr.bf16.mxu0 0
      %5741 = vmatpush2.bf16.msra.mxu0 0
      %5742 = vmatprep.mubr.bf16.mxu0 0
      %5743 = vmatmul.mubr.bf16.gmra.mxu0 %v5663
      %v5744 = vpop.f32.mrf.mxu0
      %v5745 = vadd.f32 0.0, %v5744
      %v5746 = vpop.f32.mrf.mxu0
      %v5747 = vpop.f32.mrf.mxu0
      %v5748 = vadd.f32 0.0, %v5747
      %v5749 = vpop.f32.mrf.mxu0
      %5750 = vmatprep.mubr.bf16.mxu0 0
      %5751 = vmatmul.mubr.bf16.gmra.mxu0 %v5666
      %v5752 = vpop.f32.mrf.mxu0
      %v5753 = vadd.f32 0.0, %v5752
      %v5754 = vpop.f32.mrf.mxu0
      %v5755 = vpop.f32.mrf.mxu0
      %v5756 = vadd.f32 0.0, %v5755
      %v5757 = vpop.f32.mrf.mxu0
      %5758 = vmatprep.mubr.bf16.mxu0 0
      %5759 = vmatmul.mubr.bf16.gmra.mxu0 %v5669
      %v5760 = vpop.f32.mrf.mxu0
      %v5761 = vadd.f32 0.0, %v5760
      %v5762 = vpop.f32.mrf.mxu0
      %v5763 = vpop.f32.mrf.mxu0
      %v5764 = vadd.f32 0.0, %v5763
      %v5765 = vpop.f32.mrf.mxu0
      %5766 = vmatprep.mubr.bf16.mxu0 0
      %5767 = vmatmul.mubr.bf16.gmra.mxu0 %v5672
      %v5768 = vpop.f32.mrf.mxu0
      %v5769 = vadd.f32 0.0, %v5768
      %v5770 = vpop.f32.mrf.mxu0
      %v5771 = vpop.f32.mrf.mxu0
      %v5772 = vadd.f32 0.0, %v5771
      %v5773 = vpop.f32.mrf.mxu0
      %5774 = vmatprep.mubr.bf16.mxu0 0
      %5775 = vmatmul.mubr.bf16.gmra.mxu0 %v5675
      %v5776 = vpop.f32.mrf.mxu0
      %v5777 = vadd.f32 0.0, %v5776
      %v5778 = vpop.f32.mrf.mxu0
      %v5779 = vpop.f32.mrf.mxu0
      %v5780 = vadd.f32 0.0, %v5779
      %v5781 = vpop.f32.mrf.mxu0
      %5782 = vmatprep.mubr.bf16.mxu0 0
      %5783 = vmatmul.mubr.bf16.gmra.mxu0 %v5678
      %v5784 = vpop.f32.mrf.mxu0
      %v5785 = vadd.f32 0.0, %v5784
      %v5786 = vpop.f32.mrf.mxu0
      %v5787 = vpop.f32.mrf.mxu0
      %v5788 = vadd.f32 0.0, %v5787
      %v5789 = vpop.f32.mrf.mxu0
      %5790 = vmatprep.mubr.bf16.mxu0 0
      %5791 = vmatmul.mubr.bf16.gmra.mxu0 %v5681
      %v5792 = vpop.f32.mrf.mxu0
      %v5793 = vadd.f32 0.0, %v5792
      %v5794 = vpop.f32.mrf.mxu0
      %v5795 = vpop.f32.mrf.mxu0
      %v5796 = vadd.f32 0.0, %v5795
      %v5797 = vpop.f32.mrf.mxu0
      %5798 = vmatprep.mubr.bf16.mxu0 0
      %5799 = vmatmul.mubr.bf16.gmra.mxu0 %v5684
      %v5800 = vpop.f32.mrf.mxu0
      %v5801 = vadd.f32 0.0, %v5800
      %v5802 = vpop.f32.mrf.mxu0
      %v5803 = vpop.f32.mrf.mxu0
      %v5804 = vadd.f32 0.0, %v5803
      %v5805 = vpop.f32.mrf.mxu0
      %5806 = vmatprep.mubr.bf16.mxu0 0
      %5807 = vmatmul.mubr.bf16.gmra.mxu0 %v5687
      %v5808 = vpop.f32.mrf.mxu0
      %v5809 = vadd.f32 0.0, %v5808
      %v5810 = vpop.f32.mrf.mxu0
      %v5811 = vpop.f32.mrf.mxu0
      %v5812 = vadd.f32 0.0, %v5811
      %v5813 = vpop.f32.mrf.mxu0
      %5814 = vmatprep.mubr.bf16.mxu0 0
      %5815 = vmatmul.mubr.bf16.gmra.mxu0 %v5690
      %v5816 = vpop.f32.mrf.mxu0
      %v5817 = vadd.f32 0.0, %v5816
      %v5818 = vpop.f32.mrf.mxu0
      %v5819 = vpop.f32.mrf.mxu0
      %v5820 = vadd.f32 0.0, %v5819
      %v5821 = vpop.f32.mrf.mxu0
      %5822 = vmatprep.mubr.bf16.mxu0 0
      %5823 = vmatmul.mubr.bf16.gmra.mxu0 %v5693
      %v5824 = vpop.f32.mrf.mxu0
      %v5825 = vadd.f32 0.0, %v5824
      %v5826 = vpop.f32.mrf.mxu0
      %v5827 = vpop.f32.mrf.mxu0
      %v5828 = vadd.f32 0.0, %v5827
      %v5829 = vpop.f32.mrf.mxu0
      %5830 = vmatprep.mubr.bf16.mxu0 0
      %5831 = vmatmul.mubr.bf16.gmra.mxu0 %v5696
      %v5832 = vpop.f32.mrf.mxu0
      %v5833 = vadd.f32 0.0, %v5832
      %v5834 = vpop.f32.mrf.mxu0
      %v5835 = vpop.f32.mrf.mxu0
      %v5836 = vadd.f32 0.0, %v5835
      %v5837 = vpop.f32.mrf.mxu0
      %5838 = vmatprep.mubr.bf16.mxu0 0
      %5839 = vmatmul.mubr.bf16.gmra.mxu0 %v5699
      %v5840 = vpop.f32.mrf.mxu0
      %v5841 = vadd.f32 0.0, %v5840
      %v5842 = vpop.f32.mrf.mxu0
      %v5843 = vpop.f32.mrf.mxu0
      %v5844 = vadd.f32 0.0, %v5843
      %v5845 = vpop.f32.mrf.mxu0
      %5846 = vmatprep.mubr.bf16.mxu0 0
      %5847 = vmatmul.mubr.bf16.gmra.mxu0 %v5702
      %v5848 = vpop.f32.mrf.mxu0
      %v5849 = vadd.f32 0.0, %v5848
      %v5850 = vpop.f32.mrf.mxu0
      %v5851 = vpop.f32.mrf.mxu0
      %v5852 = vadd.f32 0.0, %v5851
      %v5853 = vpop.f32.mrf.mxu0
      %5854 = vmatprep.mubr.bf16.mxu0 0
      %5855 = vmatmul.mubr.bf16.gmra.mxu0 %v5705
      %v5856 = vpop.f32.mrf.mxu0
      %v5857 = vadd.f32 0.0, %v5856
      %v5858 = vpop.f32.mrf.mxu0
      %v5859 = vpop.f32.mrf.mxu0
      %v5860 = vadd.f32 0.0, %v5859
      %v5861 = vpop.f32.mrf.mxu0
      %5862 = vmatprep.mubr.bf16.mxu0 0
      %5863 = vmatmul.mubr.bf16.gmra.mxu0 %v5708
      %v5864 = vpop.f32.mrf.mxu0
      %v5865 = vadd.f32 0.0, %v5864
      %v5866 = vpop.f32.mrf.mxu0
      %v5867 = vpop.f32.mrf.mxu0
      %v5868 = vadd.f32 0.0, %v5867
      %v5869 = vpop.f32.mrf.mxu0
      %5870 = vdwg.mxu0
      %v5871 = vadd.f32 %v5541, %v5745
      %v5872 = vadd.f32 %v5542, %v5748
      %v5873 = vadd.f32 %v5543, %v5753
      %v5874 = vadd.f32 %v5544, %v5756
      %v5875 = vadd.f32 %v5545, %v5761
      %v5876 = vadd.f32 %v5546, %v5764
      %v5877 = vadd.f32 %v5547, %v5769
      %v5878 = vadd.f32 %v5548, %v5772
      %v5879 = vadd.f32 %v5549, %v5777
      %v5880 = vadd.f32 %v5550, %v5780
      %v5881 = vadd.f32 %v5551, %v5785
      %v5882 = vadd.f32 %v5552, %v5788
      %v5883 = vadd.f32 %v5553, %v5793
      %v5884 = vadd.f32 %v5554, %v5796
      %v5885 = vadd.f32 %v5555, %v5801
      %v5886 = vadd.f32 %v5556, %v5804
      %v5887 = vadd.f32 %v5557, %v5809
      %v5888 = vadd.f32 %v5558, %v5812
      %v5889 = vadd.f32 %v5559, %v5817
      %v5890 = vadd.f32 %v5560, %v5820
      %v5891 = vadd.f32 %v5561, %v5825
      %v5892 = vadd.f32 %v5562, %v5828
      %v5893 = vadd.f32 %v5563, %v5833
      %v5894 = vadd.f32 %v5564, %v5836
      %v5895 = vadd.f32 %v5565, %v5841
      %v5896 = vadd.f32 %v5566, %v5844
      %v5897 = vadd.f32 %v5567, %v5849
      %v5898 = vadd.f32 %v5568, %v5852
      %v5899 = vadd.f32 %v5569, %v5857
      %v5900 = vadd.f32 %v5570, %v5860
      %v5901 = vadd.f32 %v5571, %v5865
      %v5902 = vadd.f32 %v5572, %v5868
      %v5903 = vld [vmem:[#allocation2 + $0x30] sm:$0xff]
      %v5904 = vld [vmem:[#allocation2 + $0x38] sm:$0xff]
      %v5905 = vld [vmem:[#allocation2 + $0x40] sm:$0xff]
      %v5906 = vld [vmem:[#allocation2 + $0x48] sm:$0xff]
      %v5907 = vld [vmem:[#allocation2 + $0x50] sm:$0xff]
      %v5908 = vld [vmem:[#allocation2 + $0x58] sm:$0xff]
      %v5909 = vld [vmem:[#allocation2 + $0x60] sm:$0xff]
      %v5910 = vld [vmem:[#allocation2 + $0x68] sm:$0xff]
      %v5911 = vld [vmem:[#allocation2 + $0x70] sm:$0xff]
      %v5912 = vld [vmem:[#allocation2 + $0x78] sm:$0xff]
      %v5913 = vld [vmem:[#allocation2 + $0x80] sm:$0xff]
      %v5914 = vld [vmem:[#allocation2 + $0x88] sm:$0xff]
      %v5915 = vld [vmem:[#allocation2 + $0x90] sm:$0xff]
      %v5916 = vld [vmem:[#allocation2 + $0x98] sm:$0xff]
      %v5917 = vld [vmem:[#allocation2 + $0xa0] sm:$0xff]
      %v5918 = vld [vmem:[#allocation2 + $0xa8] sm:$0xff]
      %v5919 = vld [vmem:[#allocation2 + $0xb0] sm:$0xff]
      %v5920 = vld [vmem:[#allocation2 + $0xb8] sm:$0xff]
      %v5921 = vld [vmem:[#allocation2 + $0xc0] sm:$0xff]
      %v5922 = vld [vmem:[#allocation2 + $0xc8] sm:$0xff]
      %v5923 = vld [vmem:[#allocation2 + $0xd0] sm:$0xff]
      %v5924 = vld [vmem:[#allocation2 + $0xd8] sm:$0xff]
      %v5925 = vld [vmem:[#allocation2 + $0xe0] sm:$0xff]
      %v5926 = vld [vmem:[#allocation2 + $0xe8] sm:$0xff]
      %v5927 = vld [vmem:[#allocation2 + $0xf0] sm:$0xff]
      %v5928 = vld [vmem:[#allocation2 + $0xf8] sm:$0xff]
      %v5929 = vld [vmem:[#allocation2 + $0x100] sm:$0xff]
      %v5930 = vld [vmem:[#allocation2 + $0x108] sm:$0xff]
      %v5931 = vld [vmem:[#allocation2 + $0x110] sm:$0xff]
      %v5932 = vld [vmem:[#allocation2 + $0x118] sm:$0xff]
      %v5933 = vld [vmem:[#allocation2 + $0x120] sm:$0xff]
      %v5934 = vld [vmem:[#allocation2 + $0x128] sm:$0xff]
      %v5935 = vpack.c.bf16 %v5904, %v5903
      %v5936 = vpack.c.bf16 %v5906, %v5905
      %v5937 = vpack.c.bf16 %v5908, %v5907
      %v5938 = vpack.c.bf16 %v5910, %v5909
      %v5939 = vpack.c.bf16 %v5912, %v5911
      %v5940 = vpack.c.bf16 %v5914, %v5913
      %v5941 = vpack.c.bf16 %v5916, %v5915
      %v5942 = vpack.c.bf16 %v5918, %v5917
      %v5943 = vpack.c.bf16 %v5920, %v5919
      %v5944 = vpack.c.bf16 %v5922, %v5921
      %v5945 = vpack.c.bf16 %v5924, %v5923
      %v5946 = vpack.c.bf16 %v5926, %v5925
      %v5947 = vpack.c.bf16 %v5928, %v5927
      %v5948 = vpack.c.bf16 %v5930, %v5929
      %v5949 = vpack.c.bf16 %v5932, %v5931
      %v5950 = vpack.c.bf16 %v5934, %v5933
      %s5951 = scalar_lea.vmem %s3, 56
      %v5952 = vld [vmem:[%s5951] sm:$0xf]
      %v5953 = vld [vmem:[%s5951 + $0x4] sm:$0xf]
      %v5956 = vunpack.c.l.b16 %v5952
      %v5957 = vunpack.c.l.b16 %v5953
      %v5958 = vpack.c.b16 %v5957, %v5956
      %v5961 = vsel %vm3681, %v5935, 0
      %v5964 = vsel %vm3681, %v5936, 0
      %v5967 = vsel %vm3681, %v5937, 0
      %v5970 = vsel %vm3681, %v5938, 0
      %v5973 = vsel %vm3681, %v5939, 0
      %v5976 = vsel %vm3681, %v5940, 0
      %v5979 = vsel %vm3681, %v5941, 0
      %v5982 = vsel %vm3681, %v5942, 0
      %v5985 = vsel %vm3681, %v5943, 0
      %v5988 = vsel %vm3681, %v5944, 0
      %v5991 = vsel %vm3681, %v5945, 0
      %v5994 = vsel %vm3681, %v5946, 0
      %v5997 = vsel %vm3681, %v5947, 0
      %v6000 = vsel %vm3681, %v5948, 0
      %v6003 = vsel %vm3681, %v5949, 0
      %v6006 = vsel %vm3681, %v5950, 0
      %6008 = vmatprep.subr.bf16.mxu0 0
      %6009 = vmatpush1.bf16.msra.mxu0 0
      %6010 = vmatprep.subr.bf16.mxu0 0
      %6011 = vmatpush1.bf16.msra.mxu0 0
      %6012 = vmatprep.subr.bf16.mxu0 0
      %6013 = vmatpush1.bf16.msra.mxu0 0
      %6014 = vmatprep.subr.bf16.mxu0 0
      %6015 = vmatpush1.bf16.msra.mxu0 0
      %6016 = vmatprep.subr.bf16.mxu0 0
      %6017 = vmatpush1.bf16.msra.mxu0 0
      %6018 = vmatprep.subr.bf16.mxu0 0
      %6019 = vmatpush1.bf16.msra.mxu0 0
      %6020 = vmatprep.subr.bf16.mxu0 0
      %6021 = vmatpush1.bf16.msra.mxu0 0
      %6022 = vmatprep.subr.bf16.mxu0 0
      %6023 = vmatpush1.bf16.msra.mxu0 %v5958
      %6024 = vmatprep.subr.bf16.mxu0 0
      %6025 = vmatpush2.bf16.msra.mxu0 0
      %6026 = vmatprep.subr.bf16.mxu0 0
      %6027 = vmatpush2.bf16.msra.mxu0 0
      %6028 = vmatprep.subr.bf16.mxu0 0
      %6029 = vmatpush2.bf16.msra.mxu0 0
      %6030 = vmatprep.subr.bf16.mxu0 0
      %6031 = vmatpush2.bf16.msra.mxu0 0
      %6032 = vmatprep.subr.bf16.mxu0 0
      %6033 = vmatpush2.bf16.msra.mxu0 0
      %6034 = vmatprep.subr.bf16.mxu0 0
      %6035 = vmatpush2.bf16.msra.mxu0 0
      %6036 = vmatprep.subr.bf16.mxu0 0
      %6037 = vmatpush2.bf16.msra.mxu0 0
      %6038 = vmatprep.subr.bf16.mxu0 0
      %6039 = vmatpush2.bf16.msra.mxu0 0
      %6040 = vmatprep.mubr.bf16.mxu0 0
      %6041 = vmatmul.mubr.bf16.gmra.mxu0 %v5961
      %v6042 = vpop.f32.mrf.mxu0
      %v6043 = vadd.f32 0.0, %v6042
      %v6044 = vpop.f32.mrf.mxu0
      %v6045 = vpop.f32.mrf.mxu0
      %v6046 = vadd.f32 0.0, %v6045
      %v6047 = vpop.f32.mrf.mxu0
      %6048 = vmatprep.mubr.bf16.mxu0 0
      %6049 = vmatmul.mubr.bf16.gmra.mxu0 %v5964
      %v6050 = vpop.f32.mrf.mxu0
      %v6051 = vadd.f32 0.0, %v6050
      %v6052 = vpop.f32.mrf.mxu0
      %v6053 = vpop.f32.mrf.mxu0
      %v6054 = vadd.f32 0.0, %v6053
      %v6055 = vpop.f32.mrf.mxu0
      %6056 = vmatprep.mubr.bf16.mxu0 0
      %6057 = vmatmul.mubr.bf16.gmra.mxu0 %v5967
      %v6058 = vpop.f32.mrf.mxu0
      %v6059 = vadd.f32 0.0, %v6058
      %v6060 = vpop.f32.mrf.mxu0
      %v6061 = vpop.f32.mrf.mxu0
      %v6062 = vadd.f32 0.0, %v6061
      %v6063 = vpop.f32.mrf.mxu0
      %6064 = vmatprep.mubr.bf16.mxu0 0
      %6065 = vmatmul.mubr.bf16.gmra.mxu0 %v5970
      %v6066 = vpop.f32.mrf.mxu0
      %v6067 = vadd.f32 0.0, %v6066
      %v6068 = vpop.f32.mrf.mxu0
      %v6069 = vpop.f32.mrf.mxu0
      %v6070 = vadd.f32 0.0, %v6069
      %v6071 = vpop.f32.mrf.mxu0
      %6072 = vmatprep.mubr.bf16.mxu0 0
      %6073 = vmatmul.mubr.bf16.gmra.mxu0 %v5973
      %v6074 = vpop.f32.mrf.mxu0
      %v6075 = vadd.f32 0.0, %v6074
      %v6076 = vpop.f32.mrf.mxu0
      %v6077 = vpop.f32.mrf.mxu0
      %v6078 = vadd.f32 0.0, %v6077
      %v6079 = vpop.f32.mrf.mxu0
      %6080 = vmatprep.mubr.bf16.mxu0 0
      %6081 = vmatmul.mubr.bf16.gmra.mxu0 %v5976
      %v6082 = vpop.f32.mrf.mxu0
      %v6083 = vadd.f32 0.0, %v6082
      %v6084 = vpop.f32.mrf.mxu0
      %v6085 = vpop.f32.mrf.mxu0
      %v6086 = vadd.f32 0.0, %v6085
      %v6087 = vpop.f32.mrf.mxu0
      %6088 = vmatprep.mubr.bf16.mxu0 0
      %6089 = vmatmul.mubr.bf16.gmra.mxu0 %v5979
      %v6090 = vpop.f32.mrf.mxu0
      %v6091 = vadd.f32 0.0, %v6090
      %v6092 = vpop.f32.mrf.mxu0
      %v6093 = vpop.f32.mrf.mxu0
      %v6094 = vadd.f32 0.0, %v6093
      %v6095 = vpop.f32.mrf.mxu0
      %6096 = vmatprep.mubr.bf16.mxu0 0
      %6097 = vmatmul.mubr.bf16.gmra.mxu0 %v5982
      %v6098 = vpop.f32.mrf.mxu0
      %v6099 = vadd.f32 0.0, %v6098
      %v6100 = vpop.f32.mrf.mxu0
      %v6101 = vpop.f32.mrf.mxu0
      %v6102 = vadd.f32 0.0, %v6101
      %v6103 = vpop.f32.mrf.mxu0
      %6104 = vmatprep.mubr.bf16.mxu0 0
      %6105 = vmatmul.mubr.bf16.gmra.mxu0 %v5985
      %v6106 = vpop.f32.mrf.mxu0
      %v6107 = vadd.f32 0.0, %v6106
      %v6108 = vpop.f32.mrf.mxu0
      %v6109 = vpop.f32.mrf.mxu0
      %v6110 = vadd.f32 0.0, %v6109
      %v6111 = vpop.f32.mrf.mxu0
      %6112 = vmatprep.mubr.bf16.mxu0 0
      %6113 = vmatmul.mubr.bf16.gmra.mxu0 %v5988
      %v6114 = vpop.f32.mrf.mxu0
      %v6115 = vadd.f32 0.0, %v6114
      %v6116 = vpop.f32.mrf.mxu0
      %v6117 = vpop.f32.mrf.mxu0
      %v6118 = vadd.f32 0.0, %v6117
      %v6119 = vpop.f32.mrf.mxu0
      %6120 = vmatprep.mubr.bf16.mxu0 0
      %6121 = vmatmul.mubr.bf16.gmra.mxu0 %v5991
      %v6122 = vpop.f32.mrf.mxu0
      %v6123 = vadd.f32 0.0, %v6122
      %v6124 = vpop.f32.mrf.mxu0
      %v6125 = vpop.f32.mrf.mxu0
      %v6126 = vadd.f32 0.0, %v6125
      %v6127 = vpop.f32.mrf.mxu0
      %6128 = vmatprep.mubr.bf16.mxu0 0
      %6129 = vmatmul.mubr.bf16.gmra.mxu0 %v5994
      %v6130 = vpop.f32.mrf.mxu0
      %v6131 = vadd.f32 0.0, %v6130
      %v6132 = vpop.f32.mrf.mxu0
      %v6133 = vpop.f32.mrf.mxu0
      %v6134 = vadd.f32 0.0, %v6133
      %v6135 = vpop.f32.mrf.mxu0
      %6136 = vmatprep.mubr.bf16.mxu0 0
      %6137 = vmatmul.mubr.bf16.gmra.mxu0 %v5997
      %v6138 = vpop.f32.mrf.mxu0
      %v6139 = vadd.f32 0.0, %v6138
      %v6140 = vpop.f32.mrf.mxu0
      %v6141 = vpop.f32.mrf.mxu0
      %v6142 = vadd.f32 0.0, %v6141
      %v6143 = vpop.f32.mrf.mxu0
      %6144 = vmatprep.mubr.bf16.mxu0 0
      %6145 = vmatmul.mubr.bf16.gmra.mxu0 %v6000
      %v6146 = vpop.f32.mrf.mxu0
      %v6147 = vadd.f32 0.0, %v6146
      %v6148 = vpop.f32.mrf.mxu0
      %v6149 = vpop.f32.mrf.mxu0
      %v6150 = vadd.f32 0.0, %v6149
      %v6151 = vpop.f32.mrf.mxu0
      %6152 = vmatprep.mubr.bf16.mxu0 0
      %6153 = vmatmul.mubr.bf16.gmra.mxu0 %v6003
      %v6154 = vpop.f32.mrf.mxu0
      %v6155 = vadd.f32 0.0, %v6154
      %v6156 = vpop.f32.mrf.mxu0
      %v6157 = vpop.f32.mrf.mxu0
      %v6158 = vadd.f32 0.0, %v6157
      %v6159 = vpop.f32.mrf.mxu0
      %6160 = vmatprep.mubr.bf16.mxu0 0
      %6161 = vmatmul.mubr.bf16.gmra.mxu0 %v6006
      %v6162 = vpop.f32.mrf.mxu0
      %v6163 = vadd.f32 0.0, %v6162
      %v6164 = vpop.f32.mrf.mxu0
      %v6165 = vpop.f32.mrf.mxu0
      %v6166 = vadd.f32 0.0, %v6165
      %v6167 = vpop.f32.mrf.mxu0
      %6168 = vdwg.mxu0
      %v6169 = vadd.f32 %v5871, %v6043
      %v6170 = vadd.f32 %v5872, %v6046
      %v6171 = vadd.f32 %v5873, %v6051
      %v6172 = vadd.f32 %v5874, %v6054
      %v6173 = vadd.f32 %v5875, %v6059
      %v6174 = vadd.f32 %v5876, %v6062
      %v6175 = vadd.f32 %v5877, %v6067
      %v6176 = vadd.f32 %v5878, %v6070
      %v6177 = vadd.f32 %v5879, %v6075
      %v6178 = vadd.f32 %v5880, %v6078
      %v6179 = vadd.f32 %v5881, %v6083
      %v6180 = vadd.f32 %v5882, %v6086
      %v6181 = vadd.f32 %v5883, %v6091
      %v6182 = vadd.f32 %v5884, %v6094
      %v6183 = vadd.f32 %v5885, %v6099
      %v6184 = vadd.f32 %v5886, %v6102
      %v6185 = vadd.f32 %v5887, %v6107
      %v6186 = vadd.f32 %v5888, %v6110
      %v6187 = vadd.f32 %v5889, %v6115
      %v6188 = vadd.f32 %v5890, %v6118
      %v6189 = vadd.f32 %v5891, %v6123
      %v6190 = vadd.f32 %v5892, %v6126
      %v6191 = vadd.f32 %v5893, %v6131
      %v6192 = vadd.f32 %v5894, %v6134
      %v6193 = vadd.f32 %v5895, %v6139
      %v6194 = vadd.f32 %v5896, %v6142
      %v6195 = vadd.f32 %v5897, %v6147
      %v6196 = vadd.f32 %v5898, %v6150
      %v6197 = vadd.f32 %v5899, %v6155
      %v6198 = vadd.f32 %v5900, %v6158
      %v6199 = vadd.f32 %v5901, %v6163
      %v6200 = vadd.f32 %v5902, %v6166
      %v6201 = vld [vmem:[#allocation2 + $0x31] sm:$0xff]
      %v6202 = vld [vmem:[#allocation2 + $0x39] sm:$0xff]
      %v6203 = vld [vmem:[#allocation2 + $0x41] sm:$0xff]
      %v6204 = vld [vmem:[#allocation2 + $0x49] sm:$0xff]
      %v6205 = vld [vmem:[#allocation2 + $0x51] sm:$0xff]
      %v6206 = vld [vmem:[#allocation2 + $0x59] sm:$0xff]
      %v6207 = vld [vmem:[#allocation2 + $0x61] sm:$0xff]
      %v6208 = vld [vmem:[#allocation2 + $0x69] sm:$0xff]
      %v6209 = vld [vmem:[#allocation2 + $0x71] sm:$0xff]
      %v6210 = vld [vmem:[#allocation2 + $0x79] sm:$0xff]
      %v6211 = vld [vmem:[#allocation2 + $0x81] sm:$0xff]
      %v6212 = vld [vmem:[#allocation2 + $0x89] sm:$0xff]
      %v6213 = vld [vmem:[#allocation2 + $0x91] sm:$0xff]
      %v6214 = vld [vmem:[#allocation2 + $0x99] sm:$0xff]
      %v6215 = vld [vmem:[#allocation2 + $0xa1] sm:$0xff]
      %v6216 = vld [vmem:[#allocation2 + $0xa9] sm:$0xff]
      %v6217 = vld [vmem:[#allocation2 + $0xb1] sm:$0xff]
      %v6218 = vld [vmem:[#allocation2 + $0xb9] sm:$0xff]
      %v6219 = vld [vmem:[#allocation2 + $0xc1] sm:$0xff]
      %v6220 = vld [vmem:[#allocation2 + $0xc9] sm:$0xff]
      %v6221 = vld [vmem:[#allocation2 + $0xd1] sm:$0xff]
      %v6222 = vld [vmem:[#allocation2 + $0xd9] sm:$0xff]
      %v6223 = vld [vmem:[#allocation2 + $0xe1] sm:$0xff]
      %v6224 = vld [vmem:[#allocation2 + $0xe9] sm:$0xff]
      %v6225 = vld [vmem:[#allocation2 + $0xf1] sm:$0xff]
      %v6226 = vld [vmem:[#allocation2 + $0xf9] sm:$0xff]
      %v6227 = vld [vmem:[#allocation2 + $0x101] sm:$0xff]
      %v6228 = vld [vmem:[#allocation2 + $0x109] sm:$0xff]
      %v6229 = vld [vmem:[#allocation2 + $0x111] sm:$0xff]
      %v6230 = vld [vmem:[#allocation2 + $0x119] sm:$0xff]
      %v6231 = vld [vmem:[#allocation2 + $0x121] sm:$0xff]
      %v6232 = vld [vmem:[#allocation2 + $0x129] sm:$0xff]
      %v6233 = vsel %vm1392, %v6201, 0.0
      %v6234 = vsel %vm1393, %v6202, 0.0
      %v6235 = vsel %vm1394, %v6203, 0.0
      %v6236 = vsel %vm1395, %v6204, 0.0
      %v6237 = vsel %vm1396, %v6205, 0.0
      %v6238 = vsel %vm1397, %v6206, 0.0
      %v6239 = vsel %vm1398, %v6207, 0.0
      %v6240 = vsel %vm1399, %v6208, 0.0
      %v6241 = vsel %vm1400, %v6209, 0.0
      %v6242 = vsel %vm1401, %v6210, 0.0
      %v6243 = vsel %vm1402, %v6211, 0.0
      %v6244 = vsel %vm1403, %v6212, 0.0
      %v6245 = vsel %vm1404, %v6213, 0.0
      %v6246 = vsel %vm1405, %v6214, 0.0
      %v6247 = vsel %vm1406, %v6215, 0.0
      %v6248 = vsel %vm1407, %v6216, 0.0
      %v6249 = vsel %vm1408, %v6217, 0.0
      %v6250 = vsel %vm1409, %v6218, 0.0
      %v6251 = vsel %vm1410, %v6219, 0.0
      %v6252 = vsel %vm1411, %v6220, 0.0
      %v6253 = vsel %vm1412, %v6221, 0.0
      %v6254 = vsel %vm1413, %v6222, 0.0
      %v6255 = vsel %vm1414, %v6223, 0.0
      %v6256 = vsel %vm1415, %v6224, 0.0
      %v6257 = vsel %vm1416, %v6225, 0.0
      %v6258 = vsel %vm1417, %v6226, 0.0
      %v6259 = vsel %vm1418, %v6227, 0.0
      %v6260 = vsel %vm1419, %v6228, 0.0
      %v6261 = vsel %vm1420, %v6229, 0.0
      %v6262 = vsel %vm1421, %v6230, 0.0
      %v6263 = vsel %vm1422, %v6231, 0.0
      %v6264 = vsel %vm1423, %v6232, 0.0
      %v6265 = vpack.c.bf16 %v6234, %v6233
      %v6266 = vpack.c.bf16 %v6236, %v6235
      %v6267 = vpack.c.bf16 %v6238, %v6237
      %v6268 = vpack.c.bf16 %v6240, %v6239
      %v6269 = vpack.c.bf16 %v6242, %v6241
      %v6270 = vpack.c.bf16 %v6244, %v6243
      %v6271 = vpack.c.bf16 %v6246, %v6245
      %v6272 = vpack.c.bf16 %v6248, %v6247
      %v6273 = vpack.c.bf16 %v6250, %v6249
      %v6274 = vpack.c.bf16 %v6252, %v6251
      %v6275 = vpack.c.bf16 %v6254, %v6253
      %v6276 = vpack.c.bf16 %v6256, %v6255
      %v6277 = vpack.c.bf16 %v6258, %v6257
      %v6278 = vpack.c.bf16 %v6260, %v6259
      %v6279 = vpack.c.bf16 %v6262, %v6261
      %v6280 = vpack.c.bf16 %v6264, %v6263
      %s6281 = scalar_lea.vmem %s3, 64
      %v6282 = vld [vmem:[%s6281] sm:$0xf]
      %v6283 = vld [vmem:[%s6281 + $0x4] sm:$0xf]
      %v6286 = vunpack.c.l.b16 %v6282
      %v6287 = vunpack.c.l.b16 %v6283
      %v6288 = vpack.c.b16 %v6287, %v6286
      %v6291 = vsel %vm3681, %v6265, 0
      %v6294 = vsel %vm3681, %v6266, 0
      %v6297 = vsel %vm3681, %v6267, 0
      %v6300 = vsel %vm3681, %v6268, 0
      %v6303 = vsel %vm3681, %v6269, 0
      %v6306 = vsel %vm3681, %v6270, 0
      %v6309 = vsel %vm3681, %v6271, 0
      %v6312 = vsel %vm3681, %v6272, 0
      %v6315 = vsel %vm3681, %v6273, 0
      %v6318 = vsel %vm3681, %v6274, 0
      %v6321 = vsel %vm3681, %v6275, 0
      %v6324 = vsel %vm3681, %v6276, 0
      %v6327 = vsel %vm3681, %v6277, 0
      %v6330 = vsel %vm3681, %v6278, 0
      %v6333 = vsel %vm3681, %v6279, 0
      %v6336 = vsel %vm3681, %v6280, 0
      %6338 = vmatprep.subr.bf16.mxu0 0
      %6339 = vmatpush1.bf16.msra.mxu0 0
      %6340 = vmatprep.subr.bf16.mxu0 0
      %6341 = vmatpush1.bf16.msra.mxu0 0
      %6342 = vmatprep.subr.bf16.mxu0 0
      %6343 = vmatpush1.bf16.msra.mxu0 0
      %6344 = vmatprep.subr.bf16.mxu0 0
      %6345 = vmatpush1.bf16.msra.mxu0 0
      %6346 = vmatprep.subr.bf16.mxu0 0
      %6347 = vmatpush1.bf16.msra.mxu0 0
      %6348 = vmatprep.subr.bf16.mxu0 0
      %6349 = vmatpush1.bf16.msra.mxu0 0
      %6350 = vmatprep.subr.bf16.mxu0 0
      %6351 = vmatpush1.bf16.msra.mxu0 0
      %6352 = vmatprep.subr.bf16.mxu0 0
      %6353 = vmatpush1.bf16.msra.mxu0 %v6288
      %6354 = vmatprep.subr.bf16.mxu0 0
      %6355 = vmatpush2.bf16.msra.mxu0 0
      %6356 = vmatprep.subr.bf16.mxu0 0
      %6357 = vmatpush2.bf16.msra.mxu0 0
      %6358 = vmatprep.subr.bf16.mxu0 0
      %6359 = vmatpush2.bf16.msra.mxu0 0
      %6360 = vmatprep.subr.bf16.mxu0 0
      %6361 = vmatpush2.bf16.msra.mxu0 0
      %6362 = vmatprep.subr.bf16.mxu0 0
      %6363 = vmatpush2.bf16.msra.mxu0 0
      %6364 = vmatprep.subr.bf16.mxu0 0
      %6365 = vmatpush2.bf16.msra.mxu0 0
      %6366 = vmatprep.subr.bf16.mxu0 0
      %6367 = vmatpush2.bf16.msra.mxu0 0
      %6368 = vmatprep.subr.bf16.mxu0 0
      %6369 = vmatpush2.bf16.msra.mxu0 0
      %6370 = vmatprep.mubr.bf16.mxu0 0
      %6371 = vmatmul.mubr.bf16.gmra.mxu0 %v6291
      %v6372 = vpop.f32.mrf.mxu0
      %v6373 = vadd.f32 0.0, %v6372
      %v6374 = vpop.f32.mrf.mxu0
      %v6375 = vpop.f32.mrf.mxu0
      %v6376 = vadd.f32 0.0, %v6375
      %v6377 = vpop.f32.mrf.mxu0
      %6378 = vmatprep.mubr.bf16.mxu0 0
      %6379 = vmatmul.mubr.bf16.gmra.mxu0 %v6294
      %v6380 = vpop.f32.mrf.mxu0
      %v6381 = vadd.f32 0.0, %v6380
      %v6382 = vpop.f32.mrf.mxu0
      %v6383 = vpop.f32.mrf.mxu0
      %v6384 = vadd.f32 0.0, %v6383
      %v6385 = vpop.f32.mrf.mxu0
      %6386 = vmatprep.mubr.bf16.mxu0 0
      %6387 = vmatmul.mubr.bf16.gmra.mxu0 %v6297
      %v6388 = vpop.f32.mrf.mxu0
      %v6389 = vadd.f32 0.0, %v6388
      %v6390 = vpop.f32.mrf.mxu0
      %v6391 = vpop.f32.mrf.mxu0
      %v6392 = vadd.f32 0.0, %v6391
      %v6393 = vpop.f32.mrf.mxu0
      %6394 = vmatprep.mubr.bf16.mxu0 0
      %6395 = vmatmul.mubr.bf16.gmra.mxu0 %v6300
      %v6396 = vpop.f32.mrf.mxu0
      %v6397 = vadd.f32 0.0, %v6396
      %v6398 = vpop.f32.mrf.mxu0
      %v6399 = vpop.f32.mrf.mxu0
      %v6400 = vadd.f32 0.0, %v6399
      %v6401 = vpop.f32.mrf.mxu0
      %6402 = vmatprep.mubr.bf16.mxu0 0
      %6403 = vmatmul.mubr.bf16.gmra.mxu0 %v6303
      %v6404 = vpop.f32.mrf.mxu0
      %v6405 = vadd.f32 0.0, %v6404
      %v6406 = vpop.f32.mrf.mxu0
      %v6407 = vpop.f32.mrf.mxu0
      %v6408 = vadd.f32 0.0, %v6407
      %v6409 = vpop.f32.mrf.mxu0
      %6410 = vmatprep.mubr.bf16.mxu0 0
      %6411 = vmatmul.mubr.bf16.gmra.mxu0 %v6306
      %v6412 = vpop.f32.mrf.mxu0
      %v6413 = vadd.f32 0.0, %v6412
      %v6414 = vpop.f32.mrf.mxu0
      %v6415 = vpop.f32.mrf.mxu0
      %v6416 = vadd.f32 0.0, %v6415
      %v6417 = vpop.f32.mrf.mxu0
      %6418 = vmatprep.mubr.bf16.mxu0 0
      %6419 = vmatmul.mubr.bf16.gmra.mxu0 %v6309
      %v6420 = vpop.f32.mrf.mxu0
      %v6421 = vadd.f32 0.0, %v6420
      %v6422 = vpop.f32.mrf.mxu0
      %v6423 = vpop.f32.mrf.mxu0
      %v6424 = vadd.f32 0.0, %v6423
      %v6425 = vpop.f32.mrf.mxu0
      %6426 = vmatprep.mubr.bf16.mxu0 0
      %6427 = vmatmul.mubr.bf16.gmra.mxu0 %v6312
      %v6428 = vpop.f32.mrf.mxu0
      %v6429 = vadd.f32 0.0, %v6428
      %v6430 = vpop.f32.mrf.mxu0
      %v6431 = vpop.f32.mrf.mxu0
      %v6432 = vadd.f32 0.0, %v6431
      %v6433 = vpop.f32.mrf.mxu0
      %6434 = vmatprep.mubr.bf16.mxu0 0
      %6435 = vmatmul.mubr.bf16.gmra.mxu0 %v6315
      %v6436 = vpop.f32.mrf.mxu0
      %v6437 = vadd.f32 0.0, %v6436
      %v6438 = vpop.f32.mrf.mxu0
      %v6439 = vpop.f32.mrf.mxu0
      %v6440 = vadd.f32 0.0, %v6439
      %v6441 = vpop.f32.mrf.mxu0
      %6442 = vmatprep.mubr.bf16.mxu0 0
      %6443 = vmatmul.mubr.bf16.gmra.mxu0 %v6318
      %v6444 = vpop.f32.mrf.mxu0
      %v6445 = vadd.f32 0.0, %v6444
      %v6446 = vpop.f32.mrf.mxu0
      %v6447 = vpop.f32.mrf.mxu0
      %v6448 = vadd.f32 0.0, %v6447
      %v6449 = vpop.f32.mrf.mxu0
      %6450 = vmatprep.mubr.bf16.mxu0 0
      %6451 = vmatmul.mubr.bf16.gmra.mxu0 %v6321
      %v6452 = vpop.f32.mrf.mxu0
      %v6453 = vadd.f32 0.0, %v6452
      %v6454 = vpop.f32.mrf.mxu0
      %v6455 = vpop.f32.mrf.mxu0
      %v6456 = vadd.f32 0.0, %v6455
      %v6457 = vpop.f32.mrf.mxu0
      %6458 = vmatprep.mubr.bf16.mxu0 0
      %6459 = vmatmul.mubr.bf16.gmra.mxu0 %v6324
      %v6460 = vpop.f32.mrf.mxu0
      %v6461 = vadd.f32 0.0, %v6460
      %v6462 = vpop.f32.mrf.mxu0
      %v6463 = vpop.f32.mrf.mxu0
      %v6464 = vadd.f32 0.0, %v6463
      %v6465 = vpop.f32.mrf.mxu0
      %6466 = vmatprep.mubr.bf16.mxu0 0
      %6467 = vmatmul.mubr.bf16.gmra.mxu0 %v6327
      %v6468 = vpop.f32.mrf.mxu0
      %v6469 = vadd.f32 0.0, %v6468
      %v6470 = vpop.f32.mrf.mxu0
      %v6471 = vpop.f32.mrf.mxu0
      %v6472 = vadd.f32 0.0, %v6471
      %v6473 = vpop.f32.mrf.mxu0
      %6474 = vmatprep.mubr.bf16.mxu0 0
      %6475 = vmatmul.mubr.bf16.gmra.mxu0 %v6330
      %v6476 = vpop.f32.mrf.mxu0
      %v6477 = vadd.f32 0.0, %v6476
      %v6478 = vpop.f32.mrf.mxu0
      %v6479 = vpop.f32.mrf.mxu0
      %v6480 = vadd.f32 0.0, %v6479
      %v6481 = vpop.f32.mrf.mxu0
      %6482 = vmatprep.mubr.bf16.mxu0 0
      %6483 = vmatmul.mubr.bf16.gmra.mxu0 %v6333
      %v6484 = vpop.f32.mrf.mxu0
      %v6485 = vadd.f32 0.0, %v6484
      %v6486 = vpop.f32.mrf.mxu0
      %v6487 = vpop.f32.mrf.mxu0
      %v6488 = vadd.f32 0.0, %v6487
      %v6489 = vpop.f32.mrf.mxu0
      %6490 = vmatprep.mubr.bf16.mxu0 0
      %6491 = vmatmul.mubr.bf16.gmra.mxu0 %v6336
      %v6492 = vpop.f32.mrf.mxu0
      %v6493 = vadd.f32 0.0, %v6492
      %v6494 = vpop.f32.mrf.mxu0
      %v6495 = vpop.f32.mrf.mxu0
      %v6496 = vadd.f32 0.0, %v6495
      %v6497 = vpop.f32.mrf.mxu0
      %6498 = vdwg.mxu0
      %v6499 = vadd.f32 %v6169, %v6373
      %v6500 = vadd.f32 %v6170, %v6376
      %v6501 = vadd.f32 %v6171, %v6381
      %v6502 = vadd.f32 %v6172, %v6384
      %v6503 = vadd.f32 %v6173, %v6389
      %v6504 = vadd.f32 %v6174, %v6392
      %v6505 = vadd.f32 %v6175, %v6397
      %v6506 = vadd.f32 %v6176, %v6400
      %v6507 = vadd.f32 %v6177, %v6405
      %v6508 = vadd.f32 %v6178, %v6408
      %v6509 = vadd.f32 %v6179, %v6413
      %v6510 = vadd.f32 %v6180, %v6416
      %v6511 = vadd.f32 %v6181, %v6421
      %v6512 = vadd.f32 %v6182, %v6424
      %v6513 = vadd.f32 %v6183, %v6429
      %v6514 = vadd.f32 %v6184, %v6432
      %v6515 = vadd.f32 %v6185, %v6437
      %v6516 = vadd.f32 %v6186, %v6440
      %v6517 = vadd.f32 %v6187, %v6445
      %v6518 = vadd.f32 %v6188, %v6448
      %v6519 = vadd.f32 %v6189, %v6453
      %v6520 = vadd.f32 %v6190, %v6456
      %v6521 = vadd.f32 %v6191, %v6461
      %v6522 = vadd.f32 %v6192, %v6464
      %v6523 = vadd.f32 %v6193, %v6469
      %v6524 = vadd.f32 %v6194, %v6472
      %v6525 = vadd.f32 %v6195, %v6477
      %v6526 = vadd.f32 %v6196, %v6480
      %v6527 = vadd.f32 %v6197, %v6485
      %v6528 = vadd.f32 %v6198, %v6488
      %v6529 = vadd.f32 %v6199, %v6493
      %v6530 = vadd.f32 %v6200, %v6496
      %v6531 = vld [vmem:[%s4] sm:$0x1]
      %v6533 = vlaneseq
      %v6534 = vshrl.u32 %v6533, 7
      %v6535 = vsub.s32 0, %v6534
      %v6536 = vrot.slane %v6531, %v6535
      %v6538 = vadd.f32 %v6499, %v6536
      %v6539 = vadd.f32 %v6500, %v6536
      %v6540 = vadd.f32 %v6501, %v6536
      %v6541 = vadd.f32 %v6502, %v6536
      %v6542 = vadd.f32 %v6503, %v6536
      %v6543 = vadd.f32 %v6504, %v6536
      %v6544 = vadd.f32 %v6505, %v6536
      %v6545 = vadd.f32 %v6506, %v6536
      %v6546 = vadd.f32 %v6507, %v6536
      %v6547 = vadd.f32 %v6508, %v6536
      %v6548 = vadd.f32 %v6509, %v6536
      %v6549 = vadd.f32 %v6510, %v6536
      %v6550 = vadd.f32 %v6511, %v6536
      %v6551 = vadd.f32 %v6512, %v6536
      %v6552 = vadd.f32 %v6513, %v6536
      %v6553 = vadd.f32 %v6514, %v6536
      %v6554 = vadd.f32 %v6515, %v6536
      %v6555 = vadd.f32 %v6516, %v6536
      %v6556 = vadd.f32 %v6517, %v6536
      %v6557 = vadd.f32 %v6518, %v6536
      %v6558 = vadd.f32 %v6519, %v6536
      %v6559 = vadd.f32 %v6520, %v6536
      %v6560 = vadd.f32 %v6521, %v6536
      %v6561 = vadd.f32 %v6522, %v6536
      %v6562 = vadd.f32 %v6523, %v6536
      %v6563 = vadd.f32 %v6524, %v6536
      %v6564 = vadd.f32 %v6525, %v6536
      %v6565 = vadd.f32 %v6526, %v6536
      %v6566 = vadd.f32 %v6527, %v6536
      %v6567 = vadd.f32 %v6528, %v6536
      %v6568 = vadd.f32 %v6529, %v6536
      %v6569 = vadd.f32 %v6530, %v6536
      %v6570 = vmax.f32 %v6538, 0.0
      %v6571 = vmax.f32 %v6539, 0.0
      %v6572 = vmax.f32 %v6540, 0.0
      %v6573 = vmax.f32 %v6541, 0.0
      %v6574 = vmax.f32 %v6542, 0.0
      %v6575 = vmax.f32 %v6543, 0.0
      %v6576 = vmax.f32 %v6544, 0.0
      %v6577 = vmax.f32 %v6545, 0.0
      %v6578 = vmax.f32 %v6546, 0.0
      %v6579 = vmax.f32 %v6547, 0.0
      %v6580 = vmax.f32 %v6548, 0.0
      %v6581 = vmax.f32 %v6549, 0.0
      %v6582 = vmax.f32 %v6550, 0.0
      %v6583 = vmax.f32 %v6551, 0.0
      %v6584 = vmax.f32 %v6552, 0.0
      %v6585 = vmax.f32 %v6553, 0.0
      %v6586 = vmax.f32 %v6554, 0.0
      %v6587 = vmax.f32 %v6555, 0.0
      %v6588 = vmax.f32 %v6556, 0.0
      %v6589 = vmax.f32 %v6557, 0.0
      %v6590 = vmax.f32 %v6558, 0.0
      %v6591 = vmax.f32 %v6559, 0.0
      %v6592 = vmax.f32 %v6560, 0.0
      %v6593 = vmax.f32 %v6561, 0.0
      %v6594 = vmax.f32 %v6562, 0.0
      %v6595 = vmax.f32 %v6563, 0.0
      %v6596 = vmax.f32 %v6564, 0.0
      %v6597 = vmax.f32 %v6565, 0.0
      %v6598 = vmax.f32 %v6566, 0.0
      %v6599 = vmax.f32 %v6567, 0.0
      %v6600 = vmax.f32 %v6568, 0.0
      %v6601 = vmax.f32 %v6569, 0.0
      %6602 = vst.msk [vmem:[%s224] sm:$0xff] %vm3681, %v6570
      %6603 = vst.msk [vmem:[%s224 + $0x8] sm:$0xff] %vm3681, %v6571
      %6604 = vst.msk [vmem:[%s224 + $0x10] sm:$0xff] %vm3681, %v6572
      %6605 = vst.msk [vmem:[%s224 + $0x18] sm:$0xff] %vm3681, %v6573
      %6606 = vst.msk [vmem:[%s224 + $0x20] sm:$0xff] %vm3681, %v6574
      %6607 = vst.msk [vmem:[%s224 + $0x28] sm:$0xff] %vm3681, %v6575
      %6608 = vst.msk [vmem:[%s224 + $0x30] sm:$0xff] %vm3681, %v6576
      %6609 = vst.msk [vmem:[%s224 + $0x38] sm:$0xff] %vm3681, %v6577
      %6610 = vst.msk [vmem:[%s224 + $0x40] sm:$0xff] %vm3681, %v6578
      %6611 = vst.msk [vmem:[%s224 + $0x48] sm:$0xff] %vm3681, %v6579
      %6612 = vst.msk [vmem:[%s224 + $0x50] sm:$0xff] %vm3681, %v6580
      %6613 = vst.msk [vmem:[%s224 + $0x58] sm:$0xff] %vm3681, %v6581
      %6614 = vst.msk [vmem:[%s224 + $0x60] sm:$0xff] %vm3681, %v6582
      %6615 = vst.msk [vmem:[%s224 + $0x68] sm:$0xff] %vm3681, %v6583
      %6616 = vst.msk [vmem:[%s224 + $0x70] sm:$0xff] %vm3681, %v6584
      %6617 = vst.msk [vmem:[%s224 + $0x78] sm:$0xff] %vm3681, %v6585
      %6618 = vst.msk [vmem:[%s224 + $0x80] sm:$0xff] %vm3681, %v6586
      %6619 = vst.msk [vmem:[%s224 + $0x88] sm:$0xff] %vm3681, %v6587
      %6620 = vst.msk [vmem:[%s224 + $0x90] sm:$0xff] %vm3681, %v6588
      %6621 = vst.msk [vmem:[%s224 + $0x98] sm:$0xff] %vm3681, %v6589
      %6622 = vst.msk [vmem:[%s224 + $0xa0] sm:$0xff] %vm3681, %v6590
      %6623 = vst.msk [vmem:[%s224 + $0xa8] sm:$0xff] %vm3681, %v6591
      %6624 = vst.msk [vmem:[%s224 + $0xb0] sm:$0xff] %vm3681, %v6592
      %6625 = vst.msk [vmem:[%s224 + $0xb8] sm:$0xff] %vm3681, %v6593
      %6626 = vst.msk [vmem:[%s224 + $0xc0] sm:$0xff] %vm3681, %v6594
      %6627 = vst.msk [vmem:[%s224 + $0xc8] sm:$0xff] %vm3681, %v6595
      %6628 = vst.msk [vmem:[%s224 + $0xd0] sm:$0xff] %vm3681, %v6596
      %6629 = vst.msk [vmem:[%s224 + $0xd8] sm:$0xff] %vm3681, %v6597
      %6630 = vst.msk [vmem:[%s224 + $0xe0] sm:$0xff] %vm3681, %v6598
      %6631 = vst.msk [vmem:[%s224 + $0xe8] sm:$0xff] %vm3681, %v6599
      %6632 = vst.msk [vmem:[%s224 + $0xf0] sm:$0xff] %vm3681, %v6600
      %6633 = vst.msk [vmem:[%s224 + $0xf8] sm:$0xff] %vm3681, %v6601
      %p6634 = scmp.lt.s32.totalorder %s16, 1
      %s6635 = scalar_select %p6634, %s16, 1
      %s6636 = smul.addr %s6635, 32
      %s6637 = smul.addr %s6636, 8
      %s6638 = scalar_lea.vmem %s5, %s6637
      // Predicated region
      $region41: #{conv2d_block_forward.1} parent=39 // pred_check
        %p6639 = pneg %p144
      $region42: #{conv2d_block_forward.1} parent=39 // pred_check_branch
        %6641 = sbr.rel (%p6639) target = $region44
      $region43: #{conv2d_block_forward.1} parent=39 // pred_region
        _
      $region44: #{conv2d_block_forward.1} parent=39 // pred_fallthru
        _
    $region40: #{conv2d_block_forward.1} parent=5 // pred_fallthru
      _
    %p6642 = scmp.le.s32.totalorder 2, %s11
    // Predicated region
    $region45: #{conv2d_block_forward.1} parent=5 // pred_check
      %p6643 = pneg %p6642
    $region46: #{conv2d_block_forward.1} parent=5 // pred_check_branch
      %6645 = sbr.rel (%p6643) target = $region48
    $region47: #{conv2d_block_forward.1} parent=5 // pred_region
      %s6646 = ssub.s32 %s11, 2
      // Predicated region
      $region49: #{conv2d_block_forward.1} parent=47 // pred_check
        %p6647 = pneg %p150
      $region50: #{conv2d_block_forward.1} parent=47 // pred_check_branch
        %6649 = sbr.rel (%p6647) target = $region52
      $region51: #{conv2d_block_forward.1} parent=47 // pred_region
        %p6650 = scmp.lt.s32.totalorder %s17, 1
        %s6651 = scalar_select %p6650, %s17, 1
        %s6652 = smul.addr %s6651, 32
        %s6653 = smul.addr %s6652, 8
        %s6654 = scalar_lea.vmem %s5, %s6653
      $region52: #{conv2d_block_forward.1} parent=47 // pred_fallthru
        _
    $region48: #{conv2d_block_forward.1} parent=5 // pred_fallthru
      _
  $region6: #{conv2d_block_forward.1} parent=0 // loop_footer
    %s15 = sadd.s32 1, %s11
  $region7: #{conv2d_block_forward.1} parent=0 // loop_footer_branch
    %10 = sbr.rel target = $region3
  $region8: #{conv2d_block_forward.1} parent=0 // loop_exit
    _

</llo_original>
